<compile_context>
chip_gen: v7x
topology: tpu7x:2x2x1
jax: 0.10.0
libtpu: 0.0.40
codegen_flags: <defaults>
</compile_context>

<pallas_src>
import functools
import numpy as np

import jax
import jax.numpy as jnp
from jax.experimental import pallas as pl
from jax.experimental.pallas import tpu as pltpu

# ----------------------------- hyper-params ---------------------------------
IMG_SIZE = 16
PATCH_SIZE = 4
IN_CHANS = 3
EMBED_DIM = 32
DEPTHS = (2, 2)
NUM_HEADS = (2, 4)
WINDOW_SIZE = 2
MLP_RATIO = 4.0
NUM_CLASSES = (5, 3)          # self.num_classes is a list -> one 1x1 conv head each
HEAD_PAD = 128                # lane-dense padded output width for the conv heads
_SQRT1_2 = 0.7071067811865476
_NEG_INF = -1e9


# ----------------------------- in-kernel math helpers ------------------------

def _layernorm(x, g, b, eps=1e-5):
    """f32 LayerNorm with biased variance (matches PyTorch nn.LayerNorm)."""
    mu = jnp.mean(x, axis=-1, keepdims=True)
    xc = x - mu
    var = jnp.mean(xc * xc, axis=-1, keepdims=True)
    return xc * jax.lax.rsqrt(var + eps) * g + b


def _erf(x):
    # Abramowitz & Stegun 7.1.26 rational approximation (max abs err 1.5e-7):
    # keeps exact-GELU (erf) semantics of nn.GELU while lowering to exp on the EUP.
    p = 0.3275911
    a1, a2, a3, a4, a5 = (0.254829592, -0.284496736, 1.421413741,
                          -1.453152027, 1.061405429)
    ax = jnp.abs(x)
    t = 1.0 / (1.0 + p * ax)
    poly = ((((a5 * t + a4) * t + a3) * t + a2) * t + a1) * t
    y = 1.0 - poly * jnp.exp(-(ax * ax))
    return jnp.where(x >= 0, y, -y)


def _gelu(x):
    return 0.5 * x * (1.0 + _erf(x * _SQRT1_2))


def _bf16(x):
    return x.astype(jnp.bfloat16)


def _dot(a, b):
    """bf16 x bf16 MXU matmul with f32 accumulation."""
    return jnp.dot(_bf16(a), _bf16(b), preferred_element_type=jnp.float32)


def _dot_t(a, b):
    """a (M, d) . b (N, d)^T -> (M, N), contraction on last dims (no transpose op)."""
    return jax.lax.dot_general(_bf16(a), _bf16(b), (((1,), (1,)), ((), ())),
                               preferred_element_type=jnp.float32)


# ----------------------------- Pallas kernels --------------------------------

def _swin_block_kernel(x_ref, qkv_w_ref, qkv_b_ref, g1_ref, b1_ref,
                       proj_w_ref, proj_b_ref, bias_ref,
                       g2_ref, b2_ref, fc1_w_ref, fc1_b_ref,
                       fc2_w_ref, fc2_b_ref, o_ref, *, heads, scale):
    """One fused SwinTransformerBlock.

    x block rows are (image, window, token-in-window) ordered tokens; lanes = C.
    bias = (heads, Mb, Mb) block-diagonal: rel-pos (+ shift mask) inside each
    window, -1e9 across windows -> attention is exactly per-window but every
    score matmul is a single dense 2-D MXU op.
    """
    x = x_ref[...]                                      # (Mb, C) f32
    Mb, C = x.shape
    d = C // heads

    # ---- LayerNorm1 (f32) + fused QKV projection (bf16 MXU, f32 acc) ----
    xn = _layernorm(x, g1_ref[...], b1_ref[...])
    qkv = _dot(xn, qkv_w_ref[...]) + qkv_b_ref[...]     # (Mb, 3C)
    q = qkv[:, :C] * scale
    k = qkv[:, C:2 * C]
    v = qkv[:, 2 * C:]

    # ---- per-head masked attention; fold head output into proj_w slices ----
    proj = jnp.zeros((Mb, C), jnp.float32)
    for h in range(heads):                              # static unroll (2 or 4 heads)
        qh = q[:, h * d:(h + 1) * d]
        kh = k[:, h * d:(h + 1) * d]
        vh = v[:, h * d:(h + 1) * d]
        s = _dot_t(qh, kh) + bias_ref[h]                # (Mb, Mb) f32
        s = s - jnp.max(s, axis=-1, keepdims=True)
        e = jnp.exp(s)
        p = e * pl.reciprocal(jnp.sum(e, axis=-1, keepdims=True), approx=True)
        oh = _dot(p, vh)                                # (Mb, d)
        # concat(heads) @ proj_w == sum_h oh @ proj_w[h*d:(h+1)*d]
        proj = proj + _dot(oh, proj_w_ref[h * d:(h + 1) * d, :])
    x1 = x + proj + proj_b_ref[...]

    # ---- LayerNorm2 + fc1 + exact(erf) GELU + fc2 + residual ----
    xn2 = _layernorm(x1, g2_ref[...], b2_ref[...])
    hdn = _dot(xn2, fc1_w_ref[...]) + fc1_b_ref[...]    # (Mb, 4C) stays in VMEM
    hdn = _gelu(hdn)
    y = _dot(hdn, fc2_w_ref[...]) + fc2_b_ref[...]
    o_ref[...] = x1 + y


def _linear_bias_ln_kernel(x_ref, w_ref, b_ref, g_ref, bln_ref, o_ref):
    """PatchEmbed: conv-as-matmul + bias + LayerNorm, fused."""
    y = _dot(x_ref[...], w_ref[...]) + b_ref[...]
    o_ref[...] = _layernorm(y, g_ref[...], bln_ref[...])


def _ln_linear_kernel(x_ref, g_ref, b_ref, w_ref, o_ref):
    """PatchMerging: LayerNorm(4C) + bias-free reduction Linear, fused."""
    xn = _layernorm(x_ref[...], g_ref[...], b_ref[...])
    o_ref[...] = _dot(xn, w_ref[...])


def _ln_expand_kernel(x_ref, g_ref, b_ref, w_ref, g2_ref, b2_ref, o_ref, *, chunk):
    """PatchExpand / FinalExpand: pre-LN + bias-free expand Linear + per-chunk LN.
    Per-chunk LN before the pixel shuffle == LN after it (chunks are contiguous)."""
    xn = _layernorm(x_ref[...], g_ref[...], b_ref[...])
    y = _dot(xn, w_ref[...])
    g2 = g2_ref[...]
    b2 = b2_ref[...]
    n_chunks = y.shape[1] // chunk
    parts = [_layernorm(y[:, j * chunk:(j + 1) * chunk], g2, b2)
             for j in range(n_chunks)]
    o_ref[...] = jnp.concatenate(parts, axis=-1)        # single lane-dense store


def _concat_linear_kernel(a_ref, s_ref, w_ref, b_ref, o_ref):
    """Skip connection: concat([a, skip]) @ W + b == a @ W[:C] + skip @ W[C:]."""
    C = a_ref.shape[1]
    w = w_ref[...]
    o = _dot(a_ref[...], w[:C]) + _dot(s_ref[...], w[C:])
    o_ref[...] = o + b_ref[...]


def _linear_nobias_kernel(x_ref, w_ref, o_ref):
    """1x1 conv head on a 128-lane zero-padded weight (lane-dense stores)."""
    o_ref[...] = _dot(x_ref[...], w_ref[...])


# ----------------------------- pallas_call wrappers ---------------------------

_PAR = pltpu.CompilerParams(dimension_semantics=("parallel",))


def _row_block(M, target=512):
    """Largest row block <= target that evenly divides M (8-aligned if < M)."""
    if M <= target:
        return M
    for b in range(target, 0, -1):
        if M % b == 0 and b % 8 == 0:
            return b
    return M


def swin_block_call(xw, p, bias, Mb, heads, scale):
    M, C = xw.shape
    Hd = p['fc1_w'].shape[1]
    kern = functools.partial(_swin_block_kernel, heads=heads, scale=scale)
    return pl.pallas_call(
        kern,
        out_shape=jax.ShapeDtypeStruct((M, C), jnp.float32),
        grid=(M // Mb,),
        in_specs=[
            pl.BlockSpec((Mb, C), lambda i: (i, 0)),            # x (LN src + residual)
            pl.BlockSpec((C, 3 * C), lambda i: (0, 0)),         # qkv_w (bf16)
            pl.BlockSpec((1, 3 * C), lambda i: (0, 0)),         # qkv_b
            pl.BlockSpec((1, C), lambda i: (0, 0)),             # norm1 gamma
            pl.BlockSpec((1, C), lambda i: (0, 0)),             # norm1 beta
            pl.BlockSpec((C, C), lambda i: (0, 0)),             # proj_w (bf16)
            pl.BlockSpec((1, C), lambda i: (0, 0)),             # proj_b
            pl.BlockSpec((heads, Mb, Mb), lambda i: (0, 0, 0)),  # block-diag attn bias
            pl.BlockSpec((1, C), lambda i: (0, 0)),             # norm2 gamma
            pl.BlockSpec((1, C), lambda i: (0, 0)),             # norm2 beta
            pl.BlockSpec((C, Hd), lambda i: (0, 0)),            # fc1_w (bf16)
            pl.BlockSpec((1, Hd), lambda i: (0, 0)),            # fc1_b
            pl.BlockSpec((Hd, C), lambda i: (0, 0)),            # fc2_w (bf16)
            pl.BlockSpec((1, C), lambda i: (0, 0)),             # fc2_b
        ],
        out_specs=pl.BlockSpec((Mb, C), lambda i: (i, 0)),
        compiler_params=_PAR,
    )(xw, p['qkv_w'], p['qkv_b'], p['norm1_g'], p['norm1_b'],
      p['proj_w'], p['proj_b'], bias,
      p['norm2_g'], p['norm2_b'], p['fc1_w'], p['fc1_b'],
      p['fc2_w'], p['fc2_b'])


def patch_embed_call(patches, pe):
    M, K = patches.shape
    C = pe['proj_w'].shape[1]
    bm = _row_block(M)
    return pl.pallas_call(
        _linear_bias_ln_kernel,
        out_shape=jax.ShapeDtypeStruct((M, C), jnp.float32),
        grid=(M // bm,),
        in_specs=[
            pl.BlockSpec((bm, K), lambda i: (i, 0)),
            pl.BlockSpec((K, C), lambda i: (0, 0)),
            pl.BlockSpec((1, C), lambda i: (0, 0)),
            pl.BlockSpec((1, C), lambda i: (0, 0)),
            pl.BlockSpec((1, C), lambda i: (0, 0)),
        ],
        out_specs=pl.BlockSpec((bm, C), lambda i: (i, 0)),
        compiler_params=_PAR,
    )(patches, pe['proj_w'], pe['proj_b'], pe['norm_g'], pe['norm_b'])


def patch_merging_call(x, p, H, W):
    B, L, C = x.shape
    xi = x.reshape(B, H, W, C)
    xc = jnp.concatenate([xi[:, 0::2, 0::2], xi[:, 1::2, 0::2],
                          xi[:, 0::2, 1::2], xi[:, 1::2, 1::2]], axis=-1)
    M = B * (H // 2) * (W // 2)
    xc = xc.reshape(M, 4 * C)
    bm = _row_block(M)
    y = pl.pallas_call(
        _ln_linear_kernel,
        out_shape=jax.ShapeDtypeStruct((M, 2 * C), jnp.float32),
        grid=(M // bm,),
        in_specs=[
            pl.BlockSpec((bm, 4 * C), lambda i: (i, 0)),
            pl.BlockSpec((1, 4 * C), lambda i: (0, 0)),
            pl.BlockSpec((1, 4 * C), lambda i: (0, 0)),
            pl.BlockSpec((4 * C, 2 * C), lambda i: (0, 0)),
        ],
        out_specs=pl.BlockSpec((bm, 2 * C), lambda i: (i, 0)),
        compiler_params=_PAR,
    )(xc, p['norm_g'], p['norm_b'], p['red_w'])
    return y.reshape(B, (H // 2) * (W // 2), 2 * C)


def patch_expand_call(x, pre_g, pre_b, p, H, W, up):
    """pre-LN + expand Linear + per-chunk LN in one kernel; pixel shuffle in XLA."""
    B, L, C = x.shape
    w = p['expand_w']                         # (C, up*up*c) bf16
    out_dim = w.shape[1]
    c = out_dim // (up * up)
    M = B * L
    bm = _row_block(M)
    kern = functools.partial(_ln_expand_kernel, chunk=c)
    y = pl.pallas_call(
        kern,
        out_shape=jax.ShapeDtypeStruct((M, out_dim), jnp.float32),
        grid=(M // bm,),
        in_specs=[
            pl.BlockSpec((bm, C), lambda i: (i, 0)),
            pl.BlockSpec((1, C), lambda i: (0, 0)),
            pl.BlockSpec((1, C), lambda i: (0, 0)),
            pl.BlockSpec((C, out_dim), lambda i: (0, 0)),
            pl.BlockSpec((1, c), lambda i: (0, 0)),
            pl.BlockSpec((1, c), lambda i: (0, 0)),
        ],
        out_specs=pl.BlockSpec((bm, out_dim), lambda i: (i, 0)),
        compiler_params=_PAR,
    )(x.reshape(M, C), pre_g, pre_b, w, p['norm_g'], p['norm_b'])
    # pixel shuffle: pure layout, no compute
    y = y.reshape(B, H, W, up, up, c).transpose(0, 1, 3, 2, 4, 5)
    return y.reshape(B, up * H * up * W, c)


def concat_linear_call(a, skip, w, b):
    B, L, C = a.shape
    M = B * L
    bm = _row_block(M)
    y = pl.pallas_call(
        _concat_linear_kernel,
        out_shape=jax.ShapeDtypeStruct((M, C), jnp.float32),
        grid=(M // bm,),
        in_specs=[
            pl.BlockSpec((bm, C), lambda i: (i, 0)),
            pl.BlockSpec((bm, C), lambda i: (i, 0)),
            pl.BlockSpec((2 * C, C), lambda i: (0, 0)),
            pl.BlockSpec((1, C), lambda i: (0, 0)),
        ],
        out_specs=pl.BlockSpec((bm, C), lambda i: (i, 0)),
        compiler_params=_PAR,
    )(a.reshape(M, C), skip.reshape(M, C), w, b)
    return y.reshape(B, L, C)


def head_call(x2d, w_padded):
    M, C = x2d.shape
    Np = w_padded.shape[1]                    # 128 (lane-dense)
    bm = _row_block(M)
    return pl.pallas_call(
        _linear_nobias_kernel,
        out_shape=jax.ShapeDtypeStruct((M, Np), jnp.float32),
        grid=(M // bm,),
        in_specs=[
            pl.BlockSpec((bm, C), lambda i: (i, 0)),
            pl.BlockSpec((C, Np), lambda i: (0, 0)),
        ],
        out_specs=pl.BlockSpec((bm, Np), lambda i: (i, 0)),
        compiler_params=_PAR,
    )(x2d, w_padded)


# ----------------------------- static tables --------------------------------

def _relative_position_index(ws):
    coords = np.stack(np.meshgrid(np.arange(ws), np.arange(ws), indexing='ij'))
    cf = coords.reshape(2, -1)
    rc = (cf[:, :, None] - cf[:, None, :]).transpose(1, 2, 0).astype(np.int64)
    rc[:, :, 0] += ws - 1
    rc[:, :, 1] += ws - 1
    rc[:, :, 0] *= 2 * ws - 1
    return rc.sum(-1)                        # (N, N) numpy


def _shift_attn_mask(H, W, ws, shift):
    img_mask = np.zeros((1, H, W, 1), np.float32)
    slices = (slice(0, -ws), slice(-ws, -shift), slice(-shift, None))
    cnt = 0
    for hs in slices:
        for wss in slices:
            img_mask[:, hs, wss, :] = cnt
            cnt += 1
    mw = img_mask.reshape(1, H // ws, ws, W // ws, ws, 1)
    mw = mw.transpose(0, 1, 3, 2, 4, 5).reshape(-1, ws * ws)
    am = mw[:, None, :] - mw[:, :, None]
    return np.where(am != 0, -100.0, 0.0).astype(np.float32)   # (nW, N, N) numpy


@functools.lru_cache(maxsize=None)
def _window_perm_np(H, W, ws, shift):
    """cyclic shift + window partition folded into a single token permutation."""
    idx = np.arange(H * W).reshape(H, W)
    if shift > 0:
        idx = np.roll(idx, (-shift, -shift), axis=(0, 1))
    perm = idx.reshape(H // ws, ws, W // ws, ws).transpose(0, 2, 1, 3).reshape(-1)
    inv = np.argsort(perm)
    return perm, inv


REL_INDEX = _relative_position_index(WINDOW_SIZE)
_HP = IMG_SIZE // PATCH_SIZE
ATTN_MASK_L0 = _shift_attn_mask(_HP, _HP, WINDOW_SIZE, WINDOW_SIZE // 2)


def _block_bias(rel_table, mask, nW, N, heads, bb):
    """Block-diagonal attention bias (heads, Mb, Mb): rel-pos (+ shift mask)
    inside each window, -1e9 across windows.  Tiny operand, built once per call."""
    rel = jnp.take(rel_table, jnp.asarray(REL_INDEX.reshape(-1)), axis=0)
    rel = rel.reshape(N, N, heads).transpose(2, 0, 1)               # (heads, N, N)
    if mask is not None:
        per_win = rel[None] + jnp.asarray(mask)[:, None]            # (nW, heads, N, N)
    else:
        per_win = jnp.broadcast_to(rel[None], (nW, heads, N, N))
    Li = nW * N
    img = jnp.full((heads, Li, Li), _NEG_INF, jnp.float32)
    for w in range(nW):
        img = img.at[:, w * N:(w + 1) * N, w * N:(w + 1) * N].set(per_win[w])
    Mb = bb * Li
    full = jnp.full((heads, Mb, Mb), _NEG_INF, jnp.float32)
    for b in range(bb):
        full = full.at[:, b * Li:(b + 1) * Li, b * Li:(b + 1) * Li].set(img)
    return full


# ----------------------------- parameter init -------------------------------

def _tn(key, shape, std=0.02):
    return std * jax.random.normal(key, shape, jnp.float32)


def init_params(key):
    keys = iter(jax.random.split(key, 256))
    nxt = lambda: next(keys)
    f32, bf16 = jnp.float32, jnp.bfloat16
    ones2 = lambda d: jnp.ones((1, d), f32)
    zeros2 = lambda d: jnp.zeros((1, d), f32)

    def block(dim, heads):
        hidden = int(dim * MLP_RATIO)
        return dict(
            norm1_g=ones2(dim), norm1_b=zeros2(dim),
            qkv_w=_tn(nxt(), (dim, 3 * dim)).astype(bf16), qkv_b=zeros2(3 * dim),
            rel_table=_tn(nxt(), ((2 * WINDOW_SIZE - 1) ** 2, heads)),
            proj_w=_tn(nxt(), (dim, dim)).astype(bf16), proj_b=zeros2(dim),
            norm2_g=ones2(dim), norm2_b=zeros2(dim),
            fc1_w=_tn(nxt(), (dim, hidden)).astype(bf16), fc1_b=zeros2(hidden),
            fc2_w=_tn(nxt(), (hidden, dim)).astype(bf16), fc2_b=zeros2(dim),
        )

    p = {}
    K = IN_CHANS * PATCH_SIZE * PATCH_SIZE
    w_conv = _tn(nxt(), (EMBED_DIM, IN_CHANS, PATCH_SIZE, PATCH_SIZE))
    p['patch_embed'] = dict(
        proj_w=w_conv.reshape(EMBED_DIM, K).T.astype(bf16),   # im2col layout (K, C)
        proj_b=zeros2(EMBED_DIM),
        norm_g=ones2(EMBED_DIM), norm_b=zeros2(EMBED_DIM),
    )
    p['layer0_blocks'] = [block(EMBED_DIM, NUM_HEADS[0]) for _ in range(DEPTHS[0])]
    p['layer0_down'] = dict(
        norm_g=ones2(4 * EMBED_DIM), norm_b=zeros2(4 * EMBED_DIM),
        red_w=_tn(nxt(), (4 * EMBED_DIM, 2 * EMBED_DIM)).astype(bf16),   # bias=False
    )
    p['layer1_blocks'] = [block(2 * EMBED_DIM, NUM_HEADS[1]) for _ in range(DEPTHS[1])]
    p['norm_g'] = ones2(2 * EMBED_DIM)
    p['norm_b'] = zeros2(2 * EMBED_DIM)
    p['up0'] = dict(                                                     # PatchExpand
        expand_w=_tn(nxt(), (2 * EMBED_DIM, 4 * EMBED_DIM)).astype(bf16),  # bias=False
        norm_g=ones2(EMBED_DIM), norm_b=zeros2(EMBED_DIM),
    )
    p['concat1_w'] = _tn(nxt(), (2 * EMBED_DIM, EMBED_DIM)).astype(bf16)
    p['concat1_b'] = zeros2(EMBED_DIM)
    p['layer_up1_blocks'] = [block(EMBED_DIM, NUM_HEADS[0]) for _ in range(DEPTHS[0])]
    p['norm_up_g'] = ones2(EMBED_DIM)
    p['norm_up_b'] = zeros2(EMBED_DIM)
    p['final_up'] = dict(                                          # FinalPatchExpand_X4
        expand_w=_tn(nxt(), (EMBED_DIM, 16 * EMBED_DIM)).astype(bf16),     # bias=False
        norm_g=ones2(EMBED_DIM), norm_b=zeros2(EMBED_DIM),
    )
    # per-task 1x1 conv heads (bias=False), zero-padded to 128 output lanes
    p['output'] = []
    for nc in NUM_CLASSES:
        w = _tn(nxt(), (EMBED_DIM, nc))
        wp = jnp.zeros((EMBED_DIM, HEAD_PAD), f32).at[:, :nc].set(w)
        p['output'].append(wp.astype(bf16))
    return p


# ----------------------------- model pieces ---------------------------------

def swin_block(x, p, H, W, heads, ws, shift, attn_mask):
    """One SwinTransformerBlock = 1 fused pallas_call + 1 token gather each way."""
    B, L, C = x.shape
    N = ws * ws
    nW = (H // ws) * (W // ws)
    perm, inv = _window_perm_np(H, W, ws, shift)
    xw = x[:, perm, :].reshape(B * L, C)                 # shift + window partition

    # whole images per grid step (keeps the masked-score matmul small)
    bb = min(B, max(1, 256 // L))
    while B % bb:
        bb -= 1
    if (bb * L) % 8 != 0 and bb != B:
        bb = B                                           # keep sublane alignment
    Mb = bb * L
    bias = _block_bias(p['rel_table'], attn_mask, nW, N, heads, bb)
    yw = swin_block_call(xw, p, bias, Mb, heads, (C // heads) ** -0.5)
    return yw.reshape(B, L, C)[:, inv, :]                # window reverse + un-shift


def swin_unet_forward(params, x, predict_head):
    # x: (B, C_in, H, W) NCHW, matching the PyTorch module
    if x.shape[1] == 1:
        x = jnp.repeat(x, 3, axis=1)
    B, Cin, H, W = x.shape
    ps = PATCH_SIZE
    Hp, Wp = H // ps, W // ps

    # ---- PatchEmbed: im2col (layout only) + fused conv-matmul + bias + LN ----
    patches = x.reshape(B, Cin, Hp, ps, Wp, ps).transpose(0, 2, 4, 1, 3, 5)
    patches = patches.reshape(B * Hp * Wp, Cin * ps * ps)
    tok = patch_embed_call(patches, params['patch_embed'])
    xx = tok.reshape(B, Hp * Wp, EMBED_DIM)

    # ---- encoder (forward_features) ----
    x_skip = xx                                              # skip for the decoder
    for i, bp in enumerate(params['layer0_blocks']):
        shift = 0 if i % 2 == 0 else WINDOW_SIZE // 2
        xx = swin_block(xx, bp, Hp, Wp, NUM_HEADS[0], WINDOW_SIZE, shift,
                        ATTN_MASK_L0 if shift > 0 else None)
    xx = patch_merging_call(xx, params['layer0_down'], Hp, Wp)

    H1, W1 = Hp // 2, Wp // 2
    ws1 = min(WINDOW_SIZE, H1, W1)      # Swin clamps window to resolution, shift -> 0
    for bp in params['layer1_blocks']:
        xx = swin_block(xx, bp, H1, W1, NUM_HEADS[1], ws1, 0, None)

    # ---- decoder (forward_up_features); bottleneck norm fused into PatchExpand ----
    xx = patch_expand_call(xx, params['norm_g'], params['norm_b'],
                           params['up0'], H1, W1, up=2)      # (B, Hp*Wp, EMBED_DIM)
    xx = concat_linear_call(xx, x_skip, params['concat1_w'], params['concat1_b'])
    for i, bp in enumerate(params['layer_up1_blocks']):
        shift = 0 if i % 2 == 0 else WINDOW_SIZE // 2
        xx = swin_block(xx, bp, Hp, Wp, NUM_HEADS[0], WINDOW_SIZE, shift,
                        ATTN_MASK_L0 if shift > 0 else None)

    # ---- up_x4 (norm_up fused in) + per-task 1x1 conv head (predict_head) ----
    xx = patch_expand_call(xx, params['norm_up_g'], params['norm_up_b'],
                           params['final_up'], Hp, Wp, up=4)  # (B, 16HpWp, EMBED_DIM)
    Hf, Wf = 4 * Hp, 4 * Wp
    nc = NUM_CLASSES[predict_head]
    logits = head_call(xx.reshape(B * Hf * Wf, EMBED_DIM),
                       params['output'][predict_head])[:, :nc]
    # module returns NCHW logits (tiny transpose kept in the wrapper for semantics)
    return logits.reshape(B, Hf, Wf, nc).transpose(0, 3, 1, 2)


# ----------------------------------- main ------------------------------------

if __name__ == "__main__":
    key = jax.random.PRNGKey(0)
    pkey, xkey = jax.random.split(key)
    params = init_params(pkey)
    # Single-channel input exercises the x.repeat(1, 3, 1, 1) branch.
    x = jax.random.normal(xkey, (2, 1, IMG_SIZE, IMG_SIZE), jnp.float32)
    fwd = jax.jit(swin_unet_forward, static_argnums=2)
    logits = fwd(params, x, 0)
    jax.block_until_ready(logits)
    assert logits.shape == (2, NUM_CLASSES[0], IMG_SIZE, IMG_SIZE), logits.shape
    # TODO(synk): SwinTransformerSys source not provided; canonical Swin-Unet
    # forward with ModuleList output heads indexed by predict_head is assumed.
    print("KERNEL_OK")
</pallas_src>

<mosaic_0001>
module attributes {stable_mosaic.version = 11 : i64} {
  func.func @_linear_bias_ln_kernel(%arg0: i32, %arg1: memref<32x48xf32, #tpu.memory_space<vmem>>, %arg2: memref<48x32xbf16, #tpu.memory_space<vmem>>, %arg3: memref<1x32xf32, #tpu.memory_space<vmem>>, %arg4: memref<1x32xf32, #tpu.memory_space<vmem>>, %arg5: memref<1x32xf32, #tpu.memory_space<vmem>>, %arg6: memref<32x32xf32, #tpu.memory_space<vmem>>) attributes {dimension_semantics = [#tpu.dimension_semantics<parallel>], iteration_bounds = array<i64: 1>, scalar_prefetch = 0 : i64, scratch_operands = 0 : i64, tpu.core_type = #tpu.core_type<tc>, window_params = [{transform_indices = @transform_0, window_bounds = array<i64: 32, 48>}, {pipeline_mode = #tpu.pipeline_mode<synchronous>, transform_indices = @transform_1, window_bounds = array<i64: 48, 32>}, {pipeline_mode = #tpu.pipeline_mode<synchronous>, transform_indices = @transform_2, window_bounds = array<i64: 1, 32>}, {pipeline_mode = #tpu.pipeline_mode<synchronous>, transform_indices = @transform_3, window_bounds = array<i64: 1, 32>}, {pipeline_mode = #tpu.pipeline_mode<synchronous>, transform_indices = @transform_4, window_bounds = array<i64: 1, 32>}, {transform_indices = @transform_5, window_bounds = array<i64: 32, 32>}]} {
    %c0 = arith.constant 0 : index
    %c0_0 = arith.constant 0 : index
    %0 = vector.load %arg1[%c0, %c0_0] : memref<32x48xf32, #tpu.memory_space<vmem>>, vector<32x48xf32>
    %c0_1 = arith.constant 0 : index
    %c0_2 = arith.constant 0 : index
    %1 = vector.load %arg2[%c0_1, %c0_2] : memref<48x32xbf16, #tpu.memory_space<vmem>>, vector<48x32xbf16>
    %2 = arith.truncf %0 : vector<32x48xf32> to vector<32x48xbf16>
    %cst = arith.constant dense<0.000000e+00> : vector<32x32xf32>
    %3 = tpu.matmul %2, %1, %cst {dimension_numbers = #tpu.dot_dimension_numbers<[1], [0], [0], [1], [0, 0, 1, 1], [], []>} : vector<32x48xbf16>, vector<48x32xbf16>, vector<32x32xf32> -> vector<32x32xf32>
    %c0_3 = arith.constant 0 : index
    %c0_4 = arith.constant 0 : index
    %4 = vector.load %arg3[%c0_3, %c0_4] : memref<1x32xf32, #tpu.memory_space<vmem>>, vector<1x32xf32>
    %5 = vector.broadcast %4 : vector<1x32xf32> to vector<32x32xf32>
    %6 = arith.addf %3, %5 : vector<32x32xf32>
    %c0_5 = arith.constant 0 : index
    %c0_6 = arith.constant 0 : index
    %7 = vector.load %arg4[%c0_5, %c0_6] : memref<1x32xf32, #tpu.memory_space<vmem>>, vector<1x32xf32>
    %c0_7 = arith.constant 0 : index
    %c0_8 = arith.constant 0 : index
    %8 = vector.load %arg5[%c0_7, %c0_8] : memref<1x32xf32, #tpu.memory_space<vmem>>, vector<1x32xf32>
    %cst_9 = arith.constant dense<0.000000e+00> : vector<32xf32>
    %9 = vector.multi_reduction <add>, %6, %cst_9 [1] : vector<32x32xf32> to vector<32xf32>
    %10 = vector.shape_cast %9 : vector<32xf32> to vector<32x1xf32>
    %cst_10 = arith.constant 3.200000e+01 : f32
    %11 = vector.broadcast %cst_10 : f32 to vector<32x1xf32>
    %12 = arith.divf %10, %11 : vector<32x1xf32>
    %13 = vector.broadcast %12 : vector<32x1xf32> to vector<32x32xf32>
    %14 = arith.subf %6, %13 : vector<32x32xf32>
    %15 = arith.mulf %14, %14 : vector<32x32xf32>
    %cst_11 = arith.constant dense<0.000000e+00> : vector<32xf32>
    %16 = vector.multi_reduction <add>, %15, %cst_11 [1] : vector<32x32xf32> to vector<32xf32>
    %17 = vector.shape_cast %16 : vector<32xf32> to vector<32x1xf32>
    %cst_12 = arith.constant 3.200000e+01 : f32
    %18 = vector.broadcast %cst_12 : f32 to vector<32x1xf32>
    %19 = arith.divf %17, %18 : vector<32x1xf32>
    %cst_13 = arith.constant 9.99999974E-6 : f32
    %20 = vector.broadcast %cst_13 : f32 to vector<32x1xf32>
    %21 = arith.addf %19, %20 : vector<32x1xf32>
    %22 = math.rsqrt %21 : vector<32x1xf32>
    %23 = vector.broadcast %22 : vector<32x1xf32> to vector<32x32xf32>
    %24 = arith.mulf %14, %23 : vector<32x32xf32>
    %25 = vector.broadcast %7 : vector<1x32xf32> to vector<32x32xf32>
    %26 = arith.mulf %24, %25 : vector<32x32xf32>
    %27 = vector.broadcast %8 : vector<1x32xf32> to vector<32x32xf32>
    %28 = arith.addf %26, %27 : vector<32x32xf32>
    %c0_14 = arith.constant 0 : index
    %c0_15 = arith.constant 0 : index
    %29 = vector.load %arg6[%c0_14, %c0_15] : memref<32x32xf32, #tpu.memory_space<vmem>>, vector<32x32xf32>
    tpu.vector_store %arg6[%c0_14, %c0_15], %28 {strides = array<i32>} : memref<32x32xf32, #tpu.memory_space<vmem>>, vector<32x32xf32>,
    return
  }
  func.func @transform_0(%arg0: i32) -> (i32, i32) {
    %c0_i32 = arith.constant 0 : i32
    %c0_i32_0 = arith.constant 0 : i32
    return %arg0, %c0_i32 : i32, i32
  }
  func.func @transform_1(%arg0: i32) -> (i32, i32) {
    %c0_i32 = arith.constant 0 : i32
    %c0_i32_0 = arith.constant 0 : i32
    %c0_i32_1 = arith.constant 0 : i32
    return %c0_i32, %c0_i32_0 : i32, i32
  }
  func.func @transform_2(%arg0: i32) -> (i32, i32) {
    %c0_i32 = arith.constant 0 : i32
    %c0_i32_0 = arith.constant 0 : i32
    %c0_i32_1 = arith.constant 0 : i32
    return %c0_i32, %c0_i32_0 : i32, i32
  }
  func.func @transform_3(%arg0: i32) -> (i32, i32) {
    %c0_i32 = arith.constant 0 : i32
    %c0_i32_0 = arith.constant 0 : i32
    %c0_i32_1 = arith.constant 0 : i32
    return %c0_i32, %c0_i32_0 : i32, i32
  }
  func.func @transform_4(%arg0: i32) -> (i32, i32) {
    %c0_i32 = arith.constant 0 : i32
    %c0_i32_0 = arith.constant 0 : i32
    %c0_i32_1 = arith.constant 0 : i32
    return %c0_i32, %c0_i32_0 : i32, i32
  }
  func.func @transform_5(%arg0: i32) -> (i32, i32) {
    %c0_i32 = arith.constant 0 : i32
    %c0_i32_0 = arith.constant 0 : i32
    return %arg0, %c0_i32 : i32, i32
  }
}

module attributes {stable_mosaic.version = 11 : i64} {
  func.func @_swin_block_kernel(%arg0: i32, %arg1: memref<32x32xf32, #tpu.memory_space<vmem>>, %arg2: memref<32x96xbf16, #tpu.memory_space<vmem>>, %arg3: memref<1x96xf32, #tpu.memory_space<vmem>>, %arg4: memref<1x32xf32, #tpu.memory_space<vmem>>, %arg5: memref<1x32xf32, #tpu.memory_space<vmem>>, %arg6: memref<32x32xbf16, #tpu.memory_space<vmem>>, %arg7: memref<1x32xf32, #tpu.memory_space<vmem>>, %arg8: memref<2x32x32xf32, #tpu.memory_space<vmem>>, %arg9: memref<1x32xf32, #tpu.memory_space<vmem>>, %arg10: memref<1x32xf32, #tpu.memory_space<vmem>>, %arg11: memref<32x128xbf16, #tpu.memory_space<vmem>>, %arg12: memref<1x128xf32, #tpu.memory_space<vmem>>, %arg13: memref<128x32xbf16, #tpu.memory_space<vmem>>, %arg14: memref<1x32xf32, #tpu.memory_space<vmem>>, %arg15: memref<32x32xf32, #tpu.memory_space<vmem>>) attributes {dimension_semantics = [#tpu.dimension_semantics<parallel>], iteration_bounds = array<i64: 1>, scalar_prefetch = 0 : i64, scratch_operands = 0 : i64, tpu.core_type = #tpu.core_type<tc>, window_params = [{transform_indices = @transform_0, window_bounds = array<i64: 32, 32>}, {pipeline_mode = #tpu.pipeline_mode<synchronous>, transform_indices = @transform_1, window_bounds = array<i64: 32, 96>}, {pipeline_mode = #tpu.pipeline_mode<synchronous>, transform_indices = @transform_2, window_bounds = array<i64: 1, 96>}, {pipeline_mode = #tpu.pipeline_mode<synchronous>, transform_indices = @transform_3, window_bounds = array<i64: 1, 32>}, {pipeline_mode = #tpu.pipeline_mode<synchronous>, transform_indices = @transform_4, window_bounds = array<i64: 1, 32>}, {pipeline_mode = #tpu.pipeline_mode<synchronous>, transform_indices = @transform_5, window_bounds = array<i64: 32, 32>}, {pipeline_mode = #tpu.pipeline_mode<synchronous>, transform_indices = @transform_6, window_bounds = array<i64: 1, 32>}, {pipeline_mode = #tpu.pipeline_mode<synchronous>, transform_indices = @transform_7, window_bounds = array<i64: 2, 32, 32>}, {pipeline_mode = #tpu.pipeline_mode<synchronous>, transform_indices = @transform_8, window_bounds = array<i64: 1, 32>}, {pipeline_mode = #tpu.pipeline_mode<synchronous>, transform_indices = @transform_9, window_bounds = array<i64: 1, 32>}, {pipeline_mode = #tpu.pipeline_mode<synchronous>, transform_indices = @transform_10, window_bounds = array<i64: 32, 128>}, {pipeline_mode = #tpu.pipeline_mode<synchronous>, transform_indices = @transform_11, window_bounds = array<i64: 1, 128>}, {pipeline_mode = #tpu.pipeline_mode<synchronous>, transform_indices = @transform_12, window_bounds = array<i64: 128, 32>}, {pipeline_mode = #tpu.pipeline_mode<synchronous>, transform_indices = @transform_13, window_bounds = array<i64: 1, 32>}, {transform_indices = @transform_14, window_bounds = array<i64: 32, 32>}]} {
    %c0 = arith.constant 0 : index
    %c0_0 = arith.constant 0 : index
    %0 = vector.load %arg1[%c0, %c0_0] : memref<32x32xf32, #tpu.memory_space<vmem>>, vector<32x32xf32>
    %c0_1 = arith.constant 0 : index
    %c0_2 = arith.constant 0 : index
    %1 = vector.load %arg4[%c0_1, %c0_2] : memref<1x32xf32, #tpu.memory_space<vmem>>, vector<1x32xf32>
    %c0_3 = arith.constant 0 : index
    %c0_4 = arith.constant 0 : index
    %2 = vector.load %arg5[%c0_3, %c0_4] : memref<1x32xf32, #tpu.memory_space<vmem>>, vector<1x32xf32>
    %cst = arith.constant dense<0.000000e+00> : vector<32xf32>
    %3 = vector.multi_reduction <add>, %0, %cst [1] : vector<32x32xf32> to vector<32xf32>
    %4 = vector.shape_cast %3 : vector<32xf32> to vector<32x1xf32>
    %cst_5 = arith.constant 3.200000e+01 : f32
    %5 = vector.broadcast %cst_5 : f32 to vector<32x1xf32>
    %6 = arith.divf %4, %5 : vector<32x1xf32>
    %7 = vector.broadcast %6 : vector<32x1xf32> to vector<32x32xf32>
    %8 = arith.subf %0, %7 : vector<32x32xf32>
    %9 = arith.mulf %8, %8 : vector<32x32xf32>
    %cst_6 = arith.constant dense<0.000000e+00> : vector<32xf32>
    %10 = vector.multi_reduction <add>, %9, %cst_6 [1] : vector<32x32xf32> to vector<32xf32>
    %11 = vector.shape_cast %10 : vector<32xf32> to vector<32x1xf32>
    %cst_7 = arith.constant 3.200000e+01 : f32
    %12 = vector.broadcast %cst_7 : f32 to vector<32x1xf32>
    %13 = arith.divf %11, %12 : vector<32x1xf32>
    %cst_8 = arith.constant 9.99999974E-6 : f32
    %14 = vector.broadcast %cst_8 : f32 to vector<32x1xf32>
    %15 = arith.addf %13, %14 : vector<32x1xf32>
    %16 = math.rsqrt %15 : vector<32x1xf32>
    %17 = vector.broadcast %16 : vector<32x1xf32> to vector<32x32xf32>
    %18 = arith.mulf %8, %17 : vector<32x32xf32>
    %19 = vector.broadcast %1 : vector<1x32xf32> to vector<32x32xf32>
    %20 = arith.mulf %18, %19 : vector<32x32xf32>
    %21 = vector.broadcast %2 : vector<1x32xf32> to vector<32x32xf32>
    %22 = arith.addf %20, %21 : vector<32x32xf32>
    %c0_9 = arith.constant 0 : index
    %c0_10 = arith.constant 0 : index
    %23 = vector.load %arg2[%c0_9, %c0_10] : memref<32x96xbf16, #tpu.memory_space<vmem>>, vector<32x96xbf16>
    %24 = arith.truncf %22 : vector<32x32xf32> to vector<32x32xbf16>
    %cst_11 = arith.constant dense<0.000000e+00> : vector<32x96xf32>
    %25 = tpu.matmul %24, %23, %cst_11 {dimension_numbers = #tpu.dot_dimension_numbers<[1], [0], [0], [1], [0, 0, 1, 1], [], []>} : vector<32x32xbf16>, vector<32x96xbf16>, vector<32x96xf32> -> vector<32x96xf32>
    %c0_12 = arith.constant 0 : index
    %c0_13 = arith.constant 0 : index
    %26 = vector.load %arg3[%c0_12, %c0_13] : memref<1x96xf32, #tpu.memory_space<vmem>>, vector<1x96xf32>
    %27 = vector.broadcast %26 : vector<1x96xf32> to vector<32x96xf32>
    %28 = arith.addf %25, %27 : vector<32x96xf32>
    %29 = vector.extract_strided_slice %28 {offsets = [0, 0], sizes = [32, 32], strides = [1, 1]} : vector<32x96xf32> to vector<32x32xf32>
    %cst_14 = arith.constant 2.500000e-01 : f32
    %30 = vector.broadcast %cst_14 : f32 to vector<32x32xf32>
    %31 = arith.mulf %29, %30 : vector<32x32xf32>
    %32 = vector.extract_strided_slice %28 {offsets = [0, 32], sizes = [32, 32], strides = [1, 1]} : vector<32x96xf32> to vector<32x32xf32>
    %33 = vector.extract_strided_slice %28 {offsets = [0, 64], sizes = [32, 32], strides = [1, 1]} : vector<32x96xf32> to vector<32x32xf32>
    %cst_15 = arith.constant 0.000000e+00 : f32
    %34 = vector.broadcast %cst_15 : f32 to vector<32x32xf32>
    %35 = vector.extract_strided_slice %31 {offsets = [0, 0], sizes = [32, 16], strides = [1, 1]} : vector<32x32xf32> to vector<32x16xf32>
    %36 = vector.extract_strided_slice %32 {offsets = [0, 0], sizes = [32, 16], strides = [1, 1]} : vector<32x32xf32> to vector<32x16xf32>
    %37 = vector.extract_strided_slice %33 {offsets = [0, 0], sizes = [32, 16], strides = [1, 1]} : vector<32x32xf32> to vector<32x16xf32>
    %38 = arith.truncf %35 : vector<32x16xf32> to vector<32x16xbf16>
    %39 = arith.truncf %36 : vector<32x16xf32> to vector<32x16xbf16>
    %cst_16 = arith.constant dense<0.000000e+00> : vector<32x32xf32>
    %40 = tpu.matmul %38, %39, %cst_16 {dimension_numbers = #tpu.dot_dimension_numbers<[1], [1], [0], [0], [0, 0, 1, 0], [], []>} : vector<32x16xbf16>, vector<32x16xbf16>, vector<32x32xf32> -> vector<32x32xf32>
    %c0_17 = arith.constant 0 : index
    %c0_18 = arith.constant 0 : index
    %c0_19 = arith.constant 0 : index
    %41 = vector.load %arg8[%c0_17, %c0_18, %c0_19] : memref<2x32x32xf32, #tpu.memory_space<vmem>>, vector<1x32x32xf32>
    %42 = vector.shape_cast %41 : vector<1x32x32xf32> to vector<32x32xf32>
    %43 = arith.addf %40, %42 : vector<32x32xf32>
    %cst_20 = arith.constant dense<0xFF800000> : vector<32xf32>
    %44 = vector.multi_reduction <maximumf>, %43, %cst_20 [1] : vector<32x32xf32> to vector<32xf32>
    %45 = vector.shape_cast %44 : vector<32xf32> to vector<32x1xf32>
    %46 = vector.broadcast %45 : vector<32x1xf32> to vector<32x32xf32>
    %47 = arith.subf %43, %46 : vector<32x32xf32>
    %48 = math.exp %47 : vector<32x32xf32>
    %cst_21 = arith.constant dense<0.000000e+00> : vector<32xf32>
    %49 = vector.multi_reduction <add>, %48, %cst_21 [1] : vector<32x32xf32> to vector<32xf32>
    %50 = vector.shape_cast %49 : vector<32xf32> to vector<32x1xf32>
    %51 = tpu.reciprocal %50 {approx = true} : vector<32x1xf32> -> vector<32x1xf32>
    %52 = vector.broadcast %51 : vector<32x1xf32> to vector<32x32xf32>
    %53 = arith.mulf %48, %52 : vector<32x32xf32>
    %54 = arith.truncf %53 : vector<32x32xf32> to vector<32x32xbf16>
    %55 = arith.truncf %37 : vector<32x16xf32> to vector<32x16xbf16>
    %cst_22 = arith.constant dense<0.000000e+00> : vector<32x16xf32>
    %56 = tpu.matmul %54, %55, %cst_22 {dimension_numbers = #tpu.dot_dimension_numbers<[1], [0], [0], [1], [0, 0, 1, 1], [], []>} : vector<32x32xbf16>, vector<32x16xbf16>, vector<32x16xf32> -> vector<32x16xf32>
    %c0_23 = arith.constant 0 : index
    %c0_24 = arith.constant 0 : index
    %57 = vector.load %arg6[%c0_23, %c0_24] : memref<32x32xbf16, #tpu.memory_space<vmem>>, vector<16x32xbf16>
    %58 = arith.truncf %56 : vector<32x16xf32> to vector<32x16xbf16>
    %cst_25 = arith.constant dense<0.000000e+00> : vector<32x32xf32>
    %59 = tpu.matmul %58, %57, %cst_25 {dimension_numbers = #tpu.dot_dimension_numbers<[1], [0], [0], [1], [0, 0, 1, 1], [], []>} : vector<32x16xbf16>, vector<16x32xbf16>, vector<32x32xf32> -> vector<32x32xf32>
    %60 = arith.addf %34, %59 : vector<32x32xf32>
    %61 = vector.extract_strided_slice %31 {offsets = [0, 16], sizes = [32, 16], strides = [1, 1]} : vector<32x32xf32> to vector<32x16xf32>
    %62 = vector.extract_strided_slice %32 {offsets = [0, 16], sizes = [32, 16], strides = [1, 1]} : vector<32x32xf32> to vector<32x16xf32>
    %63 = vector.extract_strided_slice %33 {offsets = [0, 16], sizes = [32, 16], strides = [1, 1]} : vector<32x32xf32> to vector<32x16xf32>
    %64 = arith.truncf %61 : vector<32x16xf32> to vector<32x16xbf16>
    %65 = arith.truncf %62 : vector<32x16xf32> to vector<32x16xbf16>
    %cst_26 = arith.constant dense<0.000000e+00> : vector<32x32xf32>
    %66 = tpu.matmul %64, %65, %cst_26 {dimension_numbers = #tpu.dot_dimension_numbers<[1], [1], [0], [0], [0, 0, 1, 0], [], []>} : vector<32x16xbf16>, vector<32x16xbf16>, vector<32x32xf32> -> vector<32x32xf32>
    %c1 = arith.constant 1 : index
    %c0_27 = arith.constant 0 : index
    %c0_28 = arith.constant 0 : index
    %67 = vector.load %arg8[%c1, %c0_27, %c0_28] : memref<2x32x32xf32, #tpu.memory_space<vmem>>, vector<1x32x32xf32>
    %68 = vector.shape_cast %67 : vector<1x32x32xf32> to vector<32x32xf32>
    %69 = arith.addf %66, %68 : vector<32x32xf32>
    %cst_29 = arith.constant dense<0xFF800000> : vector<32xf32>
    %70 = vector.multi_reduction <maximumf>, %69, %cst_29 [1] : vector<32x32xf32> to vector<32xf32>
    %71 = vector.shape_cast %70 : vector<32xf32> to vector<32x1xf32>
    %72 = vector.broadcast %71 : vector<32x1xf32> to vector<32x32xf32>
    %73 = arith.subf %69, %72 : vector<32x32xf32>
    %74 = math.exp %73 : vector<32x32xf32>
    %cst_30 = arith.constant dense<0.000000e+00> : vector<32xf32>
    %75 = vector.multi_reduction <add>, %74, %cst_30 [1] : vector<32x32xf32> to vector<32xf32>
    %76 = vector.shape_cast %75 : vector<32xf32> to vector<32x1xf32>
    %77 = tpu.reciprocal %76 {approx = true} : vector<32x1xf32> -> vector<32x1xf32>
    %78 = vector.broadcast %77 : vector<32x1xf32> to vector<32x32xf32>
    %79 = arith.mulf %74, %78 : vector<32x32xf32>
    %80 = arith.truncf %79 : vector<32x32xf32> to vector<32x32xbf16>
    %81 = arith.truncf %63 : vector<32x16xf32> to vector<32x16xbf16>
    %cst_31 = arith.constant dense<0.000000e+00> : vector<32x16xf32>
    %82 = tpu.matmul %80, %81, %cst_31 {dimension_numbers = #tpu.dot_dimension_numbers<[1], [0], [0], [1], [0, 0, 1, 1], [], []>} : vector<32x32xbf16>, vector<32x16xbf16>, vector<32x16xf32> -> vector<32x16xf32>
    %c16 = arith.constant 16 : index
    %c0_32 = arith.constant 0 : index
    %83 = vector.load %arg6[%c16, %c0_32] : memref<32x32xbf16, #tpu.memory_space<vmem>>, vector<16x32xbf16>
    %84 = arith.truncf %82 : vector<32x16xf32> to vector<32x16xbf16>
    %cst_33 = arith.constant dense<0.000000e+00> : vector<32x32xf32>
    %85 = tpu.matmul %84, %83, %cst_33 {dimension_numbers = #tpu.dot_dimension_numbers<[1], [0], [0], [1], [0, 0, 1, 1], [], []>} : vector<32x16xbf16>, vector<16x32xbf16>, vector<32x32xf32> -> vector<32x32xf32>
    %86 = arith.addf %60, %85 : vector<32x32xf32>
    %87 = arith.addf %0, %86 : vector<32x32xf32>
    %c0_34 = arith.constant 0 : index
    %c0_35 = arith.constant 0 : index
    %88 = vector.load %arg7[%c0_34, %c0_35] : memref<1x32xf32, #tpu.memory_space<vmem>>, vector<1x32xf32>
    %89 = vector.broadcast %88 : vector<1x32xf32> to vector<32x32xf32>
    %90 = arith.addf %87, %89 : vector<32x32xf32>
    %c0_36 = arith.constant 0 : index
    %c0_37 = arith.constant 0 : index
    %91 = vector.load %arg9[%c0_36, %c0_37] : memref<1x32xf32, #tpu.memory_space<vmem>>, vector<1x32xf32>
    %c0_38 = arith.constant 0 : index
    %c0_39 = arith.constant 0 : index
    %92 = vector.load %arg10[%c0_38, %c0_39] : memref<1x32xf32, #tpu.memory_space<vmem>>, vector<1x32xf32>
    %cst_40 = arith.constant dense<0.000000e+00> : vector<32xf32>
    %93 = vector.multi_reduction <add>, %90, %cst_40 [1] : vector<32x32xf32> to vector<32xf32>
    %94 = vector.shape_cast %93 : vector<32xf32> to vector<32x1xf32>
    %cst_41 = arith.constant 3.200000e+01 : f32
    %95 = vector.broadcast %cst_41 : f32 to vector<32x1xf32>
    %96 = arith.divf %94, %95 : vector<32x1xf32>
    %97 = vector.broadcast %96 : vector<32x1xf32> to vector<32x32xf32>
    %98 = arith.subf %90, %97 : vector<32x32xf32>
    %99 = arith.mulf %98, %98 : vector<32x32xf32>
    %cst_42 = arith.constant dense<0.000000e+00> : vector<32xf32>
    %100 = vector.multi_reduction <add>, %99, %cst_42 [1] : vector<32x32xf32> to vector<32xf32>
    %101 = vector.shape_cast %100 : vector<32xf32> to vector<32x1xf32>
    %cst_43 = arith.constant 3.200000e+01 : f32
    %102 = vector.broadcast %cst_43 : f32 to vector<32x1xf32>
    %103 = arith.divf %101, %102 : vector<32x1xf32>
    %cst_44 = arith.constant 9.99999974E-6 : f32
    %104 = vector.broadcast %cst_44 : f32 to vector<32x1xf32>
    %105 = arith.addf %103, %104 : vector<32x1xf32>
    %106 = math.rsqrt %105 : vector<32x1xf32>
    %107 = vector.broadcast %106 : vector<32x1xf32> to vector<32x32xf32>
    %108 = arith.mulf %98, %107 : vector<32x32xf32>
    %109 = vector.broadcast %91 : vector<1x32xf32> to vector<32x32xf32>
    %110 = arith.mulf %108, %109 : vector<32x32xf32>
    %111 = vector.broadcast %92 : vector<1x32xf32> to vector<32x32xf32>
    %112 = arith.addf %110, %111 : vector<32x32xf32>
    %c0_45 = arith.constant 0 : index
    %c0_46 = arith.constant 0 : index
    %113 = vector.load %arg11[%c0_45, %c0_46] : memref<32x128xbf16, #tpu.memory_space<vmem>>, vector<32x128xbf16>
    %114 = arith.truncf %112 : vector<32x32xf32> to vector<32x32xbf16>
    %cst_47 = arith.constant dense<0.000000e+00> : vector<32x128xf32>
    %115 = tpu.matmul %114, %113, %cst_47 {dimension_numbers = #tpu.dot_dimension_numbers<[1], [0], [0], [1], [0, 0, 1, 1], [], []>} : vector<32x32xbf16>, vector<32x128xbf16>, vector<32x128xf32> -> vector<32x128xf32>
    %c0_48 = arith.constant 0 : index
    %c0_49 = arith.constant 0 : index
    %116 = vector.load %arg12[%c0_48, %c0_49] : memref<1x128xf32, #tpu.memory_space<vmem>>, vector<1x128xf32>
    %117 = vector.broadcast %116 : vector<1x128xf32> to vector<32x128xf32>
    %118 = arith.addf %115, %117 : vector<32x128xf32>
    %cst_50 = arith.constant 5.000000e-01 : f32
    %119 = vector.broadcast %cst_50 : f32 to vector<32x128xf32>
    %120 = arith.mulf %119, %118 : vector<32x128xf32>
    %cst_51 = arith.constant 0.707106769 : f32
    %121 = vector.broadcast %cst_51 : f32 to vector<32x128xf32>
    %122 = arith.mulf %118, %121 : vector<32x128xf32>
    %123 = math.absf %122 : vector<32x128xf32>
    %cst_52 = arith.constant 0.327591091 : f32
    %124 = vector.broadcast %cst_52 : f32 to vector<32x128xf32>
    %125 = arith.mulf %124, %123 : vector<32x128xf32>
    %cst_53 = arith.constant 1.000000e+00 : f32
    %126 = vector.broadcast %cst_53 : f32 to vector<32x128xf32>
    %127 = arith.addf %126, %125 : vector<32x128xf32>
    %cst_54 = arith.constant 1.000000e+00 : f32
    %128 = vector.broadcast %cst_54 : f32 to vector<32x128xf32>
    %129 = arith.divf %128, %127 : vector<32x128xf32>
    %cst_55 = arith.constant 1.06140542 : f32
    %130 = vector.broadcast %cst_55 : f32 to vector<32x128xf32>
    %131 = arith.mulf %130, %129 : vector<32x128xf32>
    %cst_56 = arith.constant -1.45315206 : f32
    %132 = vector.broadcast %cst_56 : f32 to vector<32x128xf32>
    %133 = arith.addf %131, %132 : vector<32x128xf32>
    %134 = arith.mulf %133, %129 : vector<32x128xf32>
    %cst_57 = arith.constant 1.42141378 : f32
    %135 = vector.broadcast %cst_57 : f32 to vector<32x128xf32>
    %136 = arith.addf %134, %135 : vector<32x128xf32>
    %137 = arith.mulf %136, %129 : vector<32x128xf32>
    %cst_58 = arith.constant -0.284496725 : f32
    %138 = vector.broadcast %cst_58 : f32 to vector<32x128xf32>
    %139 = arith.addf %137, %138 : vector<32x128xf32>
    %140 = arith.mulf %139, %129 : vector<32x128xf32>
    %cst_59 = arith.constant 0.254829586 : f32
    %141 = vector.broadcast %cst_59 : f32 to vector<32x128xf32>
    %142 = arith.addf %140, %141 : vector<32x128xf32>
    %143 = arith.mulf %142, %129 : vector<32x128xf32>
    %144 = arith.mulf %123, %123 : vector<32x128xf32>
    %cst_60 = arith.constant 0.000000e+00 : f32
    %145 = vector.broadcast %cst_60 : f32 to vector<32x128xf32>
    %146 = arith.subf %145, %144 : vector<32x128xf32>
    %147 = math.exp %146 : vector<32x128xf32>
    %148 = arith.mulf %143, %147 : vector<32x128xf32>
    %cst_61 = arith.constant 1.000000e+00 : f32
    %149 = vector.broadcast %cst_61 : f32 to vector<32x128xf32>
    %150 = arith.subf %149, %148 : vector<32x128xf32>
    %cst_62 = arith.constant 0.000000e+00 : f32
    %151 = vector.broadcast %cst_62 : f32 to vector<32x128xf32>
    %152 = arith.cmpf oge, %122, %151 : vector<32x128xf32>
    %cst_63 = arith.constant 0.000000e+00 : f32
    %153 = vector.broadcast %cst_63 : f32 to vector<32x128xf32>
    %154 = arith.subf %153, %150 : vector<32x128xf32>
    %155 = arith.select %152, %150, %154 : vector<32x128xi1>, vector<32x128xf32>
    %cst_64 = arith.constant 1.000000e+00 : f32
    %156 = vector.broadcast %cst_64 : f32 to vector<32x128xf32>
    %157 = arith.addf %156, %155 : vector<32x128xf32>
    %158 = arith.mulf %120, %157 : vector<32x128xf32>
    %c0_65 = arith.constant 0 : index
    %c0_66 = arith.constant 0 : index
    %159 = vector.load %arg13[%c0_65, %c0_66] : memref<128x32xbf16, #tpu.memory_space<vmem>>, vector<128x32xbf16>
    %160 = arith.truncf %158 : vector<32x128xf32> to vector<32x128xbf16>
    %cst_67 = arith.constant dense<0.000000e+00> : vector<32x32xf32>
    %161 = tpu.matmul %160, %159, %cst_67 {dimension_numbers = #tpu.dot_dimension_numbers<[1], [0], [0], [1], [0, 0, 1, 1], [], []>} : vector<32x128xbf16>, vector<128x32xbf16>, vector<32x32xf32> -> vector<32x32xf32>
    %c0_68 = arith.constant 0 : index
    %c0_69 = arith.constant 0 : index
    %162 = vector.load %arg14[%c0_68, %c0_69] : memref<1x32xf32, #tpu.memory_space<vmem>>, vector<1x32xf32>
    %163 = vector.broadcast %162 : vector<1x32xf32> to vector<32x32xf32>
    %164 = arith.addf %161, %163 : vector<32x32xf32>
    %165 = arith.addf %90, %164 : vector<32x32xf32>
    %c0_70 = arith.constant 0 : index
    %c0_71 = arith.constant 0 : index
    %166 = vector.load %arg15[%c0_70, %c0_71] : memref<32x32xf32, #tpu.memory_space<vmem>>, vector<32x32xf32>
    tpu.vector_store %arg15[%c0_70, %c0_71], %165 {strides = array<i32>} : memref<32x32xf32, #tpu.memory_space<vmem>>, vector<32x32xf32>,
    return
  }
  func.func @transform_0(%arg0: i32) -> (i32, i32) {
    %c0_i32 = arith.constant 0 : i32
    %c0_i32_0 = arith.constant 0 : i32
    return %arg0, %c0_i32 : i32, i32
  }
  func.func @transform_1(%arg0: i32) -> (i32, i32) {
    %c0_i32 = arith.constant 0 : i32
    %c0_i32_0 = arith.constant 0 : i32
    %c0_i32_1 = arith.constant 0 : i32
    return %c0_i32, %c0_i32_0 : i32, i32
  }
  func.func @transform_2(%arg0: i32) -> (i32, i32) {
    %c0_i32 = arith.constant 0 : i32
    %c0_i32_0 = arith.constant 0 : i32
    %c0_i32_1 = arith.constant 0 : i32
    return %c0_i32, %c0_i32_0 : i32, i32
  }
  func.func @transform_3(%arg0: i32) -> (i32, i32) {
    %c0_i32 = arith.constant 0 : i32
    %c0_i32_0 = arith.constant 0 : i32
    %c0_i32_1 = arith.constant 0 : i32
    return %c0_i32, %c0_i32_0 : i32, i32
  }
  func.func @transform_4(%arg0: i32) -> (i32, i32) {
    %c0_i32 = arith.constant 0 : i32
    %c0_i32_0 = arith.constant 0 : i32
    %c0_i32_1 = arith.constant 0 : i32
    return %c0_i32, %c0_i32_0 : i32, i32
  }
  func.func @transform_5(%arg0: i32) -> (i32, i32) {
    %c0_i32 = arith.constant 0 : i32
    %c0_i32_0 = arith.constant 0 : i32
    %c0_i32_1 = arith.constant 0 : i32
    return %c0_i32, %c0_i32_0 : i32, i32
  }
  func.func @transform_6(%arg0: i32) -> (i32, i32) {
    %c0_i32 = arith.constant 0 : i32
    %c0_i32_0 = arith.constant 0 : i32
    %c0_i32_1 = arith.constant 0 : i32
    return %c0_i32, %c0_i32_0 : i32, i32
  }
  func.func @transform_7(%arg0: i32) -> (i32, i32, i32) {
    %c0_i32 = arith.constant 0 : i32
    %c0_i32_0 = arith.constant 0 : i32
    %c0_i32_1 = arith.constant 0 : i32
    %c0_i32_2 = arith.constant 0 : i32
    return %c0_i32, %c0_i32_0, %c0_i32_1 : i32, i32, i32
  }
  func.func @transform_8(%arg0: i32) -> (i32, i32) {
    %c0_i32 = arith.constant 0 : i32
    %c0_i32_0 = arith.constant 0 : i32
    %c0_i32_1 = arith.constant 0 : i32
    return %c0_i32, %c0_i32_0 : i32, i32
  }
  func.func @transform_9(%arg0: i32) -> (i32, i32) {
    %c0_i32 = arith.constant 0 : i32
    %c0_i32_0 = arith.constant 0 : i32
    %c0_i32_1 = arith.constant 0 : i32
    return %c0_i32, %c0_i32_0 : i32, i32
  }
  func.func @transform_10(%arg0: i32) -> (i32, i32) {
    %c0_i32 = arith.constant 0 : i32
    %c0_i32_0 = arith.constant 0 : i32
    %c0_i32_1 = arith.constant 0 : i32
    return %c0_i32, %c0_i32_0 : i32, i32
  }
  func.func @transform_11(%arg0: i32) -> (i32, i32) {
    %c0_i32 = arith.constant 0 : i32
    %c0_i32_0 = arith.constant 0 : i32
    %c0_i32_1 = arith.constant 0 : i32
    return %c0_i32, %c0_i32_0 : i32, i32
  }
  func.func @transform_12(%arg0: i32) -> (i32, i32) {
    %c0_i32 = arith.constant 0 : i32
    %c0_i32_0 = arith.constant 0 : i32
    %c0_i32_1 = arith.constant 0 : i32
    return %c0_i32, %c0_i32_0 : i32, i32
  }
  func.func @transform_13(%arg0: i32) -> (i32, i32) {
    %c0_i32 = arith.constant 0 : i32
    %c0_i32_0 = arith.constant 0 : i32
    %c0_i32_1 = arith.constant 0 : i32
    return %c0_i32, %c0_i32_0 : i32, i32
  }
  func.func @transform_14(%arg0: i32) -> (i32, i32) {
    %c0_i32 = arith.constant 0 : i32
    %c0_i32_0 = arith.constant 0 : i32
    return %arg0, %c0_i32 : i32, i32
  }
}

module attributes {stable_mosaic.version = 11 : i64} {
  func.func @_ln_linear_kernel(%arg0: i32, %arg1: memref<8x128xf32, #tpu.memory_space<vmem>>, %arg2: memref<1x128xf32, #tpu.memory_space<vmem>>, %arg3: memref<1x128xf32, #tpu.memory_space<vmem>>, %arg4: memref<128x64xbf16, #tpu.memory_space<vmem>>, %arg5: memref<8x64xf32, #tpu.memory_space<vmem>>) attributes {dimension_semantics = [#tpu.dimension_semantics<parallel>], iteration_bounds = array<i64: 1>, scalar_prefetch = 0 : i64, scratch_operands = 0 : i64, tpu.core_type = #tpu.core_type<tc>, window_params = [{transform_indices = @transform_0, window_bounds = array<i64: 8, 128>}, {pipeline_mode = #tpu.pipeline_mode<synchronous>, transform_indices = @transform_1, window_bounds = array<i64: 1, 128>}, {pipeline_mode = #tpu.pipeline_mode<synchronous>, transform_indices = @transform_2, window_bounds = array<i64: 1, 128>}, {pipeline_mode = #tpu.pipeline_mode<synchronous>, transform_indices = @transform_3, window_bounds = array<i64: 128, 64>}, {transform_indices = @transform_4, window_bounds = array<i64: 8, 64>}]} {
    %c0 = arith.constant 0 : index
    %c0_0 = arith.constant 0 : index
    %0 = vector.load %arg1[%c0, %c0_0] : memref<8x128xf32, #tpu.memory_space<vmem>>, vector<8x128xf32>
    %c0_1 = arith.constant 0 : index
    %c0_2 = arith.constant 0 : index
    %1 = vector.load %arg2[%c0_1, %c0_2] : memref<1x128xf32, #tpu.memory_space<vmem>>, vector<1x128xf32>
    %c0_3 = arith.constant 0 : index
    %c0_4 = arith.constant 0 : index
    %2 = vector.load %arg3[%c0_3, %c0_4] : memref<1x128xf32, #tpu.memory_space<vmem>>, vector<1x128xf32>
    %cst = arith.constant dense<0.000000e+00> : vector<8xf32>
    %3 = vector.multi_reduction <add>, %0, %cst [1] : vector<8x128xf32> to vector<8xf32>
    %4 = vector.shape_cast %3 : vector<8xf32> to vector<8x1xf32>
    %cst_5 = arith.constant 1.280000e+02 : f32
    %5 = vector.broadcast %cst_5 : f32 to vector<8x1xf32>
    %6 = arith.divf %4, %5 : vector<8x1xf32>
    %7 = vector.broadcast %6 : vector<8x1xf32> to vector<8x128xf32>
    %8 = arith.subf %0, %7 : vector<8x128xf32>
    %9 = arith.mulf %8, %8 : vector<8x128xf32>
    %cst_6 = arith.constant dense<0.000000e+00> : vector<8xf32>
    %10 = vector.multi_reduction <add>, %9, %cst_6 [1] : vector<8x128xf32> to vector<8xf32>
    %11 = vector.shape_cast %10 : vector<8xf32> to vector<8x1xf32>
    %cst_7 = arith.constant 1.280000e+02 : f32
    %12 = vector.broadcast %cst_7 : f32 to vector<8x1xf32>
    %13 = arith.divf %11, %12 : vector<8x1xf32>
    %cst_8 = arith.constant 9.99999974E-6 : f32
    %14 = vector.broadcast %cst_8 : f32 to vector<8x1xf32>
    %15 = arith.addf %13, %14 : vector<8x1xf32>
    %16 = math.rsqrt %15 : vector<8x1xf32>
    %17 = vector.broadcast %16 : vector<8x1xf32> to vector<8x128xf32>
    %18 = arith.mulf %8, %17 : vector<8x128xf32>
    %19 = vector.broadcast %1 : vector<1x128xf32> to vector<8x128xf32>
    %20 = arith.mulf %18, %19 : vector<8x128xf32>
    %21 = vector.broadcast %2 : vector<1x128xf32> to vector<8x128xf32>
    %22 = arith.addf %20, %21 : vector<8x128xf32>
    %c0_9 = arith.constant 0 : index
    %c0_10 = arith.constant 0 : index
    %23 = vector.load %arg4[%c0_9, %c0_10] : memref<128x64xbf16, #tpu.memory_space<vmem>>, vector<128x64xbf16>
    %24 = arith.truncf %22 : vector<8x128xf32> to vector<8x128xbf16>
    %cst_11 = arith.constant dense<0.000000e+00> : vector<8x64xf32>
    %25 = tpu.matmul %24, %23, %cst_11 {dimension_numbers = #tpu.dot_dimension_numbers<[1], [0], [0], [1], [0, 0, 1, 1], [], []>} : vector<8x128xbf16>, vector<128x64xbf16>, vector<8x64xf32> -> vector<8x64xf32>
    %c0_12 = arith.constant 0 : index
    %c0_13 = arith.constant 0 : index
    %26 = vector.load %arg5[%c0_12, %c0_13] : memref<8x64xf32, #tpu.memory_space<vmem>>, vector<8x64xf32>
    tpu.vector_store %arg5[%c0_12, %c0_13], %25 {strides = array<i32>} : memref<8x64xf32, #tpu.memory_space<vmem>>, vector<8x64xf32>,
    return
  }
  func.func @transform_0(%arg0: i32) -> (i32, i32) {
    %c0_i32 = arith.constant 0 : i32
    %c0_i32_0 = arith.constant 0 : i32
    return %arg0, %c0_i32 : i32, i32
  }
  func.func @transform_1(%arg0: i32) -> (i32, i32) {
    %c0_i32 = arith.constant 0 : i32
    %c0_i32_0 = arith.constant 0 : i32
    %c0_i32_1 = arith.constant 0 : i32
    return %c0_i32, %c0_i32_0 : i32, i32
  }
  func.func @transform_2(%arg0: i32) -> (i32, i32) {
    %c0_i32 = arith.constant 0 : i32
    %c0_i32_0 = arith.constant 0 : i32
    %c0_i32_1 = arith.constant 0 : i32
    return %c0_i32, %c0_i32_0 : i32, i32
  }
  func.func @transform_3(%arg0: i32) -> (i32, i32) {
    %c0_i32 = arith.constant 0 : i32
    %c0_i32_0 = arith.constant 0 : i32
    %c0_i32_1 = arith.constant 0 : i32
    return %c0_i32, %c0_i32_0 : i32, i32
  }
  func.func @transform_4(%arg0: i32) -> (i32, i32) {
    %c0_i32 = arith.constant 0 : i32
    %c0_i32_0 = arith.constant 0 : i32
    return %arg0, %c0_i32 : i32, i32
  }
}

module attributes {stable_mosaic.version = 11 : i64} {
  func.func @_swin_block_kernel(%arg0: i32, %arg1: memref<8x64xf32, #tpu.memory_space<vmem>>, %arg2: memref<64x192xbf16, #tpu.memory_space<vmem>>, %arg3: memref<1x192xf32, #tpu.memory_space<vmem>>, %arg4: memref<1x64xf32, #tpu.memory_space<vmem>>, %arg5: memref<1x64xf32, #tpu.memory_space<vmem>>, %arg6: memref<64x64xbf16, #tpu.memory_space<vmem>>, %arg7: memref<1x64xf32, #tpu.memory_space<vmem>>, %arg8: memref<4x8x8xf32, #tpu.memory_space<vmem>>, %arg9: memref<1x64xf32, #tpu.memory_space<vmem>>, %arg10: memref<1x64xf32, #tpu.memory_space<vmem>>, %arg11: memref<64x256xbf16, #tpu.memory_space<vmem>>, %arg12: memref<1x256xf32, #tpu.memory_space<vmem>>, %arg13: memref<256x64xbf16, #tpu.memory_space<vmem>>, %arg14: memref<1x64xf32, #tpu.memory_space<vmem>>, %arg15: memref<8x64xf32, #tpu.memory_space<vmem>>) attributes {dimension_semantics = [#tpu.dimension_semantics<parallel>], iteration_bounds = array<i64: 1>, scalar_prefetch = 0 : i64, scratch_operands = 0 : i64, tpu.core_type = #tpu.core_type<tc>, window_params = [{transform_indices = @transform_0, window_bounds = array<i64: 8, 64>}, {pipeline_mode = #tpu.pipeline_mode<synchronous>, transform_indices = @transform_1, window_bounds = array<i64: 64, 192>}, {pipeline_mode = #tpu.pipeline_mode<synchronous>, transform_indices = @transform_2, window_bounds = array<i64: 1, 192>}, {pipeline_mode = #tpu.pipeline_mode<synchronous>, transform_indices = @transform_3, window_bounds = array<i64: 1, 64>}, {pipeline_mode = #tpu.pipeline_mode<synchronous>, transform_indices = @transform_4, window_bounds = array<i64: 1, 64>}, {pipeline_mode = #tpu.pipeline_mode<synchronous>, transform_indices = @transform_5, window_bounds = array<i64: 64, 64>}, {pipeline_mode = #tpu.pipeline_mode<synchronous>, transform_indices = @transform_6, window_bounds = array<i64: 1, 64>}, {pipeline_mode = #tpu.pipeline_mode<synchronous>, transform_indices = @transform_7, window_bounds = array<i64: 4, 8, 8>}, {pipeline_mode = #tpu.pipeline_mode<synchronous>, transform_indices = @transform_8, window_bounds = array<i64: 1, 64>}, {pipeline_mode = #tpu.pipeline_mode<synchronous>, transform_indices = @transform_9, window_bounds = array<i64: 1, 64>}, {pipeline_mode = #tpu.pipeline_mode<synchronous>, transform_indices = @transform_10, window_bounds = array<i64: 64, 256>}, {pipeline_mode = #tpu.pipeline_mode<synchronous>, transform_indices = @transform_11, window_bounds = array<i64: 1, 256>}, {pipeline_mode = #tpu.pipeline_mode<synchronous>, transform_indices = @transform_12, window_bounds = array<i64: 256, 64>}, {pipeline_mode = #tpu.pipeline_mode<synchronous>, transform_indices = @transform_13, window_bounds = array<i64: 1, 64>}, {transform_indices = @transform_14, window_bounds = array<i64: 8, 64>}]} {
    %c0 = arith.constant 0 : index
    %c0_0 = arith.constant 0 : index
    %0 = vector.load %arg1[%c0, %c0_0] : memref<8x64xf32, #tpu.memory_space<vmem>>, vector<8x64xf32>
    %c0_1 = arith.constant 0 : index
    %c0_2 = arith.constant 0 : index
    %1 = vector.load %arg4[%c0_1, %c0_2] : memref<1x64xf32, #tpu.memory_space<vmem>>, vector<1x64xf32>
    %c0_3 = arith.constant 0 : index
    %c0_4 = arith.constant 0 : index
    %2 = vector.load %arg5[%c0_3, %c0_4] : memref<1x64xf32, #tpu.memory_space<vmem>>, vector<1x64xf32>
    %cst = arith.constant dense<0.000000e+00> : vector<8xf32>
    %3 = vector.multi_reduction <add>, %0, %cst [1] : vector<8x64xf32> to vector<8xf32>
    %4 = vector.shape_cast %3 : vector<8xf32> to vector<8x1xf32>
    %cst_5 = arith.constant 6.400000e+01 : f32
    %5 = vector.broadcast %cst_5 : f32 to vector<8x1xf32>
    %6 = arith.divf %4, %5 : vector<8x1xf32>
    %7 = vector.broadcast %6 : vector<8x1xf32> to vector<8x64xf32>
    %8 = arith.subf %0, %7 : vector<8x64xf32>
    %9 = arith.mulf %8, %8 : vector<8x64xf32>
    %cst_6 = arith.constant dense<0.000000e+00> : vector<8xf32>
    %10 = vector.multi_reduction <add>, %9, %cst_6 [1] : vector<8x64xf32> to vector<8xf32>
    %11 = vector.shape_cast %10 : vector<8xf32> to vector<8x1xf32>
    %cst_7 = arith.constant 6.400000e+01 : f32
    %12 = vector.broadcast %cst_7 : f32 to vector<8x1xf32>
    %13 = arith.divf %11, %12 : vector<8x1xf32>
    %cst_8 = arith.constant 9.99999974E-6 : f32
    %14 = vector.broadcast %cst_8 : f32 to vector<8x1xf32>
    %15 = arith.addf %13, %14 : vector<8x1xf32>
    %16 = math.rsqrt %15 : vector<8x1xf32>
    %17 = vector.broadcast %16 : vector<8x1xf32> to vector<8x64xf32>
    %18 = arith.mulf %8, %17 : vector<8x64xf32>
    %19 = vector.broadcast %1 : vector<1x64xf32> to vector<8x64xf32>
    %20 = arith.mulf %18, %19 : vector<8x64xf32>
    %21 = vector.broadcast %2 : vector<1x64xf32> to vector<8x64xf32>
    %22 = arith.addf %20, %21 : vector<8x64xf32>
    %c0_9 = arith.constant 0 : index
    %c0_10 = arith.constant 0 : index
    %23 = vector.load %arg2[%c0_9, %c0_10] : memref<64x192xbf16, #tpu.memory_space<vmem>>, vector<64x192xbf16>
    %24 = arith.truncf %22 : vector<8x64xf32> to vector<8x64xbf16>
    %cst_11 = arith.constant dense<0.000000e+00> : vector<8x192xf32>
    %25 = tpu.matmul %24, %23, %cst_11 {dimension_numbers = #tpu.dot_dimension_numbers<[1], [0], [0], [1], [0, 0, 1, 1], [], []>} : vector<8x64xbf16>, vector<64x192xbf16>, vector<8x192xf32> -> vector<8x192xf32>
    %c0_12 = arith.constant 0 : index
    %c0_13 = arith.constant 0 : index
    %26 = vector.load %arg3[%c0_12, %c0_13] : memref<1x192xf32, #tpu.memory_space<vmem>>, vector<1x192xf32>
    %27 = vector.broadcast %26 : vector<1x192xf32> to vector<8x192xf32>
    %28 = arith.addf %25, %27 : vector<8x192xf32>
    %29 = vector.extract_strided_slice %28 {offsets = [0, 0], sizes = [8, 64], strides = [1, 1]} : vector<8x192xf32> to vector<8x64xf32>
    %cst_14 = arith.constant 2.500000e-01 : f32
    %30 = vector.broadcast %cst_14 : f32 to vector<8x64xf32>
    %31 = arith.mulf %29, %30 : vector<8x64xf32>
    %32 = vector.extract_strided_slice %28 {offsets = [0, 64], sizes = [8, 64], strides = [1, 1]} : vector<8x192xf32> to vector<8x64xf32>
    %33 = vector.extract_strided_slice %28 {offsets = [0, 128], sizes = [8, 64], strides = [1, 1]} : vector<8x192xf32> to vector<8x64xf32>
    %cst_15 = arith.constant 0.000000e+00 : f32
    %34 = vector.broadcast %cst_15 : f32 to vector<8x64xf32>
    %35 = vector.extract_strided_slice %31 {offsets = [0, 0], sizes = [8, 16], strides = [1, 1]} : vector<8x64xf32> to vector<8x16xf32>
    %36 = vector.extract_strided_slice %32 {offsets = [0, 0], sizes = [8, 16], strides = [1, 1]} : vector<8x64xf32> to vector<8x16xf32>
    %37 = vector.extract_strided_slice %33 {offsets = [0, 0], sizes = [8, 16], strides = [1, 1]} : vector<8x64xf32> to vector<8x16xf32>
    %38 = arith.truncf %35 : vector<8x16xf32> to vector<8x16xbf16>
    %39 = arith.truncf %36 : vector<8x16xf32> to vector<8x16xbf16>
    %cst_16 = arith.constant dense<0.000000e+00> : vector<8x8xf32>
    %40 = tpu.matmul %38, %39, %cst_16 {dimension_numbers = #tpu.dot_dimension_numbers<[1], [1], [0], [0], [0, 0, 1, 0], [], []>} : vector<8x16xbf16>, vector<8x16xbf16>, vector<8x8xf32> -> vector<8x8xf32>
    %c0_17 = arith.constant 0 : index
    %c0_18 = arith.constant 0 : index
    %c0_19 = arith.constant 0 : index
    %41 = vector.load %arg8[%c0_17, %c0_18, %c0_19] : memref<4x8x8xf32, #tpu.memory_space<vmem>>, vector<1x8x8xf32>
    %42 = vector.shape_cast %41 : vector<1x8x8xf32> to vector<8x8xf32>
    %43 = arith.addf %40, %42 : vector<8x8xf32>
    %cst_20 = arith.constant dense<0xFF800000> : vector<8xf32>
    %44 = vector.multi_reduction <maximumf>, %43, %cst_20 [1] : vector<8x8xf32> to vector<8xf32>
    %45 = vector.shape_cast %44 : vector<8xf32> to vector<8x1xf32>
    %46 = vector.broadcast %45 : vector<8x1xf32> to vector<8x8xf32>
    %47 = arith.subf %43, %46 : vector<8x8xf32>
    %48 = math.exp %47 : vector<8x8xf32>
    %cst_21 = arith.constant dense<0.000000e+00> : vector<8xf32>
    %49 = vector.multi_reduction <add>, %48, %cst_21 [1] : vector<8x8xf32> to vector<8xf32>
    %50 = vector.shape_cast %49 : vector<8xf32> to vector<8x1xf32>
    %51 = tpu.reciprocal %50 {approx = true} : vector<8x1xf32> -> vector<8x1xf32>
    %52 = vector.broadcast %51 : vector<8x1xf32> to vector<8x8xf32>
    %53 = arith.mulf %48, %52 : vector<8x8xf32>
    %54 = arith.truncf %53 : vector<8x8xf32> to vector<8x8xbf16>
    %55 = arith.truncf %37 : vector<8x16xf32> to vector<8x16xbf16>
    %cst_22 = arith.constant dense<0.000000e+00> : vector<8x16xf32>
    %56 = tpu.matmul %54, %55, %cst_22 {dimension_numbers = #tpu.dot_dimension_numbers<[1], [0], [0], [1], [0, 0, 1, 1], [], []>} : vector<8x8xbf16>, vector<8x16xbf16>, vector<8x16xf32> -> vector<8x16xf32>
    %c0_23 = arith.constant 0 : index
    %c0_24 = arith.constant 0 : index
    %57 = vector.load %arg6[%c0_23, %c0_24] : memref<64x64xbf16, #tpu.memory_space<vmem>>, vector<16x64xbf16>
    %58 = arith.truncf %56 : vector<8x16xf32> to vector<8x16xbf16>
    %cst_25 = arith.constant dense<0.000000e+00> : vector<8x64xf32>
    %59 = tpu.matmul %58, %57, %cst_25 {dimension_numbers = #tpu.dot_dimension_numbers<[1], [0], [0], [1], [0, 0, 1, 1], [], []>} : vector<8x16xbf16>, vector<16x64xbf16>, vector<8x64xf32> -> vector<8x64xf32>
    %60 = arith.addf %34, %59 : vector<8x64xf32>
    %61 = vector.extract_strided_slice %31 {offsets = [0, 16], sizes = [8, 16], strides = [1, 1]} : vector<8x64xf32> to vector<8x16xf32>
    %62 = vector.extract_strided_slice %32 {offsets = [0, 16], sizes = [8, 16], strides = [1, 1]} : vector<8x64xf32> to vector<8x16xf32>
    %63 = vector.extract_strided_slice %33 {offsets = [0, 16], sizes = [8, 16], strides = [1, 1]} : vector<8x64xf32> to vector<8x16xf32>
    %64 = arith.truncf %61 : vector<8x16xf32> to vector<8x16xbf16>
    %65 = arith.truncf %62 : vector<8x16xf32> to vector<8x16xbf16>
    %cst_26 = arith.constant dense<0.000000e+00> : vector<8x8xf32>
    %66 = tpu.matmul %64, %65, %cst_26 {dimension_numbers = #tpu.dot_dimension_numbers<[1], [1], [0], [0], [0, 0, 1, 0], [], []>} : vector<8x16xbf16>, vector<8x16xbf16>, vector<8x8xf32> -> vector<8x8xf32>
    %c1 = arith.constant 1 : index
    %c0_27 = arith.constant 0 : index
    %c0_28 = arith.constant 0 : index
    %67 = vector.load %arg8[%c1, %c0_27, %c0_28] : memref<4x8x8xf32, #tpu.memory_space<vmem>>, vector<1x8x8xf32>
    %68 = vector.shape_cast %67 : vector<1x8x8xf32> to vector<8x8xf32>
    %69 = arith.addf %66, %68 : vector<8x8xf32>
    %cst_29 = arith.constant dense<0xFF800000> : vector<8xf32>
    %70 = vector.multi_reduction <maximumf>, %69, %cst_29 [1] : vector<8x8xf32> to vector<8xf32>
    %71 = vector.shape_cast %70 : vector<8xf32> to vector<8x1xf32>
    %72 = vector.broadcast %71 : vector<8x1xf32> to vector<8x8xf32>
    %73 = arith.subf %69, %72 : vector<8x8xf32>
    %74 = math.exp %73 : vector<8x8xf32>
    %cst_30 = arith.constant dense<0.000000e+00> : vector<8xf32>
    %75 = vector.multi_reduction <add>, %74, %cst_30 [1] : vector<8x8xf32> to vector<8xf32>
    %76 = vector.shape_cast %75 : vector<8xf32> to vector<8x1xf32>
    %77 = tpu.reciprocal %76 {approx = true} : vector<8x1xf32> -> vector<8x1xf32>
    %78 = vector.broadcast %77 : vector<8x1xf32> to vector<8x8xf32>
    %79 = arith.mulf %74, %78 : vector<8x8xf32>
    %80 = arith.truncf %79 : vector<8x8xf32> to vector<8x8xbf16>
    %81 = arith.truncf %63 : vector<8x16xf32> to vector<8x16xbf16>
    %cst_31 = arith.constant dense<0.000000e+00> : vector<8x16xf32>
    %82 = tpu.matmul %80, %81, %cst_31 {dimension_numbers = #tpu.dot_dimension_numbers<[1], [0], [0], [1], [0, 0, 1, 1], [], []>} : vector<8x8xbf16>, vector<8x16xbf16>, vector<8x16xf32> -> vector<8x16xf32>
    %c16 = arith.constant 16 : index
    %c0_32 = arith.constant 0 : index
    %83 = vector.load %arg6[%c16, %c0_32] : memref<64x64xbf16, #tpu.memory_space<vmem>>, vector<16x64xbf16>
    %84 = arith.truncf %82 : vector<8x16xf32> to vector<8x16xbf16>
    %cst_33 = arith.constant dense<0.000000e+00> : vector<8x64xf32>
    %85 = tpu.matmul %84, %83, %cst_33 {dimension_numbers = #tpu.dot_dimension_numbers<[1], [0], [0], [1], [0, 0, 1, 1], [], []>} : vector<8x16xbf16>, vector<16x64xbf16>, vector<8x64xf32> -> vector<8x64xf32>
    %86 = arith.addf %60, %85 : vector<8x64xf32>
    %87 = vector.extract_strided_slice %31 {offsets = [0, 32], sizes = [8, 16], strides = [1, 1]} : vector<8x64xf32> to vector<8x16xf32>
    %88 = vector.extract_strided_slice %32 {offsets = [0, 32], sizes = [8, 16], strides = [1, 1]} : vector<8x64xf32> to vector<8x16xf32>
    %89 = vector.extract_strided_slice %33 {offsets = [0, 32], sizes = [8, 16], strides = [1, 1]} : vector<8x64xf32> to vector<8x16xf32>
    %90 = arith.truncf %87 : vector<8x16xf32> to vector<8x16xbf16>
    %91 = arith.truncf %88 : vector<8x16xf32> to vector<8x16xbf16>
    %cst_34 = arith.constant dense<0.000000e+00> : vector<8x8xf32>
    %92 = tpu.matmul %90, %91, %cst_34 {dimension_numbers = #tpu.dot_dimension_numbers<[1], [1], [0], [0], [0, 0, 1, 0], [], []>} : vector<8x16xbf16>, vector<8x16xbf16>, vector<8x8xf32> -> vector<8x8xf32>
    %c2 = arith.constant 2 : index
    %c0_35 = arith.constant 0 : index
    %c0_36 = arith.constant 0 : index
    %93 = vector.load %arg8[%c2, %c0_35, %c0_36] : memref<4x8x8xf32, #tpu.memory_space<vmem>>, vector<1x8x8xf32>
    %94 = vector.shape_cast %93 : vector<1x8x8xf32> to vector<8x8xf32>
    %95 = arith.addf %92, %94 : vector<8x8xf32>
    %cst_37 = arith.constant dense<0xFF800000> : vector<8xf32>
    %96 = vector.multi_reduction <maximumf>, %95, %cst_37 [1] : vector<8x8xf32> to vector<8xf32>
    %97 = vector.shape_cast %96 : vector<8xf32> to vector<8x1xf32>
    %98 = vector.broadcast %97 : vector<8x1xf32> to vector<8x8xf32>
    %99 = arith.subf %95, %98 : vector<8x8xf32>
    %100 = math.exp %99 : vector<8x8xf32>
    %cst_38 = arith.constant dense<0.000000e+00> : vector<8xf32>
    %101 = vector.multi_reduction <add>, %100, %cst_38 [1] : vector<8x8xf32> to vector<8xf32>
    %102 = vector.shape_cast %101 : vector<8xf32> to vector<8x1xf32>
    %103 = tpu.reciprocal %102 {approx = true} : vector<8x1xf32> -> vector<8x1xf32>
    %104 = vector.broadcast %103 : vector<8x1xf32> to vector<8x8xf32>
    %105 = arith.mulf %100, %104 : vector<8x8xf32>
    %106 = arith.truncf %105 : vector<8x8xf32> to vector<8x8xbf16>
    %107 = arith.truncf %89 : vector<8x16xf32> to vector<8x16xbf16>
    %cst_39 = arith.constant dense<0.000000e+00> : vector<8x16xf32>
    %108 = tpu.matmul %106, %107, %cst_39 {dimension_numbers = #tpu.dot_dimension_numbers<[1], [0], [0], [1], [0, 0, 1, 1], [], []>} : vector<8x8xbf16>, vector<8x16xbf16>, vector<8x16xf32> -> vector<8x16xf32>
    %c32 = arith.constant 32 : index
    %c0_40 = arith.constant 0 : index
    %109 = vector.load %arg6[%c32, %c0_40] : memref<64x64xbf16, #tpu.memory_space<vmem>>, vector<16x64xbf16>
    %110 = arith.truncf %108 : vector<8x16xf32> to vector<8x16xbf16>
    %cst_41 = arith.constant dense<0.000000e+00> : vector<8x64xf32>
    %111 = tpu.matmul %110, %109, %cst_41 {dimension_numbers = #tpu.dot_dimension_numbers<[1], [0], [0], [1], [0, 0, 1, 1], [], []>} : vector<8x16xbf16>, vector<16x64xbf16>, vector<8x64xf32> -> vector<8x64xf32>
    %112 = arith.addf %86, %111 : vector<8x64xf32>
    %113 = vector.extract_strided_slice %31 {offsets = [0, 48], sizes = [8, 16], strides = [1, 1]} : vector<8x64xf32> to vector<8x16xf32>
    %114 = vector.extract_strided_slice %32 {offsets = [0, 48], sizes = [8, 16], strides = [1, 1]} : vector<8x64xf32> to vector<8x16xf32>
    %115 = vector.extract_strided_slice %33 {offsets = [0, 48], sizes = [8, 16], strides = [1, 1]} : vector<8x64xf32> to vector<8x16xf32>
    %116 = arith.truncf %113 : vector<8x16xf32> to vector<8x16xbf16>
    %117 = arith.truncf %114 : vector<8x16xf32> to vector<8x16xbf16>
    %cst_42 = arith.constant dense<0.000000e+00> : vector<8x8xf32>
    %118 = tpu.matmul %116, %117, %cst_42 {dimension_numbers = #tpu.dot_dimension_numbers<[1], [1], [0], [0], [0, 0, 1, 0], [], []>} : vector<8x16xbf16>, vector<8x16xbf16>, vector<8x8xf32> -> vector<8x8xf32>
    %c3 = arith.constant 3 : index
    %c0_43 = arith.constant 0 : index
    %c0_44 = arith.constant 0 : index
    %119 = vector.load %arg8[%c3, %c0_43, %c0_44] : memref<4x8x8xf32, #tpu.memory_space<vmem>>, vector<1x8x8xf32>
    %120 = vector.shape_cast %119 : vector<1x8x8xf32> to vector<8x8xf32>
    %121 = arith.addf %118, %120 : vector<8x8xf32>
    %cst_45 = arith.constant dense<0xFF800000> : vector<8xf32>
    %122 = vector.multi_reduction <maximumf>, %121, %cst_45 [1] : vector<8x8xf32> to vector<8xf32>
    %123 = vector.shape_cast %122 : vector<8xf32> to vector<8x1xf32>
    %124 = vector.broadcast %123 : vector<8x1xf32> to vector<8x8xf32>
    %125 = arith.subf %121, %124 : vector<8x8xf32>
    %126 = math.exp %125 : vector<8x8xf32>
    %cst_46 = arith.constant dense<0.000000e+00> : vector<8xf32>
    %127 = vector.multi_reduction <add>, %126, %cst_46 [1] : vector<8x8xf32> to vector<8xf32>
    %128 = vector.shape_cast %127 : vector<8xf32> to vector<8x1xf32>
    %129 = tpu.reciprocal %128 {approx = true} : vector<8x1xf32> -> vector<8x1xf32>
    %130 = vector.broadcast %129 : vector<8x1xf32> to vector<8x8xf32>
    %131 = arith.mulf %126, %130 : vector<8x8xf32>
    %132 = arith.truncf %131 : vector<8x8xf32> to vector<8x8xbf16>
    %133 = arith.truncf %115 : vector<8x16xf32> to vector<8x16xbf16>
    %cst_47 = arith.constant dense<0.000000e+00> : vector<8x16xf32>
    %134 = tpu.matmul %132, %133, %cst_47 {dimension_numbers = #tpu.dot_dimension_numbers<[1], [0], [0], [1], [0, 0, 1, 1], [], []>} : vector<8x8xbf16>, vector<8x16xbf16>, vector<8x16xf32> -> vector<8x16xf32>
    %c48 = arith.constant 48 : index
    %c0_48 = arith.constant 0 : index
    %135 = vector.load %arg6[%c48, %c0_48] : memref<64x64xbf16, #tpu.memory_space<vmem>>, vector<16x64xbf16>
    %136 = arith.truncf %134 : vector<8x16xf32> to vector<8x16xbf16>
    %cst_49 = arith.constant dense<0.000000e+00> : vector<8x64xf32>
    %137 = tpu.matmul %136, %135, %cst_49 {dimension_numbers = #tpu.dot_dimension_numbers<[1], [0], [0], [1], [0, 0, 1, 1], [], []>} : vector<8x16xbf16>, vector<16x64xbf16>, vector<8x64xf32> -> vector<8x64xf32>
    %138 = arith.addf %112, %137 : vector<8x64xf32>
    %139 = arith.addf %0, %138 : vector<8x64xf32>
    %c0_50 = arith.constant 0 : index
    %c0_51 = arith.constant 0 : index
    %140 = vector.load %arg7[%c0_50, %c0_51] : memref<1x64xf32, #tpu.memory_space<vmem>>, vector<1x64xf32>
    %141 = vector.broadcast %140 : vector<1x64xf32> to vector<8x64xf32>
    %142 = arith.addf %139, %141 : vector<8x64xf32>
    %c0_52 = arith.constant 0 : index
    %c0_53 = arith.constant 0 : index
    %143 = vector.load %arg9[%c0_52, %c0_53] : memref<1x64xf32, #tpu.memory_space<vmem>>, vector<1x64xf32>
    %c0_54 = arith.constant 0 : index
    %c0_55 = arith.constant 0 : index
    %144 = vector.load %arg10[%c0_54, %c0_55] : memref<1x64xf32, #tpu.memory_space<vmem>>, vector<1x64xf32>
    %cst_56 = arith.constant dense<0.000000e+00> : vector<8xf32>
    %145 = vector.multi_reduction <add>, %142, %cst_56 [1] : vector<8x64xf32> to vector<8xf32>
    %146 = vector.shape_cast %145 : vector<8xf32> to vector<8x1xf32>
    %cst_57 = arith.constant 6.400000e+01 : f32
    %147 = vector.broadcast %cst_57 : f32 to vector<8x1xf32>
    %148 = arith.divf %146, %147 : vector<8x1xf32>
    %149 = vector.broadcast %148 : vector<8x1xf32> to vector<8x64xf32>
    %150 = arith.subf %142, %149 : vector<8x64xf32>
    %151 = arith.mulf %150, %150 : vector<8x64xf32>
    %cst_58 = arith.constant dense<0.000000e+00> : vector<8xf32>
    %152 = vector.multi_reduction <add>, %151, %cst_58 [1] : vector<8x64xf32> to vector<8xf32>
    %153 = vector.shape_cast %152 : vector<8xf32> to vector<8x1xf32>
    %cst_59 = arith.constant 6.400000e+01 : f32
    %154 = vector.broadcast %cst_59 : f32 to vector<8x1xf32>
    %155 = arith.divf %153, %154 : vector<8x1xf32>
    %cst_60 = arith.constant 9.99999974E-6 : f32
    %156 = vector.broadcast %cst_60 : f32 to vector<8x1xf32>
    %157 = arith.addf %155, %156 : vector<8x1xf32>
    %158 = math.rsqrt %157 : vector<8x1xf32>
    %159 = vector.broadcast %158 : vector<8x1xf32> to vector<8x64xf32>
    %160 = arith.mulf %150, %159 : vector<8x64xf32>
    %161 = vector.broadcast %143 : vector<1x64xf32> to vector<8x64xf32>
    %162 = arith.mulf %160, %161 : vector<8x64xf32>
    %163 = vector.broadcast %144 : vector<1x64xf32> to vector<8x64xf32>
    %164 = arith.addf %162, %163 : vector<8x64xf32>
    %c0_61 = arith.constant 0 : index
    %c0_62 = arith.constant 0 : index
    %165 = vector.load %arg11[%c0_61, %c0_62] : memref<64x256xbf16, #tpu.memory_space<vmem>>, vector<64x256xbf16>
    %166 = arith.truncf %164 : vector<8x64xf32> to vector<8x64xbf16>
    %cst_63 = arith.constant dense<0.000000e+00> : vector<8x256xf32>
    %167 = tpu.matmul %166, %165, %cst_63 {dimension_numbers = #tpu.dot_dimension_numbers<[1], [0], [0], [1], [0, 0, 1, 1], [], []>} : vector<8x64xbf16>, vector<64x256xbf16>, vector<8x256xf32> -> vector<8x256xf32>
    %c0_64 = arith.constant 0 : index
    %c0_65 = arith.constant 0 : index
    %168 = vector.load %arg12[%c0_64, %c0_65] : memref<1x256xf32, #tpu.memory_space<vmem>>, vector<1x256xf32>
    %169 = vector.broadcast %168 : vector<1x256xf32> to vector<8x256xf32>
    %170 = arith.addf %167, %169 : vector<8x256xf32>
    %cst_66 = arith.constant 5.000000e-01 : f32
    %171 = vector.broadcast %cst_66 : f32 to vector<8x256xf32>
    %172 = arith.mulf %171, %170 : vector<8x256xf32>
    %cst_67 = arith.constant 0.707106769 : f32
    %173 = vector.broadcast %cst_67 : f32 to vector<8x256xf32>
    %174 = arith.mulf %170, %173 : vector<8x256xf32>
    %175 = math.absf %174 : vector<8x256xf32>
    %cst_68 = arith.constant 0.327591091 : f32
    %176 = vector.broadcast %cst_68 : f32 to vector<8x256xf32>
    %177 = arith.mulf %176, %175 : vector<8x256xf32>
    %cst_69 = arith.constant 1.000000e+00 : f32
    %178 = vector.broadcast %cst_69 : f32 to vector<8x256xf32>
    %179 = arith.addf %178, %177 : vector<8x256xf32>
    %cst_70 = arith.constant 1.000000e+00 : f32
    %180 = vector.broadcast %cst_70 : f32 to vector<8x256xf32>
    %181 = arith.divf %180, %179 : vector<8x256xf32>
    %cst_71 = arith.constant 1.06140542 : f32
    %182 = vector.broadcast %cst_71 : f32 to vector<8x256xf32>
    %183 = arith.mulf %182, %181 : vector<8x256xf32>
    %cst_72 = arith.constant -1.45315206 : f32
    %184 = vector.broadcast %cst_72 : f32 to vector<8x256xf32>
    %185 = arith.addf %183, %184 : vector<8x256xf32>
    %186 = arith.mulf %185, %181 : vector<8x256xf32>
    %cst_73 = arith.constant 1.42141378 : f32
    %187 = vector.broadcast %cst_73 : f32 to vector<8x256xf32>
    %188 = arith.addf %186, %187 : vector<8x256xf32>
    %189 = arith.mulf %188, %181 : vector<8x256xf32>
    %cst_74 = arith.constant -0.284496725 : f32
    %190 = vector.broadcast %cst_74 : f32 to vector<8x256xf32>
    %191 = arith.addf %189, %190 : vector<8x256xf32>
    %192 = arith.mulf %191, %181 : vector<8x256xf32>
    %cst_75 = arith.constant 0.254829586 : f32
    %193 = vector.broadcast %cst_75 : f32 to vector<8x256xf32>
    %194 = arith.addf %192, %193 : vector<8x256xf32>
    %195 = arith.mulf %194, %181 : vector<8x256xf32>
    %196 = arith.mulf %175, %175 : vector<8x256xf32>
    %cst_76 = arith.constant 0.000000e+00 : f32
    %197 = vector.broadcast %cst_76 : f32 to vector<8x256xf32>
    %198 = arith.subf %197, %196 : vector<8x256xf32>
    %199 = math.exp %198 : vector<8x256xf32>
    %200 = arith.mulf %195, %199 : vector<8x256xf32>
    %cst_77 = arith.constant 1.000000e+00 : f32
    %201 = vector.broadcast %cst_77 : f32 to vector<8x256xf32>
    %202 = arith.subf %201, %200 : vector<8x256xf32>
    %cst_78 = arith.constant 0.000000e+00 : f32
    %203 = vector.broadcast %cst_78 : f32 to vector<8x256xf32>
    %204 = arith.cmpf oge, %174, %203 : vector<8x256xf32>
    %cst_79 = arith.constant 0.000000e+00 : f32
    %205 = vector.broadcast %cst_79 : f32 to vector<8x256xf32>
    %206 = arith.subf %205, %202 : vector<8x256xf32>
    %207 = arith.select %204, %202, %206 : vector<8x256xi1>, vector<8x256xf32>
    %cst_80 = arith.constant 1.000000e+00 : f32
    %208 = vector.broadcast %cst_80 : f32 to vector<8x256xf32>
    %209 = arith.addf %208, %207 : vector<8x256xf32>
    %210 = arith.mulf %172, %209 : vector<8x256xf32>
    %c0_81 = arith.constant 0 : index
    %c0_82 = arith.constant 0 : index
    %211 = vector.load %arg13[%c0_81, %c0_82] : memref<256x64xbf16, #tpu.memory_space<vmem>>, vector<256x64xbf16>
    %212 = arith.truncf %210 : vector<8x256xf32> to vector<8x256xbf16>
    %cst_83 = arith.constant dense<0.000000e+00> : vector<8x64xf32>
    %213 = tpu.matmul %212, %211, %cst_83 {dimension_numbers = #tpu.dot_dimension_numbers<[1], [0], [0], [1], [0, 0, 1, 1], [], []>} : vector<8x256xbf16>, vector<256x64xbf16>, vector<8x64xf32> -> vector<8x64xf32>
    %c0_84 = arith.constant 0 : index
    %c0_85 = arith.constant 0 : index
    %214 = vector.load %arg14[%c0_84, %c0_85] : memref<1x64xf32, #tpu.memory_space<vmem>>, vector<1x64xf32>
    %215 = vector.broadcast %214 : vector<1x64xf32> to vector<8x64xf32>
    %216 = arith.addf %213, %215 : vector<8x64xf32>
    %217 = arith.addf %142, %216 : vector<8x64xf32>
    %c0_86 = arith.constant 0 : index
    %c0_87 = arith.constant 0 : index
    %218 = vector.load %arg15[%c0_86, %c0_87] : memref<8x64xf32, #tpu.memory_space<vmem>>, vector<8x64xf32>
    tpu.vector_store %arg15[%c0_86, %c0_87], %217 {strides = array<i32>} : memref<8x64xf32, #tpu.memory_space<vmem>>, vector<8x64xf32>,
    return
  }
  func.func @transform_0(%arg0: i32) -> (i32, i32) {
    %c0_i32 = arith.constant 0 : i32
    %c0_i32_0 = arith.constant 0 : i32
    return %arg0, %c0_i32 : i32, i32
  }
  func.func @transform_1(%arg0: i32) -> (i32, i32) {
    %c0_i32 = arith.constant 0 : i32
    %c0_i32_0 = arith.constant 0 : i32
    %c0_i32_1 = arith.constant 0 : i32
    return %c0_i32, %c0_i32_0 : i32, i32
  }
  func.func @transform_2(%arg0: i32) -> (i32, i32) {
    %c0_i32 = arith.constant 0 : i32
    %c0_i32_0 = arith.constant 0 : i32
    %c0_i32_1 = arith.constant 0 : i32
    return %c0_i32, %c0_i32_0 : i32, i32
  }
  func.func @transform_3(%arg0: i32) -> (i32, i32) {
    %c0_i32 = arith.constant 0 : i32
    %c0_i32_0 = arith.constant 0 : i32
    %c0_i32_1 = arith.constant 0 : i32
    return %c0_i32, %c0_i32_0 : i32, i32
  }
  func.func @transform_4(%arg0: i32) -> (i32, i32) {
    %c0_i32 = arith.constant 0 : i32
    %c0_i32_0 = arith.constant 0 : i32
    %c0_i32_1 = arith.constant 0 : i32
    return %c0_i32, %c0_i32_0 : i32, i32
  }
  func.func @transform_5(%arg0: i32) -> (i32, i32) {
    %c0_i32 = arith.constant 0 : i32
    %c0_i32_0 = arith.constant 0 : i32
    %c0_i32_1 = arith.constant 0 : i32
    return %c0_i32, %c0_i32_0 : i32, i32
  }
  func.func @transform_6(%arg0: i32) -> (i32, i32) {
    %c0_i32 = arith.constant 0 : i32
    %c0_i32_0 = arith.constant 0 : i32
    %c0_i32_1 = arith.constant 0 : i32
    return %c0_i32, %c0_i32_0 : i32, i32
  }
  func.func @transform_7(%arg0: i32) -> (i32, i32, i32) {
    %c0_i32 = arith.constant 0 : i32
    %c0_i32_0 = arith.constant 0 : i32
    %c0_i32_1 = arith.constant 0 : i32
    %c0_i32_2 = arith.constant 0 : i32
    return %c0_i32, %c0_i32_0, %c0_i32_1 : i32, i32, i32
  }
  func.func @transform_8(%arg0: i32) -> (i32, i32) {
    %c0_i32 = arith.constant 0 : i32
    %c0_i32_0 = arith.constant 0 : i32
    %c0_i32_1 = arith.constant 0 : i32
    return %c0_i32, %c0_i32_0 : i32, i32
  }
  func.func @transform_9(%arg0: i32) -> (i32, i32) {
    %c0_i32 = arith.constant 0 : i32
    %c0_i32_0 = arith.constant 0 : i32
    %c0_i32_1 = arith.constant 0 : i32
    return %c0_i32, %c0_i32_0 : i32, i32
  }
  func.func @transform_10(%arg0: i32) -> (i32, i32) {
    %c0_i32 = arith.constant 0 : i32
    %c0_i32_0 = arith.constant 0 : i32
    %c0_i32_1 = arith.constant 0 : i32
    return %c0_i32, %c0_i32_0 : i32, i32
  }
  func.func @transform_11(%arg0: i32) -> (i32, i32) {
    %c0_i32 = arith.constant 0 : i32
    %c0_i32_0 = arith.constant 0 : i32
    %c0_i32_1 = arith.constant 0 : i32
    return %c0_i32, %c0_i32_0 : i32, i32
  }
  func.func @transform_12(%arg0: i32) -> (i32, i32) {
    %c0_i32 = arith.constant 0 : i32
    %c0_i32_0 = arith.constant 0 : i32
    %c0_i32_1 = arith.constant 0 : i32
    return %c0_i32, %c0_i32_0 : i32, i32
  }
  func.func @transform_13(%arg0: i32) -> (i32, i32) {
    %c0_i32 = arith.constant 0 : i32
    %c0_i32_0 = arith.constant 0 : i32
    %c0_i32_1 = arith.constant 0 : i32
    return %c0_i32, %c0_i32_0 : i32, i32
  }
  func.func @transform_14(%arg0: i32) -> (i32, i32) {
    %c0_i32 = arith.constant 0 : i32
    %c0_i32_0 = arith.constant 0 : i32
    return %arg0, %c0_i32 : i32, i32
  }
}

module attributes {stable_mosaic.version = 11 : i64} {
  func.func @_ln_expand_kernel(%arg0: i32, %arg1: memref<8x64xf32, #tpu.memory_space<vmem>>, %arg2: memref<1x64xf32, #tpu.memory_space<vmem>>, %arg3: memref<1x64xf32, #tpu.memory_space<vmem>>, %arg4: memref<64x128xbf16, #tpu.memory_space<vmem>>, %arg5: memref<1x32xf32, #tpu.memory_space<vmem>>, %arg6: memref<1x32xf32, #tpu.memory_space<vmem>>, %arg7: memref<8x128xf32, #tpu.memory_space<vmem>>) attributes {dimension_semantics = [#tpu.dimension_semantics<parallel>], iteration_bounds = array<i64: 1>, scalar_prefetch = 0 : i64, scratch_operands = 0 : i64, tpu.core_type = #tpu.core_type<tc>, window_params = [{transform_indices = @transform_0, window_bounds = array<i64: 8, 64>}, {pipeline_mode = #tpu.pipeline_mode<synchronous>, transform_indices = @transform_1, window_bounds = array<i64: 1, 64>}, {pipeline_mode = #tpu.pipeline_mode<synchronous>, transform_indices = @transform_2, window_bounds = array<i64: 1, 64>}, {pipeline_mode = #tpu.pipeline_mode<synchronous>, transform_indices = @transform_3, window_bounds = array<i64: 64, 128>}, {pipeline_mode = #tpu.pipeline_mode<synchronous>, transform_indices = @transform_4, window_bounds = array<i64: 1, 32>}, {pipeline_mode = #tpu.pipeline_mode<synchronous>, transform_indices = @transform_5, window_bounds = array<i64: 1, 32>}, {transform_indices = @transform_6, window_bounds = array<i64: 8, 128>}]} {
    %c0 = arith.constant 0 : index
    %c0_0 = arith.constant 0 : index
    %0 = vector.load %arg1[%c0, %c0_0] : memref<8x64xf32, #tpu.memory_space<vmem>>, vector<8x64xf32>
    %c0_1 = arith.constant 0 : index
    %c0_2 = arith.constant 0 : index
    %1 = vector.load %arg2[%c0_1, %c0_2] : memref<1x64xf32, #tpu.memory_space<vmem>>, vector<1x64xf32>
    %c0_3 = arith.constant 0 : index
    %c0_4 = arith.constant 0 : index
    %2 = vector.load %arg3[%c0_3, %c0_4] : memref<1x64xf32, #tpu.memory_space<vmem>>, vector<1x64xf32>
    %cst = arith.constant dense<0.000000e+00> : vector<8xf32>
    %3 = vector.multi_reduction <add>, %0, %cst [1] : vector<8x64xf32> to vector<8xf32>
    %4 = vector.shape_cast %3 : vector<8xf32> to vector<8x1xf32>
    %cst_5 = arith.constant 6.400000e+01 : f32
    %5 = vector.broadcast %cst_5 : f32 to vector<8x1xf32>
    %6 = arith.divf %4, %5 : vector<8x1xf32>
    %7 = vector.broadcast %6 : vector<8x1xf32> to vector<8x64xf32>
    %8 = arith.subf %0, %7 : vector<8x64xf32>
    %9 = arith.mulf %8, %8 : vector<8x64xf32>
    %cst_6 = arith.constant dense<0.000000e+00> : vector<8xf32>
    %10 = vector.multi_reduction <add>, %9, %cst_6 [1] : vector<8x64xf32> to vector<8xf32>
    %11 = vector.shape_cast %10 : vector<8xf32> to vector<8x1xf32>
    %cst_7 = arith.constant 6.400000e+01 : f32
    %12 = vector.broadcast %cst_7 : f32 to vector<8x1xf32>
    %13 = arith.divf %11, %12 : vector<8x1xf32>
    %cst_8 = arith.constant 9.99999974E-6 : f32
    %14 = vector.broadcast %cst_8 : f32 to vector<8x1xf32>
    %15 = arith.addf %13, %14 : vector<8x1xf32>
    %16 = math.rsqrt %15 : vector<8x1xf32>
    %17 = vector.broadcast %16 : vector<8x1xf32> to vector<8x64xf32>
    %18 = arith.mulf %8, %17 : vector<8x64xf32>
    %19 = vector.broadcast %1 : vector<1x64xf32> to vector<8x64xf32>
    %20 = arith.mulf %18, %19 : vector<8x64xf32>
    %21 = vector.broadcast %2 : vector<1x64xf32> to vector<8x64xf32>
    %22 = arith.addf %20, %21 : vector<8x64xf32>
    %c0_9 = arith.constant 0 : index
    %c0_10 = arith.constant 0 : index
    %23 = vector.load %arg4[%c0_9, %c0_10] : memref<64x128xbf16, #tpu.memory_space<vmem>>, vector<64x128xbf16>
    %24 = arith.truncf %22 : vector<8x64xf32> to vector<8x64xbf16>
    %cst_11 = arith.constant dense<0.000000e+00> : vector<8x128xf32>
    %25 = tpu.matmul %24, %23, %cst_11 {dimension_numbers = #tpu.dot_dimension_numbers<[1], [0], [0], [1], [0, 0, 1, 1], [], []>} : vector<8x64xbf16>, vector<64x128xbf16>, vector<8x128xf32> -> vector<8x128xf32>
    %c0_12 = arith.constant 0 : index
    %c0_13 = arith.constant 0 : index
    %26 = vector.load %arg5[%c0_12, %c0_13] : memref<1x32xf32, #tpu.memory_space<vmem>>, vector<1x32xf32>
    %c0_14 = arith.constant 0 : index
    %c0_15 = arith.constant 0 : index
    %27 = vector.load %arg6[%c0_14, %c0_15] : memref<1x32xf32, #tpu.memory_space<vmem>>, vector<1x32xf32>
    %28 = vector.extract_strided_slice %25 {offsets = [0, 0], sizes = [8, 32], strides = [1, 1]} : vector<8x128xf32> to vector<8x32xf32>
    %cst_16 = arith.constant dense<0.000000e+00> : vector<8xf32>
    %29 = vector.multi_reduction <add>, %28, %cst_16 [1] : vector<8x32xf32> to vector<8xf32>
    %30 = vector.shape_cast %29 : vector<8xf32> to vector<8x1xf32>
    %cst_17 = arith.constant 3.200000e+01 : f32
    %31 = vector.broadcast %cst_17 : f32 to vector<8x1xf32>
    %32 = arith.divf %30, %31 : vector<8x1xf32>
    %33 = vector.broadcast %32 : vector<8x1xf32> to vector<8x32xf32>
    %34 = arith.subf %28, %33 : vector<8x32xf32>
    %35 = arith.mulf %34, %34 : vector<8x32xf32>
    %cst_18 = arith.constant dense<0.000000e+00> : vector<8xf32>
    %36 = vector.multi_reduction <add>, %35, %cst_18 [1] : vector<8x32xf32> to vector<8xf32>
    %37 = vector.shape_cast %36 : vector<8xf32> to vector<8x1xf32>
    %cst_19 = arith.constant 3.200000e+01 : f32
    %38 = vector.broadcast %cst_19 : f32 to vector<8x1xf32>
    %39 = arith.divf %37, %38 : vector<8x1xf32>
    %cst_20 = arith.constant 9.99999974E-6 : f32
    %40 = vector.broadcast %cst_20 : f32 to vector<8x1xf32>
    %41 = arith.addf %39, %40 : vector<8x1xf32>
    %42 = math.rsqrt %41 : vector<8x1xf32>
    %43 = vector.broadcast %42 : vector<8x1xf32> to vector<8x32xf32>
    %44 = arith.mulf %34, %43 : vector<8x32xf32>
    %45 = vector.broadcast %26 : vector<1x32xf32> to vector<8x32xf32>
    %46 = arith.mulf %44, %45 : vector<8x32xf32>
    %47 = vector.broadcast %27 : vector<1x32xf32> to vector<8x32xf32>
    %48 = arith.addf %46, %47 : vector<8x32xf32>
    %49 = vector.extract_strided_slice %25 {offsets = [0, 32], sizes = [8, 32], strides = [1, 1]} : vector<8x128xf32> to vector<8x32xf32>
    %cst_21 = arith.constant dense<0.000000e+00> : vector<8xf32>
    %50 = vector.multi_reduction <add>, %49, %cst_21 [1] : vector<8x32xf32> to vector<8xf32>
    %51 = vector.shape_cast %50 : vector<8xf32> to vector<8x1xf32>
    %cst_22 = arith.constant 3.200000e+01 : f32
    %52 = vector.broadcast %cst_22 : f32 to vector<8x1xf32>
    %53 = arith.divf %51, %52 : vector<8x1xf32>
    %54 = vector.broadcast %53 : vector<8x1xf32> to vector<8x32xf32>
    %55 = arith.subf %49, %54 : vector<8x32xf32>
    %56 = arith.mulf %55, %55 : vector<8x32xf32>
    %cst_23 = arith.constant dense<0.000000e+00> : vector<8xf32>
    %57 = vector.multi_reduction <add>, %56, %cst_23 [1] : vector<8x32xf32> to vector<8xf32>
    %58 = vector.shape_cast %57 : vector<8xf32> to vector<8x1xf32>
    %cst_24 = arith.constant 3.200000e+01 : f32
    %59 = vector.broadcast %cst_24 : f32 to vector<8x1xf32>
    %60 = arith.divf %58, %59 : vector<8x1xf32>
    %cst_25 = arith.constant 9.99999974E-6 : f32
    %61 = vector.broadcast %cst_25 : f32 to vector<8x1xf32>
    %62 = arith.addf %60, %61 : vector<8x1xf32>
    %63 = math.rsqrt %62 : vector<8x1xf32>
    %64 = vector.broadcast %63 : vector<8x1xf32> to vector<8x32xf32>
    %65 = arith.mulf %55, %64 : vector<8x32xf32>
    %66 = vector.broadcast %26 : vector<1x32xf32> to vector<8x32xf32>
    %67 = arith.mulf %65, %66 : vector<8x32xf32>
    %68 = vector.broadcast %27 : vector<1x32xf32> to vector<8x32xf32>
    %69 = arith.addf %67, %68 : vector<8x32xf32>
    %70 = vector.extract_strided_slice %25 {offsets = [0, 64], sizes = [8, 32], strides = [1, 1]} : vector<8x128xf32> to vector<8x32xf32>
    %cst_26 = arith.constant dense<0.000000e+00> : vector<8xf32>
    %71 = vector.multi_reduction <add>, %70, %cst_26 [1] : vector<8x32xf32> to vector<8xf32>
    %72 = vector.shape_cast %71 : vector<8xf32> to vector<8x1xf32>
    %cst_27 = arith.constant 3.200000e+01 : f32
    %73 = vector.broadcast %cst_27 : f32 to vector<8x1xf32>
    %74 = arith.divf %72, %73 : vector<8x1xf32>
    %75 = vector.broadcast %74 : vector<8x1xf32> to vector<8x32xf32>
    %76 = arith.subf %70, %75 : vector<8x32xf32>
    %77 = arith.mulf %76, %76 : vector<8x32xf32>
    %cst_28 = arith.constant dense<0.000000e+00> : vector<8xf32>
    %78 = vector.multi_reduction <add>, %77, %cst_28 [1] : vector<8x32xf32> to vector<8xf32>
    %79 = vector.shape_cast %78 : vector<8xf32> to vector<8x1xf32>
    %cst_29 = arith.constant 3.200000e+01 : f32
    %80 = vector.broadcast %cst_29 : f32 to vector<8x1xf32>
    %81 = arith.divf %79, %80 : vector<8x1xf32>
    %cst_30 = arith.constant 9.99999974E-6 : f32
    %82 = vector.broadcast %cst_30 : f32 to vector<8x1xf32>
    %83 = arith.addf %81, %82 : vector<8x1xf32>
    %84 = math.rsqrt %83 : vector<8x1xf32>
    %85 = vector.broadcast %84 : vector<8x1xf32> to vector<8x32xf32>
    %86 = arith.mulf %76, %85 : vector<8x32xf32>
    %87 = vector.broadcast %26 : vector<1x32xf32> to vector<8x32xf32>
    %88 = arith.mulf %86, %87 : vector<8x32xf32>
    %89 = vector.broadcast %27 : vector<1x32xf32> to vector<8x32xf32>
    %90 = arith.addf %88, %89 : vector<8x32xf32>
    %91 = vector.extract_strided_slice %25 {offsets = [0, 96], sizes = [8, 32], strides = [1, 1]} : vector<8x128xf32> to vector<8x32xf32>
    %cst_31 = arith.constant dense<0.000000e+00> : vector<8xf32>
    %92 = vector.multi_reduction <add>, %91, %cst_31 [1] : vector<8x32xf32> to vector<8xf32>
    %93 = vector.shape_cast %92 : vector<8xf32> to vector<8x1xf32>
    %cst_32 = arith.constant 3.200000e+01 : f32
    %94 = vector.broadcast %cst_32 : f32 to vector<8x1xf32>
    %95 = arith.divf %93, %94 : vector<8x1xf32>
    %96 = vector.broadcast %95 : vector<8x1xf32> to vector<8x32xf32>
    %97 = arith.subf %91, %96 : vector<8x32xf32>
    %98 = arith.mulf %97, %97 : vector<8x32xf32>
    %cst_33 = arith.constant dense<0.000000e+00> : vector<8xf32>
    %99 = vector.multi_reduction <add>, %98, %cst_33 [1] : vector<8x32xf32> to vector<8xf32>
    %100 = vector.shape_cast %99 : vector<8xf32> to vector<8x1xf32>
    %cst_34 = arith.constant 3.200000e+01 : f32
    %101 = vector.broadcast %cst_34 : f32 to vector<8x1xf32>
    %102 = arith.divf %100, %101 : vector<8x1xf32>
    %cst_35 = arith.constant 9.99999974E-6 : f32
    %103 = vector.broadcast %cst_35 : f32 to vector<8x1xf32>
    %104 = arith.addf %102, %103 : vector<8x1xf32>
    %105 = math.rsqrt %104 : vector<8x1xf32>
    %106 = vector.broadcast %105 : vector<8x1xf32> to vector<8x32xf32>
    %107 = arith.mulf %97, %106 : vector<8x32xf32>
    %108 = vector.broadcast %26 : vector<1x32xf32> to vector<8x32xf32>
    %109 = arith.mulf %107, %108 : vector<8x32xf32>
    %110 = vector.broadcast %27 : vector<1x32xf32> to vector<8x32xf32>
    %111 = arith.addf %109, %110 : vector<8x32xf32>
    %112 = tpu.concatenate %48, %69, %90, %111 in 1 : vector<8x32xf32>, vector<8x32xf32>, vector<8x32xf32>, vector<8x32xf32> -> vector<8x128xf32>
    %c0_36 = arith.constant 0 : index
    %c0_37 = arith.constant 0 : index
    %113 = vector.load %arg7[%c0_36, %c0_37] : memref<8x128xf32, #tpu.memory_space<vmem>>, vector<8x128xf32>
    tpu.vector_store %arg7[%c0_36, %c0_37], %112 {strides = array<i32>} : memref<8x128xf32, #tpu.memory_space<vmem>>, vector<8x128xf32>,
    return
  }
  func.func @transform_0(%arg0: i32) -> (i32, i32) {
    %c0_i32 = arith.constant 0 : i32
    %c0_i32_0 = arith.constant 0 : i32
    return %arg0, %c0_i32 : i32, i32
  }
  func.func @transform_1(%arg0: i32) -> (i32, i32) {
    %c0_i32 = arith.constant 0 : i32
    %c0_i32_0 = arith.constant 0 : i32
    %c0_i32_1 = arith.constant 0 : i32
    return %c0_i32, %c0_i32_0 : i32, i32
  }
  func.func @transform_2(%arg0: i32) -> (i32, i32) {
    %c0_i32 = arith.constant 0 : i32
    %c0_i32_0 = arith.constant 0 : i32
    %c0_i32_1 = arith.constant 0 : i32
    return %c0_i32, %c0_i32_0 : i32, i32
  }
  func.func @transform_3(%arg0: i32) -> (i32, i32) {
    %c0_i32 = arith.constant 0 : i32
    %c0_i32_0 = arith.constant 0 : i32
    %c0_i32_1 = arith.constant 0 : i32
    return %c0_i32, %c0_i32_0 : i32, i32
  }
  func.func @transform_4(%arg0: i32) -> (i32, i32) {
    %c0_i32 = arith.constant 0 : i32
    %c0_i32_0 = arith.constant 0 : i32
    %c0_i32_1 = arith.constant 0 : i32
    return %c0_i32, %c0_i32_0 : i32, i32
  }
  func.func @transform_5(%arg0: i32) -> (i32, i32) {
    %c0_i32 = arith.constant 0 : i32
    %c0_i32_0 = arith.constant 0 : i32
    %c0_i32_1 = arith.constant 0 : i32
    return %c0_i32, %c0_i32_0 : i32, i32
  }
  func.func @transform_6(%arg0: i32) -> (i32, i32) {
    %c0_i32 = arith.constant 0 : i32
    %c0_i32_0 = arith.constant 0 : i32
    return %arg0, %c0_i32 : i32, i32
  }
}

module attributes {stable_mosaic.version = 11 : i64} {
  func.func @_concat_linear_kernel(%arg0: i32, %arg1: memref<32x32xf32, #tpu.memory_space<vmem>>, %arg2: memref<32x32xf32, #tpu.memory_space<vmem>>, %arg3: memref<64x32xbf16, #tpu.memory_space<vmem>>, %arg4: memref<1x32xf32, #tpu.memory_space<vmem>>, %arg5: memref<32x32xf32, #tpu.memory_space<vmem>>) attributes {dimension_semantics = [#tpu.dimension_semantics<parallel>], iteration_bounds = array<i64: 1>, scalar_prefetch = 0 : i64, scratch_operands = 0 : i64, tpu.core_type = #tpu.core_type<tc>, window_params = [{transform_indices = @transform_0, window_bounds = array<i64: 32, 32>}, {transform_indices = @transform_1, window_bounds = array<i64: 32, 32>}, {pipeline_mode = #tpu.pipeline_mode<synchronous>, transform_indices = @transform_2, window_bounds = array<i64: 64, 32>}, {pipeline_mode = #tpu.pipeline_mode<synchronous>, transform_indices = @transform_3, window_bounds = array<i64: 1, 32>}, {transform_indices = @transform_4, window_bounds = array<i64: 32, 32>}]} {
    %c0 = arith.constant 0 : index
    %c0_0 = arith.constant 0 : index
    %0 = vector.load %arg3[%c0, %c0_0] : memref<64x32xbf16, #tpu.memory_space<vmem>>, vector<64x32xbf16>
    %c0_1 = arith.constant 0 : index
    %c0_2 = arith.constant 0 : index
    %1 = vector.load %arg1[%c0_1, %c0_2] : memref<32x32xf32, #tpu.memory_space<vmem>>, vector<32x32xf32>
    %2 = vector.extract_strided_slice %0 {offsets = [0, 0], sizes = [32, 32], strides = [1, 1]} : vector<64x32xbf16> to vector<32x32xbf16>
    %3 = arith.truncf %1 : vector<32x32xf32> to vector<32x32xbf16>
    %cst = arith.constant dense<0.000000e+00> : vector<32x32xf32>
    %4 = tpu.matmul %3, %2, %cst {dimension_numbers = #tpu.dot_dimension_numbers<[1], [0], [0], [1], [0, 0, 1, 1], [], []>} : vector<32x32xbf16>, vector<32x32xbf16>, vector<32x32xf32> -> vector<32x32xf32>
    %c0_3 = arith.constant 0 : index
    %c0_4 = arith.constant 0 : index
    %5 = vector.load %arg2[%c0_3, %c0_4] : memref<32x32xf32, #tpu.memory_space<vmem>>, vector<32x32xf32>
    %6 = vector.extract_strided_slice %0 {offsets = [32, 0], sizes = [32, 32], strides = [1, 1]} : vector<64x32xbf16> to vector<32x32xbf16>
    %7 = arith.truncf %5 : vector<32x32xf32> to vector<32x32xbf16>
    %cst_5 = arith.constant dense<0.000000e+00> : vector<32x32xf32>
    %8 = tpu.matmul %7, %6, %cst_5 {dimension_numbers = #tpu.dot_dimension_numbers<[1], [0], [0], [1], [0, 0, 1, 1], [], []>} : vector<32x32xbf16>, vector<32x32xbf16>, vector<32x32xf32> -> vector<32x32xf32>
    %9 = arith.addf %4, %8 : vector<32x32xf32>
    %c0_6 = arith.constant 0 : index
    %c0_7 = arith.constant 0 : index
    %10 = vector.load %arg4[%c0_6, %c0_7] : memref<1x32xf32, #tpu.memory_space<vmem>>, vector<1x32xf32>
    %11 = vector.broadcast %10 : vector<1x32xf32> to vector<32x32xf32>
    %12 = arith.addf %9, %11 : vector<32x32xf32>
    %c0_8 = arith.constant 0 : index
    %c0_9 = arith.constant 0 : index
    %13 = vector.load %arg5[%c0_8, %c0_9] : memref<32x32xf32, #tpu.memory_space<vmem>>, vector<32x32xf32>
    tpu.vector_store %arg5[%c0_8, %c0_9], %12 {strides = array<i32>} : memref<32x32xf32, #tpu.memory_space<vmem>>, vector<32x32xf32>,
    return
  }
  func.func @transform_0(%arg0: i32) -> (i32, i32) {
    %c0_i32 = arith.constant 0 : i32
    %c0_i32_0 = arith.constant 0 : i32
    return %arg0, %c0_i32 : i32, i32
  }
  func.func @transform_1(%arg0: i32) -> (i32, i32) {
    %c0_i32 = arith.constant 0 : i32
    %c0_i32_0 = arith.constant 0 : i32
    return %arg0, %c0_i32 : i32, i32
  }
  func.func @transform_2(%arg0: i32) -> (i32, i32) {
    %c0_i32 = arith.constant 0 : i32
    %c0_i32_0 = arith.constant 0 : i32
    %c0_i32_1 = arith.constant 0 : i32
    return %c0_i32, %c0_i32_0 : i32, i32
  }
  func.func @transform_3(%arg0: i32) -> (i32, i32) {
    %c0_i32 = arith.constant 0 : i32
    %c0_i32_0 = arith.constant 0 : i32
    %c0_i32_1 = arith.constant 0 : i32
    return %c0_i32, %c0_i32_0 : i32, i32
  }
  func.func @transform_4(%arg0: i32) -> (i32, i32) {
    %c0_i32 = arith.constant 0 : i32
    %c0_i32_0 = arith.constant 0 : i32
    return %arg0, %c0_i32 : i32, i32
  }
}

module attributes {stable_mosaic.version = 11 : i64} {
  func.func @_ln_expand_kernel(%arg0: i32, %arg1: memref<32x32xf32, #tpu.memory_space<vmem>>, %arg2: memref<1x32xf32, #tpu.memory_space<vmem>>, %arg3: memref<1x32xf32, #tpu.memory_space<vmem>>, %arg4: memref<32x512xbf16, #tpu.memory_space<vmem>>, %arg5: memref<1x32xf32, #tpu.memory_space<vmem>>, %arg6: memref<1x32xf32, #tpu.memory_space<vmem>>, %arg7: memref<32x512xf32, #tpu.memory_space<vmem>>) attributes {dimension_semantics = [#tpu.dimension_semantics<parallel>], iteration_bounds = array<i64: 1>, scalar_prefetch = 0 : i64, scratch_operands = 0 : i64, tpu.core_type = #tpu.core_type<tc>, window_params = [{transform_indices = @transform_0, window_bounds = array<i64: 32, 32>}, {pipeline_mode = #tpu.pipeline_mode<synchronous>, transform_indices = @transform_1, window_bounds = array<i64: 1, 32>}, {pipeline_mode = #tpu.pipeline_mode<synchronous>, transform_indices = @transform_2, window_bounds = array<i64: 1, 32>}, {pipeline_mode = #tpu.pipeline_mode<synchronous>, transform_indices = @transform_3, window_bounds = array<i64: 32, 512>}, {pipeline_mode = #tpu.pipeline_mode<synchronous>, transform_indices = @transform_4, window_bounds = array<i64: 1, 32>}, {pipeline_mode = #tpu.pipeline_mode<synchronous>, transform_indices = @transform_5, window_bounds = array<i64: 1, 32>}, {transform_indices = @transform_6, window_bounds = array<i64: 32, 512>}]} {
    %c0 = arith.constant 0 : index
    %c0_0 = arith.constant 0 : index
    %0 = vector.load %arg1[%c0, %c0_0] : memref<32x32xf32, #tpu.memory_space<vmem>>, vector<32x32xf32>
    %c0_1 = arith.constant 0 : index
    %c0_2 = arith.constant 0 : index
    %1 = vector.load %arg2[%c0_1, %c0_2] : memref<1x32xf32, #tpu.memory_space<vmem>>, vector<1x32xf32>
    %c0_3 = arith.constant 0 : index
    %c0_4 = arith.constant 0 : index
    %2 = vector.load %arg3[%c0_3, %c0_4] : memref<1x32xf32, #tpu.memory_space<vmem>>, vector<1x32xf32>
    %cst = arith.constant dense<0.000000e+00> : vector<32xf32>
    %3 = vector.multi_reduction <add>, %0, %cst [1] : vector<32x32xf32> to vector<32xf32>
    %4 = vector.shape_cast %3 : vector<32xf32> to vector<32x1xf32>
    %cst_5 = arith.constant 3.200000e+01 : f32
    %5 = vector.broadcast %cst_5 : f32 to vector<32x1xf32>
    %6 = arith.divf %4, %5 : vector<32x1xf32>
    %7 = vector.broadcast %6 : vector<32x1xf32> to vector<32x32xf32>
    %8 = arith.subf %0, %7 : vector<32x32xf32>
    %9 = arith.mulf %8, %8 : vector<32x32xf32>
    %cst_6 = arith.constant dense<0.000000e+00> : vector<32xf32>
    %10 = vector.multi_reduction <add>, %9, %cst_6 [1] : vector<32x32xf32> to vector<32xf32>
    %11 = vector.shape_cast %10 : vector<32xf32> to vector<32x1xf32>
    %cst_7 = arith.constant 3.200000e+01 : f32
    %12 = vector.broadcast %cst_7 : f32 to vector<32x1xf32>
    %13 = arith.divf %11, %12 : vector<32x1xf32>
    %cst_8 = arith.constant 9.99999974E-6 : f32
    %14 = vector.broadcast %cst_8 : f32 to vector<32x1xf32>
    %15 = arith.addf %13, %14 : vector<32x1xf32>
    %16 = math.rsqrt %15 : vector<32x1xf32>
    %17 = vector.broadcast %16 : vector<32x1xf32> to vector<32x32xf32>
    %18 = arith.mulf %8, %17 : vector<32x32xf32>
    %19 = vector.broadcast %1 : vector<1x32xf32> to vector<32x32xf32>
    %20 = arith.mulf %18, %19 : vector<32x32xf32>
    %21 = vector.broadcast %2 : vector<1x32xf32> to vector<32x32xf32>
    %22 = arith.addf %20, %21 : vector<32x32xf32>
    %c0_9 = arith.constant 0 : index
    %c0_10 = arith.constant 0 : index
    %23 = vector.load %arg4[%c0_9, %c0_10] : memref<32x512xbf16, #tpu.memory_space<vmem>>, vector<32x512xbf16>
    %24 = arith.truncf %22 : vector<32x32xf32> to vector<32x32xbf16>
    %cst_11 = arith.constant dense<0.000000e+00> : vector<32x512xf32>
    %25 = tpu.matmul %24, %23, %cst_11 {dimension_numbers = #tpu.dot_dimension_numbers<[1], [0], [0], [1], [0, 0, 1, 1], [], []>} : vector<32x32xbf16>, vector<32x512xbf16>, vector<32x512xf32> -> vector<32x512xf32>
    %c0_12 = arith.constant 0 : index
    %c0_13 = arith.constant 0 : index
    %26 = vector.load %arg5[%c0_12, %c0_13] : memref<1x32xf32, #tpu.memory_space<vmem>>, vector<1x32xf32>
    %c0_14 = arith.constant 0 : index
    %c0_15 = arith.constant 0 : index
    %27 = vector.load %arg6[%c0_14, %c0_15] : memref<1x32xf32, #tpu.memory_space<vmem>>, vector<1x32xf32>
    %28 = vector.extract_strided_slice %25 {offsets = [0, 0], sizes = [32, 32], strides = [1, 1]} : vector<32x512xf32> to vector<32x32xf32>
    %cst_16 = arith.constant dense<0.000000e+00> : vector<32xf32>
    %29 = vector.multi_reduction <add>, %28, %cst_16 [1] : vector<32x32xf32> to vector<32xf32>
    %30 = vector.shape_cast %29 : vector<32xf32> to vector<32x1xf32>
    %cst_17 = arith.constant 3.200000e+01 : f32
    %31 = vector.broadcast %cst_17 : f32 to vector<32x1xf32>
    %32 = arith.divf %30, %31 : vector<32x1xf32>
    %33 = vector.broadcast %32 : vector<32x1xf32> to vector<32x32xf32>
    %34 = arith.subf %28, %33 : vector<32x32xf32>
    %35 = arith.mulf %34, %34 : vector<32x32xf32>
    %cst_18 = arith.constant dense<0.000000e+00> : vector<32xf32>
    %36 = vector.multi_reduction <add>, %35, %cst_18 [1] : vector<32x32xf32> to vector<32xf32>
    %37 = vector.shape_cast %36 : vector<32xf32> to vector<32x1xf32>
    %cst_19 = arith.constant 3.200000e+01 : f32
    %38 = vector.broadcast %cst_19 : f32 to vector<32x1xf32>
    %39 = arith.divf %37, %38 : vector<32x1xf32>
    %cst_20 = arith.constant 9.99999974E-6 : f32
    %40 = vector.broadcast %cst_20 : f32 to vector<32x1xf32>
    %41 = arith.addf %39, %40 : vector<32x1xf32>
    %42 = math.rsqrt %41 : vector<32x1xf32>
    %43 = vector.broadcast %42 : vector<32x1xf32> to vector<32x32xf32>
    %44 = arith.mulf %34, %43 : vector<32x32xf32>
    %45 = vector.broadcast %26 : vector<1x32xf32> to vector<32x32xf32>
    %46 = arith.mulf %44, %45 : vector<32x32xf32>
    %47 = vector.broadcast %27 : vector<1x32xf32> to vector<32x32xf32>
    %48 = arith.addf %46, %47 : vector<32x32xf32>
    %49 = vector.extract_strided_slice %25 {offsets = [0, 32], sizes = [32, 32], strides = [1, 1]} : vector<32x512xf32> to vector<32x32xf32>
    %cst_21 = arith.constant dense<0.000000e+00> : vector<32xf32>
    %50 = vector.multi_reduction <add>, %49, %cst_21 [1] : vector<32x32xf32> to vector<32xf32>
    %51 = vector.shape_cast %50 : vector<32xf32> to vector<32x1xf32>
    %cst_22 = arith.constant 3.200000e+01 : f32
    %52 = vector.broadcast %cst_22 : f32 to vector<32x1xf32>
    %53 = arith.divf %51, %52 : vector<32x1xf32>
    %54 = vector.broadcast %53 : vector<32x1xf32> to vector<32x32xf32>
    %55 = arith.subf %49, %54 : vector<32x32xf32>
    %56 = arith.mulf %55, %55 : vector<32x32xf32>
    %cst_23 = arith.constant dense<0.000000e+00> : vector<32xf32>
    %57 = vector.multi_reduction <add>, %56, %cst_23 [1] : vector<32x32xf32> to vector<32xf32>
    %58 = vector.shape_cast %57 : vector<32xf32> to vector<32x1xf32>
    %cst_24 = arith.constant 3.200000e+01 : f32
    %59 = vector.broadcast %cst_24 : f32 to vector<32x1xf32>
    %60 = arith.divf %58, %59 : vector<32x1xf32>
    %cst_25 = arith.constant 9.99999974E-6 : f32
    %61 = vector.broadcast %cst_25 : f32 to vector<32x1xf32>
    %62 = arith.addf %60, %61 : vector<32x1xf32>
    %63 = math.rsqrt %62 : vector<32x1xf32>
    %64 = vector.broadcast %63 : vector<32x1xf32> to vector<32x32xf32>
    %65 = arith.mulf %55, %64 : vector<32x32xf32>
    %66 = vector.broadcast %26 : vector<1x32xf32> to vector<32x32xf32>
    %67 = arith.mulf %65, %66 : vector<32x32xf32>
    %68 = vector.broadcast %27 : vector<1x32xf32> to vector<32x32xf32>
    %69 = arith.addf %67, %68 : vector<32x32xf32>
    %70 = vector.extract_strided_slice %25 {offsets = [0, 64], sizes = [32, 32], strides = [1, 1]} : vector<32x512xf32> to vector<32x32xf32>
    %cst_26 = arith.constant dense<0.000000e+00> : vector<32xf32>
    %71 = vector.multi_reduction <add>, %70, %cst_26 [1] : vector<32x32xf32> to vector<32xf32>
    %72 = vector.shape_cast %71 : vector<32xf32> to vector<32x1xf32>
    %cst_27 = arith.constant 3.200000e+01 : f32
    %73 = vector.broadcast %cst_27 : f32 to vector<32x1xf32>
    %74 = arith.divf %72, %73 : vector<32x1xf32>
    %75 = vector.broadcast %74 : vector<32x1xf32> to vector<32x32xf32>
    %76 = arith.subf %70, %75 : vector<32x32xf32>
    %77 = arith.mulf %76, %76 : vector<32x32xf32>
    %cst_28 = arith.constant dense<0.000000e+00> : vector<32xf32>
    %78 = vector.multi_reduction <add>, %77, %cst_28 [1] : vector<32x32xf32> to vector<32xf32>
    %79 = vector.shape_cast %78 : vector<32xf32> to vector<32x1xf32>
    %cst_29 = arith.constant 3.200000e+01 : f32
    %80 = vector.broadcast %cst_29 : f32 to vector<32x1xf32>
    %81 = arith.divf %79, %80 : vector<32x1xf32>
    %cst_30 = arith.constant 9.99999974E-6 : f32
    %82 = vector.broadcast %cst_30 : f32 to vector<32x1xf32>
    %83 = arith.addf %81, %82 : vector<32x1xf32>
    %84 = math.rsqrt %83 : vector<32x1xf32>
    %85 = vector.broadcast %84 : vector<32x1xf32> to vector<32x32xf32>
    %86 = arith.mulf %76, %85 : vector<32x32xf32>
    %87 = vector.broadcast %26 : vector<1x32xf32> to vector<32x32xf32>
    %88 = arith.mulf %86, %87 : vector<32x32xf32>
    %89 = vector.broadcast %27 : vector<1x32xf32> to vector<32x32xf32>
    %90 = arith.addf %88, %89 : vector<32x32xf32>
    %91 = vector.extract_strided_slice %25 {offsets = [0, 96], sizes = [32, 32], strides = [1, 1]} : vector<32x512xf32> to vector<32x32xf32>
    %cst_31 = arith.constant dense<0.000000e+00> : vector<32xf32>
    %92 = vector.multi_reduction <add>, %91, %cst_31 [1] : vector<32x32xf32> to vector<32xf32>
    %93 = vector.shape_cast %92 : vector<32xf32> to vector<32x1xf32>
    %cst_32 = arith.constant 3.200000e+01 : f32
    %94 = vector.broadcast %cst_32 : f32 to vector<32x1xf32>
    %95 = arith.divf %93, %94 : vector<32x1xf32>
    %96 = vector.broadcast %95 : vector<32x1xf32> to vector<32x32xf32>
    %97 = arith.subf %91, %96 : vector<32x32xf32>
    %98 = arith.mulf %97, %97 : vector<32x32xf32>
    %cst_33 = arith.constant dense<0.000000e+00> : vector<32xf32>
    %99 = vector.multi_reduction <add>, %98, %cst_33 [1] : vector<32x32xf32> to vector<32xf32>
    %100 = vector.shape_cast %99 : vector<32xf32> to vector<32x1xf32>
    %cst_34 = arith.constant 3.200000e+01 : f32
    %101 = vector.broadcast %cst_34 : f32 to vector<32x1xf32>
    %102 = arith.divf %100, %101 : vector<32x1xf32>
    %cst_35 = arith.constant 9.99999974E-6 : f32
    %103 = vector.broadcast %cst_35 : f32 to vector<32x1xf32>
    %104 = arith.addf %102, %103 : vector<32x1xf32>
    %105 = math.rsqrt %104 : vector<32x1xf32>
    %106 = vector.broadcast %105 : vector<32x1xf32> to vector<32x32xf32>
    %107 = arith.mulf %97, %106 : vector<32x32xf32>
    %108 = vector.broadcast %26 : vector<1x32xf32> to vector<32x32xf32>
    %109 = arith.mulf %107, %108 : vector<32x32xf32>
    %110 = vector.broadcast %27 : vector<1x32xf32> to vector<32x32xf32>
    %111 = arith.addf %109, %110 : vector<32x32xf32>
    %112 = vector.extract_strided_slice %25 {offsets = [0, 128], sizes = [32, 32], strides = [1, 1]} : vector<32x512xf32> to vector<32x32xf32>
    %cst_36 = arith.constant dense<0.000000e+00> : vector<32xf32>
    %113 = vector.multi_reduction <add>, %112, %cst_36 [1] : vector<32x32xf32> to vector<32xf32>
    %114 = vector.shape_cast %113 : vector<32xf32> to vector<32x1xf32>
    %cst_37 = arith.constant 3.200000e+01 : f32
    %115 = vector.broadcast %cst_37 : f32 to vector<32x1xf32>
    %116 = arith.divf %114, %115 : vector<32x1xf32>
    %117 = vector.broadcast %116 : vector<32x1xf32> to vector<32x32xf32>
    %118 = arith.subf %112, %117 : vector<32x32xf32>
    %119 = arith.mulf %118, %118 : vector<32x32xf32>
    %cst_38 = arith.constant dense<0.000000e+00> : vector<32xf32>
    %120 = vector.multi_reduction <add>, %119, %cst_38 [1] : vector<32x32xf32> to vector<32xf32>
    %121 = vector.shape_cast %120 : vector<32xf32> to vector<32x1xf32>
    %cst_39 = arith.constant 3.200000e+01 : f32
    %122 = vector.broadcast %cst_39 : f32 to vector<32x1xf32>
    %123 = arith.divf %121, %122 : vector<32x1xf32>
    %cst_40 = arith.constant 9.99999974E-6 : f32
    %124 = vector.broadcast %cst_40 : f32 to vector<32x1xf32>
    %125 = arith.addf %123, %124 : vector<32x1xf32>
    %126 = math.rsqrt %125 : vector<32x1xf32>
    %127 = vector.broadcast %126 : vector<32x1xf32> to vector<32x32xf32>
    %128 = arith.mulf %118, %127 : vector<32x32xf32>
    %129 = vector.broadcast %26 : vector<1x32xf32> to vector<32x32xf32>
    %130 = arith.mulf %128, %129 : vector<32x32xf32>
    %131 = vector.broadcast %27 : vector<1x32xf32> to vector<32x32xf32>
    %132 = arith.addf %130, %131 : vector<32x32xf32>
    %133 = vector.extract_strided_slice %25 {offsets = [0, 160], sizes = [32, 32], strides = [1, 1]} : vector<32x512xf32> to vector<32x32xf32>
    %cst_41 = arith.constant dense<0.000000e+00> : vector<32xf32>
    %134 = vector.multi_reduction <add>, %133, %cst_41 [1] : vector<32x32xf32> to vector<32xf32>
    %135 = vector.shape_cast %134 : vector<32xf32> to vector<32x1xf32>
    %cst_42 = arith.constant 3.200000e+01 : f32
    %136 = vector.broadcast %cst_42 : f32 to vector<32x1xf32>
    %137 = arith.divf %135, %136 : vector<32x1xf32>
    %138 = vector.broadcast %137 : vector<32x1xf32> to vector<32x32xf32>
    %139 = arith.subf %133, %138 : vector<32x32xf32>
    %140 = arith.mulf %139, %139 : vector<32x32xf32>
    %cst_43 = arith.constant dense<0.000000e+00> : vector<32xf32>
    %141 = vector.multi_reduction <add>, %140, %cst_43 [1] : vector<32x32xf32> to vector<32xf32>
    %142 = vector.shape_cast %141 : vector<32xf32> to vector<32x1xf32>
    %cst_44 = arith.constant 3.200000e+01 : f32
    %143 = vector.broadcast %cst_44 : f32 to vector<32x1xf32>
    %144 = arith.divf %142, %143 : vector<32x1xf32>
    %cst_45 = arith.constant 9.99999974E-6 : f32
    %145 = vector.broadcast %cst_45 : f32 to vector<32x1xf32>
    %146 = arith.addf %144, %145 : vector<32x1xf32>
    %147 = math.rsqrt %146 : vector<32x1xf32>
    %148 = vector.broadcast %147 : vector<32x1xf32> to vector<32x32xf32>
    %149 = arith.mulf %139, %148 : vector<32x32xf32>
    %150 = vector.broadcast %26 : vector<1x32xf32> to vector<32x32xf32>
    %151 = arith.mulf %149, %150 : vector<32x32xf32>
    %152 = vector.broadcast %27 : vector<1x32xf32> to vector<32x32xf32>
    %153 = arith.addf %151, %152 : vector<32x32xf32>
    %154 = vector.extract_strided_slice %25 {offsets = [0, 192], sizes = [32, 32], strides = [1, 1]} : vector<32x512xf32> to vector<32x32xf32>
    %cst_46 = arith.constant dense<0.000000e+00> : vector<32xf32>
    %155 = vector.multi_reduction <add>, %154, %cst_46 [1] : vector<32x32xf32> to vector<32xf32>
    %156 = vector.shape_cast %155 : vector<32xf32> to vector<32x1xf32>
    %cst_47 = arith.constant 3.200000e+01 : f32
    %157 = vector.broadcast %cst_47 : f32 to vector<32x1xf32>
    %158 = arith.divf %156, %157 : vector<32x1xf32>
    %159 = vector.broadcast %158 : vector<32x1xf32> to vector<32x32xf32>
    %160 = arith.subf %154, %159 : vector<32x32xf32>
    %161 = arith.mulf %160, %160 : vector<32x32xf32>
    %cst_48 = arith.constant dense<0.000000e+00> : vector<32xf32>
    %162 = vector.multi_reduction <add>, %161, %cst_48 [1] : vector<32x32xf32> to vector<32xf32>
    %163 = vector.shape_cast %162 : vector<32xf32> to vector<32x1xf32>
    %cst_49 = arith.constant 3.200000e+01 : f32
    %164 = vector.broadcast %cst_49 : f32 to vector<32x1xf32>
    %165 = arith.divf %163, %164 : vector<32x1xf32>
    %cst_50 = arith.constant 9.99999974E-6 : f32
    %166 = vector.broadcast %cst_50 : f32 to vector<32x1xf32>
    %167 = arith.addf %165, %166 : vector<32x1xf32>
    %168 = math.rsqrt %167 : vector<32x1xf32>
    %169 = vector.broadcast %168 : vector<32x1xf32> to vector<32x32xf32>
    %170 = arith.mulf %160, %169 : vector<32x32xf32>
    %171 = vector.broadcast %26 : vector<1x32xf32> to vector<32x32xf32>
    %172 = arith.mulf %170, %171 : vector<32x32xf32>
    %173 = vector.broadcast %27 : vector<1x32xf32> to vector<32x32xf32>
    %174 = arith.addf %172, %173 : vector<32x32xf32>
    %175 = vector.extract_strided_slice %25 {offsets = [0, 224], sizes = [32, 32], strides = [1, 1]} : vector<32x512xf32> to vector<32x32xf32>
    %cst_51 = arith.constant dense<0.000000e+00> : vector<32xf32>
    %176 = vector.multi_reduction <add>, %175, %cst_51 [1] : vector<32x32xf32> to vector<32xf32>
    %177 = vector.shape_cast %176 : vector<32xf32> to vector<32x1xf32>
    %cst_52 = arith.constant 3.200000e+01 : f32
    %178 = vector.broadcast %cst_52 : f32 to vector<32x1xf32>
    %179 = arith.divf %177, %178 : vector<32x1xf32>
    %180 = vector.broadcast %179 : vector<32x1xf32> to vector<32x32xf32>
    %181 = arith.subf %175, %180 : vector<32x32xf32>
    %182 = arith.mulf %181, %181 : vector<32x32xf32>
    %cst_53 = arith.constant dense<0.000000e+00> : vector<32xf32>
    %183 = vector.multi_reduction <add>, %182, %cst_53 [1] : vector<32x32xf32> to vector<32xf32>
    %184 = vector.shape_cast %183 : vector<32xf32> to vector<32x1xf32>
    %cst_54 = arith.constant 3.200000e+01 : f32
    %185 = vector.broadcast %cst_54 : f32 to vector<32x1xf32>
    %186 = arith.divf %184, %185 : vector<32x1xf32>
    %cst_55 = arith.constant 9.99999974E-6 : f32
    %187 = vector.broadcast %cst_55 : f32 to vector<32x1xf32>
    %188 = arith.addf %186, %187 : vector<32x1xf32>
    %189 = math.rsqrt %188 : vector<32x1xf32>
    %190 = vector.broadcast %189 : vector<32x1xf32> to vector<32x32xf32>
    %191 = arith.mulf %181, %190 : vector<32x32xf32>
    %192 = vector.broadcast %26 : vector<1x32xf32> to vector<32x32xf32>
    %193 = arith.mulf %191, %192 : vector<32x32xf32>
    %194 = vector.broadcast %27 : vector<1x32xf32> to vector<32x32xf32>
    %195 = arith.addf %193, %194 : vector<32x32xf32>
    %196 = vector.extract_strided_slice %25 {offsets = [0, 256], sizes = [32, 32], strides = [1, 1]} : vector<32x512xf32> to vector<32x32xf32>
    %cst_56 = arith.constant dense<0.000000e+00> : vector<32xf32>
    %197 = vector.multi_reduction <add>, %196, %cst_56 [1] : vector<32x32xf32> to vector<32xf32>
    %198 = vector.shape_cast %197 : vector<32xf32> to vector<32x1xf32>
    %cst_57 = arith.constant 3.200000e+01 : f32
    %199 = vector.broadcast %cst_57 : f32 to vector<32x1xf32>
    %200 = arith.divf %198, %199 : vector<32x1xf32>
    %201 = vector.broadcast %200 : vector<32x1xf32> to vector<32x32xf32>
    %202 = arith.subf %196, %201 : vector<32x32xf32>
    %203 = arith.mulf %202, %202 : vector<32x32xf32>
    %cst_58 = arith.constant dense<0.000000e+00> : vector<32xf32>
    %204 = vector.multi_reduction <add>, %203, %cst_58 [1] : vector<32x32xf32> to vector<32xf32>
    %205 = vector.shape_cast %204 : vector<32xf32> to vector<32x1xf32>
    %cst_59 = arith.constant 3.200000e+01 : f32
    %206 = vector.broadcast %cst_59 : f32 to vector<32x1xf32>
    %207 = arith.divf %205, %206 : vector<32x1xf32>
    %cst_60 = arith.constant 9.99999974E-6 : f32
    %208 = vector.broadcast %cst_60 : f32 to vector<32x1xf32>
    %209 = arith.addf %207, %208 : vector<32x1xf32>
    %210 = math.rsqrt %209 : vector<32x1xf32>
    %211 = vector.broadcast %210 : vector<32x1xf32> to vector<32x32xf32>
    %212 = arith.mulf %202, %211 : vector<32x32xf32>
    %213 = vector.broadcast %26 : vector<1x32xf32> to vector<32x32xf32>
    %214 = arith.mulf %212, %213 : vector<32x32xf32>
    %215 = vector.broadcast %27 : vector<1x32xf32> to vector<32x32xf32>
    %216 = arith.addf %214, %215 : vector<32x32xf32>
    %217 = vector.extract_strided_slice %25 {offsets = [0, 288], sizes = [32, 32], strides = [1, 1]} : vector<32x512xf32> to vector<32x32xf32>
    %cst_61 = arith.constant dense<0.000000e+00> : vector<32xf32>
    %218 = vector.multi_reduction <add>, %217, %cst_61 [1] : vector<32x32xf32> to vector<32xf32>
    %219 = vector.shape_cast %218 : vector<32xf32> to vector<32x1xf32>
    %cst_62 = arith.constant 3.200000e+01 : f32
    %220 = vector.broadcast %cst_62 : f32 to vector<32x1xf32>
    %221 = arith.divf %219, %220 : vector<32x1xf32>
    %222 = vector.broadcast %221 : vector<32x1xf32> to vector<32x32xf32>
    %223 = arith.subf %217, %222 : vector<32x32xf32>
    %224 = arith.mulf %223, %223 : vector<32x32xf32>
    %cst_63 = arith.constant dense<0.000000e+00> : vector<32xf32>
    %225 = vector.multi_reduction <add>, %224, %cst_63 [1] : vector<32x32xf32> to vector<32xf32>
    %226 = vector.shape_cast %225 : vector<32xf32> to vector<32x1xf32>
    %cst_64 = arith.constant 3.200000e+01 : f32
    %227 = vector.broadcast %cst_64 : f32 to vector<32x1xf32>
    %228 = arith.divf %226, %227 : vector<32x1xf32>
    %cst_65 = arith.constant 9.99999974E-6 : f32
    %229 = vector.broadcast %cst_65 : f32 to vector<32x1xf32>
    %230 = arith.addf %228, %229 : vector<32x1xf32>
    %231 = math.rsqrt %230 : vector<32x1xf32>
    %232 = vector.broadcast %231 : vector<32x1xf32> to vector<32x32xf32>
    %233 = arith.mulf %223, %232 : vector<32x32xf32>
    %234 = vector.broadcast %26 : vector<1x32xf32> to vector<32x32xf32>
    %235 = arith.mulf %233, %234 : vector<32x32xf32>
    %236 = vector.broadcast %27 : vector<1x32xf32> to vector<32x32xf32>
    %237 = arith.addf %235, %236 : vector<32x32xf32>
    %238 = vector.extract_strided_slice %25 {offsets = [0, 320], sizes = [32, 32], strides = [1, 1]} : vector<32x512xf32> to vector<32x32xf32>
    %cst_66 = arith.constant dense<0.000000e+00> : vector<32xf32>
    %239 = vector.multi_reduction <add>, %238, %cst_66 [1] : vector<32x32xf32> to vector<32xf32>
    %240 = vector.shape_cast %239 : vector<32xf32> to vector<32x1xf32>
    %cst_67 = arith.constant 3.200000e+01 : f32
    %241 = vector.broadcast %cst_67 : f32 to vector<32x1xf32>
    %242 = arith.divf %240, %241 : vector<32x1xf32>
    %243 = vector.broadcast %242 : vector<32x1xf32> to vector<32x32xf32>
    %244 = arith.subf %238, %243 : vector<32x32xf32>
    %245 = arith.mulf %244, %244 : vector<32x32xf32>
    %cst_68 = arith.constant dense<0.000000e+00> : vector<32xf32>
    %246 = vector.multi_reduction <add>, %245, %cst_68 [1] : vector<32x32xf32> to vector<32xf32>
    %247 = vector.shape_cast %246 : vector<32xf32> to vector<32x1xf32>
    %cst_69 = arith.constant 3.200000e+01 : f32
    %248 = vector.broadcast %cst_69 : f32 to vector<32x1xf32>
    %249 = arith.divf %247, %248 : vector<32x1xf32>
    %cst_70 = arith.constant 9.99999974E-6 : f32
    %250 = vector.broadcast %cst_70 : f32 to vector<32x1xf32>
    %251 = arith.addf %249, %250 : vector<32x1xf32>
    %252 = math.rsqrt %251 : vector<32x1xf32>
    %253 = vector.broadcast %252 : vector<32x1xf32> to vector<32x32xf32>
    %254 = arith.mulf %244, %253 : vector<32x32xf32>
    %255 = vector.broadcast %26 : vector<1x32xf32> to vector<32x32xf32>
    %256 = arith.mulf %254, %255 : vector<32x32xf32>
    %257 = vector.broadcast %27 : vector<1x32xf32> to vector<32x32xf32>
    %258 = arith.addf %256, %257 : vector<32x32xf32>
    %259 = vector.extract_strided_slice %25 {offsets = [0, 352], sizes = [32, 32], strides = [1, 1]} : vector<32x512xf32> to vector<32x32xf32>
    %cst_71 = arith.constant dense<0.000000e+00> : vector<32xf32>
    %260 = vector.multi_reduction <add>, %259, %cst_71 [1] : vector<32x32xf32> to vector<32xf32>
    %261 = vector.shape_cast %260 : vector<32xf32> to vector<32x1xf32>
    %cst_72 = arith.constant 3.200000e+01 : f32
    %262 = vector.broadcast %cst_72 : f32 to vector<32x1xf32>
    %263 = arith.divf %261, %262 : vector<32x1xf32>
    %264 = vector.broadcast %263 : vector<32x1xf32> to vector<32x32xf32>
    %265 = arith.subf %259, %264 : vector<32x32xf32>
    %266 = arith.mulf %265, %265 : vector<32x32xf32>
    %cst_73 = arith.constant dense<0.000000e+00> : vector<32xf32>
    %267 = vector.multi_reduction <add>, %266, %cst_73 [1] : vector<32x32xf32> to vector<32xf32>
    %268 = vector.shape_cast %267 : vector<32xf32> to vector<32x1xf32>
    %cst_74 = arith.constant 3.200000e+01 : f32
    %269 = vector.broadcast %cst_74 : f32 to vector<32x1xf32>
    %270 = arith.divf %268, %269 : vector<32x1xf32>
    %cst_75 = arith.constant 9.99999974E-6 : f32
    %271 = vector.broadcast %cst_75 : f32 to vector<32x1xf32>
    %272 = arith.addf %270, %271 : vector<32x1xf32>
    %273 = math.rsqrt %272 : vector<32x1xf32>
    %274 = vector.broadcast %273 : vector<32x1xf32> to vector<32x32xf32>
    %275 = arith.mulf %265, %274 : vector<32x32xf32>
    %276 = vector.broadcast %26 : vector<1x32xf32> to vector<32x32xf32>
    %277 = arith.mulf %275, %276 : vector<32x32xf32>
    %278 = vector.broadcast %27 : vector<1x32xf32> to vector<32x32xf32>
    %279 = arith.addf %277, %278 : vector<32x32xf32>
    %280 = vector.extract_strided_slice %25 {offsets = [0, 384], sizes = [32, 32], strides = [1, 1]} : vector<32x512xf32> to vector<32x32xf32>
    %cst_76 = arith.constant dense<0.000000e+00> : vector<32xf32>
    %281 = vector.multi_reduction <add>, %280, %cst_76 [1] : vector<32x32xf32> to vector<32xf32>
    %282 = vector.shape_cast %281 : vector<32xf32> to vector<32x1xf32>
    %cst_77 = arith.constant 3.200000e+01 : f32
    %283 = vector.broadcast %cst_77 : f32 to vector<32x1xf32>
    %284 = arith.divf %282, %283 : vector<32x1xf32>
    %285 = vector.broadcast %284 : vector<32x1xf32> to vector<32x32xf32>
    %286 = arith.subf %280, %285 : vector<32x32xf32>
    %287 = arith.mulf %286, %286 : vector<32x32xf32>
    %cst_78 = arith.constant dense<0.000000e+00> : vector<32xf32>
    %288 = vector.multi_reduction <add>, %287, %cst_78 [1] : vector<32x32xf32> to vector<32xf32>
    %289 = vector.shape_cast %288 : vector<32xf32> to vector<32x1xf32>
    %cst_79 = arith.constant 3.200000e+01 : f32
    %290 = vector.broadcast %cst_79 : f32 to vector<32x1xf32>
    %291 = arith.divf %289, %290 : vector<32x1xf32>
    %cst_80 = arith.constant 9.99999974E-6 : f32
    %292 = vector.broadcast %cst_80 : f32 to vector<32x1xf32>
    %293 = arith.addf %291, %292 : vector<32x1xf32>
    %294 = math.rsqrt %293 : vector<32x1xf32>
    %295 = vector.broadcast %294 : vector<32x1xf32> to vector<32x32xf32>
    %296 = arith.mulf %286, %295 : vector<32x32xf32>
    %297 = vector.broadcast %26 : vector<1x32xf32> to vector<32x32xf32>
    %298 = arith.mulf %296, %297 : vector<32x32xf32>
    %299 = vector.broadcast %27 : vector<1x32xf32> to vector<32x32xf32>
    %300 = arith.addf %298, %299 : vector<32x32xf32>
    %301 = vector.extract_strided_slice %25 {offsets = [0, 416], sizes = [32, 32], strides = [1, 1]} : vector<32x512xf32> to vector<32x32xf32>
    %cst_81 = arith.constant dense<0.000000e+00> : vector<32xf32>
    %302 = vector.multi_reduction <add>, %301, %cst_81 [1] : vector<32x32xf32> to vector<32xf32>
    %303 = vector.shape_cast %302 : vector<32xf32> to vector<32x1xf32>
    %cst_82 = arith.constant 3.200000e+01 : f32
    %304 = vector.broadcast %cst_82 : f32 to vector<32x1xf32>
    %305 = arith.divf %303, %304 : vector<32x1xf32>
    %306 = vector.broadcast %305 : vector<32x1xf32> to vector<32x32xf32>
    %307 = arith.subf %301, %306 : vector<32x32xf32>
    %308 = arith.mulf %307, %307 : vector<32x32xf32>
    %cst_83 = arith.constant dense<0.000000e+00> : vector<32xf32>
    %309 = vector.multi_reduction <add>, %308, %cst_83 [1] : vector<32x32xf32> to vector<32xf32>
    %310 = vector.shape_cast %309 : vector<32xf32> to vector<32x1xf32>
    %cst_84 = arith.constant 3.200000e+01 : f32
    %311 = vector.broadcast %cst_84 : f32 to vector<32x1xf32>
    %312 = arith.divf %310, %311 : vector<32x1xf32>
    %cst_85 = arith.constant 9.99999974E-6 : f32
    %313 = vector.broadcast %cst_85 : f32 to vector<32x1xf32>
    %314 = arith.addf %312, %313 : vector<32x1xf32>
    %315 = math.rsqrt %314 : vector<32x1xf32>
    %316 = vector.broadcast %315 : vector<32x1xf32> to vector<32x32xf32>
    %317 = arith.mulf %307, %316 : vector<32x32xf32>
    %318 = vector.broadcast %26 : vector<1x32xf32> to vector<32x32xf32>
    %319 = arith.mulf %317, %318 : vector<32x32xf32>
    %320 = vector.broadcast %27 : vector<1x32xf32> to vector<32x32xf32>
    %321 = arith.addf %319, %320 : vector<32x32xf32>
    %322 = vector.extract_strided_slice %25 {offsets = [0, 448], sizes = [32, 32], strides = [1, 1]} : vector<32x512xf32> to vector<32x32xf32>
    %cst_86 = arith.constant dense<0.000000e+00> : vector<32xf32>
    %323 = vector.multi_reduction <add>, %322, %cst_86 [1] : vector<32x32xf32> to vector<32xf32>
    %324 = vector.shape_cast %323 : vector<32xf32> to vector<32x1xf32>
    %cst_87 = arith.constant 3.200000e+01 : f32
    %325 = vector.broadcast %cst_87 : f32 to vector<32x1xf32>
    %326 = arith.divf %324, %325 : vector<32x1xf32>
    %327 = vector.broadcast %326 : vector<32x1xf32> to vector<32x32xf32>
    %328 = arith.subf %322, %327 : vector<32x32xf32>
    %329 = arith.mulf %328, %328 : vector<32x32xf32>
    %cst_88 = arith.constant dense<0.000000e+00> : vector<32xf32>
    %330 = vector.multi_reduction <add>, %329, %cst_88 [1] : vector<32x32xf32> to vector<32xf32>
    %331 = vector.shape_cast %330 : vector<32xf32> to vector<32x1xf32>
    %cst_89 = arith.constant 3.200000e+01 : f32
    %332 = vector.broadcast %cst_89 : f32 to vector<32x1xf32>
    %333 = arith.divf %331, %332 : vector<32x1xf32>
    %cst_90 = arith.constant 9.99999974E-6 : f32
    %334 = vector.broadcast %cst_90 : f32 to vector<32x1xf32>
    %335 = arith.addf %333, %334 : vector<32x1xf32>
    %336 = math.rsqrt %335 : vector<32x1xf32>
    %337 = vector.broadcast %336 : vector<32x1xf32> to vector<32x32xf32>
    %338 = arith.mulf %328, %337 : vector<32x32xf32>
    %339 = vector.broadcast %26 : vector<1x32xf32> to vector<32x32xf32>
    %340 = arith.mulf %338, %339 : vector<32x32xf32>
    %341 = vector.broadcast %27 : vector<1x32xf32> to vector<32x32xf32>
    %342 = arith.addf %340, %341 : vector<32x32xf32>
    %343 = vector.extract_strided_slice %25 {offsets = [0, 480], sizes = [32, 32], strides = [1, 1]} : vector<32x512xf32> to vector<32x32xf32>
    %cst_91 = arith.constant dense<0.000000e+00> : vector<32xf32>
    %344 = vector.multi_reduction <add>, %343, %cst_91 [1] : vector<32x32xf32> to vector<32xf32>
    %345 = vector.shape_cast %344 : vector<32xf32> to vector<32x1xf32>
    %cst_92 = arith.constant 3.200000e+01 : f32
    %346 = vector.broadcast %cst_92 : f32 to vector<32x1xf32>
    %347 = arith.divf %345, %346 : vector<32x1xf32>
    %348 = vector.broadcast %347 : vector<32x1xf32> to vector<32x32xf32>
    %349 = arith.subf %343, %348 : vector<32x32xf32>
    %350 = arith.mulf %349, %349 : vector<32x32xf32>
    %cst_93 = arith.constant dense<0.000000e+00> : vector<32xf32>
    %351 = vector.multi_reduction <add>, %350, %cst_93 [1] : vector<32x32xf32> to vector<32xf32>
    %352 = vector.shape_cast %351 : vector<32xf32> to vector<32x1xf32>
    %cst_94 = arith.constant 3.200000e+01 : f32
    %353 = vector.broadcast %cst_94 : f32 to vector<32x1xf32>
    %354 = arith.divf %352, %353 : vector<32x1xf32>
    %cst_95 = arith.constant 9.99999974E-6 : f32
    %355 = vector.broadcast %cst_95 : f32 to vector<32x1xf32>
    %356 = arith.addf %354, %355 : vector<32x1xf32>
    %357 = math.rsqrt %356 : vector<32x1xf32>
    %358 = vector.broadcast %357 : vector<32x1xf32> to vector<32x32xf32>
    %359 = arith.mulf %349, %358 : vector<32x32xf32>
    %360 = vector.broadcast %26 : vector<1x32xf32> to vector<32x32xf32>
    %361 = arith.mulf %359, %360 : vector<32x32xf32>
    %362 = vector.broadcast %27 : vector<1x32xf32> to vector<32x32xf32>
    %363 = arith.addf %361, %362 : vector<32x32xf32>
    %364 = tpu.concatenate %48, %69, %90, %111, %132, %153, %174, %195, %216, %237, %258, %279, %300, %321, %342, %363 in 1 : vector<32x32xf32>, vector<32x32xf32>, vector<32x32xf32>, vector<32x32xf32>, vector<32x32xf32>, vector<32x32xf32>, vector<32x32xf32>, vector<32x32xf32>, vector<32x32xf32>, vector<32x32xf32>, vector<32x32xf32>, vector<32x32xf32>, vector<32x32xf32>, vector<32x32xf32>, vector<32x32xf32>, vector<32x32xf32> -> vector<32x512xf32>
    %c0_96 = arith.constant 0 : index
    %c0_97 = arith.constant 0 : index
    %365 = vector.load %arg7[%c0_96, %c0_97] : memref<32x512xf32, #tpu.memory_space<vmem>>, vector<32x512xf32>
    tpu.vector_store %arg7[%c0_96, %c0_97], %364 {strides = array<i32>} : memref<32x512xf32, #tpu.memory_space<vmem>>, vector<32x512xf32>,
    return
  }
  func.func @transform_0(%arg0: i32) -> (i32, i32) {
    %c0_i32 = arith.constant 0 : i32
    %c0_i32_0 = arith.constant 0 : i32
    return %arg0, %c0_i32 : i32, i32
  }
  func.func @transform_1(%arg0: i32) -> (i32, i32) {
    %c0_i32 = arith.constant 0 : i32
    %c0_i32_0 = arith.constant 0 : i32
    %c0_i32_1 = arith.constant 0 : i32
    return %c0_i32, %c0_i32_0 : i32, i32
  }
  func.func @transform_2(%arg0: i32) -> (i32, i32) {
    %c0_i32 = arith.constant 0 : i32
    %c0_i32_0 = arith.constant 0 : i32
    %c0_i32_1 = arith.constant 0 : i32
    return %c0_i32, %c0_i32_0 : i32, i32
  }
  func.func @transform_3(%arg0: i32) -> (i32, i32) {
    %c0_i32 = arith.constant 0 : i32
    %c0_i32_0 = arith.constant 0 : i32
    %c0_i32_1 = arith.constant 0 : i32
    return %c0_i32, %c0_i32_0 : i32, i32
  }
  func.func @transform_4(%arg0: i32) -> (i32, i32) {
    %c0_i32 = arith.constant 0 : i32
    %c0_i32_0 = arith.constant 0 : i32
    %c0_i32_1 = arith.constant 0 : i32
    return %c0_i32, %c0_i32_0 : i32, i32
  }
  func.func @transform_5(%arg0: i32) -> (i32, i32) {
    %c0_i32 = arith.constant 0 : i32
    %c0_i32_0 = arith.constant 0 : i32
    %c0_i32_1 = arith.constant 0 : i32
    return %c0_i32, %c0_i32_0 : i32, i32
  }
  func.func @transform_6(%arg0: i32) -> (i32, i32) {
    %c0_i32 = arith.constant 0 : i32
    %c0_i32_0 = arith.constant 0 : i32
    return %arg0, %c0_i32 : i32, i32
  }
}

module attributes {stable_mosaic.version = 11 : i64} {
  func.func @_linear_nobias_kernel(%arg0: i32, %arg1: memref<512x32xf32, #tpu.memory_space<vmem>>, %arg2: memref<32x128xbf16, #tpu.memory_space<vmem>>, %arg3: memref<512x128xf32, #tpu.memory_space<vmem>>) attributes {dimension_semantics = [#tpu.dimension_semantics<parallel>], iteration_bounds = array<i64: 1>, scalar_prefetch = 0 : i64, scratch_operands = 0 : i64, tpu.core_type = #tpu.core_type<tc>, window_params = [{transform_indices = @transform_0, window_bounds = array<i64: 512, 32>}, {pipeline_mode = #tpu.pipeline_mode<synchronous>, transform_indices = @transform_1, window_bounds = array<i64: 32, 128>}, {transform_indices = @transform_2, window_bounds = array<i64: 512, 128>}]} {
    %c0 = arith.constant 0 : index
    %c0_0 = arith.constant 0 : index
    %0 = vector.load %arg1[%c0, %c0_0] : memref<512x32xf32, #tpu.memory_space<vmem>>, vector<512x32xf32>
    %c0_1 = arith.constant 0 : index
    %c0_2 = arith.constant 0 : index
    %1 = vector.load %arg2[%c0_1, %c0_2] : memref<32x128xbf16, #tpu.memory_space<vmem>>, vector<32x128xbf16>
    %2 = arith.truncf %0 : vector<512x32xf32> to vector<512x32xbf16>
    %cst = arith.constant dense<0.000000e+00> : vector<512x128xf32>
    %3 = tpu.matmul %2, %1, %cst {dimension_numbers = #tpu.dot_dimension_numbers<[1], [0], [0], [1], [0, 0, 1, 1], [], []>} : vector<512x32xbf16>, vector<32x128xbf16>, vector<512x128xf32> -> vector<512x128xf32>
    %c0_3 = arith.constant 0 : index
    %c0_4 = arith.constant 0 : index
    %4 = vector.load %arg3[%c0_3, %c0_4] : memref<512x128xf32, #tpu.memory_space<vmem>>, vector<512x128xf32>
    tpu.vector_store %arg3[%c0_3, %c0_4], %3 {strides = array<i32>} : memref<512x128xf32, #tpu.memory_space<vmem>>, vector<512x128xf32>,
    return
  }
  func.func @transform_0(%arg0: i32) -> (i32, i32) {
    %c0_i32 = arith.constant 0 : i32
    %c0_i32_0 = arith.constant 0 : i32
    return %arg0, %c0_i32 : i32, i32
  }
  func.func @transform_1(%arg0: i32) -> (i32, i32) {
    %c0_i32 = arith.constant 0 : i32
    %c0_i32_0 = arith.constant 0 : i32
    %c0_i32_1 = arith.constant 0 : i32
    return %c0_i32, %c0_i32_0 : i32, i32
  }
  func.func @transform_2(%arg0: i32) -> (i32, i32) {
    %c0_i32 = arith.constant 0 : i32
    %c0_i32_0 = arith.constant 0 : i32
    return %arg0, %c0_i32 : i32, i32
  }
}

</mosaic_0001>

<llo_original>
// kernel: swin_unet_forward.12
$region0: #{swin_unet_forward.12}
  #allocation0 [shape = 'u32[]', space=smem, size = 0x4, offset = 0x4, fixed_abs, tag = 'smem constant byte address 0x4 - core index']
  #allocation1 [shape = 'u32[144,128]{1,0:T(1,128)}', space=vmem, size = 0x12000, scoped, tag = 'internal scratch']
  %s0 = inlined_call_operand.vmem [shape: f32[32,48], index: 0, kind: input, shape index: {}]
  %s1 = inlined_call_operand.vmem [shape: bf16[48,32], index: 1, kind: input, shape index: {}]
  %s2 = inlined_call_operand.vmem [shape: f32[1,32], index: 2, kind: input, shape index: {}]
  %s3 = inlined_call_operand.vmem [shape: f32[1,32], index: 3, kind: input, shape index: {}]
  %s4 = inlined_call_operand.vmem [shape: f32[1,32], index: 4, kind: input, shape index: {}]
  %s5 = inlined_call_operand.vmem [shape: f32[32,32], index: 5, kind: output, shape index: {}]
  %s6 = sld [smem:[#allocation0]]
  $region30: #{swin_unet_forward.12} parent=0
    _
  %s8 = ssub.s32 1, %s6
  %s9 = scalar_select 0, %s8, %s6
  // Predicated region
  $region2: #{swin_unet_forward.12} parent=0 // pred_check
    _
  $region3: #{swin_unet_forward.12} parent=0 // pred_check_branch
    %11 = sbr.rel (0) target = $region5
  $region4: #{swin_unet_forward.12} parent=0 // pred_region
    _
  $region5: #{swin_unet_forward.12} parent=0 // pred_fallthru
    _
  // Predicated region
  $region6: #{swin_unet_forward.12} parent=0 // pred_check
    _
  $region7: #{swin_unet_forward.12} parent=0 // pred_check_branch
    %13 = sbr.rel (0) target = $region9
  $region8: #{swin_unet_forward.12} parent=0 // pred_region
    _
  $region9: #{swin_unet_forward.12} parent=0 // pred_fallthru
    _
  // Predicated region
  $region10: #{swin_unet_forward.12} parent=0 // pred_check
    _
  $region11: #{swin_unet_forward.12} parent=0 // pred_check_branch
    %15 = sbr.rel (0) target = $region13
  $region12: #{swin_unet_forward.12} parent=0 // pred_region
    _
  $region13: #{swin_unet_forward.12} parent=0 // pred_fallthru
    _
  // Predicated region
  $region14: #{swin_unet_forward.12} parent=0 // pred_check
    _
  $region15: #{swin_unet_forward.12} parent=0 // pred_check_branch
    %17 = sbr.rel (0) target = $region17
  $region16: #{swin_unet_forward.12} parent=0 // pred_region
    _
  $region17: #{swin_unet_forward.12} parent=0 // pred_fallthru
    _
  // Predicated region
  $region18: #{swin_unet_forward.12} parent=0 // pred_check
    _
  $region19: #{swin_unet_forward.12} parent=0 // pred_check_branch
    %19 = sbr.rel (0) target = $region21
  $region20: #{swin_unet_forward.12} parent=0 // pred_region
    _
  $region21: #{swin_unet_forward.12} parent=0 // pred_fallthru
    _
  %v21 = vld [vmem:[%s0] sm:$0xff]
  %v22 = vld [vmem:[%s0 + $0x8] sm:$0xff]
  %v23 = vld [vmem:[%s0 + $0x10] sm:$0xff]
  %v24 = vld [vmem:[%s0 + $0x18] sm:$0xff]
  %v25 = vld [vmem:[%s1] sm:$0xf]
  %v26 = vld [vmem:[%s1 + $0x4] sm:$0xf]
  %v27 = vld [vmem:[%s1 + $0x8] sm:$0xf]
  %v28 = vld [vmem:[%s1 + $0xc] sm:$0xf]
  %v29 = vld [vmem:[%s1 + $0x10] sm:$0xf]
  %v30 = vld [vmem:[%s1 + $0x14] sm:$0xf]
  %v31 = vpack.c.bf16 %v22, %v21
  %v32 = vpack.c.bf16 %v24, %v23
  %v33 = vld [vmem:[%s2] sm:$0x1]
  %v35 = vlaneseq
  %v36 = vshrl.u32 %v35, 7
  %v37 = vsub.s32 0, %v36
  %v38 = vrot.slane %v33, %v37
  %v46 = vunpack.c.l.b16 %v25
  %v47 = vunpack.c.l.b16 %v26
  %v48 = vunpack.c.l.b16 %v27
  %v49 = vunpack.c.l.b16 %v28
  %v50 = vunpack.c.l.b16 %v29
  %v51 = vunpack.c.l.b16 %v30
  %v52 = vpack.c.b16 %v47, %v46
  %v53 = vpack.c.b16 %v49, %v48
  %v54 = vpack.c.b16 %v51, %v50
  %vm58 = vcmask 392192
  %v60 = vsel %vm58, %v31, 0
  %v63 = vsel %vm58, %v32, 0
  %65 = vmatprep.subr.bf16.mxu0 0
  %66 = vmatpush1.bf16.msra.mxu0 %v52
  %67 = vmatprep.subr.bf16.mxu0 0
  %68 = vmatpush1.bf16.msra.mxu0 %v53
  %69 = vmatprep.subr.bf16.mxu0 0
  %70 = vmatpush1.bf16.msra.mxu0 %v54
  %71 = vmatprep.subr.bf16.mxu0 0
  %72 = vmatpush1.bf16.msra.mxu0 0
  %73 = vmatprep.subr.bf16.mxu0 0
  %74 = vmatpush1.bf16.msra.mxu0 0
  %75 = vmatprep.subr.bf16.mxu0 0
  %76 = vmatpush1.bf16.msra.mxu0 0
  %77 = vmatprep.subr.bf16.mxu0 0
  %78 = vmatpush1.bf16.msra.mxu0 0
  %79 = vmatprep.subr.bf16.mxu0 0
  %80 = vmatpush1.bf16.msra.mxu0 0
  %81 = vmatprep.subr.bf16.mxu0 0
  %82 = vmatpush1.bf16.msra.mxu0 0
  %83 = vmatprep.subr.bf16.mxu0 0
  %84 = vmatpush1.bf16.msra.mxu0 0
  %85 = vmatprep.subr.bf16.mxu0 0
  %86 = vmatpush1.bf16.msra.mxu0 0
  %87 = vmatprep.subr.bf16.mxu0 0
  %88 = vmatpush1.bf16.msra.mxu0 0
  %89 = vmatprep.subr.bf16.mxu0 0
  %90 = vmatpush1.bf16.msra.mxu0 0
  %91 = vmatprep.subr.bf16.mxu0 0
  %92 = vmatpush1.bf16.msra.mxu0 0
  %93 = vmatprep.subr.bf16.mxu0 0
  %94 = vmatpush1.bf16.msra.mxu0 0
  %95 = vmatprep.subr.bf16.mxu0 0
  %96 = vmatpush1.bf16.msra.mxu0 0
  %97 = vmatprep.mubr.bf16.mxu0 0
  %98 = vmatmul.mubr.bf16.gmra.mrb[0].mxu0 %v60
  %v99 = vpop.f32.mrb[0].mxu0
  %v100 = vadd.f32 %v38, %v99
  %v101 = vpop.f32.mrb[0].mxu0
  %v102 = vpop.f32.mrb[0].mxu0
  %v103 = vadd.f32 %v38, %v102
  %v104 = vpop.f32.mrb[0].mxu0
  %105 = vmatprep.mubr.bf16.mxu0 0
  %106 = vmatmul.mubr.bf16.gmra.mrb[0].mxu0 %v63
  %v107 = vpop.f32.mrb[0].mxu0
  %v108 = vadd.f32 %v38, %v107
  %v109 = vpop.f32.mrb[0].mxu0
  %v110 = vpop.f32.mrb[0].mxu0
  %v111 = vadd.f32 %v38, %v110
  %v112 = vpop.f32.mrb[0].mxu0
  %113 = vdwg.mxu0
  %v114 = vld [vmem:[%s3] sm:$0x1]
  %v115 = vld [vmem:[%s4] sm:$0x1]
  %vm116 = vcmask 261120
  %v117 = vsel %vm116, %v100, 0.0
  %118 = vadd.xlane.f32.xlu0 %v117
  %v119 = vpop.xlane.xlu0 %118
  %v120 = vsel %vm116, %v103, 0.0
  %121 = vadd.xlane.f32.xlu0 %v120
  %v122 = vpop.xlane.xlu0 %121
  %v123 = vsel %vm116, %v108, 0.0
  %124 = vadd.xlane.f32.xlu0 %v123
  %v125 = vpop.xlane.xlu0 %124
  %v126 = vsel %vm116, %v111, 0.0
  %127 = vadd.xlane.f32.xlu0 %v126
  %v128 = vpop.xlane.xlu0 %127
  %v129 = vrcp.pop 32.0
  %v130 = vmul.f32 %v119, %v129
  %v131 = vmul.f32 %v122, %v129
  %v132 = vmul.f32 %v125, %v129
  %v133 = vmul.f32 %v128, %v129
  %v134 = vsub.f32 %v100, %v130
  %v135 = vsub.f32 %v103, %v131
  %v136 = vsub.f32 %v108, %v132
  %v137 = vsub.f32 %v111, %v133
  %v138 = vmul.f32 %v134, %v134
  %v139 = vmul.f32 %v135, %v135
  %v140 = vmul.f32 %v136, %v136
  %v141 = vmul.f32 %v137, %v137
  %v142 = vsel %vm116, %v138, 0.0
  %143 = vadd.xlane.f32.xlu0 %v142
  %v144 = vpop.xlane.xlu0 %143
  %v145 = vsel %vm116, %v139, 0.0
  %146 = vadd.xlane.f32.xlu0 %v145
  %v147 = vpop.xlane.xlu0 %146
  %v148 = vsel %vm116, %v140, 0.0
  %149 = vadd.xlane.f32.xlu0 %v148
  %v150 = vpop.xlane.xlu0 %149
  %v151 = vsel %vm116, %v141, 0.0
  %152 = vadd.xlane.f32.xlu0 %v151
  %v153 = vpop.xlane.xlu0 %152
  %v154 = vmul.f32 %v144, %v129
  %v155 = vmul.f32 %v147, %v129
  %v156 = vmul.f32 %v150, %v129
  %v157 = vmul.f32 %v153, %v129
  %v158 = vadd.f32 %v154, 1e-05
  %v159 = vadd.f32 %v155, 1e-05
  %v160 = vadd.f32 %v156, 1e-05
  %v161 = vadd.f32 %v157, 1e-05
  %v162 = vrsqrt.pop %v158
  %v163 = vrsqrt.pop %v159
  %v164 = vrsqrt.pop %v160
  %v165 = vrsqrt.pop %v161
  %v166 = vmul.f32 %v134, %v162
  %v167 = vmul.f32 %v135, %v163
  %v168 = vmul.f32 %v136, %v164
  %v169 = vmul.f32 %v137, %v165
  %v171 = vlaneseq
  %v172 = vshrl.u32 %v171, 7
  %v173 = vsub.s32 0, %v172
  %v174 = vrot.slane %v114, %v173
  %v176 = vmul.f32 %v166, %v174
  %v177 = vmul.f32 %v167, %v174
  %v178 = vmul.f32 %v168, %v174
  %v179 = vmul.f32 %v169, %v174
  %v181 = vlaneseq
  %v182 = vshrl.u32 %v181, 7
  %v183 = vsub.s32 0, %v182
  %v184 = vrot.slane %v115, %v183
  %v186 = vadd.f32 %v176, %v184
  %v187 = vadd.f32 %v177, %v184
  %v188 = vadd.f32 %v178, %v184
  %v189 = vadd.f32 %v179, %v184
  %190 = vst.msk [vmem:[%s5] sm:$0xff] %vm116, %v186
  %191 = vst.msk [vmem:[%s5 + $0x8] sm:$0xff] %vm116, %v187
  %192 = vst.msk [vmem:[%s5 + $0x10] sm:$0xff] %vm116, %v188
  %193 = vst.msk [vmem:[%s5 + $0x18] sm:$0xff] %vm116, %v189
  // Predicated region
  $region22: #{swin_unet_forward.12} parent=0 // pred_check
    _
  $region23: #{swin_unet_forward.12} parent=0 // pred_check_branch
    %195 = sbr.rel (0) target = $region25
  $region24: #{swin_unet_forward.12} parent=0 // pred_region
    _
  $region25: #{swin_unet_forward.12} parent=0 // pred_fallthru
    _
  // Predicated region
  $region26: #{swin_unet_forward.12} parent=0 // pred_check
    _
  $region27: #{swin_unet_forward.12} parent=0 // pred_check_branch
    %197 = sbr.rel (0) target = $region29
  $region28: #{swin_unet_forward.12} parent=0 // pred_region
    _
  $region29: #{swin_unet_forward.12} parent=0 // pred_fallthru
    _

// kernel: swin_unet_forward.15
$region0: #{swin_unet_forward.15}
  #allocation0 [shape = 'u32[]', space=smem, size = 0x4, offset = 0x4, fixed_abs, tag = 'smem constant byte address 0x4 - core index']
  #allocation1 [shape = 'u32[144,128]{1,0:T(1,128)}', space=vmem, size = 0x12000, scoped, tag = 'internal scratch']
  %s0 = inlined_call_operand.vmem [shape: f32[8,128], index: 0, kind: input, shape index: {}]
  %s1 = inlined_call_operand.vmem [shape: f32[1,128], index: 1, kind: input, shape index: {}]
  %s2 = inlined_call_operand.vmem [shape: f32[1,128], index: 2, kind: input, shape index: {}]
  %s3 = inlined_call_operand.vmem [shape: bf16[128,64], index: 3, kind: input, shape index: {}]
  %s4 = inlined_call_operand.vmem [shape: f32[8,64], index: 4, kind: output, shape index: {}]
  %s5 = sld [smem:[#allocation0]]
  $region26: #{swin_unet_forward.15} parent=0
    _
  %s7 = ssub.s32 1, %s5
  %s8 = scalar_select 0, %s7, %s5
  // Predicated region
  $region2: #{swin_unet_forward.15} parent=0 // pred_check
    _
  $region3: #{swin_unet_forward.15} parent=0 // pred_check_branch
    %10 = sbr.rel (0) target = $region5
  $region4: #{swin_unet_forward.15} parent=0 // pred_region
    _
  $region5: #{swin_unet_forward.15} parent=0 // pred_fallthru
    _
  // Predicated region
  $region6: #{swin_unet_forward.15} parent=0 // pred_check
    _
  $region7: #{swin_unet_forward.15} parent=0 // pred_check_branch
    %12 = sbr.rel (0) target = $region9
  $region8: #{swin_unet_forward.15} parent=0 // pred_region
    _
  $region9: #{swin_unet_forward.15} parent=0 // pred_fallthru
    _
  // Predicated region
  $region10: #{swin_unet_forward.15} parent=0 // pred_check
    _
  $region11: #{swin_unet_forward.15} parent=0 // pred_check_branch
    %14 = sbr.rel (0) target = $region13
  $region12: #{swin_unet_forward.15} parent=0 // pred_region
    _
  $region13: #{swin_unet_forward.15} parent=0 // pred_fallthru
    _
  // Predicated region
  $region14: #{swin_unet_forward.15} parent=0 // pred_check
    _
  $region15: #{swin_unet_forward.15} parent=0 // pred_check_branch
    %16 = sbr.rel (0) target = $region17
  $region16: #{swin_unet_forward.15} parent=0 // pred_region
    _
  $region17: #{swin_unet_forward.15} parent=0 // pred_fallthru
    _
  %v18 = vld [vmem:[%s0] sm:$0xff]
  %v19 = vld [vmem:[%s1] sm:$0x1]
  %v20 = vld [vmem:[%s2] sm:$0x1]
  %21 = vadd.xlane.f32.xlu0 %v18
  %v22 = vpop.xlane.xlu0 %21
  %v23 = vrcp.pop 128.0
  %v24 = vmul.f32 %v22, %v23
  %v25 = vsub.f32 %v18, %v24
  %v26 = vmul.f32 %v25, %v25
  %27 = vadd.xlane.f32.xlu0 %v26
  %v28 = vpop.xlane.xlu0 %27
  %v29 = vmul.f32 %v28, %v23
  %v30 = vadd.f32 %v29, 1e-05
  %v31 = vrsqrt.pop %v30
  %v32 = vmul.f32 %v25, %v31
  %v34 = vlaneseq
  %v35 = vshrl.u32 %v34, 7
  %v36 = vsub.s32 0, %v35
  %v37 = vrot.slane %v19, %v36
  %v39 = vmul.f32 %v32, %v37
  %v41 = vlaneseq
  %v42 = vshrl.u32 %v41, 7
  %v43 = vsub.s32 0, %v42
  %v44 = vrot.slane %v20, %v43
  %v46 = vadd.f32 %v39, %v44
  %v47 = vld [vmem:[%s3] sm:$0xf]
  %v48 = vld [vmem:[%s3 + $0x4] sm:$0xf]
  %v49 = vld [vmem:[%s3 + $0x8] sm:$0xf]
  %v50 = vld [vmem:[%s3 + $0xc] sm:$0xf]
  %v51 = vld [vmem:[%s3 + $0x10] sm:$0xf]
  %v52 = vld [vmem:[%s3 + $0x14] sm:$0xf]
  %v53 = vld [vmem:[%s3 + $0x18] sm:$0xf]
  %v54 = vld [vmem:[%s3 + $0x1c] sm:$0xf]
  %v55 = vld [vmem:[%s3 + $0x20] sm:$0xf]
  %v56 = vld [vmem:[%s3 + $0x24] sm:$0xf]
  %v57 = vld [vmem:[%s3 + $0x28] sm:$0xf]
  %v58 = vld [vmem:[%s3 + $0x2c] sm:$0xf]
  %v59 = vld [vmem:[%s3 + $0x30] sm:$0xf]
  %v60 = vld [vmem:[%s3 + $0x34] sm:$0xf]
  %v61 = vld [vmem:[%s3 + $0x38] sm:$0xf]
  %v62 = vld [vmem:[%s3 + $0x3c] sm:$0xf]
  %v63 = vpack.c.bf16 %v46, %v46
  %v80 = vunpack.c.l.b16 %v47
  %v81 = vunpack.c.l.b16 %v48
  %v82 = vunpack.c.l.b16 %v49
  %v83 = vunpack.c.l.b16 %v50
  %v84 = vunpack.c.l.b16 %v51
  %v85 = vunpack.c.l.b16 %v52
  %v86 = vunpack.c.l.b16 %v53
  %v87 = vunpack.c.l.b16 %v54
  %v88 = vunpack.c.l.b16 %v55
  %v89 = vunpack.c.l.b16 %v56
  %v90 = vunpack.c.l.b16 %v57
  %v91 = vunpack.c.l.b16 %v58
  %v92 = vunpack.c.l.b16 %v59
  %v93 = vunpack.c.l.b16 %v60
  %v94 = vunpack.c.l.b16 %v61
  %v95 = vunpack.c.l.b16 %v62
  %v96 = vpack.c.b16 %v81, %v80
  %v97 = vpack.c.b16 %v83, %v82
  %v98 = vpack.c.b16 %v85, %v84
  %v99 = vpack.c.b16 %v87, %v86
  %v100 = vpack.c.b16 %v89, %v88
  %v101 = vpack.c.b16 %v91, %v90
  %v102 = vpack.c.b16 %v93, %v92
  %v103 = vpack.c.b16 %v95, %v94
  %112 = vmatprep.subr.bf16.mxu0 0
  %113 = vmatpush1.bf16.msra.mxu0 %v96
  %114 = vmatprep.subr.bf16.mxu0 0
  %115 = vmatpush1.bf16.msra.mxu0 %v97
  %116 = vmatprep.subr.bf16.mxu0 0
  %117 = vmatpush1.bf16.msra.mxu0 %v98
  %118 = vmatprep.subr.bf16.mxu0 0
  %119 = vmatpush1.bf16.msra.mxu0 %v99
  %120 = vmatprep.subr.bf16.mxu0 0
  %121 = vmatpush1.bf16.msra.mxu0 %v100
  %122 = vmatprep.subr.bf16.mxu0 0
  %123 = vmatpush1.bf16.msra.mxu0 %v101
  %124 = vmatprep.subr.bf16.mxu0 0
  %125 = vmatpush1.bf16.msra.mxu0 %v102
  %126 = vmatprep.subr.bf16.mxu0 0
  %127 = vmatpush1.bf16.msra.mxu0 %v103
  %128 = vmatprep.subr.bf16.mxu0 0
  %129 = vmatpush1.bf16.msra.mxu0 0
  %130 = vmatprep.subr.bf16.mxu0 0
  %131 = vmatpush1.bf16.msra.mxu0 0
  %132 = vmatprep.subr.bf16.mxu0 0
  %133 = vmatpush1.bf16.msra.mxu0 0
  %134 = vmatprep.subr.bf16.mxu0 0
  %135 = vmatpush1.bf16.msra.mxu0 0
  %136 = vmatprep.subr.bf16.mxu0 0
  %137 = vmatpush1.bf16.msra.mxu0 0
  %138 = vmatprep.subr.bf16.mxu0 0
  %139 = vmatpush1.bf16.msra.mxu0 0
  %140 = vmatprep.subr.bf16.mxu0 0
  %141 = vmatpush1.bf16.msra.mxu0 0
  %142 = vmatprep.subr.bf16.mxu0 0
  %143 = vmatpush1.bf16.msra.mxu0 0
  %144 = vmatprep.mubr.bf16.mxu0 0
  %145 = vmatmul.mubr.bf16.gmra.mrb[0].mxu0 %v63
  %v146 = vpop.f32.mrb[0].mxu0
  %v147 = vadd.f32 0.0, %v146
  %v148 = vpop.f32.mrb[0].mxu0
  %v149 = vpop.f32.mrb[0].mxu0
  %v150 = vpop.f32.mrb[0].mxu0
  %151 = vdwg.mxu0
  %vm152 = vcmask 523264
  %153 = vst.msk [vmem:[%s4] sm:$0xff] %vm152, %v147
  // Predicated region
  $region18: #{swin_unet_forward.15} parent=0 // pred_check
    _
  $region19: #{swin_unet_forward.15} parent=0 // pred_check_branch
    %155 = sbr.rel (0) target = $region21
  $region20: #{swin_unet_forward.15} parent=0 // pred_region
    _
  $region21: #{swin_unet_forward.15} parent=0 // pred_fallthru
    _
  // Predicated region
  $region22: #{swin_unet_forward.15} parent=0 // pred_check
    _
  $region23: #{swin_unet_forward.15} parent=0 // pred_check_branch
    %157 = sbr.rel (0) target = $region25
  $region24: #{swin_unet_forward.15} parent=0 // pred_region
    _
  $region25: #{swin_unet_forward.15} parent=0 // pred_fallthru
    _

// kernel: swin_unet_forward.13
$region0: #{swin_unet_forward.13}
  #allocation0 [shape = 'u32[]', space=smem, size = 0x4, offset = 0x4, fixed_abs, tag = 'smem constant byte address 0x4 - core index']
  #allocation1 [shape = 'u32[144,128]{1,0:T(1,128)}', space=vmem, size = 0x12000, scoped, tag = 'internal scratch']
  %s0 = inlined_call_operand.vmem [shape: f32[32,32], index: 0, kind: input, shape index: {}]
  %s1 = inlined_call_operand.vmem [shape: bf16[32,96], index: 1, kind: input, shape index: {}]
  %s2 = inlined_call_operand.vmem [shape: f32[1,96], index: 2, kind: input, shape index: {}]
  %s3 = inlined_call_operand.vmem [shape: f32[1,32], index: 3, kind: input, shape index: {}]
  %s4 = inlined_call_operand.vmem [shape: f32[1,32], index: 4, kind: input, shape index: {}]
  %s5 = inlined_call_operand.vmem [shape: bf16[32,32], index: 5, kind: input, shape index: {}]
  %s6 = inlined_call_operand.vmem [shape: f32[1,32], index: 6, kind: input, shape index: {}]
  %s7 = inlined_call_operand.vmem [shape: f32[2,32,32], index: 7, kind: input, shape index: {}]
  %s8 = inlined_call_operand.vmem [shape: f32[1,32], index: 8, kind: input, shape index: {}]
  %s9 = inlined_call_operand.vmem [shape: f32[1,32], index: 9, kind: input, shape index: {}]
  %s10 = inlined_call_operand.vmem [shape: bf16[32,128], index: 10, kind: input, shape index: {}]
  %s11 = inlined_call_operand.vmem [shape: f32[1,128], index: 11, kind: input, shape index: {}]
  %s12 = inlined_call_operand.vmem [shape: bf16[128,32], index: 12, kind: input, shape index: {}]
  %s13 = inlined_call_operand.vmem [shape: f32[1,32], index: 13, kind: input, shape index: {}]
  %s14 = inlined_call_operand.vmem [shape: f32[32,32], index: 14, kind: output, shape index: {}]
  %s15 = sld [smem:[#allocation0]]
  $region66: #{swin_unet_forward.13} parent=0
    _
  %s17 = ssub.s32 1, %s15
  %s18 = scalar_select 0, %s17, %s15
  // Predicated region
  $region2: #{swin_unet_forward.13} parent=0 // pred_check
    _
  $region3: #{swin_unet_forward.13} parent=0 // pred_check_branch
    %20 = sbr.rel (0) target = $region5
  $region4: #{swin_unet_forward.13} parent=0 // pred_region
    _
  $region5: #{swin_unet_forward.13} parent=0 // pred_fallthru
    _
  // Predicated region
  $region6: #{swin_unet_forward.13} parent=0 // pred_check
    _
  $region7: #{swin_unet_forward.13} parent=0 // pred_check_branch
    %22 = sbr.rel (0) target = $region9
  $region8: #{swin_unet_forward.13} parent=0 // pred_region
    _
  $region9: #{swin_unet_forward.13} parent=0 // pred_fallthru
    _
  // Predicated region
  $region10: #{swin_unet_forward.13} parent=0 // pred_check
    _
  $region11: #{swin_unet_forward.13} parent=0 // pred_check_branch
    %24 = sbr.rel (0) target = $region13
  $region12: #{swin_unet_forward.13} parent=0 // pred_region
    _
  $region13: #{swin_unet_forward.13} parent=0 // pred_fallthru
    _
  // Predicated region
  $region14: #{swin_unet_forward.13} parent=0 // pred_check
    _
  $region15: #{swin_unet_forward.13} parent=0 // pred_check_branch
    %26 = sbr.rel (0) target = $region17
  $region16: #{swin_unet_forward.13} parent=0 // pred_region
    _
  $region17: #{swin_unet_forward.13} parent=0 // pred_fallthru
    _
  // Predicated region
  $region18: #{swin_unet_forward.13} parent=0 // pred_check
    _
  $region19: #{swin_unet_forward.13} parent=0 // pred_check_branch
    %28 = sbr.rel (0) target = $region21
  $region20: #{swin_unet_forward.13} parent=0 // pred_region
    _
  $region21: #{swin_unet_forward.13} parent=0 // pred_fallthru
    _
  // Predicated region
  $region22: #{swin_unet_forward.13} parent=0 // pred_check
    _
  $region23: #{swin_unet_forward.13} parent=0 // pred_check_branch
    %30 = sbr.rel (0) target = $region25
  $region24: #{swin_unet_forward.13} parent=0 // pred_region
    _
  $region25: #{swin_unet_forward.13} parent=0 // pred_fallthru
    _
  // Predicated region
  $region26: #{swin_unet_forward.13} parent=0 // pred_check
    _
  $region27: #{swin_unet_forward.13} parent=0 // pred_check_branch
    %32 = sbr.rel (0) target = $region29
  $region28: #{swin_unet_forward.13} parent=0 // pred_region
    _
  $region29: #{swin_unet_forward.13} parent=0 // pred_fallthru
    _
  // Predicated region
  $region30: #{swin_unet_forward.13} parent=0 // pred_check
    _
  $region31: #{swin_unet_forward.13} parent=0 // pred_check_branch
    %34 = sbr.rel (0) target = $region33
  $region32: #{swin_unet_forward.13} parent=0 // pred_region
    _
  $region33: #{swin_unet_forward.13} parent=0 // pred_fallthru
    _
  // Predicated region
  $region34: #{swin_unet_forward.13} parent=0 // pred_check
    _
  $region35: #{swin_unet_forward.13} parent=0 // pred_check_branch
    %36 = sbr.rel (0) target = $region37
  $region36: #{swin_unet_forward.13} parent=0 // pred_region
    _
  $region37: #{swin_unet_forward.13} parent=0 // pred_fallthru
    _
  // Predicated region
  $region38: #{swin_unet_forward.13} parent=0 // pred_check
    _
  $region39: #{swin_unet_forward.13} parent=0 // pred_check_branch
    %38 = sbr.rel (0) target = $region41
  $region40: #{swin_unet_forward.13} parent=0 // pred_region
    _
  $region41: #{swin_unet_forward.13} parent=0 // pred_fallthru
    _
  // Predicated region
  $region42: #{swin_unet_forward.13} parent=0 // pred_check
    _
  $region43: #{swin_unet_forward.13} parent=0 // pred_check_branch
    %40 = sbr.rel (0) target = $region45
  $region44: #{swin_unet_forward.13} parent=0 // pred_region
    _
  $region45: #{swin_unet_forward.13} parent=0 // pred_fallthru
    _
  // Predicated region
  $region46: #{swin_unet_forward.13} parent=0 // pred_check
    _
  $region47: #{swin_unet_forward.13} parent=0 // pred_check_branch
    %42 = sbr.rel (0) target = $region49
  $region48: #{swin_unet_forward.13} parent=0 // pred_region
    _
  $region49: #{swin_unet_forward.13} parent=0 // pred_fallthru
    _
  // Predicated region
  $region50: #{swin_unet_forward.13} parent=0 // pred_check
    _
  $region51: #{swin_unet_forward.13} parent=0 // pred_check_branch
    %44 = sbr.rel (0) target = $region53
  $region52: #{swin_unet_forward.13} parent=0 // pred_region
    _
  $region53: #{swin_unet_forward.13} parent=0 // pred_fallthru
    _
  // Predicated region
  $region54: #{swin_unet_forward.13} parent=0 // pred_check
    _
  $region55: #{swin_unet_forward.13} parent=0 // pred_check_branch
    %46 = sbr.rel (0) target = $region57
  $region56: #{swin_unet_forward.13} parent=0 // pred_region
    _
  $region57: #{swin_unet_forward.13} parent=0 // pred_fallthru
    _
  %v48 = vld [vmem:[%s0] sm:$0xff]
  %v49 = vld [vmem:[%s0 + $0x8] sm:$0xff]
  %v50 = vld [vmem:[%s0 + $0x10] sm:$0xff]
  %v51 = vld [vmem:[%s0 + $0x18] sm:$0xff]
  %v52 = vld [vmem:[%s3] sm:$0x1]
  %v53 = vld [vmem:[%s4] sm:$0x1]
  %vm54 = vcmask 261120
  %v55 = vsel %vm54, %v48, 0.0
  %56 = vadd.xlane.f32.xlu0 %v55
  %v57 = vpop.xlane.xlu0 %56
  %v58 = vsel %vm54, %v49, 0.0
  %59 = vadd.xlane.f32.xlu0 %v58
  %v60 = vpop.xlane.xlu0 %59
  %v61 = vsel %vm54, %v50, 0.0
  %62 = vadd.xlane.f32.xlu0 %v61
  %v63 = vpop.xlane.xlu0 %62
  %v64 = vsel %vm54, %v51, 0.0
  %65 = vadd.xlane.f32.xlu0 %v64
  %v66 = vpop.xlane.xlu0 %65
  %v67 = vrcp.pop 32.0
  %v68 = vmul.f32 %v57, %v67
  %v69 = vmul.f32 %v60, %v67
  %v70 = vmul.f32 %v63, %v67
  %v71 = vmul.f32 %v66, %v67
  %v72 = vsub.f32 %v48, %v68
  %v73 = vsub.f32 %v49, %v69
  %v74 = vsub.f32 %v50, %v70
  %v75 = vsub.f32 %v51, %v71
  %v76 = vmul.f32 %v72, %v72
  %v77 = vmul.f32 %v73, %v73
  %v78 = vmul.f32 %v74, %v74
  %v79 = vmul.f32 %v75, %v75
  %v80 = vsel %vm54, %v76, 0.0
  %81 = vadd.xlane.f32.xlu0 %v80
  %v82 = vpop.xlane.xlu0 %81
  %v83 = vsel %vm54, %v77, 0.0
  %84 = vadd.xlane.f32.xlu0 %v83
  %v85 = vpop.xlane.xlu0 %84
  %v86 = vsel %vm54, %v78, 0.0
  %87 = vadd.xlane.f32.xlu0 %v86
  %v88 = vpop.xlane.xlu0 %87
  %v89 = vsel %vm54, %v79, 0.0
  %90 = vadd.xlane.f32.xlu0 %v89
  %v91 = vpop.xlane.xlu0 %90
  %v92 = vmul.f32 %v82, %v67
  %v93 = vmul.f32 %v85, %v67
  %v94 = vmul.f32 %v88, %v67
  %v95 = vmul.f32 %v91, %v67
  %v96 = vadd.f32 %v92, 1e-05
  %v97 = vadd.f32 %v93, 1e-05
  %v98 = vadd.f32 %v94, 1e-05
  %v99 = vadd.f32 %v95, 1e-05
  %v100 = vrsqrt.pop %v96
  %v101 = vrsqrt.pop %v97
  %v102 = vrsqrt.pop %v98
  %v103 = vrsqrt.pop %v99
  %v104 = vmul.f32 %v72, %v100
  %v105 = vmul.f32 %v73, %v101
  %v106 = vmul.f32 %v74, %v102
  %v107 = vmul.f32 %v75, %v103
  %v109 = vlaneseq
  %v110 = vshrl.u32 %v109, 7
  %v111 = vsub.s32 0, %v110
  %v112 = vrot.slane %v52, %v111
  %v114 = vmul.f32 %v104, %v112
  %v115 = vmul.f32 %v105, %v112
  %v116 = vmul.f32 %v106, %v112
  %v117 = vmul.f32 %v107, %v112
  %v119 = vlaneseq
  %v120 = vshrl.u32 %v119, 7
  %v121 = vsub.s32 0, %v120
  %v122 = vrot.slane %v53, %v121
  %v124 = vadd.f32 %v114, %v122
  %v125 = vadd.f32 %v115, %v122
  %v126 = vadd.f32 %v116, %v122
  %v127 = vadd.f32 %v117, %v122
  %v128 = vld [vmem:[%s1] sm:$0xf]
  %v129 = vld [vmem:[%s1 + $0x4] sm:$0xf]
  %v130 = vld [vmem:[%s1 + $0x8] sm:$0xf]
  %v131 = vld [vmem:[%s1 + $0xc] sm:$0xf]
  %v132 = vpack.c.bf16 %v125, %v124
  %v133 = vpack.c.bf16 %v127, %v126
  %v134 = vld [vmem:[%s2] sm:$0x1]
  %v136 = vlaneseq
  %v137 = vshrl.u32 %v136, 7
  %v138 = vsub.s32 0, %v137
  %v139 = vrot.slane %v134, %v138
  %v145 = vunpack.c.l.b16 %v128
  %v146 = vunpack.c.l.b16 %v129
  %v147 = vunpack.c.l.b16 %v130
  %v148 = vunpack.c.l.b16 %v131
  %v149 = vpack.c.b16 %v146, %v145
  %v150 = vpack.c.b16 %v148, %v147
  %v154 = vsel %vm54, %v132, 0
  %v157 = vsel %vm54, %v133, 0
  %159 = vmatprep.subr.bf16.mxu0 0
  %160 = vmatpush1.bf16.msra.mxu0 %v149
  %161 = vmatprep.subr.bf16.mxu0 0
  %162 = vmatpush1.bf16.msra.mxu0 %v150
  %163 = vmatprep.subr.bf16.mxu0 0
  %164 = vmatpush1.bf16.msra.mxu0 0
  %165 = vmatprep.subr.bf16.mxu0 0
  %166 = vmatpush1.bf16.msra.mxu0 0
  %167 = vmatprep.subr.bf16.mxu0 0
  %168 = vmatpush1.bf16.msra.mxu0 0
  %169 = vmatprep.subr.bf16.mxu0 0
  %170 = vmatpush1.bf16.msra.mxu0 0
  %171 = vmatprep.subr.bf16.mxu0 0
  %172 = vmatpush1.bf16.msra.mxu0 0
  %173 = vmatprep.subr.bf16.mxu0 0
  %174 = vmatpush1.bf16.msra.mxu0 0
  %175 = vmatprep.subr.bf16.mxu0 0
  %176 = vmatpush1.bf16.msra.mxu0 0
  %177 = vmatprep.subr.bf16.mxu0 0
  %178 = vmatpush1.bf16.msra.mxu0 0
  %179 = vmatprep.subr.bf16.mxu0 0
  %180 = vmatpush1.bf16.msra.mxu0 0
  %181 = vmatprep.subr.bf16.mxu0 0
  %182 = vmatpush1.bf16.msra.mxu0 0
  %183 = vmatprep.subr.bf16.mxu0 0
  %184 = vmatpush1.bf16.msra.mxu0 0
  %185 = vmatprep.subr.bf16.mxu0 0
  %186 = vmatpush1.bf16.msra.mxu0 0
  %187 = vmatprep.subr.bf16.mxu0 0
  %188 = vmatpush1.bf16.msra.mxu0 0
  %189 = vmatprep.subr.bf16.mxu0 0
  %190 = vmatpush1.bf16.msra.mxu0 0
  %191 = vmatprep.mubr.bf16.mxu0 0
  %192 = vmatmul.mubr.bf16.gmra.mrb[0].mxu0 %v154
  %v193 = vpop.f32.mrb[0].mxu0
  %v194 = vadd.f32 %v139, %v193
  %v195 = vpop.f32.mrb[0].mxu0
  %v196 = vpop.f32.mrb[0].mxu0
  %v197 = vadd.f32 %v139, %v196
  %v198 = vpop.f32.mrb[0].mxu0
  %199 = vmatprep.mubr.bf16.mxu0 0
  %200 = vmatmul.mubr.bf16.gmra.mrb[0].mxu0 %v157
  %v201 = vpop.f32.mrb[0].mxu0
  %v202 = vadd.f32 %v139, %v201
  %v203 = vpop.f32.mrb[0].mxu0
  %v204 = vpop.f32.mrb[0].mxu0
  %v205 = vadd.f32 %v139, %v204
  %v206 = vpop.f32.mrb[0].mxu0
  %207 = vdwg.mxu0
  %v208 = vmul.f32 %v194, 0.25
  %v209 = vmul.f32 %v197, 0.25
  %v210 = vmul.f32 %v202, 0.25
  %v211 = vmul.f32 %v205, 0.25
  %v212 = vpack.c.bf16 %v209, %v208
  %v213 = vpack.c.bf16 %v211, %v210
  %v214 = vpack.c.bf16 %v197, %v194
  %v215 = vpack.c.bf16 %v205, %v202
  %v216 = vld [vmem:[%s7] sm:$0xff]
  %v217 = vld [vmem:[%s7 + $0x8] sm:$0xff]
  %v218 = vld [vmem:[%s7 + $0x10] sm:$0xff]
  %v219 = vld [vmem:[%s7 + $0x18] sm:$0xff]
  %222 = vrot.lane.b32.xlu0 %v214, 96
  %v223 = vpop.permute.xlu0 %222
  %224 = vrot.lane.b32.xlu0 %v215, 96
  %v225 = vpop.permute.xlu0 %224
  %vm226 = vcmask 130048
  %v228 = vsel %vm226, %v212, 0
  %v231 = vsel %vm226, %v213, 0
  %v234 = vsel %vm226, %v223, 0
  %v237 = vsel %vm226, %v225, 0
  %239 = vmatprep.subr.bf16.mxu0 0
  %240 = vmatpush1.bf16.xpose.msra.mxu0 %v234
  %241 = vmatprep.subr.bf16.mxu0 0
  %242 = vmatpush1.bf16.xpose.msra.mxu0 %v237
  %243 = vmatprep.subr.bf16.mxu0 0
  %244 = vmatpush1.bf16.xpose.msra.mxu0 0
  %245 = vmatprep.subr.bf16.mxu0 0
  %246 = vmatpush1.bf16.xpose.msra.mxu0 0
  %247 = vmatprep.subr.bf16.mxu0 0
  %248 = vmatpush1.bf16.xpose.msra.mxu0 0
  %249 = vmatprep.subr.bf16.mxu0 0
  %250 = vmatpush1.bf16.xpose.msra.mxu0 0
  %251 = vmatprep.subr.bf16.mxu0 0
  %252 = vmatpush1.bf16.xpose.msra.mxu0 0
  %253 = vmatprep.subr.bf16.mxu0 0
  %254 = vmatpush1.bf16.xpose.msra.mxu0 0
  %255 = vmatprep.subr.bf16.mxu0 0
  %256 = vmatpush1.bf16.xpose.msra.mxu0 0
  %257 = vmatprep.subr.bf16.mxu0 0
  %258 = vmatpush1.bf16.xpose.msra.mxu0 0
  %259 = vmatprep.subr.bf16.mxu0 0
  %260 = vmatpush1.bf16.xpose.msra.mxu0 0
  %261 = vmatprep.subr.bf16.mxu0 0
  %262 = vmatpush1.bf16.xpose.msra.mxu0 0
  %263 = vmatprep.subr.bf16.mxu0 0
  %264 = vmatpush1.bf16.xpose.msra.mxu0 0
  %265 = vmatprep.subr.bf16.mxu0 0
  %266 = vmatpush1.bf16.xpose.msra.mxu0 0
  %267 = vmatprep.subr.bf16.mxu0 0
  %268 = vmatpush1.bf16.xpose.msra.mxu0 0
  %269 = vmatprep.subr.bf16.mxu0 0
  %270 = vmatpush1.bf16.xpose.msra.mxu0 0
  %271 = vmatprep.mubr.bf16.mxu0 0
  %272 = vmatmul.mubr.bf16.gmra.mrb[0].mxu0 %v228
  %v273 = vpop.f32.mrb[0].mxu0
  %v274 = vadd.f32 %v216, %v273
  %v275 = vpop.f32.mrb[0].mxu0
  %v276 = vpop.f32.mrb[0].mxu0
  %v277 = vadd.f32 %v217, %v276
  %v278 = vpop.f32.mrb[0].mxu0
  %279 = vmatprep.mubr.bf16.mxu0 0
  %280 = vmatmul.mubr.bf16.gmra.mrb[0].mxu0 %v231
  %v281 = vpop.f32.mrb[0].mxu0
  %v282 = vadd.f32 %v218, %v281
  %v283 = vpop.f32.mrb[0].mxu0
  %v284 = vpop.f32.mrb[0].mxu0
  %v285 = vadd.f32 %v219, %v284
  %v286 = vpop.f32.mrb[0].mxu0
  %287 = vdwg.mxu0
  %v288 = vsel %vm54, %v274, -inf
  %289 = vmax.xlane.f32.xlu0 %v288
  %v290 = vpop.xlane.xlu0 %289
  %v291 = vsel %vm54, %v277, -inf
  %292 = vmax.xlane.f32.xlu0 %v291
  %v293 = vpop.xlane.xlu0 %292
  %v294 = vsel %vm54, %v282, -inf
  %295 = vmax.xlane.f32.xlu0 %v294
  %v296 = vpop.xlane.xlu0 %295
  %v297 = vsel %vm54, %v285, -inf
  %298 = vmax.xlane.f32.xlu0 %v297
  %v299 = vpop.xlane.xlu0 %298
  %v300 = vsub.f32 %v274, %v290
  %v301 = vsub.f32 %v277, %v293
  %v302 = vsub.f32 %v282, %v296
  %v303 = vsub.f32 %v285, %v299
  %v304 = vmul.f32 %v300, 1.442695
  %v305 = vpow.pop %v304
  %v306 = vmul.f32 %v301, 1.442695
  %v307 = vpow.pop %v306
  %v308 = vmul.f32 %v302, 1.442695
  %v309 = vpow.pop %v308
  %v310 = vmul.f32 %v303, 1.442695
  %v311 = vpow.pop %v310
  %v312 = vsel %vm54, %v305, 0.0
  %313 = vadd.xlane.f32.xlu0 %v312
  %v314 = vpop.xlane.xlu0 %313
  %v315 = vsel %vm54, %v307, 0.0
  %316 = vadd.xlane.f32.xlu0 %v315
  %v317 = vpop.xlane.xlu0 %316
  %v318 = vsel %vm54, %v309, 0.0
  %319 = vadd.xlane.f32.xlu0 %v318
  %v320 = vpop.xlane.xlu0 %319
  %v321 = vsel %vm54, %v311, 0.0
  %322 = vadd.xlane.f32.xlu0 %v321
  %v323 = vpop.xlane.xlu0 %322
  %v324 = vrcp.pop %v314
  %v325 = vrcp.pop %v317
  %v326 = vrcp.pop %v320
  %v327 = vrcp.pop %v323
  %v328 = vmul.f32 %v305, %v324
  %v329 = vmul.f32 %v307, %v325
  %v330 = vmul.f32 %v309, %v326
  %v331 = vmul.f32 %v311, %v327
  %v332 = vpack.c.bf16 %v329, %v328
  %v333 = vpack.c.bf16 %v331, %v330
  %334 = vrot.lane.b32.xlu0 %v214, 64
  %v335 = vpop.permute.xlu0 %334
  %336 = vrot.lane.b32.xlu0 %v215, 64
  %v337 = vpop.permute.xlu0 %336
  %v341 = vsel %vm54, %v332, 0
  %v344 = vsel %vm54, %v333, 0
  %346 = vmatprep.subr.bf16.mxu0 0
  %347 = vmatpush1.bf16.msra.mxu0 %v335
  %348 = vmatprep.subr.bf16.mxu0 0
  %349 = vmatpush1.bf16.msra.mxu0 %v337
  %350 = vmatprep.subr.bf16.mxu0 0
  %351 = vmatpush1.bf16.msra.mxu0 0
  %352 = vmatprep.subr.bf16.mxu0 0
  %353 = vmatpush1.bf16.msra.mxu0 0
  %354 = vmatprep.subr.bf16.mxu0 0
  %355 = vmatpush1.bf16.msra.mxu0 0
  %356 = vmatprep.subr.bf16.mxu0 0
  %357 = vmatpush1.bf16.msra.mxu0 0
  %358 = vmatprep.subr.bf16.mxu0 0
  %359 = vmatpush1.bf16.msra.mxu0 0
  %360 = vmatprep.subr.bf16.mxu0 0
  %361 = vmatpush1.bf16.msra.mxu0 0
  %362 = vmatprep.subr.bf16.mxu0 0
  %363 = vmatpush1.bf16.msra.mxu0 0
  %364 = vmatprep.subr.bf16.mxu0 0
  %365 = vmatpush1.bf16.msra.mxu0 0
  %366 = vmatprep.subr.bf16.mxu0 0
  %367 = vmatpush1.bf16.msra.mxu0 0
  %368 = vmatprep.subr.bf16.mxu0 0
  %369 = vmatpush1.bf16.msra.mxu0 0
  %370 = vmatprep.subr.bf16.mxu0 0
  %371 = vmatpush1.bf16.msra.mxu0 0
  %372 = vmatprep.subr.bf16.mxu0 0
  %373 = vmatpush1.bf16.msra.mxu0 0
  %374 = vmatprep.subr.bf16.mxu0 0
  %375 = vmatpush1.bf16.msra.mxu0 0
  %376 = vmatprep.subr.bf16.mxu0 0
  %377 = vmatpush1.bf16.msra.mxu0 0
  %378 = vmatprep.mubr.bf16.mxu0 0
  %379 = vmatmul.mubr.bf16.gmra.mrb[0].mxu0 %v341
  %v380 = vpop.f32.mrb[0].mxu0
  %v381 = vadd.f32 0.0, %v380
  %v382 = vpop.f32.mrb[0].mxu0
  %v383 = vpop.f32.mrb[0].mxu0
  %v384 = vadd.f32 0.0, %v383
  %v385 = vpop.f32.mrb[0].mxu0
  %386 = vmatprep.mubr.bf16.mxu0 0
  %387 = vmatmul.mubr.bf16.gmra.mrb[0].mxu0 %v344
  %v388 = vpop.f32.mrb[0].mxu0
  %v389 = vadd.f32 0.0, %v388
  %v390 = vpop.f32.mrb[0].mxu0
  %v391 = vpop.f32.mrb[0].mxu0
  %v392 = vadd.f32 0.0, %v391
  %v393 = vpop.f32.mrb[0].mxu0
  %394 = vdwg.mxu0
  %v395 = vld [vmem:[%s5] sm:$0xf]
  %v396 = vld [vmem:[%s5 + $0x4] sm:$0xf]
  %v397 = vpack.c.bf16 %v384, %v381
  %v398 = vpack.c.bf16 %v392, %v389
  %s399 = scalar_lea.vmem %s7, 32
  %v400 = vld [vmem:[%s399] sm:$0xff]
  %v401 = vld [vmem:[%s399 + $0x8] sm:$0xff]
  %v402 = vld [vmem:[%s399 + $0x10] sm:$0xff]
  %v403 = vld [vmem:[%s399 + $0x18] sm:$0xff]
  %406 = vrot.lane.b32.xlu0 %v212, 112
  %v407 = vpop.permute.xlu0 %406
  %408 = vrot.lane.b32.xlu0 %v213, 112
  %v409 = vpop.permute.xlu0 %408
  %410 = vrot.lane.b32.xlu0 %v214, 80
  %v411 = vpop.permute.xlu0 %410
  %412 = vrot.lane.b32.xlu0 %v215, 80
  %v413 = vpop.permute.xlu0 %412
  %v415 = vsel %vm226, %v407, 0
  %v418 = vsel %vm226, %v409, 0
  %v421 = vsel %vm226, %v411, 0
  %v424 = vsel %vm226, %v413, 0
  %426 = vmatprep.subr.bf16.mxu0 0
  %427 = vmatpush1.bf16.xpose.msra.mxu0 %v421
  %428 = vmatprep.subr.bf16.mxu0 0
  %429 = vmatpush1.bf16.xpose.msra.mxu0 %v424
  %430 = vmatprep.subr.bf16.mxu0 0
  %431 = vmatpush1.bf16.xpose.msra.mxu0 0
  %432 = vmatprep.subr.bf16.mxu0 0
  %433 = vmatpush1.bf16.xpose.msra.mxu0 0
  %434 = vmatprep.subr.bf16.mxu0 0
  %435 = vmatpush1.bf16.xpose.msra.mxu0 0
  %436 = vmatprep.subr.bf16.mxu0 0
  %437 = vmatpush1.bf16.xpose.msra.mxu0 0
  %438 = vmatprep.subr.bf16.mxu0 0
  %439 = vmatpush1.bf16.xpose.msra.mxu0 0
  %440 = vmatprep.subr.bf16.mxu0 0
  %441 = vmatpush1.bf16.xpose.msra.mxu0 0
  %442 = vmatprep.subr.bf16.mxu0 0
  %443 = vmatpush1.bf16.xpose.msra.mxu0 0
  %444 = vmatprep.subr.bf16.mxu0 0
  %445 = vmatpush1.bf16.xpose.msra.mxu0 0
  %446 = vmatprep.subr.bf16.mxu0 0
  %447 = vmatpush1.bf16.xpose.msra.mxu0 0
  %448 = vmatprep.subr.bf16.mxu0 0
  %449 = vmatpush1.bf16.xpose.msra.mxu0 0
  %450 = vmatprep.subr.bf16.mxu0 0
  %451 = vmatpush1.bf16.xpose.msra.mxu0 0
  %452 = vmatprep.subr.bf16.mxu0 0
  %453 = vmatpush1.bf16.xpose.msra.mxu0 0
  %454 = vmatprep.subr.bf16.mxu0 0
  %455 = vmatpush1.bf16.xpose.msra.mxu0 0
  %456 = vmatprep.subr.bf16.mxu0 0
  %457 = vmatpush1.bf16.xpose.msra.mxu0 0
  %458 = vmatprep.mubr.bf16.mxu0 0
  %459 = vmatmul.mubr.bf16.gmra.mrb[0].mxu0 %v415
  %v460 = vpop.f32.mrb[0].mxu0
  %v461 = vadd.f32 %v400, %v460
  %v462 = vpop.f32.mrb[0].mxu0
  %v463 = vpop.f32.mrb[0].mxu0
  %v464 = vadd.f32 %v401, %v463
  %v465 = vpop.f32.mrb[0].mxu0
  %466 = vmatprep.mubr.bf16.mxu0 0
  %467 = vmatmul.mubr.bf16.gmra.mrb[0].mxu0 %v418
  %v468 = vpop.f32.mrb[0].mxu0
  %v469 = vadd.f32 %v402, %v468
  %v470 = vpop.f32.mrb[0].mxu0
  %v471 = vpop.f32.mrb[0].mxu0
  %v472 = vadd.f32 %v403, %v471
  %v473 = vpop.f32.mrb[0].mxu0
  %474 = vdwg.mxu0
  %v475 = vsel %vm54, %v461, -inf
  %476 = vmax.xlane.f32.xlu0 %v475
  %v477 = vpop.xlane.xlu0 %476
  %v478 = vsel %vm54, %v464, -inf
  %479 = vmax.xlane.f32.xlu0 %v478
  %v480 = vpop.xlane.xlu0 %479
  %v481 = vsel %vm54, %v469, -inf
  %482 = vmax.xlane.f32.xlu0 %v481
  %v483 = vpop.xlane.xlu0 %482
  %v484 = vsel %vm54, %v472, -inf
  %485 = vmax.xlane.f32.xlu0 %v484
  %v486 = vpop.xlane.xlu0 %485
  %v487 = vsub.f32 %v461, %v477
  %v488 = vsub.f32 %v464, %v480
  %v489 = vsub.f32 %v469, %v483
  %v490 = vsub.f32 %v472, %v486
  %v491 = vmul.f32 %v487, 1.442695
  %v492 = vpow.pop %v491
  %v493 = vmul.f32 %v488, 1.442695
  %v494 = vpow.pop %v493
  %v495 = vmul.f32 %v489, 1.442695
  %v496 = vpow.pop %v495
  %v497 = vmul.f32 %v490, 1.442695
  %v498 = vpow.pop %v497
  %v499 = vsel %vm54, %v492, 0.0
  %500 = vadd.xlane.f32.xlu0 %v499
  %v501 = vpop.xlane.xlu0 %500
  %v502 = vsel %vm54, %v494, 0.0
  %503 = vadd.xlane.f32.xlu0 %v502
  %v504 = vpop.xlane.xlu0 %503
  %v505 = vsel %vm54, %v496, 0.0
  %506 = vadd.xlane.f32.xlu0 %v505
  %v507 = vpop.xlane.xlu0 %506
  %v508 = vsel %vm54, %v498, 0.0
  %509 = vadd.xlane.f32.xlu0 %v508
  %v510 = vpop.xlane.xlu0 %509
  %v511 = vrcp.pop %v501
  %v512 = vrcp.pop %v504
  %v513 = vrcp.pop %v507
  %v514 = vrcp.pop %v510
  %v515 = vmul.f32 %v492, %v511
  %v516 = vmul.f32 %v494, %v512
  %v517 = vmul.f32 %v496, %v513
  %v518 = vmul.f32 %v498, %v514
  %v519 = vpack.c.bf16 %v516, %v515
  %v520 = vpack.c.bf16 %v518, %v517
  %521 = vrot.lane.b32.xlu0 %v214, 48
  %v522 = vpop.permute.xlu0 %521
  %523 = vrot.lane.b32.xlu0 %v215, 48
  %v524 = vpop.permute.xlu0 %523
  %v528 = vsel %vm54, %v519, 0
  %v531 = vsel %vm54, %v520, 0
  %533 = vmatprep.subr.bf16.mxu0 0
  %534 = vmatpush1.bf16.msra.mxu0 %v522
  %535 = vmatprep.subr.bf16.mxu0 0
  %536 = vmatpush1.bf16.msra.mxu0 %v524
  %537 = vmatprep.subr.bf16.mxu0 0
  %538 = vmatpush1.bf16.msra.mxu0 0
  %539 = vmatprep.subr.bf16.mxu0 0
  %540 = vmatpush1.bf16.msra.mxu0 0
  %541 = vmatprep.subr.bf16.mxu0 0
  %542 = vmatpush1.bf16.msra.mxu0 0
  %543 = vmatprep.subr.bf16.mxu0 0
  %544 = vmatpush1.bf16.msra.mxu0 0
  %545 = vmatprep.subr.bf16.mxu0 0
  %546 = vmatpush1.bf16.msra.mxu0 0
  %547 = vmatprep.subr.bf16.mxu0 0
  %548 = vmatpush1.bf16.msra.mxu0 0
  %549 = vmatprep.subr.bf16.mxu0 0
  %550 = vmatpush1.bf16.msra.mxu0 0
  %551 = vmatprep.subr.bf16.mxu0 0
  %552 = vmatpush1.bf16.msra.mxu0 0
  %553 = vmatprep.subr.bf16.mxu0 0
  %554 = vmatpush1.bf16.msra.mxu0 0
  %555 = vmatprep.subr.bf16.mxu0 0
  %556 = vmatpush1.bf16.msra.mxu0 0
  %557 = vmatprep.subr.bf16.mxu0 0
  %558 = vmatpush1.bf16.msra.mxu0 0
  %559 = vmatprep.subr.bf16.mxu0 0
  %560 = vmatpush1.bf16.msra.mxu0 0
  %561 = vmatprep.subr.bf16.mxu0 0
  %562 = vmatpush1.bf16.msra.mxu0 0
  %563 = vmatprep.subr.bf16.mxu0 0
  %564 = vmatpush1.bf16.msra.mxu0 0
  %565 = vmatprep.mubr.bf16.mxu0 0
  %566 = vmatmul.mubr.bf16.gmra.mrb[0].mxu0 %v528
  %v567 = vpop.f32.mrb[0].mxu0
  %v568 = vadd.f32 0.0, %v567
  %v569 = vpop.f32.mrb[0].mxu0
  %v570 = vpop.f32.mrb[0].mxu0
  %v571 = vadd.f32 0.0, %v570
  %v572 = vpop.f32.mrb[0].mxu0
  %573 = vmatprep.mubr.bf16.mxu0 0
  %574 = vmatmul.mubr.bf16.gmra.mrb[0].mxu0 %v531
  %v575 = vpop.f32.mrb[0].mxu0
  %v576 = vadd.f32 0.0, %v575
  %v577 = vpop.f32.mrb[0].mxu0
  %v578 = vpop.f32.mrb[0].mxu0
  %v579 = vadd.f32 0.0, %v578
  %v580 = vpop.f32.mrb[0].mxu0
  %581 = vdwg.mxu0
  %v582 = vld [vmem:[%s5 + $0x8] sm:$0xf]
  %v583 = vld [vmem:[%s5 + $0xc] sm:$0xf]
  %v584 = vpack.c.bf16 %v571, %v568
  %v585 = vpack.c.bf16 %v579, %v576
  %v588 = vunpack.c.l.b16 %v582
  %v589 = vunpack.c.l.b16 %v583
  %v590 = vpack.c.b16 %v589, %v588
  %v593 = vsel %vm226, %v584, 0
  %v596 = vsel %vm226, %v585, 0
  %598 = vmatprep.subr.bf16.mxu0 0
  %599 = vmatpush1.bf16.msra.mxu0 %v590
  %600 = vmatprep.subr.bf16.mxu0 0
  %601 = vmatpush1.bf16.msra.mxu0 0
  %602 = vmatprep.subr.bf16.mxu0 0
  %603 = vmatpush1.bf16.msra.mxu0 0
  %604 = vmatprep.subr.bf16.mxu0 0
  %605 = vmatpush1.bf16.msra.mxu0 0
  %606 = vmatprep.subr.bf16.mxu0 0
  %607 = vmatpush1.bf16.msra.mxu0 0
  %608 = vmatprep.subr.bf16.mxu0 0
  %609 = vmatpush1.bf16.msra.mxu0 0
  %610 = vmatprep.subr.bf16.mxu0 0
  %611 = vmatpush1.bf16.msra.mxu0 0
  %612 = vmatprep.subr.bf16.mxu0 0
  %613 = vmatpush1.bf16.msra.mxu0 0
  %614 = vmatprep.subr.bf16.mxu0 0
  %615 = vmatpush1.bf16.msra.mxu0 0
  %616 = vmatprep.subr.bf16.mxu0 0
  %617 = vmatpush1.bf16.msra.mxu0 0
  %618 = vmatprep.subr.bf16.mxu0 0
  %619 = vmatpush1.bf16.msra.mxu0 0
  %620 = vmatprep.subr.bf16.mxu0 0
  %621 = vmatpush1.bf16.msra.mxu0 0
  %622 = vmatprep.subr.bf16.mxu0 0
  %623 = vmatpush1.bf16.msra.mxu0 0
  %624 = vmatprep.subr.bf16.mxu0 0
  %625 = vmatpush1.bf16.msra.mxu0 0
  %626 = vmatprep.subr.bf16.mxu0 0
  %627 = vmatpush1.bf16.msra.mxu0 0
  %628 = vmatprep.subr.bf16.mxu0 0
  %629 = vmatpush1.bf16.msra.mxu0 0
  %630 = vmatprep.mubr.bf16.mxu0 0
  %631 = vmatmul.mubr.bf16.gmra.mrb[0].mxu0 %v593
  %v632 = vpop.f32.mrb[0].mxu0
  %v633 = vadd.f32 0.0, %v632
  %v634 = vpop.f32.mrb[0].mxu0
  %v635 = vpop.f32.mrb[0].mxu0
  %v636 = vadd.f32 0.0, %v635
  %v637 = vpop.f32.mrb[0].mxu0
  %638 = vmatprep.mubr.bf16.mxu0 0
  %639 = vmatmul.mubr.bf16.gmra.mrb[0].mxu0 %v596
  %v640 = vpop.f32.mrb[0].mxu0
  %v641 = vadd.f32 0.0, %v640
  %v642 = vpop.f32.mrb[0].mxu0
  %v643 = vpop.f32.mrb[0].mxu0
  %v644 = vadd.f32 0.0, %v643
  %v645 = vpop.f32.mrb[0].mxu0
  %646 = vdwg.mxu0
  %v649 = vunpack.c.l.b16 %v395
  %v650 = vunpack.c.l.b16 %v396
  %v651 = vpack.c.b16 %v650, %v649
  %v654 = vsel %vm226, %v397, 0
  %v657 = vsel %vm226, %v398, 0
  %659 = vmatprep.subr.bf16.mxu0 0
  %660 = vmatpush1.bf16.msra.mxu0 %v651
  %661 = vmatprep.subr.bf16.mxu0 0
  %662 = vmatpush1.bf16.msra.mxu0 0
  %663 = vmatprep.subr.bf16.mxu0 0
  %664 = vmatpush1.bf16.msra.mxu0 0
  %665 = vmatprep.subr.bf16.mxu0 0
  %666 = vmatpush1.bf16.msra.mxu0 0
  %667 = vmatprep.subr.bf16.mxu0 0
  %668 = vmatpush1.bf16.msra.mxu0 0
  %669 = vmatprep.subr.bf16.mxu0 0
  %670 = vmatpush1.bf16.msra.mxu0 0
  %671 = vmatprep.subr.bf16.mxu0 0
  %672 = vmatpush1.bf16.msra.mxu0 0
  %673 = vmatprep.subr.bf16.mxu0 0
  %674 = vmatpush1.bf16.msra.mxu0 0
  %675 = vmatprep.subr.bf16.mxu0 0
  %676 = vmatpush1.bf16.msra.mxu0 0
  %677 = vmatprep.subr.bf16.mxu0 0
  %678 = vmatpush1.bf16.msra.mxu0 0
  %679 = vmatprep.subr.bf16.mxu0 0
  %680 = vmatpush1.bf16.msra.mxu0 0
  %681 = vmatprep.subr.bf16.mxu0 0
  %682 = vmatpush1.bf16.msra.mxu0 0
  %683 = vmatprep.subr.bf16.mxu0 0
  %684 = vmatpush1.bf16.msra.mxu0 0
  %685 = vmatprep.subr.bf16.mxu0 0
  %686 = vmatpush1.bf16.msra.mxu0 0
  %687 = vmatprep.subr.bf16.mxu0 0
  %688 = vmatpush1.bf16.msra.mxu0 0
  %689 = vmatprep.subr.bf16.mxu0 0
  %690 = vmatpush1.bf16.msra.mxu0 0
  %691 = vmatprep.mubr.bf16.mxu0 0
  %692 = vmatmul.mubr.bf16.gmra.mrb[0].mxu0 %v654
  %v693 = vpop.f32.mrb[0].mxu0
  %v694 = vadd.f32 %v633, %v693
  %v695 = vpop.f32.mrb[0].mxu0
  %v696 = vpop.f32.mrb[0].mxu0
  %v697 = vadd.f32 %v636, %v696
  %v698 = vpop.f32.mrb[0].mxu0
  %699 = vmatprep.mubr.bf16.mxu0 0
  %700 = vmatmul.mubr.bf16.gmra.mrb[0].mxu0 %v657
  %v701 = vpop.f32.mrb[0].mxu0
  %v702 = vadd.f32 %v641, %v701
  %v703 = vpop.f32.mrb[0].mxu0
  %v704 = vpop.f32.mrb[0].mxu0
  %v705 = vadd.f32 %v644, %v704
  %v706 = vpop.f32.mrb[0].mxu0
  %707 = vdwg.mxu0
  %v708 = vadd.f32 %v48, %v694
  %v709 = vadd.f32 %v49, %v697
  %v710 = vadd.f32 %v50, %v702
  %v711 = vadd.f32 %v51, %v705
  %v712 = vld [vmem:[%s6] sm:$0x1]
  %v714 = vlaneseq
  %v715 = vshrl.u32 %v714, 7
  %v716 = vsub.s32 0, %v715
  %v717 = vrot.slane %v712, %v716
  %v719 = vadd.f32 %v708, %v717
  %v720 = vadd.f32 %v709, %v717
  %v721 = vadd.f32 %v710, %v717
  %v722 = vadd.f32 %v711, %v717
  %v723 = vld [vmem:[%s8] sm:$0x1]
  %v724 = vld [vmem:[%s9] sm:$0x1]
  %v725 = vsel %vm54, %v719, 0.0
  %726 = vadd.xlane.f32.xlu0 %v725
  %v727 = vpop.xlane.xlu0 %726
  %v728 = vsel %vm54, %v720, 0.0
  %729 = vadd.xlane.f32.xlu0 %v728
  %v730 = vpop.xlane.xlu0 %729
  %v731 = vsel %vm54, %v721, 0.0
  %732 = vadd.xlane.f32.xlu0 %v731
  %v733 = vpop.xlane.xlu0 %732
  %v734 = vsel %vm54, %v722, 0.0
  %735 = vadd.xlane.f32.xlu0 %v734
  %v736 = vpop.xlane.xlu0 %735
  %v737 = vmul.f32 %v727, %v67
  %v738 = vmul.f32 %v730, %v67
  %v739 = vmul.f32 %v733, %v67
  %v740 = vmul.f32 %v736, %v67
  %v741 = vsub.f32 %v719, %v737
  %v742 = vsub.f32 %v720, %v738
  %v743 = vsub.f32 %v721, %v739
  %v744 = vsub.f32 %v722, %v740
  %v745 = vmul.f32 %v741, %v741
  %v746 = vmul.f32 %v742, %v742
  %v747 = vmul.f32 %v743, %v743
  %v748 = vmul.f32 %v744, %v744
  %v749 = vsel %vm54, %v745, 0.0
  %750 = vadd.xlane.f32.xlu0 %v749
  %v751 = vpop.xlane.xlu0 %750
  %v752 = vsel %vm54, %v746, 0.0
  %753 = vadd.xlane.f32.xlu0 %v752
  %v754 = vpop.xlane.xlu0 %753
  %v755 = vsel %vm54, %v747, 0.0
  %756 = vadd.xlane.f32.xlu0 %v755
  %v757 = vpop.xlane.xlu0 %756
  %v758 = vsel %vm54, %v748, 0.0
  %759 = vadd.xlane.f32.xlu0 %v758
  %v760 = vpop.xlane.xlu0 %759
  %v761 = vmul.f32 %v751, %v67
  %v762 = vmul.f32 %v754, %v67
  %v763 = vmul.f32 %v757, %v67
  %v764 = vmul.f32 %v760, %v67
  %v765 = vadd.f32 %v761, 1e-05
  %v766 = vadd.f32 %v762, 1e-05
  %v767 = vadd.f32 %v763, 1e-05
  %v768 = vadd.f32 %v764, 1e-05
  %v769 = vrsqrt.pop %v765
  %v770 = vrsqrt.pop %v766
  %v771 = vrsqrt.pop %v767
  %v772 = vrsqrt.pop %v768
  %v773 = vmul.f32 %v741, %v769
  %v774 = vmul.f32 %v742, %v770
  %v775 = vmul.f32 %v743, %v771
  %v776 = vmul.f32 %v744, %v772
  %v778 = vlaneseq
  %v779 = vshrl.u32 %v778, 7
  %v780 = vsub.s32 0, %v779
  %v781 = vrot.slane %v723, %v780
  %v783 = vmul.f32 %v773, %v781
  %v784 = vmul.f32 %v774, %v781
  %v785 = vmul.f32 %v775, %v781
  %v786 = vmul.f32 %v776, %v781
  %v788 = vlaneseq
  %v789 = vshrl.u32 %v788, 7
  %v790 = vsub.s32 0, %v789
  %v791 = vrot.slane %v724, %v790
  %v793 = vadd.f32 %v783, %v791
  %v794 = vadd.f32 %v784, %v791
  %v795 = vadd.f32 %v785, %v791
  %v796 = vadd.f32 %v786, %v791
  %v797 = vld [vmem:[%s10] sm:$0xf]
  %v798 = vld [vmem:[%s10 + $0x4] sm:$0xf]
  %v799 = vld [vmem:[%s10 + $0x8] sm:$0xf]
  %v800 = vld [vmem:[%s10 + $0xc] sm:$0xf]
  %v801 = vpack.c.bf16 %v794, %v793
  %v802 = vpack.c.bf16 %v796, %v795
  %v803 = vld [vmem:[%s11] sm:$0x1]
  %v805 = vlaneseq
  %v806 = vshrl.u32 %v805, 7
  %v807 = vsub.s32 0, %v806
  %v808 = vrot.slane %v803, %v807
  %v814 = vunpack.c.l.b16 %v797
  %v815 = vunpack.c.l.b16 %v798
  %v816 = vunpack.c.l.b16 %v799
  %v817 = vunpack.c.l.b16 %v800
  %v818 = vpack.c.b16 %v815, %v814
  %v819 = vpack.c.b16 %v817, %v816
  %v823 = vsel %vm54, %v801, 0
  %v826 = vsel %vm54, %v802, 0
  %828 = vmatprep.subr.bf16.mxu0 0
  %829 = vmatpush1.bf16.msra.mxu0 %v818
  %830 = vmatprep.subr.bf16.mxu0 0
  %831 = vmatpush1.bf16.msra.mxu0 %v819
  %832 = vmatprep.subr.bf16.mxu0 0
  %833 = vmatpush1.bf16.msra.mxu0 0
  %834 = vmatprep.subr.bf16.mxu0 0
  %835 = vmatpush1.bf16.msra.mxu0 0
  %836 = vmatprep.subr.bf16.mxu0 0
  %837 = vmatpush1.bf16.msra.mxu0 0
  %838 = vmatprep.subr.bf16.mxu0 0
  %839 = vmatpush1.bf16.msra.mxu0 0
  %840 = vmatprep.subr.bf16.mxu0 0
  %841 = vmatpush1.bf16.msra.mxu0 0
  %842 = vmatprep.subr.bf16.mxu0 0
  %843 = vmatpush1.bf16.msra.mxu0 0
  %844 = vmatprep.subr.bf16.mxu0 0
  %845 = vmatpush1.bf16.msra.mxu0 0
  %846 = vmatprep.subr.bf16.mxu0 0
  %847 = vmatpush1.bf16.msra.mxu0 0
  %848 = vmatprep.subr.bf16.mxu0 0
  %849 = vmatpush1.bf16.msra.mxu0 0
  %850 = vmatprep.subr.bf16.mxu0 0
  %851 = vmatpush1.bf16.msra.mxu0 0
  %852 = vmatprep.subr.bf16.mxu0 0
  %853 = vmatpush1.bf16.msra.mxu0 0
  %854 = vmatprep.subr.bf16.mxu0 0
  %855 = vmatpush1.bf16.msra.mxu0 0
  %856 = vmatprep.subr.bf16.mxu0 0
  %857 = vmatpush1.bf16.msra.mxu0 0
  %858 = vmatprep.subr.bf16.mxu0 0
  %859 = vmatpush1.bf16.msra.mxu0 0
  %860 = vmatprep.mubr.bf16.mxu0 0
  %861 = vmatmul.mubr.bf16.gmra.mrb[0].mxu0 %v823
  %v862 = vpop.f32.mrb[0].mxu0
  %v863 = vadd.f32 %v808, %v862
  %v864 = vpop.f32.mrb[0].mxu0
  %v865 = vpop.f32.mrb[0].mxu0
  %v866 = vadd.f32 %v808, %v865
  %v867 = vpop.f32.mrb[0].mxu0
  %868 = vmatprep.mubr.bf16.mxu0 0
  %869 = vmatmul.mubr.bf16.gmra.mrb[0].mxu0 %v826
  %v870 = vpop.f32.mrb[0].mxu0
  %v871 = vadd.f32 %v808, %v870
  %v872 = vpop.f32.mrb[0].mxu0
  %v873 = vpop.f32.mrb[0].mxu0
  %v874 = vadd.f32 %v808, %v873
  %v875 = vpop.f32.mrb[0].mxu0
  %876 = vdwg.mxu0
  %v877 = vmul.f32 %v863, 0.5
  %v878 = vmul.f32 %v866, 0.5
  %v879 = vmul.f32 %v871, 0.5
  %v880 = vmul.f32 %v874, 0.5
  %v881 = vmul.f32 %v863, 0.70710677
  %v882 = vmul.f32 %v866, 0.70710677
  %v883 = vmul.f32 %v871, 0.70710677
  %v884 = vmul.f32 %v874, 0.70710677
  %v885 = vand.u32 2147483647, %v881
  %v886 = vand.u32 2147483647, %v882
  %v887 = vand.u32 2147483647, %v883
  %v888 = vand.u32 2147483647, %v884
  %v889 = vmul.f32 %v885, 0.3275911
  %v890 = vmul.f32 %v886, 0.3275911
  %v891 = vmul.f32 %v887, 0.3275911
  %v892 = vmul.f32 %v888, 0.3275911
  %v893 = vadd.f32 %v889, 1.0
  %v894 = vadd.f32 %v890, 1.0
  %v895 = vadd.f32 %v891, 1.0
  %v896 = vadd.f32 %v892, 1.0
  %v897 = vrcp.pop %v893
  %v898 = vmul.f32 1.0, %v897
  %v899 = vrcp.pop %v894
  %v900 = vmul.f32 1.0, %v899
  %v901 = vrcp.pop %v895
  %v902 = vmul.f32 1.0, %v901
  %v903 = vrcp.pop %v896
  %v904 = vmul.f32 1.0, %v903
  %v905 = vmul.f32 %v898, 1.0614054
  %v906 = vmul.f32 %v900, 1.0614054
  %v907 = vmul.f32 %v902, 1.0614054
  %v908 = vmul.f32 %v904, 1.0614054
  %v909 = vadd.f32 %v905, -1.4531521
  %v910 = vadd.f32 %v906, -1.4531521
  %v911 = vadd.f32 %v907, -1.4531521
  %v912 = vadd.f32 %v908, -1.4531521
  %v913 = vmul.f32 %v909, %v898
  %v914 = vmul.f32 %v910, %v900
  %v915 = vmul.f32 %v911, %v902
  %v916 = vmul.f32 %v912, %v904
  %v917 = vadd.f32 %v913, 1.4214138
  %v918 = vadd.f32 %v914, 1.4214138
  %v919 = vadd.f32 %v915, 1.4214138
  %v920 = vadd.f32 %v916, 1.4214138
  %v921 = vmul.f32 %v917, %v898
  %v922 = vmul.f32 %v918, %v900
  %v923 = vmul.f32 %v919, %v902
  %v924 = vmul.f32 %v920, %v904
  %v925 = vadd.f32 %v921, -0.28449672
  %v926 = vadd.f32 %v922, -0.28449672
  %v927 = vadd.f32 %v923, -0.28449672
  %v928 = vadd.f32 %v924, -0.28449672
  %v929 = vmul.f32 %v925, %v898
  %v930 = vmul.f32 %v926, %v900
  %v931 = vmul.f32 %v927, %v902
  %v932 = vmul.f32 %v928, %v904
  %v933 = vadd.f32 %v929, 0.2548296
  %v934 = vadd.f32 %v930, 0.2548296
  %v935 = vadd.f32 %v931, 0.2548296
  %v936 = vadd.f32 %v932, 0.2548296
  %v937 = vmul.f32 %v933, %v898
  %v938 = vmul.f32 %v934, %v900
  %v939 = vmul.f32 %v935, %v902
  %v940 = vmul.f32 %v936, %v904
  %v941 = vmul.f32 %v885, %v885
  %v942 = vmul.f32 %v886, %v886
  %v943 = vmul.f32 %v887, %v887
  %v944 = vmul.f32 %v888, %v888
  %v945 = vsub.f32 0.0, %v941
  %v946 = vsub.f32 0.0, %v942
  %v947 = vsub.f32 0.0, %v943
  %v948 = vsub.f32 0.0, %v944
  %v949 = vmul.f32 %v945, 1.442695
  %v950 = vpow.pop %v949
  %v951 = vmul.f32 %v946, 1.442695
  %v952 = vpow.pop %v951
  %v953 = vmul.f32 %v947, 1.442695
  %v954 = vpow.pop %v953
  %v955 = vmul.f32 %v948, 1.442695
  %v956 = vpow.pop %v955
  %v957 = vmul.f32 %v937, %v950
  %v958 = vmul.f32 %v938, %v952
  %v959 = vmul.f32 %v939, %v954
  %v960 = vmul.f32 %v940, %v956
  %v961 = vsub.f32 1.0, %v957
  %v962 = vsub.f32 1.0, %v958
  %v963 = vsub.f32 1.0, %v959
  %v964 = vsub.f32 1.0, %v960
  %vm965 = vcmp.ge.f32.partialorder %v881, 0.0
  %vm966 = vcmp.ge.f32.partialorder %v882, 0.0
  %vm967 = vcmp.ge.f32.partialorder %v883, 0.0
  %vm968 = vcmp.ge.f32.partialorder %v884, 0.0
  %v969 = vsub.f32 0.0, %v961
  %v970 = vsub.f32 0.0, %v962
  %v971 = vsub.f32 0.0, %v963
  %v972 = vsub.f32 0.0, %v964
  %v973 = vsel %vm965, %v961, %v969
  %v974 = vsel %vm966, %v962, %v970
  %v975 = vsel %vm967, %v963, %v971
  %v976 = vsel %vm968, %v964, %v972
  %v977 = vadd.f32 %v973, 1.0
  %v978 = vadd.f32 %v974, 1.0
  %v979 = vadd.f32 %v975, 1.0
  %v980 = vadd.f32 %v976, 1.0
  %v981 = vmul.f32 %v877, %v977
  %v982 = vmul.f32 %v878, %v978
  %v983 = vmul.f32 %v879, %v979
  %v984 = vmul.f32 %v880, %v980
  %v985 = vld [vmem:[%s12] sm:$0xf]
  %v986 = vld [vmem:[%s12 + $0x4] sm:$0xf]
  %v987 = vld [vmem:[%s12 + $0x8] sm:$0xf]
  %v988 = vld [vmem:[%s12 + $0xc] sm:$0xf]
  %v989 = vld [vmem:[%s12 + $0x10] sm:$0xf]
  %v990 = vld [vmem:[%s12 + $0x14] sm:$0xf]
  %v991 = vld [vmem:[%s12 + $0x18] sm:$0xf]
  %v992 = vld [vmem:[%s12 + $0x1c] sm:$0xf]
  %v993 = vld [vmem:[%s12 + $0x20] sm:$0xf]
  %v994 = vld [vmem:[%s12 + $0x24] sm:$0xf]
  %v995 = vld [vmem:[%s12 + $0x28] sm:$0xf]
  %v996 = vld [vmem:[%s12 + $0x2c] sm:$0xf]
  %v997 = vld [vmem:[%s12 + $0x30] sm:$0xf]
  %v998 = vld [vmem:[%s12 + $0x34] sm:$0xf]
  %v999 = vld [vmem:[%s12 + $0x38] sm:$0xf]
  %v1000 = vld [vmem:[%s12 + $0x3c] sm:$0xf]
  %v1001 = vpack.c.bf16 %v982, %v981
  %v1002 = vpack.c.bf16 %v984, %v983
  %v1003 = vld [vmem:[%s13] sm:$0x1]
  %v1005 = vlaneseq
  %v1006 = vshrl.u32 %v1005, 7
  %v1007 = vsub.s32 0, %v1006
  %v1008 = vrot.slane %v1003, %v1007
  %v1026 = vunpack.c.l.b16 %v985
  %v1027 = vunpack.c.l.b16 %v986
  %v1028 = vunpack.c.l.b16 %v987
  %v1029 = vunpack.c.l.b16 %v988
  %v1030 = vunpack.c.l.b16 %v989
  %v1031 = vunpack.c.l.b16 %v990
  %v1032 = vunpack.c.l.b16 %v991
  %v1033 = vunpack.c.l.b16 %v992
  %v1034 = vunpack.c.l.b16 %v993
  %v1035 = vunpack.c.l.b16 %v994
  %v1036 = vunpack.c.l.b16 %v995
  %v1037 = vunpack.c.l.b16 %v996
  %v1038 = vunpack.c.l.b16 %v997
  %v1039 = vunpack.c.l.b16 %v998
  %v1040 = vunpack.c.l.b16 %v999
  %v1041 = vunpack.c.l.b16 %v1000
  %v1042 = vpack.c.b16 %v1027, %v1026
  %v1043 = vpack.c.b16 %v1029, %v1028
  %v1044 = vpack.c.b16 %v1031, %v1030
  %v1045 = vpack.c.b16 %v1033, %v1032
  %v1046 = vpack.c.b16 %v1035, %v1034
  %v1047 = vpack.c.b16 %v1037, %v1036
  %v1048 = vpack.c.b16 %v1039, %v1038
  %v1049 = vpack.c.b16 %v1041, %v1040
  %1058 = vmatprep.subr.bf16.mxu0 0
  %1059 = vmatpush1.bf16.msra.mxu0 %v1042
  %1060 = vmatprep.subr.bf16.mxu0 0
  %1061 = vmatpush1.bf16.msra.mxu0 %v1043
  %1062 = vmatprep.subr.bf16.mxu0 0
  %1063 = vmatpush1.bf16.msra.mxu0 %v1044
  %1064 = vmatprep.subr.bf16.mxu0 0
  %1065 = vmatpush1.bf16.msra.mxu0 %v1045
  %1066 = vmatprep.subr.bf16.mxu0 0
  %1067 = vmatpush1.bf16.msra.mxu0 %v1046
  %1068 = vmatprep.subr.bf16.mxu0 0
  %1069 = vmatpush1.bf16.msra.mxu0 %v1047
  %1070 = vmatprep.subr.bf16.mxu0 0
  %1071 = vmatpush1.bf16.msra.mxu0 %v1048
  %1072 = vmatprep.subr.bf16.mxu0 0
  %1073 = vmatpush1.bf16.msra.mxu0 %v1049
  %1074 = vmatprep.subr.bf16.mxu0 0
  %1075 = vmatpush1.bf16.msra.mxu0 0
  %1076 = vmatprep.subr.bf16.mxu0 0
  %1077 = vmatpush1.bf16.msra.mxu0 0
  %1078 = vmatprep.subr.bf16.mxu0 0
  %1079 = vmatpush1.bf16.msra.mxu0 0
  %1080 = vmatprep.subr.bf16.mxu0 0
  %1081 = vmatpush1.bf16.msra.mxu0 0
  %1082 = vmatprep.subr.bf16.mxu0 0
  %1083 = vmatpush1.bf16.msra.mxu0 0
  %1084 = vmatprep.subr.bf16.mxu0 0
  %1085 = vmatpush1.bf16.msra.mxu0 0
  %1086 = vmatprep.subr.bf16.mxu0 0
  %1087 = vmatpush1.bf16.msra.mxu0 0
  %1088 = vmatprep.subr.bf16.mxu0 0
  %1089 = vmatpush1.bf16.msra.mxu0 0
  %1090 = vmatprep.mubr.bf16.mxu0 0
  %1091 = vmatmul.mubr.bf16.gmra.mrb[0].mxu0 %v1001
  %v1092 = vpop.f32.mrb[0].mxu0
  %v1093 = vadd.f32 %v1008, %v1092
  %v1094 = vpop.f32.mrb[0].mxu0
  %v1095 = vpop.f32.mrb[0].mxu0
  %v1096 = vadd.f32 %v1008, %v1095
  %v1097 = vpop.f32.mrb[0].mxu0
  %1098 = vmatprep.mubr.bf16.mxu0 0
  %1099 = vmatmul.mubr.bf16.gmra.mrb[0].mxu0 %v1002
  %v1100 = vpop.f32.mrb[0].mxu0
  %v1101 = vadd.f32 %v1008, %v1100
  %v1102 = vpop.f32.mrb[0].mxu0
  %v1103 = vpop.f32.mrb[0].mxu0
  %v1104 = vadd.f32 %v1008, %v1103
  %v1105 = vpop.f32.mrb[0].mxu0
  %1106 = vdwg.mxu0
  %v1107 = vadd.f32 %v719, %v1093
  %v1108 = vadd.f32 %v720, %v1096
  %v1109 = vadd.f32 %v721, %v1101
  %v1110 = vadd.f32 %v722, %v1104
  %1111 = vst.msk [vmem:[%s14] sm:$0xff] %vm54, %v1107
  %1112 = vst.msk [vmem:[%s14 + $0x8] sm:$0xff] %vm54, %v1108
  %1113 = vst.msk [vmem:[%s14 + $0x10] sm:$0xff] %vm54, %v1109
  %1114 = vst.msk [vmem:[%s14 + $0x18] sm:$0xff] %vm54, %v1110
  // Predicated region
  $region58: #{swin_unet_forward.13} parent=0 // pred_check
    _
  $region59: #{swin_unet_forward.13} parent=0 // pred_check_branch
    %1116 = sbr.rel (0) target = $region61
  $region60: #{swin_unet_forward.13} parent=0 // pred_region
    _
  $region61: #{swin_unet_forward.13} parent=0 // pred_fallthru
    _
  // Predicated region
  $region62: #{swin_unet_forward.13} parent=0 // pred_check
    _
  $region63: #{swin_unet_forward.13} parent=0 // pred_check_branch
    %1118 = sbr.rel (0) target = $region65
  $region64: #{swin_unet_forward.13} parent=0 // pred_region
    _
  $region65: #{swin_unet_forward.13} parent=0 // pred_fallthru
    _

// kernel: swin_unet_forward.18
$region0: #{swin_unet_forward.18}
  #allocation0 [shape = 'u32[]', space=smem, size = 0x4, offset = 0x4, fixed_abs, tag = 'smem constant byte address 0x4 - core index']
  #allocation1 [shape = 'u32[144,128]{1,0:T(1,128)}', space=vmem, size = 0x12000, scoped, tag = 'internal scratch']
  %s0 = inlined_call_operand.vmem [shape: f32[8,64], index: 0, kind: input, shape index: {}]
  %s1 = inlined_call_operand.vmem [shape: f32[1,64], index: 1, kind: input, shape index: {}]
  %s2 = inlined_call_operand.vmem [shape: f32[1,64], index: 2, kind: input, shape index: {}]
  %s3 = inlined_call_operand.vmem [shape: bf16[64,128], index: 3, kind: input, shape index: {}]
  %s4 = inlined_call_operand.vmem [shape: f32[1,32], index: 4, kind: input, shape index: {}]
  %s5 = inlined_call_operand.vmem [shape: f32[1,32], index: 5, kind: input, shape index: {}]
  %s6 = inlined_call_operand.vmem [shape: f32[8,128], index: 6, kind: output, shape index: {}]
  %s7 = sld [smem:[#allocation0]]
  $region34: #{swin_unet_forward.18} parent=0
    _
  %s9 = ssub.s32 1, %s7
  %s10 = scalar_select 0, %s9, %s7
  // Predicated region
  $region2: #{swin_unet_forward.18} parent=0 // pred_check
    _
  $region3: #{swin_unet_forward.18} parent=0 // pred_check_branch
    %12 = sbr.rel (0) target = $region5
  $region4: #{swin_unet_forward.18} parent=0 // pred_region
    _
  $region5: #{swin_unet_forward.18} parent=0 // pred_fallthru
    _
  // Predicated region
  $region6: #{swin_unet_forward.18} parent=0 // pred_check
    _
  $region7: #{swin_unet_forward.18} parent=0 // pred_check_branch
    %14 = sbr.rel (0) target = $region9
  $region8: #{swin_unet_forward.18} parent=0 // pred_region
    _
  $region9: #{swin_unet_forward.18} parent=0 // pred_fallthru
    _
  // Predicated region
  $region10: #{swin_unet_forward.18} parent=0 // pred_check
    _
  $region11: #{swin_unet_forward.18} parent=0 // pred_check_branch
    %16 = sbr.rel (0) target = $region13
  $region12: #{swin_unet_forward.18} parent=0 // pred_region
    _
  $region13: #{swin_unet_forward.18} parent=0 // pred_fallthru
    _
  // Predicated region
  $region14: #{swin_unet_forward.18} parent=0 // pred_check
    _
  $region15: #{swin_unet_forward.18} parent=0 // pred_check_branch
    %18 = sbr.rel (0) target = $region17
  $region16: #{swin_unet_forward.18} parent=0 // pred_region
    _
  $region17: #{swin_unet_forward.18} parent=0 // pred_fallthru
    _
  // Predicated region
  $region18: #{swin_unet_forward.18} parent=0 // pred_check
    _
  $region19: #{swin_unet_forward.18} parent=0 // pred_check_branch
    %20 = sbr.rel (0) target = $region21
  $region20: #{swin_unet_forward.18} parent=0 // pred_region
    _
  $region21: #{swin_unet_forward.18} parent=0 // pred_fallthru
    _
  // Predicated region
  $region22: #{swin_unet_forward.18} parent=0 // pred_check
    _
  $region23: #{swin_unet_forward.18} parent=0 // pred_check_branch
    %22 = sbr.rel (0) target = $region25
  $region24: #{swin_unet_forward.18} parent=0 // pred_region
    _
  $region25: #{swin_unet_forward.18} parent=0 // pred_fallthru
    _
  %v24 = vld [vmem:[%s0] sm:$0xff]
  %v25 = vld [vmem:[%s1] sm:$0x1]
  %v26 = vld [vmem:[%s2] sm:$0x1]
  %vm27 = vcmask 523264
  %v28 = vsel %vm27, %v24, 0.0
  %29 = vadd.xlane.f32.xlu0 %v28
  %v30 = vpop.xlane.xlu0 %29
  %v31 = vrcp.pop 64.0
  %v32 = vmul.f32 %v30, %v31
  %v33 = vsub.f32 %v24, %v32
  %v34 = vmul.f32 %v33, %v33
  %v35 = vsel %vm27, %v34, 0.0
  %36 = vadd.xlane.f32.xlu0 %v35
  %v37 = vpop.xlane.xlu0 %36
  %v38 = vmul.f32 %v37, %v31
  %v39 = vadd.f32 %v38, 1e-05
  %v40 = vrsqrt.pop %v39
  %v41 = vmul.f32 %v33, %v40
  %v43 = vlaneseq
  %v44 = vshrl.u32 %v43, 7
  %v45 = vsub.s32 0, %v44
  %v46 = vrot.slane %v25, %v45
  %v48 = vmul.f32 %v41, %v46
  %v50 = vlaneseq
  %v51 = vshrl.u32 %v50, 7
  %v52 = vsub.s32 0, %v51
  %v53 = vrot.slane %v26, %v52
  %v55 = vadd.f32 %v48, %v53
  %v56 = vld [vmem:[%s3] sm:$0xf]
  %v57 = vld [vmem:[%s3 + $0x4] sm:$0xf]
  %v58 = vld [vmem:[%s3 + $0x8] sm:$0xf]
  %v59 = vld [vmem:[%s3 + $0xc] sm:$0xf]
  %v60 = vld [vmem:[%s3 + $0x10] sm:$0xf]
  %v61 = vld [vmem:[%s3 + $0x14] sm:$0xf]
  %v62 = vld [vmem:[%s3 + $0x18] sm:$0xf]
  %v63 = vld [vmem:[%s3 + $0x1c] sm:$0xf]
  %v64 = vpack.c.bf16 %v55, %v55
  %v73 = vunpack.c.l.b16 %v56
  %v74 = vunpack.c.l.b16 %v57
  %v75 = vunpack.c.l.b16 %v58
  %v76 = vunpack.c.l.b16 %v59
  %v77 = vunpack.c.l.b16 %v60
  %v78 = vunpack.c.l.b16 %v61
  %v79 = vunpack.c.l.b16 %v62
  %v80 = vunpack.c.l.b16 %v63
  %v81 = vpack.c.b16 %v74, %v73
  %v82 = vpack.c.b16 %v76, %v75
  %v83 = vpack.c.b16 %v78, %v77
  %v84 = vpack.c.b16 %v80, %v79
  %v90 = vsel %vm27, %v64, 0
  %92 = vmatprep.subr.bf16.mxu0 0
  %93 = vmatpush1.bf16.msra.mxu0 %v81
  %94 = vmatprep.subr.bf16.mxu0 0
  %95 = vmatpush1.bf16.msra.mxu0 %v82
  %96 = vmatprep.subr.bf16.mxu0 0
  %97 = vmatpush1.bf16.msra.mxu0 %v83
  %98 = vmatprep.subr.bf16.mxu0 0
  %99 = vmatpush1.bf16.msra.mxu0 %v84
  %100 = vmatprep.subr.bf16.mxu0 0
  %101 = vmatpush1.bf16.msra.mxu0 0
  %102 = vmatprep.subr.bf16.mxu0 0
  %103 = vmatpush1.bf16.msra.mxu0 0
  %104 = vmatprep.subr.bf16.mxu0 0
  %105 = vmatpush1.bf16.msra.mxu0 0
  %106 = vmatprep.subr.bf16.mxu0 0
  %107 = vmatpush1.bf16.msra.mxu0 0
  %108 = vmatprep.subr.bf16.mxu0 0
  %109 = vmatpush1.bf16.msra.mxu0 0
  %110 = vmatprep.subr.bf16.mxu0 0
  %111 = vmatpush1.bf16.msra.mxu0 0
  %112 = vmatprep.subr.bf16.mxu0 0
  %113 = vmatpush1.bf16.msra.mxu0 0
  %114 = vmatprep.subr.bf16.mxu0 0
  %115 = vmatpush1.bf16.msra.mxu0 0
  %116 = vmatprep.subr.bf16.mxu0 0
  %117 = vmatpush1.bf16.msra.mxu0 0
  %118 = vmatprep.subr.bf16.mxu0 0
  %119 = vmatpush1.bf16.msra.mxu0 0
  %120 = vmatprep.subr.bf16.mxu0 0
  %121 = vmatpush1.bf16.msra.mxu0 0
  %122 = vmatprep.subr.bf16.mxu0 0
  %123 = vmatpush1.bf16.msra.mxu0 0
  %124 = vmatprep.mubr.bf16.mxu0 0
  %125 = vmatmul.mubr.bf16.gmra.mrb[0].mxu0 %v90
  %v126 = vpop.f32.mrb[0].mxu0
  %v127 = vadd.f32 0.0, %v126
  %v128 = vpop.f32.mrb[0].mxu0
  %v129 = vpop.f32.mrb[0].mxu0
  %v130 = vpop.f32.mrb[0].mxu0
  %131 = vdwg.mxu0
  %v132 = vld [vmem:[%s4] sm:$0x1]
  %v133 = vld [vmem:[%s5] sm:$0x1]
  %vm134 = vcmask 261120
  %v135 = vsel %vm134, %v127, 0.0
  %136 = vadd.xlane.f32.xlu0 %v135
  %v137 = vpop.xlane.xlu0 %136
  %v138 = vrcp.pop 32.0
  %v139 = vmul.f32 %v137, %v138
  %v140 = vsub.f32 %v127, %v139
  %v141 = vmul.f32 %v140, %v140
  %v142 = vsel %vm134, %v141, 0.0
  %143 = vadd.xlane.f32.xlu0 %v142
  %v144 = vpop.xlane.xlu0 %143
  %v145 = vmul.f32 %v144, %v138
  %v146 = vadd.f32 %v145, 1e-05
  %v147 = vrsqrt.pop %v146
  %v148 = vmul.f32 %v140, %v147
  %v150 = vlaneseq
  %v151 = vshrl.u32 %v150, 7
  %v152 = vsub.s32 0, %v151
  %v153 = vrot.slane %v132, %v152
  %v155 = vmul.f32 %v148, %v153
  %v157 = vlaneseq
  %v158 = vshrl.u32 %v157, 7
  %v159 = vsub.s32 0, %v158
  %v160 = vrot.slane %v133, %v159
  %v162 = vadd.f32 %v155, %v160
  %164 = vrot.lane.b32.xlu0 %v127, 96
  %v165 = vpop.permute.xlu0 %164
  %v167 = vsel %vm134, %v165, 0.0
  %168 = vadd.xlane.f32.xlu0 %v167
  %v169 = vpop.xlane.xlu0 %168
  %v170 = vmul.f32 %v169, %v138
  %v171 = vsub.f32 %v127, %v170
  %v172 = vmul.f32 %v171, %v171
  %174 = vrot.lane.b32.xlu0 %v172, 96
  %v175 = vpop.permute.xlu0 %174
  %v177 = vsel %vm134, %v175, 0.0
  %178 = vadd.xlane.f32.xlu0 %v177
  %v179 = vpop.xlane.xlu0 %178
  %v180 = vmul.f32 %v179, %v138
  %v181 = vadd.f32 %v180, 1e-05
  %v182 = vrsqrt.pop %v181
  %v183 = vmul.f32 %v171, %v182
  %184 = vrot.lane.b32.xlu0 %v153, 32
  %v185 = vpop.permute.xlu0 %184
  %v187 = vmul.f32 %v183, %v185
  %188 = vrot.lane.b32.xlu0 %v160, 32
  %v189 = vpop.permute.xlu0 %188
  %v191 = vadd.f32 %v187, %v189
  %192 = vrot.lane.b32.xlu0 %v127, 64
  %v193 = vpop.permute.xlu0 %192
  %v195 = vsel %vm134, %v193, 0.0
  %196 = vadd.xlane.f32.xlu0 %v195
  %v197 = vpop.xlane.xlu0 %196
  %v198 = vmul.f32 %v197, %v138
  %v199 = vsub.f32 %v127, %v198
  %v200 = vmul.f32 %v199, %v199
  %202 = vrot.lane.b32.xlu0 %v200, 64
  %v203 = vpop.permute.xlu0 %202
  %v205 = vsel %vm134, %v203, 0.0
  %206 = vadd.xlane.f32.xlu0 %v205
  %v207 = vpop.xlane.xlu0 %206
  %v208 = vmul.f32 %v207, %v138
  %v209 = vadd.f32 %v208, 1e-05
  %v210 = vrsqrt.pop %v209
  %v211 = vmul.f32 %v199, %v210
  %212 = vrot.lane.b32.xlu0 %v153, 64
  %v213 = vpop.permute.xlu0 %212
  %v215 = vmul.f32 %v211, %v213
  %216 = vrot.lane.b32.xlu0 %v160, 64
  %v217 = vpop.permute.xlu0 %216
  %v219 = vadd.f32 %v215, %v217
  %220 = vrot.lane.b32.xlu0 %v127, 32
  %v221 = vpop.permute.xlu0 %220
  %v223 = vsel %vm134, %v221, 0.0
  %224 = vadd.xlane.f32.xlu0 %v223
  %v225 = vpop.xlane.xlu0 %224
  %v226 = vmul.f32 %v225, %v138
  %v227 = vsub.f32 %v127, %v226
  %v228 = vmul.f32 %v227, %v227
  %230 = vrot.lane.b32.xlu0 %v228, 32
  %v231 = vpop.permute.xlu0 %230
  %v233 = vsel %vm134, %v231, 0.0
  %234 = vadd.xlane.f32.xlu0 %v233
  %v235 = vpop.xlane.xlu0 %234
  %v236 = vmul.f32 %v235, %v138
  %v237 = vadd.f32 %v236, 1e-05
  %v238 = vrsqrt.pop %v237
  %v239 = vmul.f32 %v227, %v238
  %240 = vrot.lane.b32.xlu0 %v153, 96
  %v241 = vpop.permute.xlu0 %240
  %v243 = vmul.f32 %v239, %v241
  %244 = vrot.lane.b32.xlu0 %v160, 96
  %v245 = vpop.permute.xlu0 %244
  %v247 = vadd.f32 %v243, %v245
  %v248 = vsel %vm134, %v162, %v191
  %v249 = vsel %vm27, %v248, %v219
  %vm250 = vcmask 785408
  %v251 = vsel %vm250, %v249, %v247
  %252 = vst [vmem:[%s6] sm:$0xff] %v251
  // Predicated region
  $region26: #{swin_unet_forward.18} parent=0 // pred_check
    _
  $region27: #{swin_unet_forward.18} parent=0 // pred_check_branch
    %254 = sbr.rel (0) target = $region29
  $region28: #{swin_unet_forward.18} parent=0 // pred_region
    _
  $region29: #{swin_unet_forward.18} parent=0 // pred_fallthru
    _
  // Predicated region
  $region30: #{swin_unet_forward.18} parent=0 // pred_check
    _
  $region31: #{swin_unet_forward.18} parent=0 // pred_check_branch
    %256 = sbr.rel (0) target = $region33
  $region32: #{swin_unet_forward.18} parent=0 // pred_region
    _
  $region33: #{swin_unet_forward.18} parent=0 // pred_fallthru
    _

// kernel: swin_unet_forward.19
$region0: #{swin_unet_forward.19}
  #allocation0 [shape = 'u32[]', space=smem, size = 0x4, offset = 0x4, fixed_abs, tag = 'smem constant byte address 0x4 - core index']
  #allocation1 [shape = 'u32[144,128]{1,0:T(1,128)}', space=vmem, size = 0x12000, scoped, tag = 'internal scratch']
  %s0 = inlined_call_operand.vmem [shape: f32[32,32], index: 0, kind: input, shape index: {}]
  %s1 = inlined_call_operand.vmem [shape: f32[32,32], index: 1, kind: input, shape index: {}]
  %s2 = inlined_call_operand.vmem [shape: bf16[64,32], index: 2, kind: input, shape index: {}]
  %s3 = inlined_call_operand.vmem [shape: f32[1,32], index: 3, kind: input, shape index: {}]
  %s4 = inlined_call_operand.vmem [shape: f32[32,32], index: 4, kind: output, shape index: {}]
  %s5 = sld [smem:[#allocation0]]
  $region26: #{swin_unet_forward.19} parent=0
    _
  %s7 = ssub.s32 1, %s5
  %s8 = scalar_select 0, %s7, %s5
  // Predicated region
  $region2: #{swin_unet_forward.19} parent=0 // pred_check
    _
  $region3: #{swin_unet_forward.19} parent=0 // pred_check_branch
    %10 = sbr.rel (0) target = $region5
  $region4: #{swin_unet_forward.19} parent=0 // pred_region
    _
  $region5: #{swin_unet_forward.19} parent=0 // pred_fallthru
    _
  // Predicated region
  $region6: #{swin_unet_forward.19} parent=0 // pred_check
    _
  $region7: #{swin_unet_forward.19} parent=0 // pred_check_branch
    %12 = sbr.rel (0) target = $region9
  $region8: #{swin_unet_forward.19} parent=0 // pred_region
    _
  $region9: #{swin_unet_forward.19} parent=0 // pred_fallthru
    _
  // Predicated region
  $region10: #{swin_unet_forward.19} parent=0 // pred_check
    _
  $region11: #{swin_unet_forward.19} parent=0 // pred_check_branch
    %14 = sbr.rel (0) target = $region13
  $region12: #{swin_unet_forward.19} parent=0 // pred_region
    _
  $region13: #{swin_unet_forward.19} parent=0 // pred_fallthru
    _
  // Predicated region
  $region14: #{swin_unet_forward.19} parent=0 // pred_check
    _
  $region15: #{swin_unet_forward.19} parent=0 // pred_check_branch
    %16 = sbr.rel (0) target = $region17
  $region16: #{swin_unet_forward.19} parent=0 // pred_region
    _
  $region17: #{swin_unet_forward.19} parent=0 // pred_fallthru
    _
  %v18 = vld [vmem:[%s2] sm:$0xf]
  %v19 = vld [vmem:[%s2 + $0x4] sm:$0xf]
  %v20 = vld [vmem:[%s2 + $0x8] sm:$0xf]
  %v21 = vld [vmem:[%s2 + $0xc] sm:$0xf]
  %v22 = vld [vmem:[%s2 + $0x10] sm:$0xf]
  %v23 = vld [vmem:[%s2 + $0x14] sm:$0xf]
  %v24 = vld [vmem:[%s2 + $0x18] sm:$0xf]
  %v25 = vld [vmem:[%s2 + $0x1c] sm:$0xf]
  %v26 = vld [vmem:[%s0] sm:$0xff]
  %v27 = vld [vmem:[%s0 + $0x8] sm:$0xff]
  %v28 = vld [vmem:[%s0 + $0x10] sm:$0xff]
  %v29 = vld [vmem:[%s0 + $0x18] sm:$0xff]
  %v30 = vpack.c.bf16 %v27, %v26
  %v31 = vpack.c.bf16 %v29, %v28
  %v32 = vld [vmem:[%s1] sm:$0xff]
  %v33 = vld [vmem:[%s1 + $0x8] sm:$0xff]
  %v34 = vld [vmem:[%s1 + $0x10] sm:$0xff]
  %v35 = vld [vmem:[%s1 + $0x18] sm:$0xff]
  %v36 = vpack.c.bf16 %v33, %v32
  %v37 = vpack.c.bf16 %v35, %v34
  %v42 = vunpack.c.l.b16 %v22
  %v43 = vunpack.c.l.b16 %v23
  %v44 = vunpack.c.l.b16 %v24
  %v45 = vunpack.c.l.b16 %v25
  %v46 = vpack.c.b16 %v43, %v42
  %v47 = vpack.c.b16 %v45, %v44
  %vm50 = vcmask 261120
  %v52 = vsel %vm50, %v36, 0
  %v55 = vsel %vm50, %v37, 0
  %57 = vmatprep.subr.bf16.mxu0 0
  %58 = vmatpush1.bf16.msra.mxu0 %v46
  %59 = vmatprep.subr.bf16.mxu0 0
  %60 = vmatpush1.bf16.msra.mxu0 %v47
  %61 = vmatprep.subr.bf16.mxu0 0
  %62 = vmatpush1.bf16.msra.mxu0 0
  %63 = vmatprep.subr.bf16.mxu0 0
  %64 = vmatpush1.bf16.msra.mxu0 0
  %65 = vmatprep.subr.bf16.mxu0 0
  %66 = vmatpush1.bf16.msra.mxu0 0
  %67 = vmatprep.subr.bf16.mxu0 0
  %68 = vmatpush1.bf16.msra.mxu0 0
  %69 = vmatprep.subr.bf16.mxu0 0
  %70 = vmatpush1.bf16.msra.mxu0 0
  %71 = vmatprep.subr.bf16.mxu0 0
  %72 = vmatpush1.bf16.msra.mxu0 0
  %73 = vmatprep.subr.bf16.mxu0 0
  %74 = vmatpush1.bf16.msra.mxu0 0
  %75 = vmatprep.subr.bf16.mxu0 0
  %76 = vmatpush1.bf16.msra.mxu0 0
  %77 = vmatprep.subr.bf16.mxu0 0
  %78 = vmatpush1.bf16.msra.mxu0 0
  %79 = vmatprep.subr.bf16.mxu0 0
  %80 = vmatpush1.bf16.msra.mxu0 0
  %81 = vmatprep.subr.bf16.mxu0 0
  %82 = vmatpush1.bf16.msra.mxu0 0
  %83 = vmatprep.subr.bf16.mxu0 0
  %84 = vmatpush1.bf16.msra.mxu0 0
  %85 = vmatprep.subr.bf16.mxu0 0
  %86 = vmatpush1.bf16.msra.mxu0 0
  %87 = vmatprep.subr.bf16.mxu0 0
  %88 = vmatpush1.bf16.msra.mxu0 0
  %89 = vmatprep.mubr.bf16.mxu0 0
  %90 = vmatmul.mubr.bf16.gmra.mrb[0].mxu0 %v52
  %v91 = vpop.f32.mrb[0].mxu0
  %v92 = vadd.f32 0.0, %v91
  %v93 = vpop.f32.mrb[0].mxu0
  %v94 = vpop.f32.mrb[0].mxu0
  %v95 = vadd.f32 0.0, %v94
  %v96 = vpop.f32.mrb[0].mxu0
  %97 = vmatprep.mubr.bf16.mxu0 0
  %98 = vmatmul.mubr.bf16.gmra.mrb[0].mxu0 %v55
  %v99 = vpop.f32.mrb[0].mxu0
  %v100 = vadd.f32 0.0, %v99
  %v101 = vpop.f32.mrb[0].mxu0
  %v102 = vpop.f32.mrb[0].mxu0
  %v103 = vadd.f32 0.0, %v102
  %v104 = vpop.f32.mrb[0].mxu0
  %105 = vdwg.mxu0
  %v110 = vunpack.c.l.b16 %v18
  %v111 = vunpack.c.l.b16 %v19
  %v112 = vunpack.c.l.b16 %v20
  %v113 = vunpack.c.l.b16 %v21
  %v114 = vpack.c.b16 %v111, %v110
  %v115 = vpack.c.b16 %v113, %v112
  %v119 = vsel %vm50, %v30, 0
  %v122 = vsel %vm50, %v31, 0
  %124 = vmatprep.subr.bf16.mxu0 0
  %125 = vmatpush1.bf16.msra.mxu0 %v114
  %126 = vmatprep.subr.bf16.mxu0 0
  %127 = vmatpush1.bf16.msra.mxu0 %v115
  %128 = vmatprep.subr.bf16.mxu0 0
  %129 = vmatpush1.bf16.msra.mxu0 0
  %130 = vmatprep.subr.bf16.mxu0 0
  %131 = vmatpush1.bf16.msra.mxu0 0
  %132 = vmatprep.subr.bf16.mxu0 0
  %133 = vmatpush1.bf16.msra.mxu0 0
  %134 = vmatprep.subr.bf16.mxu0 0
  %135 = vmatpush1.bf16.msra.mxu0 0
  %136 = vmatprep.subr.bf16.mxu0 0
  %137 = vmatpush1.bf16.msra.mxu0 0
  %138 = vmatprep.subr.bf16.mxu0 0
  %139 = vmatpush1.bf16.msra.mxu0 0
  %140 = vmatprep.subr.bf16.mxu0 0
  %141 = vmatpush1.bf16.msra.mxu0 0
  %142 = vmatprep.subr.bf16.mxu0 0
  %143 = vmatpush1.bf16.msra.mxu0 0
  %144 = vmatprep.subr.bf16.mxu0 0
  %145 = vmatpush1.bf16.msra.mxu0 0
  %146 = vmatprep.subr.bf16.mxu0 0
  %147 = vmatpush1.bf16.msra.mxu0 0
  %148 = vmatprep.subr.bf16.mxu0 0
  %149 = vmatpush1.bf16.msra.mxu0 0
  %150 = vmatprep.subr.bf16.mxu0 0
  %151 = vmatpush1.bf16.msra.mxu0 0
  %152 = vmatprep.subr.bf16.mxu0 0
  %153 = vmatpush1.bf16.msra.mxu0 0
  %154 = vmatprep.subr.bf16.mxu0 0
  %155 = vmatpush1.bf16.msra.mxu0 0
  %156 = vmatprep.mubr.bf16.mxu0 0
  %157 = vmatmul.mubr.bf16.gmra.mrb[0].mxu0 %v119
  %v158 = vpop.f32.mrb[0].mxu0
  %v159 = vadd.f32 %v92, %v158
  %v160 = vpop.f32.mrb[0].mxu0
  %v161 = vpop.f32.mrb[0].mxu0
  %v162 = vadd.f32 %v95, %v161
  %v163 = vpop.f32.mrb[0].mxu0
  %164 = vmatprep.mubr.bf16.mxu0 0
  %165 = vmatmul.mubr.bf16.gmra.mrb[0].mxu0 %v122
  %v166 = vpop.f32.mrb[0].mxu0
  %v167 = vadd.f32 %v100, %v166
  %v168 = vpop.f32.mrb[0].mxu0
  %v169 = vpop.f32.mrb[0].mxu0
  %v170 = vadd.f32 %v103, %v169
  %v171 = vpop.f32.mrb[0].mxu0
  %172 = vdwg.mxu0
  %v173 = vld [vmem:[%s3] sm:$0x1]
  %v175 = vlaneseq
  %v176 = vshrl.u32 %v175, 7
  %v177 = vsub.s32 0, %v176
  %v178 = vrot.slane %v173, %v177
  %v180 = vadd.f32 %v159, %v178
  %v181 = vadd.f32 %v162, %v178
  %v182 = vadd.f32 %v167, %v178
  %v183 = vadd.f32 %v170, %v178
  %184 = vst.msk [vmem:[%s4] sm:$0xff] %vm50, %v180
  %185 = vst.msk [vmem:[%s4 + $0x8] sm:$0xff] %vm50, %v181
  %186 = vst.msk [vmem:[%s4 + $0x10] sm:$0xff] %vm50, %v182
  %187 = vst.msk [vmem:[%s4 + $0x18] sm:$0xff] %vm50, %v183
  // Predicated region
  $region18: #{swin_unet_forward.19} parent=0 // pred_check
    _
  $region19: #{swin_unet_forward.19} parent=0 // pred_check_branch
    %189 = sbr.rel (0) target = $region21
  $region20: #{swin_unet_forward.19} parent=0 // pred_region
    _
  $region21: #{swin_unet_forward.19} parent=0 // pred_fallthru
    _
  // Predicated region
  $region22: #{swin_unet_forward.19} parent=0 // pred_check
    _
  $region23: #{swin_unet_forward.19} parent=0 // pred_check_branch
    %191 = sbr.rel (0) target = $region25
  $region24: #{swin_unet_forward.19} parent=0 // pred_region
    _
  $region25: #{swin_unet_forward.19} parent=0 // pred_fallthru
    _

// kernel: swin_unet_forward.16
$region0: #{swin_unet_forward.16}
  #allocation0 [shape = 'u32[]', space=smem, size = 0x4, offset = 0x4, fixed_abs, tag = 'smem constant byte address 0x4 - core index']
  #allocation1 [shape = 'u32[144,128]{1,0:T(1,128)}', space=vmem, size = 0x12000, scoped, tag = 'internal scratch']
  %s0 = inlined_call_operand.vmem [shape: f32[8,64], index: 0, kind: input, shape index: {}]
  %s1 = inlined_call_operand.vmem [shape: bf16[64,192], index: 1, kind: input, shape index: {}]
  %s2 = inlined_call_operand.vmem [shape: f32[1,192], index: 2, kind: input, shape index: {}]
  %s3 = inlined_call_operand.vmem [shape: f32[1,64], index: 3, kind: input, shape index: {}]
  %s4 = inlined_call_operand.vmem [shape: f32[1,64], index: 4, kind: input, shape index: {}]
  %s5 = inlined_call_operand.vmem [shape: bf16[64,64], index: 5, kind: input, shape index: {}]
  %s6 = inlined_call_operand.vmem [shape: f32[1,64], index: 6, kind: input, shape index: {}]
  %s7 = inlined_call_operand.vmem [shape: f32[4,8,8], index: 7, kind: input, shape index: {}]
  %s8 = inlined_call_operand.vmem [shape: f32[1,64], index: 8, kind: input, shape index: {}]
  %s9 = inlined_call_operand.vmem [shape: f32[1,64], index: 9, kind: input, shape index: {}]
  %s10 = inlined_call_operand.vmem [shape: bf16[64,256], index: 10, kind: input, shape index: {}]
  %s11 = inlined_call_operand.vmem [shape: f32[1,256], index: 11, kind: input, shape index: {}]
  %s12 = inlined_call_operand.vmem [shape: bf16[256,64], index: 12, kind: input, shape index: {}]
  %s13 = inlined_call_operand.vmem [shape: f32[1,64], index: 13, kind: input, shape index: {}]
  %s14 = inlined_call_operand.vmem [shape: f32[8,64], index: 14, kind: output, shape index: {}]
  %s15 = sld [smem:[#allocation0]]
  $region66: #{swin_unet_forward.16} parent=0
    _
  %s17 = ssub.s32 1, %s15
  %s18 = scalar_select 0, %s17, %s15
  // Predicated region
  $region2: #{swin_unet_forward.16} parent=0 // pred_check
    _
  $region3: #{swin_unet_forward.16} parent=0 // pred_check_branch
    %20 = sbr.rel (0) target = $region5
  $region4: #{swin_unet_forward.16} parent=0 // pred_region
    _
  $region5: #{swin_unet_forward.16} parent=0 // pred_fallthru
    _
  // Predicated region
  $region6: #{swin_unet_forward.16} parent=0 // pred_check
    _
  $region7: #{swin_unet_forward.16} parent=0 // pred_check_branch
    %22 = sbr.rel (0) target = $region9
  $region8: #{swin_unet_forward.16} parent=0 // pred_region
    _
  $region9: #{swin_unet_forward.16} parent=0 // pred_fallthru
    _
  // Predicated region
  $region10: #{swin_unet_forward.16} parent=0 // pred_check
    _
  $region11: #{swin_unet_forward.16} parent=0 // pred_check_branch
    %24 = sbr.rel (0) target = $region13
  $region12: #{swin_unet_forward.16} parent=0 // pred_region
    _
  $region13: #{swin_unet_forward.16} parent=0 // pred_fallthru
    _
  // Predicated region
  $region14: #{swin_unet_forward.16} parent=0 // pred_check
    _
  $region15: #{swin_unet_forward.16} parent=0 // pred_check_branch
    %26 = sbr.rel (0) target = $region17
  $region16: #{swin_unet_forward.16} parent=0 // pred_region
    _
  $region17: #{swin_unet_forward.16} parent=0 // pred_fallthru
    _
  // Predicated region
  $region18: #{swin_unet_forward.16} parent=0 // pred_check
    _
  $region19: #{swin_unet_forward.16} parent=0 // pred_check_branch
    %28 = sbr.rel (0) target = $region21
  $region20: #{swin_unet_forward.16} parent=0 // pred_region
    _
  $region21: #{swin_unet_forward.16} parent=0 // pred_fallthru
    _
  // Predicated region
  $region22: #{swin_unet_forward.16} parent=0 // pred_check
    _
  $region23: #{swin_unet_forward.16} parent=0 // pred_check_branch
    %30 = sbr.rel (0) target = $region25
  $region24: #{swin_unet_forward.16} parent=0 // pred_region
    _
  $region25: #{swin_unet_forward.16} parent=0 // pred_fallthru
    _
  // Predicated region
  $region26: #{swin_unet_forward.16} parent=0 // pred_check
    _
  $region27: #{swin_unet_forward.16} parent=0 // pred_check_branch
    %32 = sbr.rel (0) target = $region29
  $region28: #{swin_unet_forward.16} parent=0 // pred_region
    _
  $region29: #{swin_unet_forward.16} parent=0 // pred_fallthru
    _
  // Predicated region
  $region30: #{swin_unet_forward.16} parent=0 // pred_check
    _
  $region31: #{swin_unet_forward.16} parent=0 // pred_check_branch
    %34 = sbr.rel (0) target = $region33
  $region32: #{swin_unet_forward.16} parent=0 // pred_region
    _
  $region33: #{swin_unet_forward.16} parent=0 // pred_fallthru
    _
  // Predicated region
  $region34: #{swin_unet_forward.16} parent=0 // pred_check
    _
  $region35: #{swin_unet_forward.16} parent=0 // pred_check_branch
    %36 = sbr.rel (0) target = $region37
  $region36: #{swin_unet_forward.16} parent=0 // pred_region
    _
  $region37: #{swin_unet_forward.16} parent=0 // pred_fallthru
    _
  // Predicated region
  $region38: #{swin_unet_forward.16} parent=0 // pred_check
    _
  $region39: #{swin_unet_forward.16} parent=0 // pred_check_branch
    %38 = sbr.rel (0) target = $region41
  $region40: #{swin_unet_forward.16} parent=0 // pred_region
    _
  $region41: #{swin_unet_forward.16} parent=0 // pred_fallthru
    _
  // Predicated region
  $region42: #{swin_unet_forward.16} parent=0 // pred_check
    _
  $region43: #{swin_unet_forward.16} parent=0 // pred_check_branch
    %40 = sbr.rel (0) target = $region45
  $region44: #{swin_unet_forward.16} parent=0 // pred_region
    _
  $region45: #{swin_unet_forward.16} parent=0 // pred_fallthru
    _
  // Predicated region
  $region46: #{swin_unet_forward.16} parent=0 // pred_check
    _
  $region47: #{swin_unet_forward.16} parent=0 // pred_check_branch
    %42 = sbr.rel (0) target = $region49
  $region48: #{swin_unet_forward.16} parent=0 // pred_region
    _
  $region49: #{swin_unet_forward.16} parent=0 // pred_fallthru
    _
  // Predicated region
  $region50: #{swin_unet_forward.16} parent=0 // pred_check
    _
  $region51: #{swin_unet_forward.16} parent=0 // pred_check_branch
    %44 = sbr.rel (0) target = $region53
  $region52: #{swin_unet_forward.16} parent=0 // pred_region
    _
  $region53: #{swin_unet_forward.16} parent=0 // pred_fallthru
    _
  // Predicated region
  $region54: #{swin_unet_forward.16} parent=0 // pred_check
    _
  $region55: #{swin_unet_forward.16} parent=0 // pred_check_branch
    %46 = sbr.rel (0) target = $region57
  $region56: #{swin_unet_forward.16} parent=0 // pred_region
    _
  $region57: #{swin_unet_forward.16} parent=0 // pred_fallthru
    _
  %v48 = vld [vmem:[%s0] sm:$0xff]
  %v49 = vld [vmem:[%s3] sm:$0x1]
  %v50 = vld [vmem:[%s4] sm:$0x1]
  %vm51 = vcmask 523264
  %v52 = vsel %vm51, %v48, 0.0
  %53 = vadd.xlane.f32.xlu0 %v52
  %v54 = vpop.xlane.xlu0 %53
  %v55 = vrcp.pop 64.0
  %v56 = vmul.f32 %v54, %v55
  %v57 = vsub.f32 %v48, %v56
  %v58 = vmul.f32 %v57, %v57
  %v59 = vsel %vm51, %v58, 0.0
  %60 = vadd.xlane.f32.xlu0 %v59
  %v61 = vpop.xlane.xlu0 %60
  %v62 = vmul.f32 %v61, %v55
  %v63 = vadd.f32 %v62, 1e-05
  %v64 = vrsqrt.pop %v63
  %v65 = vmul.f32 %v57, %v64
  %v67 = vlaneseq
  %v68 = vshrl.u32 %v67, 7
  %v69 = vsub.s32 0, %v68
  %v70 = vrot.slane %v49, %v69
  %v72 = vmul.f32 %v65, %v70
  %v74 = vlaneseq
  %v75 = vshrl.u32 %v74, 7
  %v76 = vsub.s32 0, %v75
  %v77 = vrot.slane %v50, %v76
  %v79 = vadd.f32 %v72, %v77
  %v80 = vld [vmem:[%s1] sm:$0xff]
  %v81 = vld [vmem:[%s1 + $0x8] sm:$0xff]
  %v82 = vld [vmem:[%s1 + $0x10] sm:$0xff]
  %v83 = vld [vmem:[%s1 + $0x18] sm:$0xff]
  %v84 = vld [vmem:[%s1 + $0x20] sm:$0xff]
  %v85 = vld [vmem:[%s1 + $0x28] sm:$0xff]
  %v86 = vld [vmem:[%s1 + $0x30] sm:$0xff]
  %v87 = vld [vmem:[%s1 + $0x38] sm:$0xff]
  %v88 = vpack.c.bf16 %v79, %v79
  %v89 = vld [vmem:[%s2] sm:$0x3]
  %v91 = vlaneseq
  %v92 = vshrl.u32 %v91, 7
  %v93 = vsub.s32 0, %v92
  %v94 = vrot.slane %v89, %v93
  %v95 = vlaneseq
  %v96 = vshrl.u32 %v95, 7
  %v97 = vsub.s32 1, %v96
  %v98 = vrot.slane %v89, %v97
  %v109 = vunpack.c.l.b16 %v80
  %v110 = vunpack.c.h.b16 %v80
  %v111 = vunpack.c.l.b16 %v81
  %v112 = vunpack.c.h.b16 %v81
  %v113 = vunpack.c.l.b16 %v82
  %v114 = vunpack.c.h.b16 %v82
  %v115 = vunpack.c.l.b16 %v83
  %v116 = vunpack.c.h.b16 %v83
  %v117 = vunpack.c.l.b16 %v84
  %v118 = vunpack.c.h.b16 %v84
  %v119 = vunpack.c.l.b16 %v85
  %v120 = vunpack.c.h.b16 %v85
  %v121 = vunpack.c.l.b16 %v86
  %v122 = vunpack.c.h.b16 %v86
  %v123 = vunpack.c.l.b16 %v87
  %v124 = vunpack.c.h.b16 %v87
  %v125 = vpack.c.b16 %v111, %v109
  %v126 = vpack.c.b16 %v112, %v110
  %v127 = vpack.c.b16 %v115, %v113
  %v128 = vpack.c.b16 %v116, %v114
  %v129 = vpack.c.b16 %v119, %v117
  %v130 = vpack.c.b16 %v120, %v118
  %v131 = vpack.c.b16 %v123, %v121
  %v132 = vpack.c.b16 %v124, %v122
  %v142 = vsel %vm51, %v88, 0
  %144 = vmatprep.subr.bf16.mxu0 %v126
  %145 = vmatpush1.bf16.msra.mxu0 %v125
  %146 = vmatprep.subr.bf16.mxu0 %v128
  %147 = vmatpush1.bf16.msra.mxu0 %v127
  %148 = vmatprep.subr.bf16.mxu0 %v130
  %149 = vmatpush1.bf16.msra.mxu0 %v129
  %150 = vmatprep.subr.bf16.mxu0 %v132
  %151 = vmatpush1.bf16.msra.mxu0 %v131
  %152 = vmatprep.subr.bf16.mxu0 0
  %153 = vmatpush1.bf16.msra.mxu0 0
  %154 = vmatprep.subr.bf16.mxu0 0
  %155 = vmatpush1.bf16.msra.mxu0 0
  %156 = vmatprep.subr.bf16.mxu0 0
  %157 = vmatpush1.bf16.msra.mxu0 0
  %158 = vmatprep.subr.bf16.mxu0 0
  %159 = vmatpush1.bf16.msra.mxu0 0
  %160 = vmatprep.subr.bf16.mxu0 0
  %161 = vmatpush1.bf16.msra.mxu0 0
  %162 = vmatprep.subr.bf16.mxu0 0
  %163 = vmatpush1.bf16.msra.mxu0 0
  %164 = vmatprep.subr.bf16.mxu0 0
  %165 = vmatpush1.bf16.msra.mxu0 0
  %166 = vmatprep.subr.bf16.mxu0 0
  %167 = vmatpush1.bf16.msra.mxu0 0
  %168 = vmatprep.subr.bf16.mxu0 0
  %169 = vmatpush1.bf16.msra.mxu0 0
  %170 = vmatprep.subr.bf16.mxu0 0
  %171 = vmatpush1.bf16.msra.mxu0 0
  %172 = vmatprep.subr.bf16.mxu0 0
  %173 = vmatpush1.bf16.msra.mxu0 0
  %174 = vmatprep.subr.bf16.mxu0 0
  %175 = vmatpush1.bf16.msra.mxu0 0
  %176 = vmatprep.mubr.bf16.mxu0 0
  %177 = vmatmul.mubr.bf16.gmra.mrb[0].mxu0 %v142
  %v178 = vpop.f32.mrb[0].mxu0
  %v179 = vadd.f32 %v94, %v178
  %v180 = vpop.f32.mrb[0].mxu0
  %v181 = vadd.f32 %v98, %v180
  %v182 = vpop.f32.mrb[0].mxu0
  %v183 = vpop.f32.mrb[0].mxu0
  %184 = vdwg.mxu0
  %v185 = vmul.f32 %v179, 0.25
  %v186 = vpack.c.bf16 %v185, %v185
  %v187 = vpack.c.bf16 %v179, %v179
  %v188 = vld [vmem:[%s7] sm:$0xff]
  %190 = vrot.lane.b32.xlu0 %v187, 64
  %v191 = vpop.permute.xlu0 %190
  %vm192 = vcmask 130048
  %v194 = vsel %vm192, %v186, 0
  %v197 = vsel %vm192, %v191, 0
  %199 = vmatprep.subr.bf16.mxu0 0
  %200 = vmatpush1.bf16.xpose.msra.mxu0 %v197
  %201 = vmatprep.subr.bf16.mxu0 0
  %202 = vmatpush1.bf16.xpose.msra.mxu0 0
  %203 = vmatprep.subr.bf16.mxu0 0
  %204 = vmatpush1.bf16.xpose.msra.mxu0 0
  %205 = vmatprep.subr.bf16.mxu0 0
  %206 = vmatpush1.bf16.xpose.msra.mxu0 0
  %207 = vmatprep.subr.bf16.mxu0 0
  %208 = vmatpush1.bf16.xpose.msra.mxu0 0
  %209 = vmatprep.subr.bf16.mxu0 0
  %210 = vmatpush1.bf16.xpose.msra.mxu0 0
  %211 = vmatprep.subr.bf16.mxu0 0
  %212 = vmatpush1.bf16.xpose.msra.mxu0 0
  %213 = vmatprep.subr.bf16.mxu0 0
  %214 = vmatpush1.bf16.xpose.msra.mxu0 0
  %215 = vmatprep.subr.bf16.mxu0 0
  %216 = vmatpush1.bf16.xpose.msra.mxu0 0
  %217 = vmatprep.subr.bf16.mxu0 0
  %218 = vmatpush1.bf16.xpose.msra.mxu0 0
  %219 = vmatprep.subr.bf16.mxu0 0
  %220 = vmatpush1.bf16.xpose.msra.mxu0 0
  %221 = vmatprep.subr.bf16.mxu0 0
  %222 = vmatpush1.bf16.xpose.msra.mxu0 0
  %223 = vmatprep.subr.bf16.mxu0 0
  %224 = vmatpush1.bf16.xpose.msra.mxu0 0
  %225 = vmatprep.subr.bf16.mxu0 0
  %226 = vmatpush1.bf16.xpose.msra.mxu0 0
  %227 = vmatprep.subr.bf16.mxu0 0
  %228 = vmatpush1.bf16.xpose.msra.mxu0 0
  %229 = vmatprep.subr.bf16.mxu0 0
  %230 = vmatpush1.bf16.xpose.msra.mxu0 0
  %231 = vmatprep.mubr.bf16.mxu0 0
  %232 = vmatmul.mubr.bf16.gmra.mrb[0].mxu0 %v194
  %v233 = vpop.f32.mrb[0].mxu0
  %v234 = vadd.f32 %v188, %v233
  %v235 = vpop.f32.mrb[0].mxu0
  %v236 = vpop.f32.mrb[0].mxu0
  %v237 = vpop.f32.mrb[0].mxu0
  %238 = vdwg.mxu0
  %vm239 = vcmask 64512
  %v240 = vsel %vm239, %v234, -inf
  %241 = vmax.xlane.f32.xlu0 %v240
  %v242 = vpop.xlane.xlu0 %241
  %v243 = vsub.f32 %v234, %v242
  %v244 = vmul.f32 %v243, 1.442695
  %v245 = vpow.pop %v244
  %v246 = vsel %vm239, %v245, 0.0
  %247 = vadd.xlane.f32.xlu0 %v246
  %v248 = vpop.xlane.xlu0 %247
  %v249 = vrcp.pop %v248
  %v250 = vmul.f32 %v245, %v249
  %v251 = vpack.c.bf16 %v250, %v250
  %v252 = vpack.c.bf16 %v181, %v181
  %v254 = vsel %vm239, %v251, 0
  %vm256 = vcmask 1043456
  %v258 = vsel %vm256, %v252, 0
  %260 = vmatprep.subr.bf16.mxu0 0
  %261 = vmatpush1.bf16.msra.mxu0 %v258
  %262 = vmatprep.subr.bf16.mxu0 0
  %263 = vmatpush1.bf16.msra.mxu0 0
  %264 = vmatprep.subr.bf16.mxu0 0
  %265 = vmatpush1.bf16.msra.mxu0 0
  %266 = vmatprep.subr.bf16.mxu0 0
  %267 = vmatpush1.bf16.msra.mxu0 0
  %268 = vmatprep.subr.bf16.mxu0 0
  %269 = vmatpush1.bf16.msra.mxu0 0
  %270 = vmatprep.subr.bf16.mxu0 0
  %271 = vmatpush1.bf16.msra.mxu0 0
  %272 = vmatprep.subr.bf16.mxu0 0
  %273 = vmatpush1.bf16.msra.mxu0 0
  %274 = vmatprep.subr.bf16.mxu0 0
  %275 = vmatpush1.bf16.msra.mxu0 0
  %276 = vmatprep.subr.bf16.mxu0 0
  %277 = vmatpush1.bf16.msra.mxu0 0
  %278 = vmatprep.subr.bf16.mxu0 0
  %279 = vmatpush1.bf16.msra.mxu0 0
  %280 = vmatprep.subr.bf16.mxu0 0
  %281 = vmatpush1.bf16.msra.mxu0 0
  %282 = vmatprep.subr.bf16.mxu0 0
  %283 = vmatpush1.bf16.msra.mxu0 0
  %284 = vmatprep.subr.bf16.mxu0 0
  %285 = vmatpush1.bf16.msra.mxu0 0
  %286 = vmatprep.subr.bf16.mxu0 0
  %287 = vmatpush1.bf16.msra.mxu0 0
  %288 = vmatprep.subr.bf16.mxu0 0
  %289 = vmatpush1.bf16.msra.mxu0 0
  %290 = vmatprep.subr.bf16.mxu0 0
  %291 = vmatpush1.bf16.msra.mxu0 0
  %292 = vmatprep.mubr.bf16.mxu0 0
  %293 = vmatmul.mubr.bf16.gmra.mrb[0].mxu0 %v254
  %v294 = vpop.f32.mrb[0].mxu0
  %v295 = vadd.f32 0.0, %v294
  %v296 = vpop.f32.mrb[0].mxu0
  %v297 = vpop.f32.mrb[0].mxu0
  %v298 = vpop.f32.mrb[0].mxu0
  %299 = vdwg.mxu0
  %v300 = vld [vmem:[%s5] sm:$0xf]
  %v301 = vld [vmem:[%s5 + $0x4] sm:$0xf]
  %v302 = vpack.c.bf16 %v295, %v295
  %s303 = scalar_lea.vmem %s7, 8
  %v304 = vld [vmem:[%s303] sm:$0xff]
  %306 = vrot.lane.b32.xlu0 %v186, 112
  %v307 = vpop.permute.xlu0 %306
  %308 = vrot.lane.b32.xlu0 %v187, 48
  %v309 = vpop.permute.xlu0 %308
  %v311 = vsel %vm192, %v307, 0
  %v314 = vsel %vm192, %v309, 0
  %316 = vmatprep.subr.bf16.mxu0 0
  %317 = vmatpush1.bf16.xpose.msra.mxu0 %v314
  %318 = vmatprep.subr.bf16.mxu0 0
  %319 = vmatpush1.bf16.xpose.msra.mxu0 0
  %320 = vmatprep.subr.bf16.mxu0 0
  %321 = vmatpush1.bf16.xpose.msra.mxu0 0
  %322 = vmatprep.subr.bf16.mxu0 0
  %323 = vmatpush1.bf16.xpose.msra.mxu0 0
  %324 = vmatprep.subr.bf16.mxu0 0
  %325 = vmatpush1.bf16.xpose.msra.mxu0 0
  %326 = vmatprep.subr.bf16.mxu0 0
  %327 = vmatpush1.bf16.xpose.msra.mxu0 0
  %328 = vmatprep.subr.bf16.mxu0 0
  %329 = vmatpush1.bf16.xpose.msra.mxu0 0
  %330 = vmatprep.subr.bf16.mxu0 0
  %331 = vmatpush1.bf16.xpose.msra.mxu0 0
  %332 = vmatprep.subr.bf16.mxu0 0
  %333 = vmatpush1.bf16.xpose.msra.mxu0 0
  %334 = vmatprep.subr.bf16.mxu0 0
  %335 = vmatpush1.bf16.xpose.msra.mxu0 0
  %336 = vmatprep.subr.bf16.mxu0 0
  %337 = vmatpush1.bf16.xpose.msra.mxu0 0
  %338 = vmatprep.subr.bf16.mxu0 0
  %339 = vmatpush1.bf16.xpose.msra.mxu0 0
  %340 = vmatprep.subr.bf16.mxu0 0
  %341 = vmatpush1.bf16.xpose.msra.mxu0 0
  %342 = vmatprep.subr.bf16.mxu0 0
  %343 = vmatpush1.bf16.xpose.msra.mxu0 0
  %344 = vmatprep.subr.bf16.mxu0 0
  %345 = vmatpush1.bf16.xpose.msra.mxu0 0
  %346 = vmatprep.subr.bf16.mxu0 0
  %347 = vmatpush1.bf16.xpose.msra.mxu0 0
  %348 = vmatprep.mubr.bf16.mxu0 0
  %349 = vmatmul.mubr.bf16.gmra.mrb[0].mxu0 %v311
  %v350 = vpop.f32.mrb[0].mxu0
  %v351 = vadd.f32 %v304, %v350
  %v352 = vpop.f32.mrb[0].mxu0
  %v353 = vpop.f32.mrb[0].mxu0
  %v354 = vpop.f32.mrb[0].mxu0
  %355 = vdwg.mxu0
  %v356 = vsel %vm239, %v351, -inf
  %357 = vmax.xlane.f32.xlu0 %v356
  %v358 = vpop.xlane.xlu0 %357
  %v359 = vsub.f32 %v351, %v358
  %v360 = vmul.f32 %v359, 1.442695
  %v361 = vpow.pop %v360
  %v362 = vsel %vm239, %v361, 0.0
  %363 = vadd.xlane.f32.xlu0 %v362
  %v364 = vpop.xlane.xlu0 %363
  %v365 = vrcp.pop %v364
  %v366 = vmul.f32 %v361, %v365
  %v367 = vpack.c.bf16 %v366, %v366
  %369 = vrot.lane.b32.xlu0 %v252, 112
  %v370 = vpop.permute.xlu0 %369
  %v372 = vsel %vm239, %v367, 0
  %v375 = vsel %vm256, %v370, 0
  %377 = vmatprep.subr.bf16.mxu0 0
  %378 = vmatpush1.bf16.msra.mxu0 %v375
  %379 = vmatprep.subr.bf16.mxu0 0
  %380 = vmatpush1.bf16.msra.mxu0 0
  %381 = vmatprep.subr.bf16.mxu0 0
  %382 = vmatpush1.bf16.msra.mxu0 0
  %383 = vmatprep.subr.bf16.mxu0 0
  %384 = vmatpush1.bf16.msra.mxu0 0
  %385 = vmatprep.subr.bf16.mxu0 0
  %386 = vmatpush1.bf16.msra.mxu0 0
  %387 = vmatprep.subr.bf16.mxu0 0
  %388 = vmatpush1.bf16.msra.mxu0 0
  %389 = vmatprep.subr.bf16.mxu0 0
  %390 = vmatpush1.bf16.msra.mxu0 0
  %391 = vmatprep.subr.bf16.mxu0 0
  %392 = vmatpush1.bf16.msra.mxu0 0
  %393 = vmatprep.subr.bf16.mxu0 0
  %394 = vmatpush1.bf16.msra.mxu0 0
  %395 = vmatprep.subr.bf16.mxu0 0
  %396 = vmatpush1.bf16.msra.mxu0 0
  %397 = vmatprep.subr.bf16.mxu0 0
  %398 = vmatpush1.bf16.msra.mxu0 0
  %399 = vmatprep.subr.bf16.mxu0 0
  %400 = vmatpush1.bf16.msra.mxu0 0
  %401 = vmatprep.subr.bf16.mxu0 0
  %402 = vmatpush1.bf16.msra.mxu0 0
  %403 = vmatprep.subr.bf16.mxu0 0
  %404 = vmatpush1.bf16.msra.mxu0 0
  %405 = vmatprep.subr.bf16.mxu0 0
  %406 = vmatpush1.bf16.msra.mxu0 0
  %407 = vmatprep.subr.bf16.mxu0 0
  %408 = vmatpush1.bf16.msra.mxu0 0
  %409 = vmatprep.mubr.bf16.mxu0 0
  %410 = vmatmul.mubr.bf16.gmra.mrb[0].mxu0 %v372
  %v411 = vpop.f32.mrb[0].mxu0
  %v412 = vadd.f32 0.0, %v411
  %v413 = vpop.f32.mrb[0].mxu0
  %v414 = vpop.f32.mrb[0].mxu0
  %v415 = vpop.f32.mrb[0].mxu0
  %416 = vdwg.mxu0
  %v417 = vld [vmem:[%s5 + $0x8] sm:$0xf]
  %v418 = vld [vmem:[%s5 + $0xc] sm:$0xf]
  %v419 = vpack.c.bf16 %v412, %v412
  %v422 = vunpack.c.l.b16 %v417
  %v423 = vunpack.c.l.b16 %v418
  %v424 = vpack.c.b16 %v423, %v422
  %v427 = vsel %vm192, %v419, 0
  %429 = vmatprep.subr.bf16.mxu0 0
  %430 = vmatpush1.bf16.msra.mxu0 %v424
  %431 = vmatprep.subr.bf16.mxu0 0
  %432 = vmatpush1.bf16.msra.mxu0 0
  %433 = vmatprep.subr.bf16.mxu0 0
  %434 = vmatpush1.bf16.msra.mxu0 0
  %435 = vmatprep.subr.bf16.mxu0 0
  %436 = vmatpush1.bf16.msra.mxu0 0
  %437 = vmatprep.subr.bf16.mxu0 0
  %438 = vmatpush1.bf16.msra.mxu0 0
  %439 = vmatprep.subr.bf16.mxu0 0
  %440 = vmatpush1.bf16.msra.mxu0 0
  %441 = vmatprep.subr.bf16.mxu0 0
  %442 = vmatpush1.bf16.msra.mxu0 0
  %443 = vmatprep.subr.bf16.mxu0 0
  %444 = vmatpush1.bf16.msra.mxu0 0
  %445 = vmatprep.subr.bf16.mxu0 0
  %446 = vmatpush1.bf16.msra.mxu0 0
  %447 = vmatprep.subr.bf16.mxu0 0
  %448 = vmatpush1.bf16.msra.mxu0 0
  %449 = vmatprep.subr.bf16.mxu0 0
  %450 = vmatpush1.bf16.msra.mxu0 0
  %451 = vmatprep.subr.bf16.mxu0 0
  %452 = vmatpush1.bf16.msra.mxu0 0
  %453 = vmatprep.subr.bf16.mxu0 0
  %454 = vmatpush1.bf16.msra.mxu0 0
  %455 = vmatprep.subr.bf16.mxu0 0
  %456 = vmatpush1.bf16.msra.mxu0 0
  %457 = vmatprep.subr.bf16.mxu0 0
  %458 = vmatpush1.bf16.msra.mxu0 0
  %459 = vmatprep.subr.bf16.mxu0 0
  %460 = vmatpush1.bf16.msra.mxu0 0
  %461 = vmatprep.mubr.bf16.mxu0 0
  %462 = vmatmul.mubr.bf16.gmra.mrb[0].mxu0 %v427
  %v463 = vpop.f32.mrb[0].mxu0
  %v464 = vadd.f32 0.0, %v463
  %v465 = vpop.f32.mrb[0].mxu0
  %v466 = vpop.f32.mrb[0].mxu0
  %v467 = vpop.f32.mrb[0].mxu0
  %468 = vdwg.mxu0
  %v471 = vunpack.c.l.b16 %v300
  %v472 = vunpack.c.l.b16 %v301
  %v473 = vpack.c.b16 %v472, %v471
  %v476 = vsel %vm192, %v302, 0
  %478 = vmatprep.subr.bf16.mxu0 0
  %479 = vmatpush1.bf16.msra.mxu0 %v473
  %480 = vmatprep.subr.bf16.mxu0 0
  %481 = vmatpush1.bf16.msra.mxu0 0
  %482 = vmatprep.subr.bf16.mxu0 0
  %483 = vmatpush1.bf16.msra.mxu0 0
  %484 = vmatprep.subr.bf16.mxu0 0
  %485 = vmatpush1.bf16.msra.mxu0 0
  %486 = vmatprep.subr.bf16.mxu0 0
  %487 = vmatpush1.bf16.msra.mxu0 0
  %488 = vmatprep.subr.bf16.mxu0 0
  %489 = vmatpush1.bf16.msra.mxu0 0
  %490 = vmatprep.subr.bf16.mxu0 0
  %491 = vmatpush1.bf16.msra.mxu0 0
  %492 = vmatprep.subr.bf16.mxu0 0
  %493 = vmatpush1.bf16.msra.mxu0 0
  %494 = vmatprep.subr.bf16.mxu0 0
  %495 = vmatpush1.bf16.msra.mxu0 0
  %496 = vmatprep.subr.bf16.mxu0 0
  %497 = vmatpush1.bf16.msra.mxu0 0
  %498 = vmatprep.subr.bf16.mxu0 0
  %499 = vmatpush1.bf16.msra.mxu0 0
  %500 = vmatprep.subr.bf16.mxu0 0
  %501 = vmatpush1.bf16.msra.mxu0 0
  %502 = vmatprep.subr.bf16.mxu0 0
  %503 = vmatpush1.bf16.msra.mxu0 0
  %504 = vmatprep.subr.bf16.mxu0 0
  %505 = vmatpush1.bf16.msra.mxu0 0
  %506 = vmatprep.subr.bf16.mxu0 0
  %507 = vmatpush1.bf16.msra.mxu0 0
  %508 = vmatprep.subr.bf16.mxu0 0
  %509 = vmatpush1.bf16.msra.mxu0 0
  %510 = vmatprep.mubr.bf16.mxu0 0
  %511 = vmatmul.mubr.bf16.gmra.mrb[0].mxu0 %v476
  %v512 = vpop.f32.mrb[0].mxu0
  %v513 = vadd.f32 %v464, %v512
  %v514 = vpop.f32.mrb[0].mxu0
  %v515 = vpop.f32.mrb[0].mxu0
  %v516 = vpop.f32.mrb[0].mxu0
  %517 = vdwg.mxu0
  %s518 = scalar_lea.vmem %s7, 16
  %v519 = vld [vmem:[%s518] sm:$0xff]
  %520 = vrot.lane.b32.xlu0 %v186, 96
  %v521 = vpop.permute.xlu0 %520
  %522 = vrot.lane.b32.xlu0 %v187, 32
  %v523 = vpop.permute.xlu0 %522
  %v525 = vsel %vm192, %v521, 0
  %v528 = vsel %vm192, %v523, 0
  %530 = vmatprep.subr.bf16.mxu0 0
  %531 = vmatpush1.bf16.xpose.msra.mxu0 %v528
  %532 = vmatprep.subr.bf16.mxu0 0
  %533 = vmatpush1.bf16.xpose.msra.mxu0 0
  %534 = vmatprep.subr.bf16.mxu0 0
  %535 = vmatpush1.bf16.xpose.msra.mxu0 0
  %536 = vmatprep.subr.bf16.mxu0 0
  %537 = vmatpush1.bf16.xpose.msra.mxu0 0
  %538 = vmatprep.subr.bf16.mxu0 0
  %539 = vmatpush1.bf16.xpose.msra.mxu0 0
  %540 = vmatprep.subr.bf16.mxu0 0
  %541 = vmatpush1.bf16.xpose.msra.mxu0 0
  %542 = vmatprep.subr.bf16.mxu0 0
  %543 = vmatpush1.bf16.xpose.msra.mxu0 0
  %544 = vmatprep.subr.bf16.mxu0 0
  %545 = vmatpush1.bf16.xpose.msra.mxu0 0
  %546 = vmatprep.subr.bf16.mxu0 0
  %547 = vmatpush1.bf16.xpose.msra.mxu0 0
  %548 = vmatprep.subr.bf16.mxu0 0
  %549 = vmatpush1.bf16.xpose.msra.mxu0 0
  %550 = vmatprep.subr.bf16.mxu0 0
  %551 = vmatpush1.bf16.xpose.msra.mxu0 0
  %552 = vmatprep.subr.bf16.mxu0 0
  %553 = vmatpush1.bf16.xpose.msra.mxu0 0
  %554 = vmatprep.subr.bf16.mxu0 0
  %555 = vmatpush1.bf16.xpose.msra.mxu0 0
  %556 = vmatprep.subr.bf16.mxu0 0
  %557 = vmatpush1.bf16.xpose.msra.mxu0 0
  %558 = vmatprep.subr.bf16.mxu0 0
  %559 = vmatpush1.bf16.xpose.msra.mxu0 0
  %560 = vmatprep.subr.bf16.mxu0 0
  %561 = vmatpush1.bf16.xpose.msra.mxu0 0
  %562 = vmatprep.mubr.bf16.mxu0 0
  %563 = vmatmul.mubr.bf16.gmra.mrb[0].mxu0 %v525
  %v564 = vpop.f32.mrb[0].mxu0
  %v565 = vadd.f32 %v519, %v564
  %v566 = vpop.f32.mrb[0].mxu0
  %v567 = vpop.f32.mrb[0].mxu0
  %v568 = vpop.f32.mrb[0].mxu0
  %569 = vdwg.mxu0
  %v570 = vsel %vm239, %v565, -inf
  %571 = vmax.xlane.f32.xlu0 %v570
  %v572 = vpop.xlane.xlu0 %571
  %v573 = vsub.f32 %v565, %v572
  %v574 = vmul.f32 %v573, 1.442695
  %v575 = vpow.pop %v574
  %v576 = vsel %vm239, %v575, 0.0
  %577 = vadd.xlane.f32.xlu0 %v576
  %v578 = vpop.xlane.xlu0 %577
  %v579 = vrcp.pop %v578
  %v580 = vmul.f32 %v575, %v579
  %v581 = vpack.c.bf16 %v580, %v580
  %582 = vrot.lane.b32.xlu0 %v252, 96
  %v583 = vpop.permute.xlu0 %582
  %v585 = vsel %vm239, %v581, 0
  %v588 = vsel %vm256, %v583, 0
  %590 = vmatprep.subr.bf16.mxu0 0
  %591 = vmatpush1.bf16.msra.mxu0 %v588
  %592 = vmatprep.subr.bf16.mxu0 0
  %593 = vmatpush1.bf16.msra.mxu0 0
  %594 = vmatprep.subr.bf16.mxu0 0
  %595 = vmatpush1.bf16.msra.mxu0 0
  %596 = vmatprep.subr.bf16.mxu0 0
  %597 = vmatpush1.bf16.msra.mxu0 0
  %598 = vmatprep.subr.bf16.mxu0 0
  %599 = vmatpush1.bf16.msra.mxu0 0
  %600 = vmatprep.subr.bf16.mxu0 0
  %601 = vmatpush1.bf16.msra.mxu0 0
  %602 = vmatprep.subr.bf16.mxu0 0
  %603 = vmatpush1.bf16.msra.mxu0 0
  %604 = vmatprep.subr.bf16.mxu0 0
  %605 = vmatpush1.bf16.msra.mxu0 0
  %606 = vmatprep.subr.bf16.mxu0 0
  %607 = vmatpush1.bf16.msra.mxu0 0
  %608 = vmatprep.subr.bf16.mxu0 0
  %609 = vmatpush1.bf16.msra.mxu0 0
  %610 = vmatprep.subr.bf16.mxu0 0
  %611 = vmatpush1.bf16.msra.mxu0 0
  %612 = vmatprep.subr.bf16.mxu0 0
  %613 = vmatpush1.bf16.msra.mxu0 0
  %614 = vmatprep.subr.bf16.mxu0 0
  %615 = vmatpush1.bf16.msra.mxu0 0
  %616 = vmatprep.subr.bf16.mxu0 0
  %617 = vmatpush1.bf16.msra.mxu0 0
  %618 = vmatprep.subr.bf16.mxu0 0
  %619 = vmatpush1.bf16.msra.mxu0 0
  %620 = vmatprep.subr.bf16.mxu0 0
  %621 = vmatpush1.bf16.msra.mxu0 0
  %622 = vmatprep.mubr.bf16.mxu0 0
  %623 = vmatmul.mubr.bf16.gmra.mrb[0].mxu0 %v585
  %v624 = vpop.f32.mrb[0].mxu0
  %v625 = vadd.f32 0.0, %v624
  %v626 = vpop.f32.mrb[0].mxu0
  %v627 = vpop.f32.mrb[0].mxu0
  %v628 = vpop.f32.mrb[0].mxu0
  %629 = vdwg.mxu0
  %v630 = vld [vmem:[%s5 + $0x10] sm:$0xf]
  %v631 = vld [vmem:[%s5 + $0x14] sm:$0xf]
  %v632 = vpack.c.bf16 %v625, %v625
  %v635 = vunpack.c.l.b16 %v630
  %v636 = vunpack.c.l.b16 %v631
  %v637 = vpack.c.b16 %v636, %v635
  %v640 = vsel %vm192, %v632, 0
  %642 = vmatprep.subr.bf16.mxu0 0
  %643 = vmatpush1.bf16.msra.mxu0 %v637
  %644 = vmatprep.subr.bf16.mxu0 0
  %645 = vmatpush1.bf16.msra.mxu0 0
  %646 = vmatprep.subr.bf16.mxu0 0
  %647 = vmatpush1.bf16.msra.mxu0 0
  %648 = vmatprep.subr.bf16.mxu0 0
  %649 = vmatpush1.bf16.msra.mxu0 0
  %650 = vmatprep.subr.bf16.mxu0 0
  %651 = vmatpush1.bf16.msra.mxu0 0
  %652 = vmatprep.subr.bf16.mxu0 0
  %653 = vmatpush1.bf16.msra.mxu0 0
  %654 = vmatprep.subr.bf16.mxu0 0
  %655 = vmatpush1.bf16.msra.mxu0 0
  %656 = vmatprep.subr.bf16.mxu0 0
  %657 = vmatpush1.bf16.msra.mxu0 0
  %658 = vmatprep.subr.bf16.mxu0 0
  %659 = vmatpush1.bf16.msra.mxu0 0
  %660 = vmatprep.subr.bf16.mxu0 0
  %661 = vmatpush1.bf16.msra.mxu0 0
  %662 = vmatprep.subr.bf16.mxu0 0
  %663 = vmatpush1.bf16.msra.mxu0 0
  %664 = vmatprep.subr.bf16.mxu0 0
  %665 = vmatpush1.bf16.msra.mxu0 0
  %666 = vmatprep.subr.bf16.mxu0 0
  %667 = vmatpush1.bf16.msra.mxu0 0
  %668 = vmatprep.subr.bf16.mxu0 0
  %669 = vmatpush1.bf16.msra.mxu0 0
  %670 = vmatprep.subr.bf16.mxu0 0
  %671 = vmatpush1.bf16.msra.mxu0 0
  %672 = vmatprep.subr.bf16.mxu0 0
  %673 = vmatpush1.bf16.msra.mxu0 0
  %674 = vmatprep.mubr.bf16.mxu0 0
  %675 = vmatmul.mubr.bf16.gmra.mrb[0].mxu0 %v640
  %v676 = vpop.f32.mrb[0].mxu0
  %v677 = vadd.f32 0.0, %v676
  %v678 = vpop.f32.mrb[0].mxu0
  %v679 = vpop.f32.mrb[0].mxu0
  %v680 = vpop.f32.mrb[0].mxu0
  %681 = vdwg.mxu0
  %v682 = vadd.f32 %v513, %v677
  %s683 = scalar_lea.vmem %s7, 24
  %v684 = vld [vmem:[%s683] sm:$0xff]
  %685 = vrot.lane.b32.xlu0 %v186, 80
  %v686 = vpop.permute.xlu0 %685
  %687 = vrot.lane.b32.xlu0 %v187, 16
  %v688 = vpop.permute.xlu0 %687
  %v690 = vsel %vm192, %v686, 0
  %v693 = vsel %vm192, %v688, 0
  %695 = vmatprep.subr.bf16.mxu0 0
  %696 = vmatpush1.bf16.xpose.msra.mxu0 %v693
  %697 = vmatprep.subr.bf16.mxu0 0
  %698 = vmatpush1.bf16.xpose.msra.mxu0 0
  %699 = vmatprep.subr.bf16.mxu0 0
  %700 = vmatpush1.bf16.xpose.msra.mxu0 0
  %701 = vmatprep.subr.bf16.mxu0 0
  %702 = vmatpush1.bf16.xpose.msra.mxu0 0
  %703 = vmatprep.subr.bf16.mxu0 0
  %704 = vmatpush1.bf16.xpose.msra.mxu0 0
  %705 = vmatprep.subr.bf16.mxu0 0
  %706 = vmatpush1.bf16.xpose.msra.mxu0 0
  %707 = vmatprep.subr.bf16.mxu0 0
  %708 = vmatpush1.bf16.xpose.msra.mxu0 0
  %709 = vmatprep.subr.bf16.mxu0 0
  %710 = vmatpush1.bf16.xpose.msra.mxu0 0
  %711 = vmatprep.subr.bf16.mxu0 0
  %712 = vmatpush1.bf16.xpose.msra.mxu0 0
  %713 = vmatprep.subr.bf16.mxu0 0
  %714 = vmatpush1.bf16.xpose.msra.mxu0 0
  %715 = vmatprep.subr.bf16.mxu0 0
  %716 = vmatpush1.bf16.xpose.msra.mxu0 0
  %717 = vmatprep.subr.bf16.mxu0 0
  %718 = vmatpush1.bf16.xpose.msra.mxu0 0
  %719 = vmatprep.subr.bf16.mxu0 0
  %720 = vmatpush1.bf16.xpose.msra.mxu0 0
  %721 = vmatprep.subr.bf16.mxu0 0
  %722 = vmatpush1.bf16.xpose.msra.mxu0 0
  %723 = vmatprep.subr.bf16.mxu0 0
  %724 = vmatpush1.bf16.xpose.msra.mxu0 0
  %725 = vmatprep.subr.bf16.mxu0 0
  %726 = vmatpush1.bf16.xpose.msra.mxu0 0
  %727 = vmatprep.mubr.bf16.mxu0 0
  %728 = vmatmul.mubr.bf16.gmra.mrb[0].mxu0 %v690
  %v729 = vpop.f32.mrb[0].mxu0
  %v730 = vadd.f32 %v684, %v729
  %v731 = vpop.f32.mrb[0].mxu0
  %v732 = vpop.f32.mrb[0].mxu0
  %v733 = vpop.f32.mrb[0].mxu0
  %734 = vdwg.mxu0
  %v735 = vsel %vm239, %v730, -inf
  %736 = vmax.xlane.f32.xlu0 %v735
  %v737 = vpop.xlane.xlu0 %736
  %v738 = vsub.f32 %v730, %v737
  %v739 = vmul.f32 %v738, 1.442695
  %v740 = vpow.pop %v739
  %v741 = vsel %vm239, %v740, 0.0
  %742 = vadd.xlane.f32.xlu0 %v741
  %v743 = vpop.xlane.xlu0 %742
  %v744 = vrcp.pop %v743
  %v745 = vmul.f32 %v740, %v744
  %v746 = vpack.c.bf16 %v745, %v745
  %747 = vrot.lane.b32.xlu0 %v252, 80
  %v748 = vpop.permute.xlu0 %747
  %v750 = vsel %vm239, %v746, 0
  %v753 = vsel %vm256, %v748, 0
  %755 = vmatprep.subr.bf16.mxu0 0
  %756 = vmatpush1.bf16.msra.mxu0 %v753
  %757 = vmatprep.subr.bf16.mxu0 0
  %758 = vmatpush1.bf16.msra.mxu0 0
  %759 = vmatprep.subr.bf16.mxu0 0
  %760 = vmatpush1.bf16.msra.mxu0 0
  %761 = vmatprep.subr.bf16.mxu0 0
  %762 = vmatpush1.bf16.msra.mxu0 0
  %763 = vmatprep.subr.bf16.mxu0 0
  %764 = vmatpush1.bf16.msra.mxu0 0
  %765 = vmatprep.subr.bf16.mxu0 0
  %766 = vmatpush1.bf16.msra.mxu0 0
  %767 = vmatprep.subr.bf16.mxu0 0
  %768 = vmatpush1.bf16.msra.mxu0 0
  %769 = vmatprep.subr.bf16.mxu0 0
  %770 = vmatpush1.bf16.msra.mxu0 0
  %771 = vmatprep.subr.bf16.mxu0 0
  %772 = vmatpush1.bf16.msra.mxu0 0
  %773 = vmatprep.subr.bf16.mxu0 0
  %774 = vmatpush1.bf16.msra.mxu0 0
  %775 = vmatprep.subr.bf16.mxu0 0
  %776 = vmatpush1.bf16.msra.mxu0 0
  %777 = vmatprep.subr.bf16.mxu0 0
  %778 = vmatpush1.bf16.msra.mxu0 0
  %779 = vmatprep.subr.bf16.mxu0 0
  %780 = vmatpush1.bf16.msra.mxu0 0
  %781 = vmatprep.subr.bf16.mxu0 0
  %782 = vmatpush1.bf16.msra.mxu0 0
  %783 = vmatprep.subr.bf16.mxu0 0
  %784 = vmatpush1.bf16.msra.mxu0 0
  %785 = vmatprep.subr.bf16.mxu0 0
  %786 = vmatpush1.bf16.msra.mxu0 0
  %787 = vmatprep.mubr.bf16.mxu0 0
  %788 = vmatmul.mubr.bf16.gmra.mrb[0].mxu0 %v750
  %v789 = vpop.f32.mrb[0].mxu0
  %v790 = vadd.f32 0.0, %v789
  %v791 = vpop.f32.mrb[0].mxu0
  %v792 = vpop.f32.mrb[0].mxu0
  %v793 = vpop.f32.mrb[0].mxu0
  %794 = vdwg.mxu0
  %v795 = vld [vmem:[%s5 + $0x18] sm:$0xf]
  %v796 = vld [vmem:[%s5 + $0x1c] sm:$0xf]
  %v797 = vpack.c.bf16 %v790, %v790
  %v800 = vunpack.c.l.b16 %v795
  %v801 = vunpack.c.l.b16 %v796
  %v802 = vpack.c.b16 %v801, %v800
  %v805 = vsel %vm192, %v797, 0
  %807 = vmatprep.subr.bf16.mxu0 0
  %808 = vmatpush1.bf16.msra.mxu0 %v802
  %809 = vmatprep.subr.bf16.mxu0 0
  %810 = vmatpush1.bf16.msra.mxu0 0
  %811 = vmatprep.subr.bf16.mxu0 0
  %812 = vmatpush1.bf16.msra.mxu0 0
  %813 = vmatprep.subr.bf16.mxu0 0
  %814 = vmatpush1.bf16.msra.mxu0 0
  %815 = vmatprep.subr.bf16.mxu0 0
  %816 = vmatpush1.bf16.msra.mxu0 0
  %817 = vmatprep.subr.bf16.mxu0 0
  %818 = vmatpush1.bf16.msra.mxu0 0
  %819 = vmatprep.subr.bf16.mxu0 0
  %820 = vmatpush1.bf16.msra.mxu0 0
  %821 = vmatprep.subr.bf16.mxu0 0
  %822 = vmatpush1.bf16.msra.mxu0 0
  %823 = vmatprep.subr.bf16.mxu0 0
  %824 = vmatpush1.bf16.msra.mxu0 0
  %825 = vmatprep.subr.bf16.mxu0 0
  %826 = vmatpush1.bf16.msra.mxu0 0
  %827 = vmatprep.subr.bf16.mxu0 0
  %828 = vmatpush1.bf16.msra.mxu0 0
  %829 = vmatprep.subr.bf16.mxu0 0
  %830 = vmatpush1.bf16.msra.mxu0 0
  %831 = vmatprep.subr.bf16.mxu0 0
  %832 = vmatpush1.bf16.msra.mxu0 0
  %833 = vmatprep.subr.bf16.mxu0 0
  %834 = vmatpush1.bf16.msra.mxu0 0
  %835 = vmatprep.subr.bf16.mxu0 0
  %836 = vmatpush1.bf16.msra.mxu0 0
  %837 = vmatprep.subr.bf16.mxu0 0
  %838 = vmatpush1.bf16.msra.mxu0 0
  %839 = vmatprep.mubr.bf16.mxu0 0
  %840 = vmatmul.mubr.bf16.gmra.mrb[0].mxu0 %v805
  %v841 = vpop.f32.mrb[0].mxu0
  %v842 = vadd.f32 0.0, %v841
  %v843 = vpop.f32.mrb[0].mxu0
  %v844 = vpop.f32.mrb[0].mxu0
  %v845 = vpop.f32.mrb[0].mxu0
  %846 = vdwg.mxu0
  %v847 = vadd.f32 %v682, %v842
  %v848 = vadd.f32 %v48, %v847
  %v849 = vld [vmem:[%s6] sm:$0x1]
  %v851 = vlaneseq
  %v852 = vshrl.u32 %v851, 7
  %v853 = vsub.s32 0, %v852
  %v854 = vrot.slane %v849, %v853
  %v856 = vadd.f32 %v848, %v854
  %v857 = vld [vmem:[%s8] sm:$0x1]
  %v858 = vld [vmem:[%s9] sm:$0x1]
  %v859 = vsel %vm51, %v856, 0.0
  %860 = vadd.xlane.f32.xlu0 %v859
  %v861 = vpop.xlane.xlu0 %860
  %v862 = vmul.f32 %v861, %v55
  %v863 = vsub.f32 %v856, %v862
  %v864 = vmul.f32 %v863, %v863
  %v865 = vsel %vm51, %v864, 0.0
  %866 = vadd.xlane.f32.xlu0 %v865
  %v867 = vpop.xlane.xlu0 %866
  %v868 = vmul.f32 %v867, %v55
  %v869 = vadd.f32 %v868, 1e-05
  %v870 = vrsqrt.pop %v869
  %v871 = vmul.f32 %v863, %v870
  %v873 = vlaneseq
  %v874 = vshrl.u32 %v873, 7
  %v875 = vsub.s32 0, %v874
  %v876 = vrot.slane %v857, %v875
  %v878 = vmul.f32 %v871, %v876
  %v880 = vlaneseq
  %v881 = vshrl.u32 %v880, 7
  %v882 = vsub.s32 0, %v881
  %v883 = vrot.slane %v858, %v882
  %v885 = vadd.f32 %v878, %v883
  %v886 = vld [vmem:[%s10] sm:$0xff]
  %v887 = vld [vmem:[%s10 + $0x8] sm:$0xff]
  %v888 = vld [vmem:[%s10 + $0x10] sm:$0xff]
  %v889 = vld [vmem:[%s10 + $0x18] sm:$0xff]
  %v890 = vld [vmem:[%s10 + $0x20] sm:$0xff]
  %v891 = vld [vmem:[%s10 + $0x28] sm:$0xff]
  %v892 = vld [vmem:[%s10 + $0x30] sm:$0xff]
  %v893 = vld [vmem:[%s10 + $0x38] sm:$0xff]
  %v894 = vpack.c.bf16 %v885, %v885
  %v895 = vld [vmem:[%s11] sm:$0x3]
  %v897 = vlaneseq
  %v898 = vshrl.u32 %v897, 7
  %v899 = vsub.s32 0, %v898
  %v900 = vrot.slane %v895, %v899
  %v901 = vlaneseq
  %v902 = vshrl.u32 %v901, 7
  %v903 = vsub.s32 1, %v902
  %v904 = vrot.slane %v895, %v903
  %v915 = vunpack.c.l.b16 %v886
  %v916 = vunpack.c.h.b16 %v886
  %v917 = vunpack.c.l.b16 %v887
  %v918 = vunpack.c.h.b16 %v887
  %v919 = vunpack.c.l.b16 %v888
  %v920 = vunpack.c.h.b16 %v888
  %v921 = vunpack.c.l.b16 %v889
  %v922 = vunpack.c.h.b16 %v889
  %v923 = vunpack.c.l.b16 %v890
  %v924 = vunpack.c.h.b16 %v890
  %v925 = vunpack.c.l.b16 %v891
  %v926 = vunpack.c.h.b16 %v891
  %v927 = vunpack.c.l.b16 %v892
  %v928 = vunpack.c.h.b16 %v892
  %v929 = vunpack.c.l.b16 %v893
  %v930 = vunpack.c.h.b16 %v893
  %v931 = vpack.c.b16 %v917, %v915
  %v932 = vpack.c.b16 %v918, %v916
  %v933 = vpack.c.b16 %v921, %v919
  %v934 = vpack.c.b16 %v922, %v920
  %v935 = vpack.c.b16 %v925, %v923
  %v936 = vpack.c.b16 %v926, %v924
  %v937 = vpack.c.b16 %v929, %v927
  %v938 = vpack.c.b16 %v930, %v928
  %v948 = vsel %vm51, %v894, 0
  %950 = vmatprep.subr.bf16.mxu0 %v932
  %951 = vmatpush1.bf16.msra.mxu0 %v931
  %952 = vmatprep.subr.bf16.mxu0 %v934
  %953 = vmatpush1.bf16.msra.mxu0 %v933
  %954 = vmatprep.subr.bf16.mxu0 %v936
  %955 = vmatpush1.bf16.msra.mxu0 %v935
  %956 = vmatprep.subr.bf16.mxu0 %v938
  %957 = vmatpush1.bf16.msra.mxu0 %v937
  %958 = vmatprep.subr.bf16.mxu0 0
  %959 = vmatpush1.bf16.msra.mxu0 0
  %960 = vmatprep.subr.bf16.mxu0 0
  %961 = vmatpush1.bf16.msra.mxu0 0
  %962 = vmatprep.subr.bf16.mxu0 0
  %963 = vmatpush1.bf16.msra.mxu0 0
  %964 = vmatprep.subr.bf16.mxu0 0
  %965 = vmatpush1.bf16.msra.mxu0 0
  %966 = vmatprep.subr.bf16.mxu0 0
  %967 = vmatpush1.bf16.msra.mxu0 0
  %968 = vmatprep.subr.bf16.mxu0 0
  %969 = vmatpush1.bf16.msra.mxu0 0
  %970 = vmatprep.subr.bf16.mxu0 0
  %971 = vmatpush1.bf16.msra.mxu0 0
  %972 = vmatprep.subr.bf16.mxu0 0
  %973 = vmatpush1.bf16.msra.mxu0 0
  %974 = vmatprep.subr.bf16.mxu0 0
  %975 = vmatpush1.bf16.msra.mxu0 0
  %976 = vmatprep.subr.bf16.mxu0 0
  %977 = vmatpush1.bf16.msra.mxu0 0
  %978 = vmatprep.subr.bf16.mxu0 0
  %979 = vmatpush1.bf16.msra.mxu0 0
  %980 = vmatprep.subr.bf16.mxu0 0
  %981 = vmatpush1.bf16.msra.mxu0 0
  %982 = vmatprep.mubr.bf16.mxu0 0
  %983 = vmatmul.mubr.bf16.gmra.mrb[0].mxu0 %v948
  %v984 = vpop.f32.mrb[0].mxu0
  %v985 = vadd.f32 %v900, %v984
  %v986 = vpop.f32.mrb[0].mxu0
  %v987 = vadd.f32 %v904, %v986
  %v988 = vpop.f32.mrb[0].mxu0
  %v989 = vpop.f32.mrb[0].mxu0
  %990 = vdwg.mxu0
  %v991 = vmul.f32 %v985, 0.5
  %v992 = vmul.f32 %v987, 0.5
  %v993 = vmul.f32 %v985, 0.70710677
  %v994 = vmul.f32 %v987, 0.70710677
  %v995 = vand.u32 2147483647, %v993
  %v996 = vand.u32 2147483647, %v994
  %v997 = vmul.f32 %v995, 0.3275911
  %v998 = vmul.f32 %v996, 0.3275911
  %v999 = vadd.f32 %v997, 1.0
  %v1000 = vadd.f32 %v998, 1.0
  %v1001 = vrcp.pop %v999
  %v1002 = vmul.f32 1.0, %v1001
  %v1003 = vrcp.pop %v1000
  %v1004 = vmul.f32 1.0, %v1003
  %v1005 = vmul.f32 %v1002, 1.0614054
  %v1006 = vmul.f32 %v1004, 1.0614054
  %v1007 = vadd.f32 %v1005, -1.4531521
  %v1008 = vadd.f32 %v1006, -1.4531521
  %v1009 = vmul.f32 %v1007, %v1002
  %v1010 = vmul.f32 %v1008, %v1004
  %v1011 = vadd.f32 %v1009, 1.4214138
  %v1012 = vadd.f32 %v1010, 1.4214138
  %v1013 = vmul.f32 %v1011, %v1002
  %v1014 = vmul.f32 %v1012, %v1004
  %v1015 = vadd.f32 %v1013, -0.28449672
  %v1016 = vadd.f32 %v1014, -0.28449672
  %v1017 = vmul.f32 %v1015, %v1002
  %v1018 = vmul.f32 %v1016, %v1004
  %v1019 = vadd.f32 %v1017, 0.2548296
  %v1020 = vadd.f32 %v1018, 0.2548296
  %v1021 = vmul.f32 %v1019, %v1002
  %v1022 = vmul.f32 %v1020, %v1004
  %v1023 = vmul.f32 %v995, %v995
  %v1024 = vmul.f32 %v996, %v996
  %v1025 = vsub.f32 0.0, %v1023
  %v1026 = vsub.f32 0.0, %v1024
  %v1027 = vmul.f32 %v1025, 1.442695
  %v1028 = vpow.pop %v1027
  %v1029 = vmul.f32 %v1026, 1.442695
  %v1030 = vpow.pop %v1029
  %v1031 = vmul.f32 %v1021, %v1028
  %v1032 = vmul.f32 %v1022, %v1030
  %v1033 = vsub.f32 1.0, %v1031
  %v1034 = vsub.f32 1.0, %v1032
  %vm1035 = vcmp.ge.f32.partialorder %v993, 0.0
  %vm1036 = vcmp.ge.f32.partialorder %v994, 0.0
  %v1037 = vsub.f32 0.0, %v1033
  %v1038 = vsub.f32 0.0, %v1034
  %v1039 = vsel %vm1035, %v1033, %v1037
  %v1040 = vsel %vm1036, %v1034, %v1038
  %v1041 = vadd.f32 %v1039, 1.0
  %v1042 = vadd.f32 %v1040, 1.0
  %v1043 = vmul.f32 %v991, %v1041
  %v1044 = vmul.f32 %v992, %v1042
  %v1045 = vld [vmem:[%s12] sm:$0xf]
  %v1046 = vld [vmem:[%s12 + $0x4] sm:$0xf]
  %v1047 = vld [vmem:[%s12 + $0x8] sm:$0xf]
  %v1048 = vld [vmem:[%s12 + $0xc] sm:$0xf]
  %v1049 = vld [vmem:[%s12 + $0x10] sm:$0xf]
  %v1050 = vld [vmem:[%s12 + $0x14] sm:$0xf]
  %v1051 = vld [vmem:[%s12 + $0x18] sm:$0xf]
  %v1052 = vld [vmem:[%s12 + $0x1c] sm:$0xf]
  %v1053 = vld [vmem:[%s12 + $0x20] sm:$0xf]
  %v1054 = vld [vmem:[%s12 + $0x24] sm:$0xf]
  %v1055 = vld [vmem:[%s12 + $0x28] sm:$0xf]
  %v1056 = vld [vmem:[%s12 + $0x2c] sm:$0xf]
  %v1057 = vld [vmem:[%s12 + $0x30] sm:$0xf]
  %v1058 = vld [vmem:[%s12 + $0x34] sm:$0xf]
  %v1059 = vld [vmem:[%s12 + $0x38] sm:$0xf]
  %v1060 = vld [vmem:[%s12 + $0x3c] sm:$0xf]
  %v1061 = vld [vmem:[%s12 + $0x40] sm:$0xf]
  %v1062 = vld [vmem:[%s12 + $0x44] sm:$0xf]
  %v1063 = vld [vmem:[%s12 + $0x48] sm:$0xf]
  %v1064 = vld [vmem:[%s12 + $0x4c] sm:$0xf]
  %v1065 = vld [vmem:[%s12 + $0x50] sm:$0xf]
  %v1066 = vld [vmem:[%s12 + $0x54] sm:$0xf]
  %v1067 = vld [vmem:[%s12 + $0x58] sm:$0xf]
  %v1068 = vld [vmem:[%s12 + $0x5c] sm:$0xf]
  %v1069 = vld [vmem:[%s12 + $0x60] sm:$0xf]
  %v1070 = vld [vmem:[%s12 + $0x64] sm:$0xf]
  %v1071 = vld [vmem:[%s12 + $0x68] sm:$0xf]
  %v1072 = vld [vmem:[%s12 + $0x6c] sm:$0xf]
  %v1073 = vld [vmem:[%s12 + $0x70] sm:$0xf]
  %v1074 = vld [vmem:[%s12 + $0x74] sm:$0xf]
  %v1075 = vld [vmem:[%s12 + $0x78] sm:$0xf]
  %v1076 = vld [vmem:[%s12 + $0x7c] sm:$0xf]
  %v1077 = vpack.c.bf16 %v1043, %v1043
  %v1078 = vpack.c.bf16 %v1044, %v1044
  %v1079 = vld [vmem:[%s13] sm:$0x1]
  %v1081 = vlaneseq
  %v1082 = vshrl.u32 %v1081, 7
  %v1083 = vsub.s32 0, %v1082
  %v1084 = vrot.slane %v1079, %v1083
  %v1118 = vunpack.c.l.b16 %v1045
  %v1119 = vunpack.c.l.b16 %v1046
  %v1120 = vunpack.c.l.b16 %v1047
  %v1121 = vunpack.c.l.b16 %v1048
  %v1122 = vunpack.c.l.b16 %v1049
  %v1123 = vunpack.c.l.b16 %v1050
  %v1124 = vunpack.c.l.b16 %v1051
  %v1125 = vunpack.c.l.b16 %v1052
  %v1126 = vunpack.c.l.b16 %v1053
  %v1127 = vunpack.c.l.b16 %v1054
  %v1128 = vunpack.c.l.b16 %v1055
  %v1129 = vunpack.c.l.b16 %v1056
  %v1130 = vunpack.c.l.b16 %v1057
  %v1131 = vunpack.c.l.b16 %v1058
  %v1132 = vunpack.c.l.b16 %v1059
  %v1133 = vunpack.c.l.b16 %v1060
  %v1134 = vunpack.c.l.b16 %v1061
  %v1135 = vunpack.c.l.b16 %v1062
  %v1136 = vunpack.c.l.b16 %v1063
  %v1137 = vunpack.c.l.b16 %v1064
  %v1138 = vunpack.c.l.b16 %v1065
  %v1139 = vunpack.c.l.b16 %v1066
  %v1140 = vunpack.c.l.b16 %v1067
  %v1141 = vunpack.c.l.b16 %v1068
  %v1142 = vunpack.c.l.b16 %v1069
  %v1143 = vunpack.c.l.b16 %v1070
  %v1144 = vunpack.c.l.b16 %v1071
  %v1145 = vunpack.c.l.b16 %v1072
  %v1146 = vunpack.c.l.b16 %v1073
  %v1147 = vunpack.c.l.b16 %v1074
  %v1148 = vunpack.c.l.b16 %v1075
  %v1149 = vunpack.c.l.b16 %v1076
  %v1150 = vpack.c.b16 %v1119, %v1118
  %v1151 = vpack.c.b16 %v1121, %v1120
  %v1152 = vpack.c.b16 %v1123, %v1122
  %v1153 = vpack.c.b16 %v1125, %v1124
  %v1154 = vpack.c.b16 %v1127, %v1126
  %v1155 = vpack.c.b16 %v1129, %v1128
  %v1156 = vpack.c.b16 %v1131, %v1130
  %v1157 = vpack.c.b16 %v1133, %v1132
  %v1158 = vpack.c.b16 %v1135, %v1134
  %v1159 = vpack.c.b16 %v1137, %v1136
  %v1160 = vpack.c.b16 %v1139, %v1138
  %v1161 = vpack.c.b16 %v1141, %v1140
  %v1162 = vpack.c.b16 %v1143, %v1142
  %v1163 = vpack.c.b16 %v1145, %v1144
  %v1164 = vpack.c.b16 %v1147, %v1146
  %v1165 = vpack.c.b16 %v1149, %v1148
  %1182 = vmatprep.subr.bf16.mxu0 0
  %1183 = vmatpush1.bf16.msra.mxu0 %v1150
  %1184 = vmatprep.subr.bf16.mxu0 0
  %1185 = vmatpush1.bf16.msra.mxu0 %v1151
  %1186 = vmatprep.subr.bf16.mxu0 0
  %1187 = vmatpush1.bf16.msra.mxu0 %v1152
  %1188 = vmatprep.subr.bf16.mxu0 0
  %1189 = vmatpush1.bf16.msra.mxu0 %v1153
  %1190 = vmatprep.subr.bf16.mxu0 0
  %1191 = vmatpush1.bf16.msra.mxu0 %v1154
  %1192 = vmatprep.subr.bf16.mxu0 0
  %1193 = vmatpush1.bf16.msra.mxu0 %v1155
  %1194 = vmatprep.subr.bf16.mxu0 0
  %1195 = vmatpush1.bf16.msra.mxu0 %v1156
  %1196 = vmatprep.subr.bf16.mxu0 0
  %1197 = vmatpush1.bf16.msra.mxu0 %v1157
  %1198 = vmatprep.subr.bf16.mxu0 0
  %1199 = vmatpush1.bf16.msra.mxu0 %v1158
  %1200 = vmatprep.subr.bf16.mxu0 0
  %1201 = vmatpush1.bf16.msra.mxu0 %v1159
  %1202 = vmatprep.subr.bf16.mxu0 0
  %1203 = vmatpush1.bf16.msra.mxu0 %v1160
  %1204 = vmatprep.subr.bf16.mxu0 0
  %1205 = vmatpush1.bf16.msra.mxu0 %v1161
  %1206 = vmatprep.subr.bf16.mxu0 0
  %1207 = vmatpush1.bf16.msra.mxu0 %v1162
  %1208 = vmatprep.subr.bf16.mxu0 0
  %1209 = vmatpush1.bf16.msra.mxu0 %v1163
  %1210 = vmatprep.subr.bf16.mxu0 0
  %1211 = vmatpush1.bf16.msra.mxu0 %v1164
  %1212 = vmatprep.subr.bf16.mxu0 0
  %1213 = vmatpush1.bf16.msra.mxu0 %v1165
  %1214 = vmatprep.mubr.bf16.mxu0 %v1078
  %1215 = vmatmul.mubr.bf16.gmra.mrb[0].mxu0 %v1077
  %v1216 = vpop.f32.mrb[0].mxu0
  %v1217 = vadd.f32 %v1084, %v1216
  %v1218 = vpop.f32.mrb[0].mxu0
  %v1219 = vpop.f32.mrb[0].mxu0
  %v1220 = vpop.f32.mrb[0].mxu0
  %1221 = vdwg.mxu0
  %v1222 = vadd.f32 %v856, %v1217
  %1223 = vst.msk [vmem:[%s14] sm:$0xff] %vm51, %v1222
  // Predicated region
  $region58: #{swin_unet_forward.16} parent=0 // pred_check
    _
  $region59: #{swin_unet_forward.16} parent=0 // pred_check_branch
    %1225 = sbr.rel (0) target = $region61
  $region60: #{swin_unet_forward.16} parent=0 // pred_region
    _
  $region61: #{swin_unet_forward.16} parent=0 // pred_fallthru
    _
  // Predicated region
  $region62: #{swin_unet_forward.16} parent=0 // pred_check
    _
  $region63: #{swin_unet_forward.16} parent=0 // pred_check_branch
    %1227 = sbr.rel (0) target = $region65
  $region64: #{swin_unet_forward.16} parent=0 // pred_region
    _
  $region65: #{swin_unet_forward.16} parent=0 // pred_fallthru
    _

// kernel: swin_unet_forward.23
$region0: #{swin_unet_forward.23}
  #allocation0 [shape = 'u32[]', space=smem, size = 0x4, offset = 0x4, fixed_abs, tag = 'smem constant byte address 0x4 - core index']
  #allocation1 [shape = 'u32[144,128]{1,0:T(1,128)}', space=vmem, size = 0x12000, scoped, tag = 'internal scratch']
  %s0 = inlined_call_operand.vmem [shape: f32[512,32], index: 0, kind: input, shape index: {}]
  %s1 = inlined_call_operand.vmem [shape: bf16[32,128], index: 1, kind: input, shape index: {}]
  %s2 = inlined_call_operand.vmem [shape: f32[512,128], index: 2, kind: output, shape index: {}]
  %s3 = sld [smem:[#allocation0]]
  $region18: #{swin_unet_forward.23} parent=0
    _
  %s5 = ssub.s32 1, %s3
  %s6 = scalar_select 0, %s5, %s3
  // Predicated region
  $region2: #{swin_unet_forward.23} parent=0 // pred_check
    _
  $region3: #{swin_unet_forward.23} parent=0 // pred_check_branch
    %8 = sbr.rel (0) target = $region5
  $region4: #{swin_unet_forward.23} parent=0 // pred_region
    _
  $region5: #{swin_unet_forward.23} parent=0 // pred_fallthru
    _
  // Predicated region
  $region6: #{swin_unet_forward.23} parent=0 // pred_check
    _
  $region7: #{swin_unet_forward.23} parent=0 // pred_check_branch
    %10 = sbr.rel (0) target = $region9
  $region8: #{swin_unet_forward.23} parent=0 // pred_region
    _
  $region9: #{swin_unet_forward.23} parent=0 // pred_fallthru
    _
  %v12 = vld [vmem:[%s0] sm:$0xff]
  %v13 = vld [vmem:[%s0 + $0x8] sm:$0xff]
  %v14 = vld [vmem:[%s0 + $0x10] sm:$0xff]
  %v15 = vld [vmem:[%s0 + $0x18] sm:$0xff]
  %v16 = vld [vmem:[%s0 + $0x20] sm:$0xff]
  %v17 = vld [vmem:[%s0 + $0x28] sm:$0xff]
  %v18 = vld [vmem:[%s0 + $0x30] sm:$0xff]
  %v19 = vld [vmem:[%s0 + $0x38] sm:$0xff]
  %v20 = vld [vmem:[%s0 + $0x40] sm:$0xff]
  %v21 = vld [vmem:[%s0 + $0x48] sm:$0xff]
  %v22 = vld [vmem:[%s0 + $0x50] sm:$0xff]
  %v23 = vld [vmem:[%s0 + $0x58] sm:$0xff]
  %v24 = vld [vmem:[%s0 + $0x60] sm:$0xff]
  %v25 = vld [vmem:[%s0 + $0x68] sm:$0xff]
  %v26 = vld [vmem:[%s0 + $0x70] sm:$0xff]
  %v27 = vld [vmem:[%s0 + $0x78] sm:$0xff]
  %v28 = vld [vmem:[%s0 + $0x80] sm:$0xff]
  %v29 = vld [vmem:[%s0 + $0x88] sm:$0xff]
  %v30 = vld [vmem:[%s0 + $0x90] sm:$0xff]
  %v31 = vld [vmem:[%s0 + $0x98] sm:$0xff]
  %v32 = vld [vmem:[%s0 + $0xa0] sm:$0xff]
  %v33 = vld [vmem:[%s0 + $0xa8] sm:$0xff]
  %v34 = vld [vmem:[%s0 + $0xb0] sm:$0xff]
  %v35 = vld [vmem:[%s0 + $0xb8] sm:$0xff]
  %v36 = vld [vmem:[%s0 + $0xc0] sm:$0xff]
  %v37 = vld [vmem:[%s0 + $0xc8] sm:$0xff]
  %v38 = vld [vmem:[%s0 + $0xd0] sm:$0xff]
  %v39 = vld [vmem:[%s0 + $0xd8] sm:$0xff]
  %v40 = vld [vmem:[%s0 + $0xe0] sm:$0xff]
  %v41 = vld [vmem:[%s0 + $0xe8] sm:$0xff]
  %v42 = vld [vmem:[%s0 + $0xf0] sm:$0xff]
  %v43 = vld [vmem:[%s0 + $0xf8] sm:$0xff]
  %v44 = vld [vmem:[%s0 + $0x100] sm:$0xff]
  %v45 = vld [vmem:[%s0 + $0x108] sm:$0xff]
  %v46 = vld [vmem:[%s0 + $0x110] sm:$0xff]
  %v47 = vld [vmem:[%s0 + $0x118] sm:$0xff]
  %v48 = vld [vmem:[%s0 + $0x120] sm:$0xff]
  %v49 = vld [vmem:[%s0 + $0x128] sm:$0xff]
  %v50 = vld [vmem:[%s0 + $0x130] sm:$0xff]
  %v51 = vld [vmem:[%s0 + $0x138] sm:$0xff]
  %v52 = vld [vmem:[%s0 + $0x140] sm:$0xff]
  %v53 = vld [vmem:[%s0 + $0x148] sm:$0xff]
  %v54 = vld [vmem:[%s0 + $0x150] sm:$0xff]
  %v55 = vld [vmem:[%s0 + $0x158] sm:$0xff]
  %v56 = vld [vmem:[%s0 + $0x160] sm:$0xff]
  %v57 = vld [vmem:[%s0 + $0x168] sm:$0xff]
  %v58 = vld [vmem:[%s0 + $0x170] sm:$0xff]
  %v59 = vld [vmem:[%s0 + $0x178] sm:$0xff]
  %v60 = vld [vmem:[%s0 + $0x180] sm:$0xff]
  %v61 = vld [vmem:[%s0 + $0x188] sm:$0xff]
  %v62 = vld [vmem:[%s0 + $0x190] sm:$0xff]
  %v63 = vld [vmem:[%s0 + $0x198] sm:$0xff]
  %v64 = vld [vmem:[%s0 + $0x1a0] sm:$0xff]
  %v65 = vld [vmem:[%s0 + $0x1a8] sm:$0xff]
  %v66 = vld [vmem:[%s0 + $0x1b0] sm:$0xff]
  %v67 = vld [vmem:[%s0 + $0x1b8] sm:$0xff]
  %v68 = vld [vmem:[%s0 + $0x1c0] sm:$0xff]
  %v69 = vld [vmem:[%s0 + $0x1c8] sm:$0xff]
  %v70 = vld [vmem:[%s0 + $0x1d0] sm:$0xff]
  %v71 = vld [vmem:[%s0 + $0x1d8] sm:$0xff]
  %v72 = vld [vmem:[%s0 + $0x1e0] sm:$0xff]
  %v73 = vld [vmem:[%s0 + $0x1e8] sm:$0xff]
  %v74 = vld [vmem:[%s0 + $0x1f0] sm:$0xff]
  %v75 = vld [vmem:[%s0 + $0x1f8] sm:$0xff]
  %v76 = vld [vmem:[%s1] sm:$0xf]
  %v77 = vld [vmem:[%s1 + $0x4] sm:$0xf]
  %v78 = vld [vmem:[%s1 + $0x8] sm:$0xf]
  %v79 = vld [vmem:[%s1 + $0xc] sm:$0xf]
  %v80 = vpack.c.bf16 %v13, %v12
  %v81 = vpack.c.bf16 %v15, %v14
  %v82 = vpack.c.bf16 %v17, %v16
  %v83 = vpack.c.bf16 %v19, %v18
  %v84 = vpack.c.bf16 %v21, %v20
  %v85 = vpack.c.bf16 %v23, %v22
  %v86 = vpack.c.bf16 %v25, %v24
  %v87 = vpack.c.bf16 %v27, %v26
  %v88 = vpack.c.bf16 %v29, %v28
  %v89 = vpack.c.bf16 %v31, %v30
  %v90 = vpack.c.bf16 %v33, %v32
  %v91 = vpack.c.bf16 %v35, %v34
  %v92 = vpack.c.bf16 %v37, %v36
  %v93 = vpack.c.bf16 %v39, %v38
  %v94 = vpack.c.bf16 %v41, %v40
  %v95 = vpack.c.bf16 %v43, %v42
  %v96 = vpack.c.bf16 %v45, %v44
  %v97 = vpack.c.bf16 %v47, %v46
  %v98 = vpack.c.bf16 %v49, %v48
  %v99 = vpack.c.bf16 %v51, %v50
  %v100 = vpack.c.bf16 %v53, %v52
  %v101 = vpack.c.bf16 %v55, %v54
  %v102 = vpack.c.bf16 %v57, %v56
  %v103 = vpack.c.bf16 %v59, %v58
  %v104 = vpack.c.bf16 %v61, %v60
  %v105 = vpack.c.bf16 %v63, %v62
  %v106 = vpack.c.bf16 %v65, %v64
  %v107 = vpack.c.bf16 %v67, %v66
  %v108 = vpack.c.bf16 %v69, %v68
  %v109 = vpack.c.bf16 %v71, %v70
  %v110 = vpack.c.bf16 %v73, %v72
  %v111 = vpack.c.bf16 %v75, %v74
  %v116 = vunpack.c.l.b16 %v76
  %v117 = vunpack.c.l.b16 %v77
  %v118 = vunpack.c.l.b16 %v78
  %v119 = vunpack.c.l.b16 %v79
  %v120 = vpack.c.b16 %v117, %v116
  %v121 = vpack.c.b16 %v119, %v118
  %vm124 = vcmask 261120
  %v126 = vsel %vm124, %v80, 0
  %v129 = vsel %vm124, %v81, 0
  %v132 = vsel %vm124, %v82, 0
  %v135 = vsel %vm124, %v83, 0
  %v138 = vsel %vm124, %v84, 0
  %v141 = vsel %vm124, %v85, 0
  %v144 = vsel %vm124, %v86, 0
  %v147 = vsel %vm124, %v87, 0
  %v150 = vsel %vm124, %v88, 0
  %v153 = vsel %vm124, %v89, 0
  %v156 = vsel %vm124, %v90, 0
  %v159 = vsel %vm124, %v91, 0
  %v162 = vsel %vm124, %v92, 0
  %v165 = vsel %vm124, %v93, 0
  %v168 = vsel %vm124, %v94, 0
  %v171 = vsel %vm124, %v95, 0
  %v174 = vsel %vm124, %v96, 0
  %v177 = vsel %vm124, %v97, 0
  %v180 = vsel %vm124, %v98, 0
  %v183 = vsel %vm124, %v99, 0
  %v186 = vsel %vm124, %v100, 0
  %v189 = vsel %vm124, %v101, 0
  %v192 = vsel %vm124, %v102, 0
  %v195 = vsel %vm124, %v103, 0
  %v198 = vsel %vm124, %v104, 0
  %v201 = vsel %vm124, %v105, 0
  %v204 = vsel %vm124, %v106, 0
  %v207 = vsel %vm124, %v107, 0
  %v210 = vsel %vm124, %v108, 0
  %v213 = vsel %vm124, %v109, 0
  %v216 = vsel %vm124, %v110, 0
  %v219 = vsel %vm124, %v111, 0
  %221 = vmatprep.subr.bf16.mxu0 0
  %222 = vmatpush1.bf16.msra.mxu0 %v120
  %223 = vmatprep.subr.bf16.mxu0 0
  %224 = vmatpush1.bf16.msra.mxu0 %v121
  %225 = vmatprep.subr.bf16.mxu0 0
  %226 = vmatpush1.bf16.msra.mxu0 0
  %227 = vmatprep.subr.bf16.mxu0 0
  %228 = vmatpush1.bf16.msra.mxu0 0
  %229 = vmatprep.subr.bf16.mxu0 0
  %230 = vmatpush1.bf16.msra.mxu0 0
  %231 = vmatprep.subr.bf16.mxu0 0
  %232 = vmatpush1.bf16.msra.mxu0 0
  %233 = vmatprep.subr.bf16.mxu0 0
  %234 = vmatpush1.bf16.msra.mxu0 0
  %235 = vmatprep.subr.bf16.mxu0 0
  %236 = vmatpush1.bf16.msra.mxu0 0
  %237 = vmatprep.subr.bf16.mxu0 0
  %238 = vmatpush1.bf16.msra.mxu0 0
  %239 = vmatprep.subr.bf16.mxu0 0
  %240 = vmatpush1.bf16.msra.mxu0 0
  %241 = vmatprep.subr.bf16.mxu0 0
  %242 = vmatpush1.bf16.msra.mxu0 0
  %243 = vmatprep.subr.bf16.mxu0 0
  %244 = vmatpush1.bf16.msra.mxu0 0
  %245 = vmatprep.subr.bf16.mxu0 0
  %246 = vmatpush1.bf16.msra.mxu0 0
  %247 = vmatprep.subr.bf16.mxu0 0
  %248 = vmatpush1.bf16.msra.mxu0 0
  %249 = vmatprep.subr.bf16.mxu0 0
  %250 = vmatpush1.bf16.msra.mxu0 0
  %251 = vmatprep.subr.bf16.mxu0 0
  %252 = vmatpush1.bf16.msra.mxu0 0
  %253 = vmatprep.mubr.bf16.mxu0 0
  %254 = vmatmul.mubr.bf16.gmra.mrb[0].mxu0 %v126
  %v255 = vpop.f32.mrb[0].mxu0
  %v256 = vadd.f32 0.0, %v255
  %v257 = vpop.f32.mrb[0].mxu0
  %v258 = vpop.f32.mrb[0].mxu0
  %v259 = vadd.f32 0.0, %v258
  %v260 = vpop.f32.mrb[0].mxu0
  %261 = vmatprep.mubr.bf16.mxu0 0
  %262 = vmatmul.mubr.bf16.gmra.mrb[0].mxu0 %v129
  %v263 = vpop.f32.mrb[0].mxu0
  %v264 = vadd.f32 0.0, %v263
  %v265 = vpop.f32.mrb[0].mxu0
  %v266 = vpop.f32.mrb[0].mxu0
  %v267 = vadd.f32 0.0, %v266
  %v268 = vpop.f32.mrb[0].mxu0
  %269 = vmatprep.mubr.bf16.mxu0 0
  %270 = vmatmul.mubr.bf16.gmra.mrb[0].mxu0 %v132
  %v271 = vpop.f32.mrb[0].mxu0
  %v272 = vadd.f32 0.0, %v271
  %v273 = vpop.f32.mrb[0].mxu0
  %v274 = vpop.f32.mrb[0].mxu0
  %v275 = vadd.f32 0.0, %v274
  %v276 = vpop.f32.mrb[0].mxu0
  %277 = vmatprep.mubr.bf16.mxu0 0
  %278 = vmatmul.mubr.bf16.gmra.mrb[0].mxu0 %v135
  %v279 = vpop.f32.mrb[0].mxu0
  %v280 = vadd.f32 0.0, %v279
  %v281 = vpop.f32.mrb[0].mxu0
  %v282 = vpop.f32.mrb[0].mxu0
  %v283 = vadd.f32 0.0, %v282
  %v284 = vpop.f32.mrb[0].mxu0
  %285 = vmatprep.mubr.bf16.mxu0 0
  %286 = vmatmul.mubr.bf16.gmra.mrb[0].mxu0 %v138
  %v287 = vpop.f32.mrb[0].mxu0
  %v288 = vadd.f32 0.0, %v287
  %v289 = vpop.f32.mrb[0].mxu0
  %v290 = vpop.f32.mrb[0].mxu0
  %v291 = vadd.f32 0.0, %v290
  %v292 = vpop.f32.mrb[0].mxu0
  %293 = vmatprep.mubr.bf16.mxu0 0
  %294 = vmatmul.mubr.bf16.gmra.mrb[0].mxu0 %v141
  %v295 = vpop.f32.mrb[0].mxu0
  %v296 = vadd.f32 0.0, %v295
  %v297 = vpop.f32.mrb[0].mxu0
  %v298 = vpop.f32.mrb[0].mxu0
  %v299 = vadd.f32 0.0, %v298
  %v300 = vpop.f32.mrb[0].mxu0
  %301 = vmatprep.mubr.bf16.mxu0 0
  %302 = vmatmul.mubr.bf16.gmra.mrb[0].mxu0 %v144
  %v303 = vpop.f32.mrb[0].mxu0
  %v304 = vadd.f32 0.0, %v303
  %v305 = vpop.f32.mrb[0].mxu0
  %v306 = vpop.f32.mrb[0].mxu0
  %v307 = vadd.f32 0.0, %v306
  %v308 = vpop.f32.mrb[0].mxu0
  %309 = vmatprep.mubr.bf16.mxu0 0
  %310 = vmatmul.mubr.bf16.gmra.mrb[0].mxu0 %v147
  %v311 = vpop.f32.mrb[0].mxu0
  %v312 = vadd.f32 0.0, %v311
  %v313 = vpop.f32.mrb[0].mxu0
  %v314 = vpop.f32.mrb[0].mxu0
  %v315 = vadd.f32 0.0, %v314
  %v316 = vpop.f32.mrb[0].mxu0
  %317 = vmatprep.mubr.bf16.mxu0 0
  %318 = vmatmul.mubr.bf16.gmra.mrb[0].mxu0 %v150
  %v319 = vpop.f32.mrb[0].mxu0
  %v320 = vadd.f32 0.0, %v319
  %v321 = vpop.f32.mrb[0].mxu0
  %v322 = vpop.f32.mrb[0].mxu0
  %v323 = vadd.f32 0.0, %v322
  %v324 = vpop.f32.mrb[0].mxu0
  %325 = vmatprep.mubr.bf16.mxu0 0
  %326 = vmatmul.mubr.bf16.gmra.mrb[0].mxu0 %v153
  %v327 = vpop.f32.mrb[0].mxu0
  %v328 = vadd.f32 0.0, %v327
  %v329 = vpop.f32.mrb[0].mxu0
  %v330 = vpop.f32.mrb[0].mxu0
  %v331 = vadd.f32 0.0, %v330
  %v332 = vpop.f32.mrb[0].mxu0
  %333 = vmatprep.mubr.bf16.mxu0 0
  %334 = vmatmul.mubr.bf16.gmra.mrb[0].mxu0 %v156
  %v335 = vpop.f32.mrb[0].mxu0
  %v336 = vadd.f32 0.0, %v335
  %v337 = vpop.f32.mrb[0].mxu0
  %v338 = vpop.f32.mrb[0].mxu0
  %v339 = vadd.f32 0.0, %v338
  %v340 = vpop.f32.mrb[0].mxu0
  %341 = vmatprep.mubr.bf16.mxu0 0
  %342 = vmatmul.mubr.bf16.gmra.mrb[0].mxu0 %v159
  %v343 = vpop.f32.mrb[0].mxu0
  %v344 = vadd.f32 0.0, %v343
  %v345 = vpop.f32.mrb[0].mxu0
  %v346 = vpop.f32.mrb[0].mxu0
  %v347 = vadd.f32 0.0, %v346
  %v348 = vpop.f32.mrb[0].mxu0
  %349 = vmatprep.mubr.bf16.mxu0 0
  %350 = vmatmul.mubr.bf16.gmra.mrb[0].mxu0 %v162
  %v351 = vpop.f32.mrb[0].mxu0
  %v352 = vadd.f32 0.0, %v351
  %v353 = vpop.f32.mrb[0].mxu0
  %v354 = vpop.f32.mrb[0].mxu0
  %v355 = vadd.f32 0.0, %v354
  %v356 = vpop.f32.mrb[0].mxu0
  %357 = vmatprep.mubr.bf16.mxu0 0
  %358 = vmatmul.mubr.bf16.gmra.mrb[0].mxu0 %v165
  %v359 = vpop.f32.mrb[0].mxu0
  %v360 = vadd.f32 0.0, %v359
  %v361 = vpop.f32.mrb[0].mxu0
  %v362 = vpop.f32.mrb[0].mxu0
  %v363 = vadd.f32 0.0, %v362
  %v364 = vpop.f32.mrb[0].mxu0
  %365 = vmatprep.mubr.bf16.mxu0 0
  %366 = vmatmul.mubr.bf16.gmra.mrb[0].mxu0 %v168
  %v367 = vpop.f32.mrb[0].mxu0
  %v368 = vadd.f32 0.0, %v367
  %v369 = vpop.f32.mrb[0].mxu0
  %v370 = vpop.f32.mrb[0].mxu0
  %v371 = vadd.f32 0.0, %v370
  %v372 = vpop.f32.mrb[0].mxu0
  %373 = vmatprep.mubr.bf16.mxu0 0
  %374 = vmatmul.mubr.bf16.gmra.mrb[0].mxu0 %v171
  %v375 = vpop.f32.mrb[0].mxu0
  %v376 = vadd.f32 0.0, %v375
  %v377 = vpop.f32.mrb[0].mxu0
  %v378 = vpop.f32.mrb[0].mxu0
  %v379 = vadd.f32 0.0, %v378
  %v380 = vpop.f32.mrb[0].mxu0
  %381 = vmatprep.mubr.bf16.mxu0 0
  %382 = vmatmul.mubr.bf16.gmra.mrb[0].mxu0 %v174
  %v383 = vpop.f32.mrb[0].mxu0
  %v384 = vadd.f32 0.0, %v383
  %v385 = vpop.f32.mrb[0].mxu0
  %v386 = vpop.f32.mrb[0].mxu0
  %v387 = vadd.f32 0.0, %v386
  %v388 = vpop.f32.mrb[0].mxu0
  %389 = vmatprep.mubr.bf16.mxu0 0
  %390 = vmatmul.mubr.bf16.gmra.mrb[0].mxu0 %v177
  %v391 = vpop.f32.mrb[0].mxu0
  %v392 = vadd.f32 0.0, %v391
  %v393 = vpop.f32.mrb[0].mxu0
  %v394 = vpop.f32.mrb[0].mxu0
  %v395 = vadd.f32 0.0, %v394
  %v396 = vpop.f32.mrb[0].mxu0
  %397 = vmatprep.mubr.bf16.mxu0 0
  %398 = vmatmul.mubr.bf16.gmra.mrb[0].mxu0 %v180
  %v399 = vpop.f32.mrb[0].mxu0
  %v400 = vadd.f32 0.0, %v399
  %v401 = vpop.f32.mrb[0].mxu0
  %v402 = vpop.f32.mrb[0].mxu0
  %v403 = vadd.f32 0.0, %v402
  %v404 = vpop.f32.mrb[0].mxu0
  %405 = vmatprep.mubr.bf16.mxu0 0
  %406 = vmatmul.mubr.bf16.gmra.mrb[0].mxu0 %v183
  %v407 = vpop.f32.mrb[0].mxu0
  %v408 = vadd.f32 0.0, %v407
  %v409 = vpop.f32.mrb[0].mxu0
  %v410 = vpop.f32.mrb[0].mxu0
  %v411 = vadd.f32 0.0, %v410
  %v412 = vpop.f32.mrb[0].mxu0
  %413 = vmatprep.mubr.bf16.mxu0 0
  %414 = vmatmul.mubr.bf16.gmra.mrb[0].mxu0 %v186
  %v415 = vpop.f32.mrb[0].mxu0
  %v416 = vadd.f32 0.0, %v415
  %v417 = vpop.f32.mrb[0].mxu0
  %v418 = vpop.f32.mrb[0].mxu0
  %v419 = vadd.f32 0.0, %v418
  %v420 = vpop.f32.mrb[0].mxu0
  %421 = vmatprep.mubr.bf16.mxu0 0
  %422 = vmatmul.mubr.bf16.gmra.mrb[0].mxu0 %v189
  %v423 = vpop.f32.mrb[0].mxu0
  %v424 = vadd.f32 0.0, %v423
  %v425 = vpop.f32.mrb[0].mxu0
  %v426 = vpop.f32.mrb[0].mxu0
  %v427 = vadd.f32 0.0, %v426
  %v428 = vpop.f32.mrb[0].mxu0
  %429 = vmatprep.mubr.bf16.mxu0 0
  %430 = vmatmul.mubr.bf16.gmra.mrb[0].mxu0 %v192
  %v431 = vpop.f32.mrb[0].mxu0
  %v432 = vadd.f32 0.0, %v431
  %v433 = vpop.f32.mrb[0].mxu0
  %v434 = vpop.f32.mrb[0].mxu0
  %v435 = vadd.f32 0.0, %v434
  %v436 = vpop.f32.mrb[0].mxu0
  %437 = vmatprep.mubr.bf16.mxu0 0
  %438 = vmatmul.mubr.bf16.gmra.mrb[0].mxu0 %v195
  %v439 = vpop.f32.mrb[0].mxu0
  %v440 = vadd.f32 0.0, %v439
  %v441 = vpop.f32.mrb[0].mxu0
  %v442 = vpop.f32.mrb[0].mxu0
  %v443 = vadd.f32 0.0, %v442
  %v444 = vpop.f32.mrb[0].mxu0
  %445 = vmatprep.mubr.bf16.mxu0 0
  %446 = vmatmul.mubr.bf16.gmra.mrb[0].mxu0 %v198
  %v447 = vpop.f32.mrb[0].mxu0
  %v448 = vadd.f32 0.0, %v447
  %v449 = vpop.f32.mrb[0].mxu0
  %v450 = vpop.f32.mrb[0].mxu0
  %v451 = vadd.f32 0.0, %v450
  %v452 = vpop.f32.mrb[0].mxu0
  %453 = vmatprep.mubr.bf16.mxu0 0
  %454 = vmatmul.mubr.bf16.gmra.mrb[0].mxu0 %v201
  %v455 = vpop.f32.mrb[0].mxu0
  %v456 = vadd.f32 0.0, %v455
  %v457 = vpop.f32.mrb[0].mxu0
  %v458 = vpop.f32.mrb[0].mxu0
  %v459 = vadd.f32 0.0, %v458
  %v460 = vpop.f32.mrb[0].mxu0
  %461 = vmatprep.mubr.bf16.mxu0 0
  %462 = vmatmul.mubr.bf16.gmra.mrb[0].mxu0 %v204
  %v463 = vpop.f32.mrb[0].mxu0
  %v464 = vadd.f32 0.0, %v463
  %v465 = vpop.f32.mrb[0].mxu0
  %v466 = vpop.f32.mrb[0].mxu0
  %v467 = vadd.f32 0.0, %v466
  %v468 = vpop.f32.mrb[0].mxu0
  %469 = vmatprep.mubr.bf16.mxu0 0
  %470 = vmatmul.mubr.bf16.gmra.mrb[0].mxu0 %v207
  %v471 = vpop.f32.mrb[0].mxu0
  %v472 = vadd.f32 0.0, %v471
  %v473 = vpop.f32.mrb[0].mxu0
  %v474 = vpop.f32.mrb[0].mxu0
  %v475 = vadd.f32 0.0, %v474
  %v476 = vpop.f32.mrb[0].mxu0
  %477 = vmatprep.mubr.bf16.mxu0 0
  %478 = vmatmul.mubr.bf16.gmra.mrb[0].mxu0 %v210
  %v479 = vpop.f32.mrb[0].mxu0
  %v480 = vadd.f32 0.0, %v479
  %v481 = vpop.f32.mrb[0].mxu0
  %v482 = vpop.f32.mrb[0].mxu0
  %v483 = vadd.f32 0.0, %v482
  %v484 = vpop.f32.mrb[0].mxu0
  %485 = vmatprep.mubr.bf16.mxu0 0
  %486 = vmatmul.mubr.bf16.gmra.mrb[0].mxu0 %v213
  %v487 = vpop.f32.mrb[0].mxu0
  %v488 = vadd.f32 0.0, %v487
  %v489 = vpop.f32.mrb[0].mxu0
  %v490 = vpop.f32.mrb[0].mxu0
  %v491 = vadd.f32 0.0, %v490
  %v492 = vpop.f32.mrb[0].mxu0
  %493 = vmatprep.mubr.bf16.mxu0 0
  %494 = vmatmul.mubr.bf16.gmra.mrb[0].mxu0 %v216
  %v495 = vpop.f32.mrb[0].mxu0
  %v496 = vadd.f32 0.0, %v495
  %v497 = vpop.f32.mrb[0].mxu0
  %v498 = vpop.f32.mrb[0].mxu0
  %v499 = vadd.f32 0.0, %v498
  %v500 = vpop.f32.mrb[0].mxu0
  %501 = vmatprep.mubr.bf16.mxu0 0
  %502 = vmatmul.mubr.bf16.gmra.mrb[0].mxu0 %v219
  %v503 = vpop.f32.mrb[0].mxu0
  %v504 = vadd.f32 0.0, %v503
  %v505 = vpop.f32.mrb[0].mxu0
  %v506 = vpop.f32.mrb[0].mxu0
  %v507 = vadd.f32 0.0, %v506
  %v508 = vpop.f32.mrb[0].mxu0
  %509 = vdwg.mxu0
  %510 = vst [vmem:[%s2] sm:$0xff] %v256
  %511 = vst [vmem:[%s2 + $0x8] sm:$0xff] %v259
  %512 = vst [vmem:[%s2 + $0x10] sm:$0xff] %v264
  %513 = vst [vmem:[%s2 + $0x18] sm:$0xff] %v267
  %514 = vst [vmem:[%s2 + $0x20] sm:$0xff] %v272
  %515 = vst [vmem:[%s2 + $0x28] sm:$0xff] %v275
  %516 = vst [vmem:[%s2 + $0x30] sm:$0xff] %v280
  %517 = vst [vmem:[%s2 + $0x38] sm:$0xff] %v283
  %518 = vst [vmem:[%s2 + $0x40] sm:$0xff] %v288
  %519 = vst [vmem:[%s2 + $0x48] sm:$0xff] %v291
  %520 = vst [vmem:[%s2 + $0x50] sm:$0xff] %v296
  %521 = vst [vmem:[%s2 + $0x58] sm:$0xff] %v299
  %522 = vst [vmem:[%s2 + $0x60] sm:$0xff] %v304
  %523 = vst [vmem:[%s2 + $0x68] sm:$0xff] %v307
  %524 = vst [vmem:[%s2 + $0x70] sm:$0xff] %v312
  %525 = vst [vmem:[%s2 + $0x78] sm:$0xff] %v315
  %526 = vst [vmem:[%s2 + $0x80] sm:$0xff] %v320
  %527 = vst [vmem:[%s2 + $0x88] sm:$0xff] %v323
  %528 = vst [vmem:[%s2 + $0x90] sm:$0xff] %v328
  %529 = vst [vmem:[%s2 + $0x98] sm:$0xff] %v331
  %530 = vst [vmem:[%s2 + $0xa0] sm:$0xff] %v336
  %531 = vst [vmem:[%s2 + $0xa8] sm:$0xff] %v339
  %532 = vst [vmem:[%s2 + $0xb0] sm:$0xff] %v344
  %533 = vst [vmem:[%s2 + $0xb8] sm:$0xff] %v347
  %534 = vst [vmem:[%s2 + $0xc0] sm:$0xff] %v352
  %535 = vst [vmem:[%s2 + $0xc8] sm:$0xff] %v355
  %536 = vst [vmem:[%s2 + $0xd0] sm:$0xff] %v360
  %537 = vst [vmem:[%s2 + $0xd8] sm:$0xff] %v363
  %538 = vst [vmem:[%s2 + $0xe0] sm:$0xff] %v368
  %539 = vst [vmem:[%s2 + $0xe8] sm:$0xff] %v371
  %540 = vst [vmem:[%s2 + $0xf0] sm:$0xff] %v376
  %541 = vst [vmem:[%s2 + $0xf8] sm:$0xff] %v379
  %542 = vst [vmem:[%s2 + $0x100] sm:$0xff] %v384
  %543 = vst [vmem:[%s2 + $0x108] sm:$0xff] %v387
  %544 = vst [vmem:[%s2 + $0x110] sm:$0xff] %v392
  %545 = vst [vmem:[%s2 + $0x118] sm:$0xff] %v395
  %546 = vst [vmem:[%s2 + $0x120] sm:$0xff] %v400
  %547 = vst [vmem:[%s2 + $0x128] sm:$0xff] %v403
  %548 = vst [vmem:[%s2 + $0x130] sm:$0xff] %v408
  %549 = vst [vmem:[%s2 + $0x138] sm:$0xff] %v411
  %550 = vst [vmem:[%s2 + $0x140] sm:$0xff] %v416
  %551 = vst [vmem:[%s2 + $0x148] sm:$0xff] %v419
  %552 = vst [vmem:[%s2 + $0x150] sm:$0xff] %v424
  %553 = vst [vmem:[%s2 + $0x158] sm:$0xff] %v427
  %554 = vst [vmem:[%s2 + $0x160] sm:$0xff] %v432
  %555 = vst [vmem:[%s2 + $0x168] sm:$0xff] %v435
  %556 = vst [vmem:[%s2 + $0x170] sm:$0xff] %v440
  %557 = vst [vmem:[%s2 + $0x178] sm:$0xff] %v443
  %558 = vst [vmem:[%s2 + $0x180] sm:$0xff] %v448
  %559 = vst [vmem:[%s2 + $0x188] sm:$0xff] %v451
  %560 = vst [vmem:[%s2 + $0x190] sm:$0xff] %v456
  %561 = vst [vmem:[%s2 + $0x198] sm:$0xff] %v459
  %562 = vst [vmem:[%s2 + $0x1a0] sm:$0xff] %v464
  %563 = vst [vmem:[%s2 + $0x1a8] sm:$0xff] %v467
  %564 = vst [vmem:[%s2 + $0x1b0] sm:$0xff] %v472
  %565 = vst [vmem:[%s2 + $0x1b8] sm:$0xff] %v475
  %566 = vst [vmem:[%s2 + $0x1c0] sm:$0xff] %v480
  %567 = vst [vmem:[%s2 + $0x1c8] sm:$0xff] %v483
  %568 = vst [vmem:[%s2 + $0x1d0] sm:$0xff] %v488
  %569 = vst [vmem:[%s2 + $0x1d8] sm:$0xff] %v491
  %570 = vst [vmem:[%s2 + $0x1e0] sm:$0xff] %v496
  %571 = vst [vmem:[%s2 + $0x1e8] sm:$0xff] %v499
  %572 = vst [vmem:[%s2 + $0x1f0] sm:$0xff] %v504
  %573 = vst [vmem:[%s2 + $0x1f8] sm:$0xff] %v507
  // Predicated region
  $region10: #{swin_unet_forward.23} parent=0 // pred_check
    _
  $region11: #{swin_unet_forward.23} parent=0 // pred_check_branch
    %575 = sbr.rel (0) target = $region13
  $region12: #{swin_unet_forward.23} parent=0 // pred_region
    _
  $region13: #{swin_unet_forward.23} parent=0 // pred_fallthru
    _
  // Predicated region
  $region14: #{swin_unet_forward.23} parent=0 // pred_check
    _
  $region15: #{swin_unet_forward.23} parent=0 // pred_check_branch
    %577 = sbr.rel (0) target = $region17
  $region16: #{swin_unet_forward.23} parent=0 // pred_region
    _
  $region17: #{swin_unet_forward.23} parent=0 // pred_fallthru
    _

// kernel: swin_unet_forward.22
$region0: #{swin_unet_forward.22}
  #allocation0 [shape = 'u32[]', space=smem, size = 0x4, offset = 0x4, fixed_abs, tag = 'smem constant byte address 0x4 - core index']
  #allocation1 [shape = 'u32[144,128]{1,0:T(1,128)}', space=vmem, size = 0x12000, scoped, tag = 'internal scratch']
  %s0 = inlined_call_operand.vmem [shape: f32[32,32], index: 0, kind: input, shape index: {}]
  %s1 = inlined_call_operand.vmem [shape: f32[1,32], index: 1, kind: input, shape index: {}]
  %s2 = inlined_call_operand.vmem [shape: f32[1,32], index: 2, kind: input, shape index: {}]
  %s3 = inlined_call_operand.vmem [shape: bf16[32,512], index: 3, kind: input, shape index: {}]
  %s4 = inlined_call_operand.vmem [shape: f32[1,32], index: 4, kind: input, shape index: {}]
  %s5 = inlined_call_operand.vmem [shape: f32[1,32], index: 5, kind: input, shape index: {}]
  %s6 = inlined_call_operand.vmem [shape: f32[32,512], index: 6, kind: output, shape index: {}]
  %s7 = sld [smem:[#allocation0]]
  $region34: #{swin_unet_forward.22} parent=0
    _
  %s9 = ssub.s32 1, %s7
  %s10 = scalar_select 0, %s9, %s7
  // Predicated region
  $region2: #{swin_unet_forward.22} parent=0 // pred_check
    _
  $region3: #{swin_unet_forward.22} parent=0 // pred_check_branch
    %12 = sbr.rel (0) target = $region5
  $region4: #{swin_unet_forward.22} parent=0 // pred_region
    _
  $region5: #{swin_unet_forward.22} parent=0 // pred_fallthru
    _
  // Predicated region
  $region6: #{swin_unet_forward.22} parent=0 // pred_check
    _
  $region7: #{swin_unet_forward.22} parent=0 // pred_check_branch
    %14 = sbr.rel (0) target = $region9
  $region8: #{swin_unet_forward.22} parent=0 // pred_region
    _
  $region9: #{swin_unet_forward.22} parent=0 // pred_fallthru
    _
  // Predicated region
  $region10: #{swin_unet_forward.22} parent=0 // pred_check
    _
  $region11: #{swin_unet_forward.22} parent=0 // pred_check_branch
    %16 = sbr.rel (0) target = $region13
  $region12: #{swin_unet_forward.22} parent=0 // pred_region
    _
  $region13: #{swin_unet_forward.22} parent=0 // pred_fallthru
    _
  // Predicated region
  $region14: #{swin_unet_forward.22} parent=0 // pred_check
    _
  $region15: #{swin_unet_forward.22} parent=0 // pred_check_branch
    %18 = sbr.rel (0) target = $region17
  $region16: #{swin_unet_forward.22} parent=0 // pred_region
    _
  $region17: #{swin_unet_forward.22} parent=0 // pred_fallthru
    _
  // Predicated region
  $region18: #{swin_unet_forward.22} parent=0 // pred_check
    _
  $region19: #{swin_unet_forward.22} parent=0 // pred_check_branch
    %20 = sbr.rel (0) target = $region21
  $region20: #{swin_unet_forward.22} parent=0 // pred_region
    _
  $region21: #{swin_unet_forward.22} parent=0 // pred_fallthru
    _
  // Predicated region
  $region22: #{swin_unet_forward.22} parent=0 // pred_check
    _
  $region23: #{swin_unet_forward.22} parent=0 // pred_check_branch
    %22 = sbr.rel (0) target = $region25
  $region24: #{swin_unet_forward.22} parent=0 // pred_region
    _
  $region25: #{swin_unet_forward.22} parent=0 // pred_fallthru
    _
  %v24 = vld [vmem:[%s0] sm:$0xff]
  %v25 = vld [vmem:[%s0 + $0x8] sm:$0xff]
  %v26 = vld [vmem:[%s0 + $0x10] sm:$0xff]
  %v27 = vld [vmem:[%s0 + $0x18] sm:$0xff]
  %v28 = vld [vmem:[%s1] sm:$0x1]
  %v29 = vld [vmem:[%s2] sm:$0x1]
  %vm30 = vcmask 261120
  %v31 = vsel %vm30, %v24, 0.0
  %32 = vadd.xlane.f32.xlu0 %v31
  %v33 = vpop.xlane.xlu0 %32
  %v34 = vsel %vm30, %v25, 0.0
  %35 = vadd.xlane.f32.xlu0 %v34
  %v36 = vpop.xlane.xlu0 %35
  %v37 = vsel %vm30, %v26, 0.0
  %38 = vadd.xlane.f32.xlu0 %v37
  %v39 = vpop.xlane.xlu0 %38
  %v40 = vsel %vm30, %v27, 0.0
  %41 = vadd.xlane.f32.xlu0 %v40
  %v42 = vpop.xlane.xlu0 %41
  %v43 = vrcp.pop 32.0
  %v44 = vmul.f32 %v33, %v43
  %v45 = vmul.f32 %v36, %v43
  %v46 = vmul.f32 %v39, %v43
  %v47 = vmul.f32 %v42, %v43
  %v48 = vsub.f32 %v24, %v44
  %v49 = vsub.f32 %v25, %v45
  %v50 = vsub.f32 %v26, %v46
  %v51 = vsub.f32 %v27, %v47
  %v52 = vmul.f32 %v48, %v48
  %v53 = vmul.f32 %v49, %v49
  %v54 = vmul.f32 %v50, %v50
  %v55 = vmul.f32 %v51, %v51
  %v56 = vsel %vm30, %v52, 0.0
  %57 = vadd.xlane.f32.xlu0 %v56
  %v58 = vpop.xlane.xlu0 %57
  %v59 = vsel %vm30, %v53, 0.0
  %60 = vadd.xlane.f32.xlu0 %v59
  %v61 = vpop.xlane.xlu0 %60
  %v62 = vsel %vm30, %v54, 0.0
  %63 = vadd.xlane.f32.xlu0 %v62
  %v64 = vpop.xlane.xlu0 %63
  %v65 = vsel %vm30, %v55, 0.0
  %66 = vadd.xlane.f32.xlu0 %v65
  %v67 = vpop.xlane.xlu0 %66
  %v68 = vmul.f32 %v58, %v43
  %v69 = vmul.f32 %v61, %v43
  %v70 = vmul.f32 %v64, %v43
  %v71 = vmul.f32 %v67, %v43
  %v72 = vadd.f32 %v68, 1e-05
  %v73 = vadd.f32 %v69, 1e-05
  %v74 = vadd.f32 %v70, 1e-05
  %v75 = vadd.f32 %v71, 1e-05
  %v76 = vrsqrt.pop %v72
  %v77 = vrsqrt.pop %v73
  %v78 = vrsqrt.pop %v74
  %v79 = vrsqrt.pop %v75
  %v80 = vmul.f32 %v48, %v76
  %v81 = vmul.f32 %v49, %v77
  %v82 = vmul.f32 %v50, %v78
  %v83 = vmul.f32 %v51, %v79
  %v85 = vlaneseq
  %v86 = vshrl.u32 %v85, 7
  %v87 = vsub.s32 0, %v86
  %v88 = vrot.slane %v28, %v87
  %v90 = vmul.f32 %v80, %v88
  %v91 = vmul.f32 %v81, %v88
  %v92 = vmul.f32 %v82, %v88
  %v93 = vmul.f32 %v83, %v88
  %v95 = vlaneseq
  %v96 = vshrl.u32 %v95, 7
  %v97 = vsub.s32 0, %v96
  %v98 = vrot.slane %v29, %v97
  %v100 = vadd.f32 %v90, %v98
  %v101 = vadd.f32 %v91, %v98
  %v102 = vadd.f32 %v92, %v98
  %v103 = vadd.f32 %v93, %v98
  %v104 = vld [vmem:[%s3] sm:$0xff]
  %v105 = vld [vmem:[%s3 + $0x8] sm:$0xff]
  %v106 = vld [vmem:[%s3 + $0x10] sm:$0xff]
  %v107 = vld [vmem:[%s3 + $0x18] sm:$0xff]
  %v108 = vld [vmem:[%s3 + $0x20] sm:$0xff]
  %v109 = vld [vmem:[%s3 + $0x28] sm:$0xff]
  %v110 = vld [vmem:[%s3 + $0x30] sm:$0xff]
  %v111 = vld [vmem:[%s3 + $0x38] sm:$0xff]
  %v112 = vpack.c.bf16 %v101, %v100
  %v113 = vpack.c.bf16 %v103, %v102
  %v122 = vunpack.c.l.b16 %v104
  %v123 = vunpack.c.h.b16 %v104
  %v124 = vunpack.c.l.b16 %v105
  %v125 = vunpack.c.h.b16 %v105
  %v126 = vunpack.c.l.b16 %v106
  %v127 = vunpack.c.h.b16 %v106
  %v128 = vunpack.c.l.b16 %v107
  %v129 = vunpack.c.h.b16 %v107
  %v130 = vunpack.c.l.b16 %v108
  %v131 = vunpack.c.h.b16 %v108
  %v132 = vunpack.c.l.b16 %v109
  %v133 = vunpack.c.h.b16 %v109
  %v134 = vunpack.c.l.b16 %v110
  %v135 = vunpack.c.h.b16 %v110
  %v136 = vunpack.c.l.b16 %v111
  %v137 = vunpack.c.h.b16 %v111
  %v138 = vpack.c.b16 %v126, %v122
  %v139 = vpack.c.b16 %v127, %v123
  %v140 = vpack.c.b16 %v128, %v124
  %v141 = vpack.c.b16 %v129, %v125
  %v142 = vpack.c.b16 %v134, %v130
  %v143 = vpack.c.b16 %v135, %v131
  %v144 = vpack.c.b16 %v136, %v132
  %v145 = vpack.c.b16 %v137, %v133
  %v155 = vsel %vm30, %v112, 0
  %v158 = vsel %vm30, %v113, 0
  %160 = vmatprep.subr.bf16.mxu0 %v139
  %161 = vmatpush1.bf16.msra.mxu0 %v138
  %162 = vmatprep.subr.bf16.mxu0 %v143
  %163 = vmatpush1.bf16.msra.mxu0 %v142
  %164 = vmatprep.subr.bf16.mxu0 0
  %165 = vmatpush1.bf16.msra.mxu0 0
  %166 = vmatprep.subr.bf16.mxu0 0
  %167 = vmatpush1.bf16.msra.mxu0 0
  %168 = vmatprep.subr.bf16.mxu0 0
  %169 = vmatpush1.bf16.msra.mxu0 0
  %170 = vmatprep.subr.bf16.mxu0 0
  %171 = vmatpush1.bf16.msra.mxu0 0
  %172 = vmatprep.subr.bf16.mxu0 0
  %173 = vmatpush1.bf16.msra.mxu0 0
  %174 = vmatprep.subr.bf16.mxu0 0
  %175 = vmatpush1.bf16.msra.mxu0 0
  %176 = vmatprep.subr.bf16.mxu0 0
  %177 = vmatpush1.bf16.msra.mxu0 0
  %178 = vmatprep.subr.bf16.mxu0 0
  %179 = vmatpush1.bf16.msra.mxu0 0
  %180 = vmatprep.subr.bf16.mxu0 0
  %181 = vmatpush1.bf16.msra.mxu0 0
  %182 = vmatprep.subr.bf16.mxu0 0
  %183 = vmatpush1.bf16.msra.mxu0 0
  %184 = vmatprep.subr.bf16.mxu0 0
  %185 = vmatpush1.bf16.msra.mxu0 0
  %186 = vmatprep.subr.bf16.mxu0 0
  %187 = vmatpush1.bf16.msra.mxu0 0
  %188 = vmatprep.subr.bf16.mxu0 0
  %189 = vmatpush1.bf16.msra.mxu0 0
  %190 = vmatprep.subr.bf16.mxu0 0
  %191 = vmatpush1.bf16.msra.mxu0 0
  %192 = vmatprep.mubr.bf16.mxu0 0
  %193 = vmatmul.mubr.bf16.gmra.mrb[0].mxu0 %v155
  %v194 = vpop.f32.mrb[0].mxu0
  %v195 = vadd.f32 0.0, %v194
  %v196 = vpop.f32.mrb[0].mxu0
  %v197 = vadd.f32 0.0, %v196
  %v198 = vpop.f32.mrb[0].mxu0
  %v199 = vadd.f32 0.0, %v198
  %v200 = vpop.f32.mrb[0].mxu0
  %v201 = vadd.f32 0.0, %v200
  %202 = vmatprep.mubr.bf16.mxu0 0
  %203 = vmatmul.mubr.bf16.gmra.mrb[0].mxu0 %v158
  %v204 = vpop.f32.mrb[0].mxu0
  %v205 = vadd.f32 0.0, %v204
  %v206 = vpop.f32.mrb[0].mxu0
  %v207 = vadd.f32 0.0, %v206
  %v208 = vpop.f32.mrb[0].mxu0
  %v209 = vadd.f32 0.0, %v208
  %v210 = vpop.f32.mrb[0].mxu0
  %v211 = vadd.f32 0.0, %v210
  %212 = vdwg.mxu0
  %213 = vmatprep.subr.bf16.mxu0 %v141
  %214 = vmatpush1.bf16.msra.mxu0 %v140
  %215 = vmatprep.subr.bf16.mxu0 %v145
  %216 = vmatpush1.bf16.msra.mxu0 %v144
  %217 = vmatprep.subr.bf16.mxu0 0
  %218 = vmatpush1.bf16.msra.mxu0 0
  %219 = vmatprep.subr.bf16.mxu0 0
  %220 = vmatpush1.bf16.msra.mxu0 0
  %221 = vmatprep.subr.bf16.mxu0 0
  %222 = vmatpush1.bf16.msra.mxu0 0
  %223 = vmatprep.subr.bf16.mxu0 0
  %224 = vmatpush1.bf16.msra.mxu0 0
  %225 = vmatprep.subr.bf16.mxu0 0
  %226 = vmatpush1.bf16.msra.mxu0 0
  %227 = vmatprep.subr.bf16.mxu0 0
  %228 = vmatpush1.bf16.msra.mxu0 0
  %229 = vmatprep.subr.bf16.mxu0 0
  %230 = vmatpush1.bf16.msra.mxu0 0
  %231 = vmatprep.subr.bf16.mxu0 0
  %232 = vmatpush1.bf16.msra.mxu0 0
  %233 = vmatprep.subr.bf16.mxu0 0
  %234 = vmatpush1.bf16.msra.mxu0 0
  %235 = vmatprep.subr.bf16.mxu0 0
  %236 = vmatpush1.bf16.msra.mxu0 0
  %237 = vmatprep.subr.bf16.mxu0 0
  %238 = vmatpush1.bf16.msra.mxu0 0
  %239 = vmatprep.subr.bf16.mxu0 0
  %240 = vmatpush1.bf16.msra.mxu0 0
  %241 = vmatprep.subr.bf16.mxu0 0
  %242 = vmatpush1.bf16.msra.mxu0 0
  %243 = vmatprep.subr.bf16.mxu0 0
  %244 = vmatpush1.bf16.msra.mxu0 0
  %245 = vmatprep.mubr.bf16.mxu0 0
  %246 = vmatmul.mubr.bf16.gmra.mrb[0].mxu0 %v155
  %v247 = vpop.f32.mrb[0].mxu0
  %v248 = vadd.f32 0.0, %v247
  %v249 = vpop.f32.mrb[0].mxu0
  %v250 = vadd.f32 0.0, %v249
  %v251 = vpop.f32.mrb[0].mxu0
  %v252 = vadd.f32 0.0, %v251
  %v253 = vpop.f32.mrb[0].mxu0
  %v254 = vadd.f32 0.0, %v253
  %255 = vmatprep.mubr.bf16.mxu0 0
  %256 = vmatmul.mubr.bf16.gmra.mrb[0].mxu0 %v158
  %v257 = vpop.f32.mrb[0].mxu0
  %v258 = vadd.f32 0.0, %v257
  %v259 = vpop.f32.mrb[0].mxu0
  %v260 = vadd.f32 0.0, %v259
  %v261 = vpop.f32.mrb[0].mxu0
  %v262 = vadd.f32 0.0, %v261
  %v263 = vpop.f32.mrb[0].mxu0
  %v264 = vadd.f32 0.0, %v263
  %265 = vdwg.mxu0
  %v266 = vld [vmem:[%s4] sm:$0x1]
  %v267 = vld [vmem:[%s5] sm:$0x1]
  %v268 = vsel %vm30, %v195, 0.0
  %269 = vadd.xlane.f32.xlu0 %v268
  %v270 = vpop.xlane.xlu0 %269
  %v271 = vsel %vm30, %v199, 0.0
  %272 = vadd.xlane.f32.xlu0 %v271
  %v273 = vpop.xlane.xlu0 %272
  %v274 = vsel %vm30, %v205, 0.0
  %275 = vadd.xlane.f32.xlu0 %v274
  %v276 = vpop.xlane.xlu0 %275
  %v277 = vsel %vm30, %v209, 0.0
  %278 = vadd.xlane.f32.xlu0 %v277
  %v279 = vpop.xlane.xlu0 %278
  %v280 = vmul.f32 %v270, %v43
  %v281 = vmul.f32 %v273, %v43
  %v282 = vmul.f32 %v276, %v43
  %v283 = vmul.f32 %v279, %v43
  %v284 = vsub.f32 %v195, %v280
  %v285 = vsub.f32 %v199, %v281
  %v286 = vsub.f32 %v205, %v282
  %v287 = vsub.f32 %v209, %v283
  %v288 = vmul.f32 %v284, %v284
  %v289 = vmul.f32 %v285, %v285
  %v290 = vmul.f32 %v286, %v286
  %v291 = vmul.f32 %v287, %v287
  %v292 = vsel %vm30, %v288, 0.0
  %293 = vadd.xlane.f32.xlu0 %v292
  %v294 = vpop.xlane.xlu0 %293
  %v295 = vsel %vm30, %v289, 0.0
  %296 = vadd.xlane.f32.xlu0 %v295
  %v297 = vpop.xlane.xlu0 %296
  %v298 = vsel %vm30, %v290, 0.0
  %299 = vadd.xlane.f32.xlu0 %v298
  %v300 = vpop.xlane.xlu0 %299
  %v301 = vsel %vm30, %v291, 0.0
  %302 = vadd.xlane.f32.xlu0 %v301
  %v303 = vpop.xlane.xlu0 %302
  %v304 = vmul.f32 %v294, %v43
  %v305 = vmul.f32 %v297, %v43
  %v306 = vmul.f32 %v300, %v43
  %v307 = vmul.f32 %v303, %v43
  %v308 = vadd.f32 %v304, 1e-05
  %v309 = vadd.f32 %v305, 1e-05
  %v310 = vadd.f32 %v306, 1e-05
  %v311 = vadd.f32 %v307, 1e-05
  %v312 = vrsqrt.pop %v308
  %v313 = vrsqrt.pop %v309
  %v314 = vrsqrt.pop %v310
  %v315 = vrsqrt.pop %v311
  %v316 = vmul.f32 %v284, %v312
  %v317 = vmul.f32 %v285, %v313
  %v318 = vmul.f32 %v286, %v314
  %v319 = vmul.f32 %v287, %v315
  %v321 = vlaneseq
  %v322 = vshrl.u32 %v321, 7
  %v323 = vsub.s32 0, %v322
  %v324 = vrot.slane %v266, %v323
  %v326 = vmul.f32 %v316, %v324
  %v327 = vmul.f32 %v317, %v324
  %v328 = vmul.f32 %v318, %v324
  %v329 = vmul.f32 %v319, %v324
  %v331 = vlaneseq
  %v332 = vshrl.u32 %v331, 7
  %v333 = vsub.s32 0, %v332
  %v334 = vrot.slane %v267, %v333
  %v336 = vadd.f32 %v326, %v334
  %v337 = vadd.f32 %v327, %v334
  %v338 = vadd.f32 %v328, %v334
  %v339 = vadd.f32 %v329, %v334
  %344 = vrot.lane.b32.xlu0 %v195, 96
  %v345 = vpop.permute.xlu0 %344
  %346 = vrot.lane.b32.xlu0 %v199, 96
  %v347 = vpop.permute.xlu0 %346
  %348 = vrot.lane.b32.xlu0 %v205, 96
  %v349 = vpop.permute.xlu0 %348
  %350 = vrot.lane.b32.xlu0 %v209, 96
  %v351 = vpop.permute.xlu0 %350
  %v356 = vsel %vm30, %v345, 0.0
  %357 = vadd.xlane.f32.xlu0 %v356
  %v358 = vpop.xlane.xlu0 %357
  %v359 = vsel %vm30, %v347, 0.0
  %360 = vadd.xlane.f32.xlu0 %v359
  %v361 = vpop.xlane.xlu0 %360
  %v362 = vsel %vm30, %v349, 0.0
  %363 = vadd.xlane.f32.xlu0 %v362
  %v364 = vpop.xlane.xlu0 %363
  %v365 = vsel %vm30, %v351, 0.0
  %366 = vadd.xlane.f32.xlu0 %v365
  %v367 = vpop.xlane.xlu0 %366
  %v368 = vmul.f32 %v358, %v43
  %v369 = vmul.f32 %v361, %v43
  %v370 = vmul.f32 %v364, %v43
  %v371 = vmul.f32 %v367, %v43
  %v372 = vsub.f32 %v195, %v368
  %v373 = vsub.f32 %v199, %v369
  %v374 = vsub.f32 %v205, %v370
  %v375 = vsub.f32 %v209, %v371
  %v376 = vmul.f32 %v372, %v372
  %v377 = vmul.f32 %v373, %v373
  %v378 = vmul.f32 %v374, %v374
  %v379 = vmul.f32 %v375, %v375
  %384 = vrot.lane.b32.xlu0 %v376, 96
  %v385 = vpop.permute.xlu0 %384
  %386 = vrot.lane.b32.xlu0 %v377, 96
  %v387 = vpop.permute.xlu0 %386
  %388 = vrot.lane.b32.xlu0 %v378, 96
  %v389 = vpop.permute.xlu0 %388
  %390 = vrot.lane.b32.xlu0 %v379, 96
  %v391 = vpop.permute.xlu0 %390
  %v396 = vsel %vm30, %v385, 0.0
  %397 = vadd.xlane.f32.xlu0 %v396
  %v398 = vpop.xlane.xlu0 %397
  %v399 = vsel %vm30, %v387, 0.0
  %400 = vadd.xlane.f32.xlu0 %v399
  %v401 = vpop.xlane.xlu0 %400
  %v402 = vsel %vm30, %v389, 0.0
  %403 = vadd.xlane.f32.xlu0 %v402
  %v404 = vpop.xlane.xlu0 %403
  %v405 = vsel %vm30, %v391, 0.0
  %406 = vadd.xlane.f32.xlu0 %v405
  %v407 = vpop.xlane.xlu0 %406
  %v408 = vmul.f32 %v398, %v43
  %v409 = vmul.f32 %v401, %v43
  %v410 = vmul.f32 %v404, %v43
  %v411 = vmul.f32 %v407, %v43
  %v412 = vadd.f32 %v408, 1e-05
  %v413 = vadd.f32 %v409, 1e-05
  %v414 = vadd.f32 %v410, 1e-05
  %v415 = vadd.f32 %v411, 1e-05
  %v416 = vrsqrt.pop %v412
  %v417 = vrsqrt.pop %v413
  %v418 = vrsqrt.pop %v414
  %v419 = vrsqrt.pop %v415
  %v420 = vmul.f32 %v372, %v416
  %v421 = vmul.f32 %v373, %v417
  %v422 = vmul.f32 %v374, %v418
  %v423 = vmul.f32 %v375, %v419
  %424 = vrot.lane.b32.xlu0 %v324, 32
  %v425 = vpop.permute.xlu0 %424
  %v427 = vmul.f32 %v420, %v425
  %v428 = vmul.f32 %v421, %v425
  %v429 = vmul.f32 %v422, %v425
  %v430 = vmul.f32 %v423, %v425
  %431 = vrot.lane.b32.xlu0 %v334, 32
  %v432 = vpop.permute.xlu0 %431
  %v434 = vadd.f32 %v427, %v432
  %v435 = vadd.f32 %v428, %v432
  %v436 = vadd.f32 %v429, %v432
  %v437 = vadd.f32 %v430, %v432
  %438 = vrot.lane.b32.xlu0 %v195, 64
  %v439 = vpop.permute.xlu0 %438
  %440 = vrot.lane.b32.xlu0 %v199, 64
  %v441 = vpop.permute.xlu0 %440
  %442 = vrot.lane.b32.xlu0 %v205, 64
  %v443 = vpop.permute.xlu0 %442
  %444 = vrot.lane.b32.xlu0 %v209, 64
  %v445 = vpop.permute.xlu0 %444
  %v450 = vsel %vm30, %v439, 0.0
  %451 = vadd.xlane.f32.xlu0 %v450
  %v452 = vpop.xlane.xlu0 %451
  %v453 = vsel %vm30, %v441, 0.0
  %454 = vadd.xlane.f32.xlu0 %v453
  %v455 = vpop.xlane.xlu0 %454
  %v456 = vsel %vm30, %v443, 0.0
  %457 = vadd.xlane.f32.xlu0 %v456
  %v458 = vpop.xlane.xlu0 %457
  %v459 = vsel %vm30, %v445, 0.0
  %460 = vadd.xlane.f32.xlu0 %v459
  %v461 = vpop.xlane.xlu0 %460
  %v462 = vmul.f32 %v452, %v43
  %v463 = vmul.f32 %v455, %v43
  %v464 = vmul.f32 %v458, %v43
  %v465 = vmul.f32 %v461, %v43
  %v466 = vsub.f32 %v195, %v462
  %v467 = vsub.f32 %v199, %v463
  %v468 = vsub.f32 %v205, %v464
  %v469 = vsub.f32 %v209, %v465
  %v470 = vmul.f32 %v466, %v466
  %v471 = vmul.f32 %v467, %v467
  %v472 = vmul.f32 %v468, %v468
  %v473 = vmul.f32 %v469, %v469
  %478 = vrot.lane.b32.xlu0 %v470, 64
  %v479 = vpop.permute.xlu0 %478
  %480 = vrot.lane.b32.xlu0 %v471, 64
  %v481 = vpop.permute.xlu0 %480
  %482 = vrot.lane.b32.xlu0 %v472, 64
  %v483 = vpop.permute.xlu0 %482
  %484 = vrot.lane.b32.xlu0 %v473, 64
  %v485 = vpop.permute.xlu0 %484
  %v490 = vsel %vm30, %v479, 0.0
  %491 = vadd.xlane.f32.xlu0 %v490
  %v492 = vpop.xlane.xlu0 %491
  %v493 = vsel %vm30, %v481, 0.0
  %494 = vadd.xlane.f32.xlu0 %v493
  %v495 = vpop.xlane.xlu0 %494
  %v496 = vsel %vm30, %v483, 0.0
  %497 = vadd.xlane.f32.xlu0 %v496
  %v498 = vpop.xlane.xlu0 %497
  %v499 = vsel %vm30, %v485, 0.0
  %500 = vadd.xlane.f32.xlu0 %v499
  %v501 = vpop.xlane.xlu0 %500
  %v502 = vmul.f32 %v492, %v43
  %v503 = vmul.f32 %v495, %v43
  %v504 = vmul.f32 %v498, %v43
  %v505 = vmul.f32 %v501, %v43
  %v506 = vadd.f32 %v502, 1e-05
  %v507 = vadd.f32 %v503, 1e-05
  %v508 = vadd.f32 %v504, 1e-05
  %v509 = vadd.f32 %v505, 1e-05
  %v510 = vrsqrt.pop %v506
  %v511 = vrsqrt.pop %v507
  %v512 = vrsqrt.pop %v508
  %v513 = vrsqrt.pop %v509
  %v514 = vmul.f32 %v466, %v510
  %v515 = vmul.f32 %v467, %v511
  %v516 = vmul.f32 %v468, %v512
  %v517 = vmul.f32 %v469, %v513
  %518 = vrot.lane.b32.xlu0 %v324, 64
  %v519 = vpop.permute.xlu0 %518
  %v521 = vmul.f32 %v514, %v519
  %v522 = vmul.f32 %v515, %v519
  %v523 = vmul.f32 %v516, %v519
  %v524 = vmul.f32 %v517, %v519
  %525 = vrot.lane.b32.xlu0 %v334, 64
  %v526 = vpop.permute.xlu0 %525
  %v528 = vadd.f32 %v521, %v526
  %v529 = vadd.f32 %v522, %v526
  %v530 = vadd.f32 %v523, %v526
  %v531 = vadd.f32 %v524, %v526
  %532 = vrot.lane.b32.xlu0 %v195, 32
  %v533 = vpop.permute.xlu0 %532
  %534 = vrot.lane.b32.xlu0 %v199, 32
  %v535 = vpop.permute.xlu0 %534
  %536 = vrot.lane.b32.xlu0 %v205, 32
  %v537 = vpop.permute.xlu0 %536
  %538 = vrot.lane.b32.xlu0 %v209, 32
  %v539 = vpop.permute.xlu0 %538
  %v544 = vsel %vm30, %v533, 0.0
  %545 = vadd.xlane.f32.xlu0 %v544
  %v546 = vpop.xlane.xlu0 %545
  %v547 = vsel %vm30, %v535, 0.0
  %548 = vadd.xlane.f32.xlu0 %v547
  %v549 = vpop.xlane.xlu0 %548
  %v550 = vsel %vm30, %v537, 0.0
  %551 = vadd.xlane.f32.xlu0 %v550
  %v552 = vpop.xlane.xlu0 %551
  %v553 = vsel %vm30, %v539, 0.0
  %554 = vadd.xlane.f32.xlu0 %v553
  %v555 = vpop.xlane.xlu0 %554
  %v556 = vmul.f32 %v546, %v43
  %v557 = vmul.f32 %v549, %v43
  %v558 = vmul.f32 %v552, %v43
  %v559 = vmul.f32 %v555, %v43
  %v560 = vsub.f32 %v195, %v556
  %v561 = vsub.f32 %v199, %v557
  %v562 = vsub.f32 %v205, %v558
  %v563 = vsub.f32 %v209, %v559
  %v564 = vmul.f32 %v560, %v560
  %v565 = vmul.f32 %v561, %v561
  %v566 = vmul.f32 %v562, %v562
  %v567 = vmul.f32 %v563, %v563
  %572 = vrot.lane.b32.xlu0 %v564, 32
  %v573 = vpop.permute.xlu0 %572
  %574 = vrot.lane.b32.xlu0 %v565, 32
  %v575 = vpop.permute.xlu0 %574
  %576 = vrot.lane.b32.xlu0 %v566, 32
  %v577 = vpop.permute.xlu0 %576
  %578 = vrot.lane.b32.xlu0 %v567, 32
  %v579 = vpop.permute.xlu0 %578
  %v584 = vsel %vm30, %v573, 0.0
  %585 = vadd.xlane.f32.xlu0 %v584
  %v586 = vpop.xlane.xlu0 %585
  %v587 = vsel %vm30, %v575, 0.0
  %588 = vadd.xlane.f32.xlu0 %v587
  %v589 = vpop.xlane.xlu0 %588
  %v590 = vsel %vm30, %v577, 0.0
  %591 = vadd.xlane.f32.xlu0 %v590
  %v592 = vpop.xlane.xlu0 %591
  %v593 = vsel %vm30, %v579, 0.0
  %594 = vadd.xlane.f32.xlu0 %v593
  %v595 = vpop.xlane.xlu0 %594
  %v596 = vmul.f32 %v586, %v43
  %v597 = vmul.f32 %v589, %v43
  %v598 = vmul.f32 %v592, %v43
  %v599 = vmul.f32 %v595, %v43
  %v600 = vadd.f32 %v596, 1e-05
  %v601 = vadd.f32 %v597, 1e-05
  %v602 = vadd.f32 %v598, 1e-05
  %v603 = vadd.f32 %v599, 1e-05
  %v604 = vrsqrt.pop %v600
  %v605 = vrsqrt.pop %v601
  %v606 = vrsqrt.pop %v602
  %v607 = vrsqrt.pop %v603
  %v608 = vmul.f32 %v560, %v604
  %v609 = vmul.f32 %v561, %v605
  %v610 = vmul.f32 %v562, %v606
  %v611 = vmul.f32 %v563, %v607
  %612 = vrot.lane.b32.xlu0 %v324, 96
  %v613 = vpop.permute.xlu0 %612
  %v615 = vmul.f32 %v608, %v613
  %v616 = vmul.f32 %v609, %v613
  %v617 = vmul.f32 %v610, %v613
  %v618 = vmul.f32 %v611, %v613
  %619 = vrot.lane.b32.xlu0 %v334, 96
  %v620 = vpop.permute.xlu0 %619
  %v622 = vadd.f32 %v615, %v620
  %v623 = vadd.f32 %v616, %v620
  %v624 = vadd.f32 %v617, %v620
  %v625 = vadd.f32 %v618, %v620
  %v626 = vsel %vm30, %v197, 0.0
  %627 = vadd.xlane.f32.xlu0 %v626
  %v628 = vpop.xlane.xlu0 %627
  %v629 = vsel %vm30, %v201, 0.0
  %630 = vadd.xlane.f32.xlu0 %v629
  %v631 = vpop.xlane.xlu0 %630
  %v632 = vsel %vm30, %v207, 0.0
  %633 = vadd.xlane.f32.xlu0 %v632
  %v634 = vpop.xlane.xlu0 %633
  %v635 = vsel %vm30, %v211, 0.0
  %636 = vadd.xlane.f32.xlu0 %v635
  %v637 = vpop.xlane.xlu0 %636
  %v638 = vmul.f32 %v628, %v43
  %v639 = vmul.f32 %v631, %v43
  %v640 = vmul.f32 %v634, %v43
  %v641 = vmul.f32 %v637, %v43
  %v642 = vsub.f32 %v197, %v638
  %v643 = vsub.f32 %v201, %v639
  %v644 = vsub.f32 %v207, %v640
  %v645 = vsub.f32 %v211, %v641
  %v646 = vmul.f32 %v642, %v642
  %v647 = vmul.f32 %v643, %v643
  %v648 = vmul.f32 %v644, %v644
  %v649 = vmul.f32 %v645, %v645
  %v650 = vsel %vm30, %v646, 0.0
  %651 = vadd.xlane.f32.xlu0 %v650
  %v652 = vpop.xlane.xlu0 %651
  %v653 = vsel %vm30, %v647, 0.0
  %654 = vadd.xlane.f32.xlu0 %v653
  %v655 = vpop.xlane.xlu0 %654
  %v656 = vsel %vm30, %v648, 0.0
  %657 = vadd.xlane.f32.xlu0 %v656
  %v658 = vpop.xlane.xlu0 %657
  %v659 = vsel %vm30, %v649, 0.0
  %660 = vadd.xlane.f32.xlu0 %v659
  %v661 = vpop.xlane.xlu0 %660
  %v662 = vmul.f32 %v652, %v43
  %v663 = vmul.f32 %v655, %v43
  %v664 = vmul.f32 %v658, %v43
  %v665 = vmul.f32 %v661, %v43
  %v666 = vadd.f32 %v662, 1e-05
  %v667 = vadd.f32 %v663, 1e-05
  %v668 = vadd.f32 %v664, 1e-05
  %v669 = vadd.f32 %v665, 1e-05
  %v670 = vrsqrt.pop %v666
  %v671 = vrsqrt.pop %v667
  %v672 = vrsqrt.pop %v668
  %v673 = vrsqrt.pop %v669
  %v674 = vmul.f32 %v642, %v670
  %v675 = vmul.f32 %v643, %v671
  %v676 = vmul.f32 %v644, %v672
  %v677 = vmul.f32 %v645, %v673
  %v678 = vmul.f32 %v674, %v324
  %v679 = vmul.f32 %v675, %v324
  %v680 = vmul.f32 %v676, %v324
  %v681 = vmul.f32 %v677, %v324
  %v682 = vadd.f32 %v678, %v334
  %v683 = vadd.f32 %v679, %v334
  %v684 = vadd.f32 %v680, %v334
  %v685 = vadd.f32 %v681, %v334
  %690 = vrot.lane.b32.xlu0 %v197, 96
  %v691 = vpop.permute.xlu0 %690
  %692 = vrot.lane.b32.xlu0 %v201, 96
  %v693 = vpop.permute.xlu0 %692
  %694 = vrot.lane.b32.xlu0 %v207, 96
  %v695 = vpop.permute.xlu0 %694
  %696 = vrot.lane.b32.xlu0 %v211, 96
  %v697 = vpop.permute.xlu0 %696
  %v702 = vsel %vm30, %v691, 0.0
  %703 = vadd.xlane.f32.xlu0 %v702
  %v704 = vpop.xlane.xlu0 %703
  %v705 = vsel %vm30, %v693, 0.0
  %706 = vadd.xlane.f32.xlu0 %v705
  %v707 = vpop.xlane.xlu0 %706
  %v708 = vsel %vm30, %v695, 0.0
  %709 = vadd.xlane.f32.xlu0 %v708
  %v710 = vpop.xlane.xlu0 %709
  %v711 = vsel %vm30, %v697, 0.0
  %712 = vadd.xlane.f32.xlu0 %v711
  %v713 = vpop.xlane.xlu0 %712
  %v714 = vmul.f32 %v704, %v43
  %v715 = vmul.f32 %v707, %v43
  %v716 = vmul.f32 %v710, %v43
  %v717 = vmul.f32 %v713, %v43
  %v718 = vsub.f32 %v197, %v714
  %v719 = vsub.f32 %v201, %v715
  %v720 = vsub.f32 %v207, %v716
  %v721 = vsub.f32 %v211, %v717
  %v722 = vmul.f32 %v718, %v718
  %v723 = vmul.f32 %v719, %v719
  %v724 = vmul.f32 %v720, %v720
  %v725 = vmul.f32 %v721, %v721
  %730 = vrot.lane.b32.xlu0 %v722, 96
  %v731 = vpop.permute.xlu0 %730
  %732 = vrot.lane.b32.xlu0 %v723, 96
  %v733 = vpop.permute.xlu0 %732
  %734 = vrot.lane.b32.xlu0 %v724, 96
  %v735 = vpop.permute.xlu0 %734
  %736 = vrot.lane.b32.xlu0 %v725, 96
  %v737 = vpop.permute.xlu0 %736
  %v742 = vsel %vm30, %v731, 0.0
  %743 = vadd.xlane.f32.xlu0 %v742
  %v744 = vpop.xlane.xlu0 %743
  %v745 = vsel %vm30, %v733, 0.0
  %746 = vadd.xlane.f32.xlu0 %v745
  %v747 = vpop.xlane.xlu0 %746
  %v748 = vsel %vm30, %v735, 0.0
  %749 = vadd.xlane.f32.xlu0 %v748
  %v750 = vpop.xlane.xlu0 %749
  %v751 = vsel %vm30, %v737, 0.0
  %752 = vadd.xlane.f32.xlu0 %v751
  %v753 = vpop.xlane.xlu0 %752
  %v754 = vmul.f32 %v744, %v43
  %v755 = vmul.f32 %v747, %v43
  %v756 = vmul.f32 %v750, %v43
  %v757 = vmul.f32 %v753, %v43
  %v758 = vadd.f32 %v754, 1e-05
  %v759 = vadd.f32 %v755, 1e-05
  %v760 = vadd.f32 %v756, 1e-05
  %v761 = vadd.f32 %v757, 1e-05
  %v762 = vrsqrt.pop %v758
  %v763 = vrsqrt.pop %v759
  %v764 = vrsqrt.pop %v760
  %v765 = vrsqrt.pop %v761
  %v766 = vmul.f32 %v718, %v762
  %v767 = vmul.f32 %v719, %v763
  %v768 = vmul.f32 %v720, %v764
  %v769 = vmul.f32 %v721, %v765
  %v770 = vmul.f32 %v766, %v425
  %v771 = vmul.f32 %v767, %v425
  %v772 = vmul.f32 %v768, %v425
  %v773 = vmul.f32 %v769, %v425
  %v774 = vadd.f32 %v770, %v432
  %v775 = vadd.f32 %v771, %v432
  %v776 = vadd.f32 %v772, %v432
  %v777 = vadd.f32 %v773, %v432
  %778 = vrot.lane.b32.xlu0 %v197, 64
  %v779 = vpop.permute.xlu0 %778
  %780 = vrot.lane.b32.xlu0 %v201, 64
  %v781 = vpop.permute.xlu0 %780
  %782 = vrot.lane.b32.xlu0 %v207, 64
  %v783 = vpop.permute.xlu0 %782
  %784 = vrot.lane.b32.xlu0 %v211, 64
  %v785 = vpop.permute.xlu0 %784
  %v790 = vsel %vm30, %v779, 0.0
  %791 = vadd.xlane.f32.xlu0 %v790
  %v792 = vpop.xlane.xlu0 %791
  %v793 = vsel %vm30, %v781, 0.0
  %794 = vadd.xlane.f32.xlu0 %v793
  %v795 = vpop.xlane.xlu0 %794
  %v796 = vsel %vm30, %v783, 0.0
  %797 = vadd.xlane.f32.xlu0 %v796
  %v798 = vpop.xlane.xlu0 %797
  %v799 = vsel %vm30, %v785, 0.0
  %800 = vadd.xlane.f32.xlu0 %v799
  %v801 = vpop.xlane.xlu0 %800
  %v802 = vmul.f32 %v792, %v43
  %v803 = vmul.f32 %v795, %v43
  %v804 = vmul.f32 %v798, %v43
  %v805 = vmul.f32 %v801, %v43
  %v806 = vsub.f32 %v197, %v802
  %v807 = vsub.f32 %v201, %v803
  %v808 = vsub.f32 %v207, %v804
  %v809 = vsub.f32 %v211, %v805
  %v810 = vmul.f32 %v806, %v806
  %v811 = vmul.f32 %v807, %v807
  %v812 = vmul.f32 %v808, %v808
  %v813 = vmul.f32 %v809, %v809
  %818 = vrot.lane.b32.xlu0 %v810, 64
  %v819 = vpop.permute.xlu0 %818
  %820 = vrot.lane.b32.xlu0 %v811, 64
  %v821 = vpop.permute.xlu0 %820
  %822 = vrot.lane.b32.xlu0 %v812, 64
  %v823 = vpop.permute.xlu0 %822
  %824 = vrot.lane.b32.xlu0 %v813, 64
  %v825 = vpop.permute.xlu0 %824
  %v830 = vsel %vm30, %v819, 0.0
  %831 = vadd.xlane.f32.xlu0 %v830
  %v832 = vpop.xlane.xlu0 %831
  %v833 = vsel %vm30, %v821, 0.0
  %834 = vadd.xlane.f32.xlu0 %v833
  %v835 = vpop.xlane.xlu0 %834
  %v836 = vsel %vm30, %v823, 0.0
  %837 = vadd.xlane.f32.xlu0 %v836
  %v838 = vpop.xlane.xlu0 %837
  %v839 = vsel %vm30, %v825, 0.0
  %840 = vadd.xlane.f32.xlu0 %v839
  %v841 = vpop.xlane.xlu0 %840
  %v842 = vmul.f32 %v832, %v43
  %v843 = vmul.f32 %v835, %v43
  %v844 = vmul.f32 %v838, %v43
  %v845 = vmul.f32 %v841, %v43
  %v846 = vadd.f32 %v842, 1e-05
  %v847 = vadd.f32 %v843, 1e-05
  %v848 = vadd.f32 %v844, 1e-05
  %v849 = vadd.f32 %v845, 1e-05
  %v850 = vrsqrt.pop %v846
  %v851 = vrsqrt.pop %v847
  %v852 = vrsqrt.pop %v848
  %v853 = vrsqrt.pop %v849
  %v854 = vmul.f32 %v806, %v850
  %v855 = vmul.f32 %v807, %v851
  %v856 = vmul.f32 %v808, %v852
  %v857 = vmul.f32 %v809, %v853
  %v858 = vmul.f32 %v854, %v519
  %v859 = vmul.f32 %v855, %v519
  %v860 = vmul.f32 %v856, %v519
  %v861 = vmul.f32 %v857, %v519
  %v862 = vadd.f32 %v858, %v526
  %v863 = vadd.f32 %v859, %v526
  %v864 = vadd.f32 %v860, %v526
  %v865 = vadd.f32 %v861, %v526
  %866 = vrot.lane.b32.xlu0 %v197, 32
  %v867 = vpop.permute.xlu0 %866
  %868 = vrot.lane.b32.xlu0 %v201, 32
  %v869 = vpop.permute.xlu0 %868
  %870 = vrot.lane.b32.xlu0 %v207, 32
  %v871 = vpop.permute.xlu0 %870
  %872 = vrot.lane.b32.xlu0 %v211, 32
  %v873 = vpop.permute.xlu0 %872
  %v878 = vsel %vm30, %v867, 0.0
  %879 = vadd.xlane.f32.xlu0 %v878
  %v880 = vpop.xlane.xlu0 %879
  %v881 = vsel %vm30, %v869, 0.0
  %882 = vadd.xlane.f32.xlu0 %v881
  %v883 = vpop.xlane.xlu0 %882
  %v884 = vsel %vm30, %v871, 0.0
  %885 = vadd.xlane.f32.xlu0 %v884
  %v886 = vpop.xlane.xlu0 %885
  %v887 = vsel %vm30, %v873, 0.0
  %888 = vadd.xlane.f32.xlu0 %v887
  %v889 = vpop.xlane.xlu0 %888
  %v890 = vmul.f32 %v880, %v43
  %v891 = vmul.f32 %v883, %v43
  %v892 = vmul.f32 %v886, %v43
  %v893 = vmul.f32 %v889, %v43
  %v894 = vsub.f32 %v197, %v890
  %v895 = vsub.f32 %v201, %v891
  %v896 = vsub.f32 %v207, %v892
  %v897 = vsub.f32 %v211, %v893
  %v898 = vmul.f32 %v894, %v894
  %v899 = vmul.f32 %v895, %v895
  %v900 = vmul.f32 %v896, %v896
  %v901 = vmul.f32 %v897, %v897
  %906 = vrot.lane.b32.xlu0 %v898, 32
  %v907 = vpop.permute.xlu0 %906
  %908 = vrot.lane.b32.xlu0 %v899, 32
  %v909 = vpop.permute.xlu0 %908
  %910 = vrot.lane.b32.xlu0 %v900, 32
  %v911 = vpop.permute.xlu0 %910
  %912 = vrot.lane.b32.xlu0 %v901, 32
  %v913 = vpop.permute.xlu0 %912
  %v918 = vsel %vm30, %v907, 0.0
  %919 = vadd.xlane.f32.xlu0 %v918
  %v920 = vpop.xlane.xlu0 %919
  %v921 = vsel %vm30, %v909, 0.0
  %922 = vadd.xlane.f32.xlu0 %v921
  %v923 = vpop.xlane.xlu0 %922
  %v924 = vsel %vm30, %v911, 0.0
  %925 = vadd.xlane.f32.xlu0 %v924
  %v926 = vpop.xlane.xlu0 %925
  %v927 = vsel %vm30, %v913, 0.0
  %928 = vadd.xlane.f32.xlu0 %v927
  %v929 = vpop.xlane.xlu0 %928
  %v930 = vmul.f32 %v920, %v43
  %v931 = vmul.f32 %v923, %v43
  %v932 = vmul.f32 %v926, %v43
  %v933 = vmul.f32 %v929, %v43
  %v934 = vadd.f32 %v930, 1e-05
  %v935 = vadd.f32 %v931, 1e-05
  %v936 = vadd.f32 %v932, 1e-05
  %v937 = vadd.f32 %v933, 1e-05
  %v938 = vrsqrt.pop %v934
  %v939 = vrsqrt.pop %v935
  %v940 = vrsqrt.pop %v936
  %v941 = vrsqrt.pop %v937
  %v942 = vmul.f32 %v894, %v938
  %v943 = vmul.f32 %v895, %v939
  %v944 = vmul.f32 %v896, %v940
  %v945 = vmul.f32 %v897, %v941
  %v946 = vmul.f32 %v942, %v613
  %v947 = vmul.f32 %v943, %v613
  %v948 = vmul.f32 %v944, %v613
  %v949 = vmul.f32 %v945, %v613
  %v950 = vadd.f32 %v946, %v620
  %v951 = vadd.f32 %v947, %v620
  %v952 = vadd.f32 %v948, %v620
  %v953 = vadd.f32 %v949, %v620
  %v954 = vsel %vm30, %v248, 0.0
  %955 = vadd.xlane.f32.xlu0 %v954
  %v956 = vpop.xlane.xlu0 %955
  %v957 = vsel %vm30, %v252, 0.0
  %958 = vadd.xlane.f32.xlu0 %v957
  %v959 = vpop.xlane.xlu0 %958
  %v960 = vsel %vm30, %v258, 0.0
  %961 = vadd.xlane.f32.xlu0 %v960
  %v962 = vpop.xlane.xlu0 %961
  %v963 = vsel %vm30, %v262, 0.0
  %964 = vadd.xlane.f32.xlu0 %v963
  %v965 = vpop.xlane.xlu0 %964
  %v966 = vmul.f32 %v956, %v43
  %v967 = vmul.f32 %v959, %v43
  %v968 = vmul.f32 %v962, %v43
  %v969 = vmul.f32 %v965, %v43
  %v970 = vsub.f32 %v248, %v966
  %v971 = vsub.f32 %v252, %v967
  %v972 = vsub.f32 %v258, %v968
  %v973 = vsub.f32 %v262, %v969
  %v974 = vmul.f32 %v970, %v970
  %v975 = vmul.f32 %v971, %v971
  %v976 = vmul.f32 %v972, %v972
  %v977 = vmul.f32 %v973, %v973
  %v978 = vsel %vm30, %v974, 0.0
  %979 = vadd.xlane.f32.xlu0 %v978
  %v980 = vpop.xlane.xlu0 %979
  %v981 = vsel %vm30, %v975, 0.0
  %982 = vadd.xlane.f32.xlu0 %v981
  %v983 = vpop.xlane.xlu0 %982
  %v984 = vsel %vm30, %v976, 0.0
  %985 = vadd.xlane.f32.xlu0 %v984
  %v986 = vpop.xlane.xlu0 %985
  %v987 = vsel %vm30, %v977, 0.0
  %988 = vadd.xlane.f32.xlu0 %v987
  %v989 = vpop.xlane.xlu0 %988
  %v990 = vmul.f32 %v980, %v43
  %v991 = vmul.f32 %v983, %v43
  %v992 = vmul.f32 %v986, %v43
  %v993 = vmul.f32 %v989, %v43
  %v994 = vadd.f32 %v990, 1e-05
  %v995 = vadd.f32 %v991, 1e-05
  %v996 = vadd.f32 %v992, 1e-05
  %v997 = vadd.f32 %v993, 1e-05
  %v998 = vrsqrt.pop %v994
  %v999 = vrsqrt.pop %v995
  %v1000 = vrsqrt.pop %v996
  %v1001 = vrsqrt.pop %v997
  %v1002 = vmul.f32 %v970, %v998
  %v1003 = vmul.f32 %v971, %v999
  %v1004 = vmul.f32 %v972, %v1000
  %v1005 = vmul.f32 %v973, %v1001
  %v1006 = vmul.f32 %v1002, %v324
  %v1007 = vmul.f32 %v1003, %v324
  %v1008 = vmul.f32 %v1004, %v324
  %v1009 = vmul.f32 %v1005, %v324
  %v1010 = vadd.f32 %v1006, %v334
  %v1011 = vadd.f32 %v1007, %v334
  %v1012 = vadd.f32 %v1008, %v334
  %v1013 = vadd.f32 %v1009, %v334
  %1018 = vrot.lane.b32.xlu0 %v248, 96
  %v1019 = vpop.permute.xlu0 %1018
  %1020 = vrot.lane.b32.xlu0 %v252, 96
  %v1021 = vpop.permute.xlu0 %1020
  %1022 = vrot.lane.b32.xlu0 %v258, 96
  %v1023 = vpop.permute.xlu0 %1022
  %1024 = vrot.lane.b32.xlu0 %v262, 96
  %v1025 = vpop.permute.xlu0 %1024
  %v1030 = vsel %vm30, %v1019, 0.0
  %1031 = vadd.xlane.f32.xlu0 %v1030
  %v1032 = vpop.xlane.xlu0 %1031
  %v1033 = vsel %vm30, %v1021, 0.0
  %1034 = vadd.xlane.f32.xlu0 %v1033
  %v1035 = vpop.xlane.xlu0 %1034
  %v1036 = vsel %vm30, %v1023, 0.0
  %1037 = vadd.xlane.f32.xlu0 %v1036
  %v1038 = vpop.xlane.xlu0 %1037
  %v1039 = vsel %vm30, %v1025, 0.0
  %1040 = vadd.xlane.f32.xlu0 %v1039
  %v1041 = vpop.xlane.xlu0 %1040
  %v1042 = vmul.f32 %v1032, %v43
  %v1043 = vmul.f32 %v1035, %v43
  %v1044 = vmul.f32 %v1038, %v43
  %v1045 = vmul.f32 %v1041, %v43
  %v1046 = vsub.f32 %v248, %v1042
  %v1047 = vsub.f32 %v252, %v1043
  %v1048 = vsub.f32 %v258, %v1044
  %v1049 = vsub.f32 %v262, %v1045
  %v1050 = vmul.f32 %v1046, %v1046
  %v1051 = vmul.f32 %v1047, %v1047
  %v1052 = vmul.f32 %v1048, %v1048
  %v1053 = vmul.f32 %v1049, %v1049
  %1058 = vrot.lane.b32.xlu0 %v1050, 96
  %v1059 = vpop.permute.xlu0 %1058
  %1060 = vrot.lane.b32.xlu0 %v1051, 96
  %v1061 = vpop.permute.xlu0 %1060
  %1062 = vrot.lane.b32.xlu0 %v1052, 96
  %v1063 = vpop.permute.xlu0 %1062
  %1064 = vrot.lane.b32.xlu0 %v1053, 96
  %v1065 = vpop.permute.xlu0 %1064
  %v1070 = vsel %vm30, %v1059, 0.0
  %1071 = vadd.xlane.f32.xlu0 %v1070
  %v1072 = vpop.xlane.xlu0 %1071
  %v1073 = vsel %vm30, %v1061, 0.0
  %1074 = vadd.xlane.f32.xlu0 %v1073
  %v1075 = vpop.xlane.xlu0 %1074
  %v1076 = vsel %vm30, %v1063, 0.0
  %1077 = vadd.xlane.f32.xlu0 %v1076
  %v1078 = vpop.xlane.xlu0 %1077
  %v1079 = vsel %vm30, %v1065, 0.0
  %1080 = vadd.xlane.f32.xlu0 %v1079
  %v1081 = vpop.xlane.xlu0 %1080
  %v1082 = vmul.f32 %v1072, %v43
  %v1083 = vmul.f32 %v1075, %v43
  %v1084 = vmul.f32 %v1078, %v43
  %v1085 = vmul.f32 %v1081, %v43
  %v1086 = vadd.f32 %v1082, 1e-05
  %v1087 = vadd.f32 %v1083, 1e-05
  %v1088 = vadd.f32 %v1084, 1e-05
  %v1089 = vadd.f32 %v1085, 1e-05
  %v1090 = vrsqrt.pop %v1086
  %v1091 = vrsqrt.pop %v1087
  %v1092 = vrsqrt.pop %v1088
  %v1093 = vrsqrt.pop %v1089
  %v1094 = vmul.f32 %v1046, %v1090
  %v1095 = vmul.f32 %v1047, %v1091
  %v1096 = vmul.f32 %v1048, %v1092
  %v1097 = vmul.f32 %v1049, %v1093
  %v1098 = vmul.f32 %v1094, %v425
  %v1099 = vmul.f32 %v1095, %v425
  %v1100 = vmul.f32 %v1096, %v425
  %v1101 = vmul.f32 %v1097, %v425
  %v1102 = vadd.f32 %v1098, %v432
  %v1103 = vadd.f32 %v1099, %v432
  %v1104 = vadd.f32 %v1100, %v432
  %v1105 = vadd.f32 %v1101, %v432
  %1106 = vrot.lane.b32.xlu0 %v248, 64
  %v1107 = vpop.permute.xlu0 %1106
  %1108 = vrot.lane.b32.xlu0 %v252, 64
  %v1109 = vpop.permute.xlu0 %1108
  %1110 = vrot.lane.b32.xlu0 %v258, 64
  %v1111 = vpop.permute.xlu0 %1110
  %1112 = vrot.lane.b32.xlu0 %v262, 64
  %v1113 = vpop.permute.xlu0 %1112
  %v1118 = vsel %vm30, %v1107, 0.0
  %1119 = vadd.xlane.f32.xlu0 %v1118
  %v1120 = vpop.xlane.xlu0 %1119
  %v1121 = vsel %vm30, %v1109, 0.0
  %1122 = vadd.xlane.f32.xlu0 %v1121
  %v1123 = vpop.xlane.xlu0 %1122
  %v1124 = vsel %vm30, %v1111, 0.0
  %1125 = vadd.xlane.f32.xlu0 %v1124
  %v1126 = vpop.xlane.xlu0 %1125
  %v1127 = vsel %vm30, %v1113, 0.0
  %1128 = vadd.xlane.f32.xlu0 %v1127
  %v1129 = vpop.xlane.xlu0 %1128
  %v1130 = vmul.f32 %v1120, %v43
  %v1131 = vmul.f32 %v1123, %v43
  %v1132 = vmul.f32 %v1126, %v43
  %v1133 = vmul.f32 %v1129, %v43
  %v1134 = vsub.f32 %v248, %v1130
  %v1135 = vsub.f32 %v252, %v1131
  %v1136 = vsub.f32 %v258, %v1132
  %v1137 = vsub.f32 %v262, %v1133
  %v1138 = vmul.f32 %v1134, %v1134
  %v1139 = vmul.f32 %v1135, %v1135
  %v1140 = vmul.f32 %v1136, %v1136
  %v1141 = vmul.f32 %v1137, %v1137
  %1146 = vrot.lane.b32.xlu0 %v1138, 64
  %v1147 = vpop.permute.xlu0 %1146
  %1148 = vrot.lane.b32.xlu0 %v1139, 64
  %v1149 = vpop.permute.xlu0 %1148
  %1150 = vrot.lane.b32.xlu0 %v1140, 64
  %v1151 = vpop.permute.xlu0 %1150
  %1152 = vrot.lane.b32.xlu0 %v1141, 64
  %v1153 = vpop.permute.xlu0 %1152
  %v1158 = vsel %vm30, %v1147, 0.0
  %1159 = vadd.xlane.f32.xlu0 %v1158
  %v1160 = vpop.xlane.xlu0 %1159
  %v1161 = vsel %vm30, %v1149, 0.0
  %1162 = vadd.xlane.f32.xlu0 %v1161
  %v1163 = vpop.xlane.xlu0 %1162
  %v1164 = vsel %vm30, %v1151, 0.0
  %1165 = vadd.xlane.f32.xlu0 %v1164
  %v1166 = vpop.xlane.xlu0 %1165
  %v1167 = vsel %vm30, %v1153, 0.0
  %1168 = vadd.xlane.f32.xlu0 %v1167
  %v1169 = vpop.xlane.xlu0 %1168
  %v1170 = vmul.f32 %v1160, %v43
  %v1171 = vmul.f32 %v1163, %v43
  %v1172 = vmul.f32 %v1166, %v43
  %v1173 = vmul.f32 %v1169, %v43
  %v1174 = vadd.f32 %v1170, 1e-05
  %v1175 = vadd.f32 %v1171, 1e-05
  %v1176 = vadd.f32 %v1172, 1e-05
  %v1177 = vadd.f32 %v1173, 1e-05
  %v1178 = vrsqrt.pop %v1174
  %v1179 = vrsqrt.pop %v1175
  %v1180 = vrsqrt.pop %v1176
  %v1181 = vrsqrt.pop %v1177
  %v1182 = vmul.f32 %v1134, %v1178
  %v1183 = vmul.f32 %v1135, %v1179
  %v1184 = vmul.f32 %v1136, %v1180
  %v1185 = vmul.f32 %v1137, %v1181
  %v1186 = vmul.f32 %v1182, %v519
  %v1187 = vmul.f32 %v1183, %v519
  %v1188 = vmul.f32 %v1184, %v519
  %v1189 = vmul.f32 %v1185, %v519
  %v1190 = vadd.f32 %v1186, %v526
  %v1191 = vadd.f32 %v1187, %v526
  %v1192 = vadd.f32 %v1188, %v526
  %v1193 = vadd.f32 %v1189, %v526
  %1194 = vrot.lane.b32.xlu0 %v248, 32
  %v1195 = vpop.permute.xlu0 %1194
  %1196 = vrot.lane.b32.xlu0 %v252, 32
  %v1197 = vpop.permute.xlu0 %1196
  %1198 = vrot.lane.b32.xlu0 %v258, 32
  %v1199 = vpop.permute.xlu0 %1198
  %1200 = vrot.lane.b32.xlu0 %v262, 32
  %v1201 = vpop.permute.xlu0 %1200
  %v1206 = vsel %vm30, %v1195, 0.0
  %1207 = vadd.xlane.f32.xlu0 %v1206
  %v1208 = vpop.xlane.xlu0 %1207
  %v1209 = vsel %vm30, %v1197, 0.0
  %1210 = vadd.xlane.f32.xlu0 %v1209
  %v1211 = vpop.xlane.xlu0 %1210
  %v1212 = vsel %vm30, %v1199, 0.0
  %1213 = vadd.xlane.f32.xlu0 %v1212
  %v1214 = vpop.xlane.xlu0 %1213
  %v1215 = vsel %vm30, %v1201, 0.0
  %1216 = vadd.xlane.f32.xlu0 %v1215
  %v1217 = vpop.xlane.xlu0 %1216
  %v1218 = vmul.f32 %v1208, %v43
  %v1219 = vmul.f32 %v1211, %v43
  %v1220 = vmul.f32 %v1214, %v43
  %v1221 = vmul.f32 %v1217, %v43
  %v1222 = vsub.f32 %v248, %v1218
  %v1223 = vsub.f32 %v252, %v1219
  %v1224 = vsub.f32 %v258, %v1220
  %v1225 = vsub.f32 %v262, %v1221
  %v1226 = vmul.f32 %v1222, %v1222
  %v1227 = vmul.f32 %v1223, %v1223
  %v1228 = vmul.f32 %v1224, %v1224
  %v1229 = vmul.f32 %v1225, %v1225
  %1234 = vrot.lane.b32.xlu0 %v1226, 32
  %v1235 = vpop.permute.xlu0 %1234
  %1236 = vrot.lane.b32.xlu0 %v1227, 32
  %v1237 = vpop.permute.xlu0 %1236
  %1238 = vrot.lane.b32.xlu0 %v1228, 32
  %v1239 = vpop.permute.xlu0 %1238
  %1240 = vrot.lane.b32.xlu0 %v1229, 32
  %v1241 = vpop.permute.xlu0 %1240
  %v1246 = vsel %vm30, %v1235, 0.0
  %1247 = vadd.xlane.f32.xlu0 %v1246
  %v1248 = vpop.xlane.xlu0 %1247
  %v1249 = vsel %vm30, %v1237, 0.0
  %1250 = vadd.xlane.f32.xlu0 %v1249
  %v1251 = vpop.xlane.xlu0 %1250
  %v1252 = vsel %vm30, %v1239, 0.0
  %1253 = vadd.xlane.f32.xlu0 %v1252
  %v1254 = vpop.xlane.xlu0 %1253
  %v1255 = vsel %vm30, %v1241, 0.0
  %1256 = vadd.xlane.f32.xlu0 %v1255
  %v1257 = vpop.xlane.xlu0 %1256
  %v1258 = vmul.f32 %v1248, %v43
  %v1259 = vmul.f32 %v1251, %v43
  %v1260 = vmul.f32 %v1254, %v43
  %v1261 = vmul.f32 %v1257, %v43
  %v1262 = vadd.f32 %v1258, 1e-05
  %v1263 = vadd.f32 %v1259, 1e-05
  %v1264 = vadd.f32 %v1260, 1e-05
  %v1265 = vadd.f32 %v1261, 1e-05
  %v1266 = vrsqrt.pop %v1262
  %v1267 = vrsqrt.pop %v1263
  %v1268 = vrsqrt.pop %v1264
  %v1269 = vrsqrt.pop %v1265
  %v1270 = vmul.f32 %v1222, %v1266
  %v1271 = vmul.f32 %v1223, %v1267
  %v1272 = vmul.f32 %v1224, %v1268
  %v1273 = vmul.f32 %v1225, %v1269
  %v1274 = vmul.f32 %v1270, %v613
  %v1275 = vmul.f32 %v1271, %v613
  %v1276 = vmul.f32 %v1272, %v613
  %v1277 = vmul.f32 %v1273, %v613
  %v1278 = vadd.f32 %v1274, %v620
  %v1279 = vadd.f32 %v1275, %v620
  %v1280 = vadd.f32 %v1276, %v620
  %v1281 = vadd.f32 %v1277, %v620
  %v1282 = vsel %vm30, %v250, 0.0
  %1283 = vadd.xlane.f32.xlu0 %v1282
  %v1284 = vpop.xlane.xlu0 %1283
  %v1285 = vsel %vm30, %v254, 0.0
  %1286 = vadd.xlane.f32.xlu0 %v1285
  %v1287 = vpop.xlane.xlu0 %1286
  %v1288 = vsel %vm30, %v260, 0.0
  %1289 = vadd.xlane.f32.xlu0 %v1288
  %v1290 = vpop.xlane.xlu0 %1289
  %v1291 = vsel %vm30, %v264, 0.0
  %1292 = vadd.xlane.f32.xlu0 %v1291
  %v1293 = vpop.xlane.xlu0 %1292
  %v1294 = vmul.f32 %v1284, %v43
  %v1295 = vmul.f32 %v1287, %v43
  %v1296 = vmul.f32 %v1290, %v43
  %v1297 = vmul.f32 %v1293, %v43
  %v1298 = vsub.f32 %v250, %v1294
  %v1299 = vsub.f32 %v254, %v1295
  %v1300 = vsub.f32 %v260, %v1296
  %v1301 = vsub.f32 %v264, %v1297
  %v1302 = vmul.f32 %v1298, %v1298
  %v1303 = vmul.f32 %v1299, %v1299
  %v1304 = vmul.f32 %v1300, %v1300
  %v1305 = vmul.f32 %v1301, %v1301
  %v1306 = vsel %vm30, %v1302, 0.0
  %1307 = vadd.xlane.f32.xlu0 %v1306
  %v1308 = vpop.xlane.xlu0 %1307
  %v1309 = vsel %vm30, %v1303, 0.0
  %1310 = vadd.xlane.f32.xlu0 %v1309
  %v1311 = vpop.xlane.xlu0 %1310
  %v1312 = vsel %vm30, %v1304, 0.0
  %1313 = vadd.xlane.f32.xlu0 %v1312
  %v1314 = vpop.xlane.xlu0 %1313
  %v1315 = vsel %vm30, %v1305, 0.0
  %1316 = vadd.xlane.f32.xlu0 %v1315
  %v1317 = vpop.xlane.xlu0 %1316
  %v1318 = vmul.f32 %v1308, %v43
  %v1319 = vmul.f32 %v1311, %v43
  %v1320 = vmul.f32 %v1314, %v43
  %v1321 = vmul.f32 %v1317, %v43
  %v1322 = vadd.f32 %v1318, 1e-05
  %v1323 = vadd.f32 %v1319, 1e-05
  %v1324 = vadd.f32 %v1320, 1e-05
  %v1325 = vadd.f32 %v1321, 1e-05
  %v1326 = vrsqrt.pop %v1322
  %v1327 = vrsqrt.pop %v1323
  %v1328 = vrsqrt.pop %v1324
  %v1329 = vrsqrt.pop %v1325
  %v1330 = vmul.f32 %v1298, %v1326
  %v1331 = vmul.f32 %v1299, %v1327
  %v1332 = vmul.f32 %v1300, %v1328
  %v1333 = vmul.f32 %v1301, %v1329
  %v1334 = vmul.f32 %v1330, %v324
  %v1335 = vmul.f32 %v1331, %v324
  %v1336 = vmul.f32 %v1332, %v324
  %v1337 = vmul.f32 %v1333, %v324
  %v1338 = vadd.f32 %v1334, %v334
  %v1339 = vadd.f32 %v1335, %v334
  %v1340 = vadd.f32 %v1336, %v334
  %v1341 = vadd.f32 %v1337, %v334
  %1346 = vrot.lane.b32.xlu0 %v250, 96
  %v1347 = vpop.permute.xlu0 %1346
  %1348 = vrot.lane.b32.xlu0 %v254, 96
  %v1349 = vpop.permute.xlu0 %1348
  %1350 = vrot.lane.b32.xlu0 %v260, 96
  %v1351 = vpop.permute.xlu0 %1350
  %1352 = vrot.lane.b32.xlu0 %v264, 96
  %v1353 = vpop.permute.xlu0 %1352
  %v1358 = vsel %vm30, %v1347, 0.0
  %1359 = vadd.xlane.f32.xlu0 %v1358
  %v1360 = vpop.xlane.xlu0 %1359
  %v1361 = vsel %vm30, %v1349, 0.0
  %1362 = vadd.xlane.f32.xlu0 %v1361
  %v1363 = vpop.xlane.xlu0 %1362
  %v1364 = vsel %vm30, %v1351, 0.0
  %1365 = vadd.xlane.f32.xlu0 %v1364
  %v1366 = vpop.xlane.xlu0 %1365
  %v1367 = vsel %vm30, %v1353, 0.0
  %1368 = vadd.xlane.f32.xlu0 %v1367
  %v1369 = vpop.xlane.xlu0 %1368
  %v1370 = vmul.f32 %v1360, %v43
  %v1371 = vmul.f32 %v1363, %v43
  %v1372 = vmul.f32 %v1366, %v43
  %v1373 = vmul.f32 %v1369, %v43
  %v1374 = vsub.f32 %v250, %v1370
  %v1375 = vsub.f32 %v254, %v1371
  %v1376 = vsub.f32 %v260, %v1372
  %v1377 = vsub.f32 %v264, %v1373
  %v1378 = vmul.f32 %v1374, %v1374
  %v1379 = vmul.f32 %v1375, %v1375
  %v1380 = vmul.f32 %v1376, %v1376
  %v1381 = vmul.f32 %v1377, %v1377
  %1386 = vrot.lane.b32.xlu0 %v1378, 96
  %v1387 = vpop.permute.xlu0 %1386
  %1388 = vrot.lane.b32.xlu0 %v1379, 96
  %v1389 = vpop.permute.xlu0 %1388
  %1390 = vrot.lane.b32.xlu0 %v1380, 96
  %v1391 = vpop.permute.xlu0 %1390
  %1392 = vrot.lane.b32.xlu0 %v1381, 96
  %v1393 = vpop.permute.xlu0 %1392
  %v1398 = vsel %vm30, %v1387, 0.0
  %1399 = vadd.xlane.f32.xlu0 %v1398
  %v1400 = vpop.xlane.xlu0 %1399
  %v1401 = vsel %vm30, %v1389, 0.0
  %1402 = vadd.xlane.f32.xlu0 %v1401
  %v1403 = vpop.xlane.xlu0 %1402
  %v1404 = vsel %vm30, %v1391, 0.0
  %1405 = vadd.xlane.f32.xlu0 %v1404
  %v1406 = vpop.xlane.xlu0 %1405
  %v1407 = vsel %vm30, %v1393, 0.0
  %1408 = vadd.xlane.f32.xlu0 %v1407
  %v1409 = vpop.xlane.xlu0 %1408
  %v1410 = vmul.f32 %v1400, %v43
  %v1411 = vmul.f32 %v1403, %v43
  %v1412 = vmul.f32 %v1406, %v43
  %v1413 = vmul.f32 %v1409, %v43
  %v1414 = vadd.f32 %v1410, 1e-05
  %v1415 = vadd.f32 %v1411, 1e-05
  %v1416 = vadd.f32 %v1412, 1e-05
  %v1417 = vadd.f32 %v1413, 1e-05
  %v1418 = vrsqrt.pop %v1414
  %v1419 = vrsqrt.pop %v1415
  %v1420 = vrsqrt.pop %v1416
  %v1421 = vrsqrt.pop %v1417
  %v1422 = vmul.f32 %v1374, %v1418
  %v1423 = vmul.f32 %v1375, %v1419
  %v1424 = vmul.f32 %v1376, %v1420
  %v1425 = vmul.f32 %v1377, %v1421
  %v1426 = vmul.f32 %v1422, %v425
  %v1427 = vmul.f32 %v1423, %v425
  %v1428 = vmul.f32 %v1424, %v425
  %v1429 = vmul.f32 %v1425, %v425
  %v1430 = vadd.f32 %v1426, %v432
  %v1431 = vadd.f32 %v1427, %v432
  %v1432 = vadd.f32 %v1428, %v432
  %v1433 = vadd.f32 %v1429, %v432
  %1434 = vrot.lane.b32.xlu0 %v250, 64
  %v1435 = vpop.permute.xlu0 %1434
  %1436 = vrot.lane.b32.xlu0 %v254, 64
  %v1437 = vpop.permute.xlu0 %1436
  %1438 = vrot.lane.b32.xlu0 %v260, 64
  %v1439 = vpop.permute.xlu0 %1438
  %1440 = vrot.lane.b32.xlu0 %v264, 64
  %v1441 = vpop.permute.xlu0 %1440
  %v1446 = vsel %vm30, %v1435, 0.0
  %1447 = vadd.xlane.f32.xlu0 %v1446
  %v1448 = vpop.xlane.xlu0 %1447
  %v1449 = vsel %vm30, %v1437, 0.0
  %1450 = vadd.xlane.f32.xlu0 %v1449
  %v1451 = vpop.xlane.xlu0 %1450
  %v1452 = vsel %vm30, %v1439, 0.0
  %1453 = vadd.xlane.f32.xlu0 %v1452
  %v1454 = vpop.xlane.xlu0 %1453
  %v1455 = vsel %vm30, %v1441, 0.0
  %1456 = vadd.xlane.f32.xlu0 %v1455
  %v1457 = vpop.xlane.xlu0 %1456
  %v1458 = vmul.f32 %v1448, %v43
  %v1459 = vmul.f32 %v1451, %v43
  %v1460 = vmul.f32 %v1454, %v43
  %v1461 = vmul.f32 %v1457, %v43
  %v1462 = vsub.f32 %v250, %v1458
  %v1463 = vsub.f32 %v254, %v1459
  %v1464 = vsub.f32 %v260, %v1460
  %v1465 = vsub.f32 %v264, %v1461
  %v1466 = vmul.f32 %v1462, %v1462
  %v1467 = vmul.f32 %v1463, %v1463
  %v1468 = vmul.f32 %v1464, %v1464
  %v1469 = vmul.f32 %v1465, %v1465
  %1474 = vrot.lane.b32.xlu0 %v1466, 64
  %v1475 = vpop.permute.xlu0 %1474
  %1476 = vrot.lane.b32.xlu0 %v1467, 64
  %v1477 = vpop.permute.xlu0 %1476
  %1478 = vrot.lane.b32.xlu0 %v1468, 64
  %v1479 = vpop.permute.xlu0 %1478
  %1480 = vrot.lane.b32.xlu0 %v1469, 64
  %v1481 = vpop.permute.xlu0 %1480
  %v1486 = vsel %vm30, %v1475, 0.0
  %1487 = vadd.xlane.f32.xlu0 %v1486
  %v1488 = vpop.xlane.xlu0 %1487
  %v1489 = vsel %vm30, %v1477, 0.0
  %1490 = vadd.xlane.f32.xlu0 %v1489
  %v1491 = vpop.xlane.xlu0 %1490
  %v1492 = vsel %vm30, %v1479, 0.0
  %1493 = vadd.xlane.f32.xlu0 %v1492
  %v1494 = vpop.xlane.xlu0 %1493
  %v1495 = vsel %vm30, %v1481, 0.0
  %1496 = vadd.xlane.f32.xlu0 %v1495
  %v1497 = vpop.xlane.xlu0 %1496
  %v1498 = vmul.f32 %v1488, %v43
  %v1499 = vmul.f32 %v1491, %v43
  %v1500 = vmul.f32 %v1494, %v43
  %v1501 = vmul.f32 %v1497, %v43
  %v1502 = vadd.f32 %v1498, 1e-05
  %v1503 = vadd.f32 %v1499, 1e-05
  %v1504 = vadd.f32 %v1500, 1e-05
  %v1505 = vadd.f32 %v1501, 1e-05
  %v1506 = vrsqrt.pop %v1502
  %v1507 = vrsqrt.pop %v1503
  %v1508 = vrsqrt.pop %v1504
  %v1509 = vrsqrt.pop %v1505
  %v1510 = vmul.f32 %v1462, %v1506
  %v1511 = vmul.f32 %v1463, %v1507
  %v1512 = vmul.f32 %v1464, %v1508
  %v1513 = vmul.f32 %v1465, %v1509
  %v1514 = vmul.f32 %v1510, %v519
  %v1515 = vmul.f32 %v1511, %v519
  %v1516 = vmul.f32 %v1512, %v519
  %v1517 = vmul.f32 %v1513, %v519
  %v1518 = vadd.f32 %v1514, %v526
  %v1519 = vadd.f32 %v1515, %v526
  %v1520 = vadd.f32 %v1516, %v526
  %v1521 = vadd.f32 %v1517, %v526
  %1522 = vrot.lane.b32.xlu0 %v250, 32
  %v1523 = vpop.permute.xlu0 %1522
  %1524 = vrot.lane.b32.xlu0 %v254, 32
  %v1525 = vpop.permute.xlu0 %1524
  %1526 = vrot.lane.b32.xlu0 %v260, 32
  %v1527 = vpop.permute.xlu0 %1526
  %1528 = vrot.lane.b32.xlu0 %v264, 32
  %v1529 = vpop.permute.xlu0 %1528
  %v1534 = vsel %vm30, %v1523, 0.0
  %1535 = vadd.xlane.f32.xlu0 %v1534
  %v1536 = vpop.xlane.xlu0 %1535
  %v1537 = vsel %vm30, %v1525, 0.0
  %1538 = vadd.xlane.f32.xlu0 %v1537
  %v1539 = vpop.xlane.xlu0 %1538
  %v1540 = vsel %vm30, %v1527, 0.0
  %1541 = vadd.xlane.f32.xlu0 %v1540
  %v1542 = vpop.xlane.xlu0 %1541
  %v1543 = vsel %vm30, %v1529, 0.0
  %1544 = vadd.xlane.f32.xlu0 %v1543
  %v1545 = vpop.xlane.xlu0 %1544
  %v1546 = vmul.f32 %v1536, %v43
  %v1547 = vmul.f32 %v1539, %v43
  %v1548 = vmul.f32 %v1542, %v43
  %v1549 = vmul.f32 %v1545, %v43
  %v1550 = vsub.f32 %v250, %v1546
  %v1551 = vsub.f32 %v254, %v1547
  %v1552 = vsub.f32 %v260, %v1548
  %v1553 = vsub.f32 %v264, %v1549
  %v1554 = vmul.f32 %v1550, %v1550
  %v1555 = vmul.f32 %v1551, %v1551
  %v1556 = vmul.f32 %v1552, %v1552
  %v1557 = vmul.f32 %v1553, %v1553
  %1562 = vrot.lane.b32.xlu0 %v1554, 32
  %v1563 = vpop.permute.xlu0 %1562
  %1564 = vrot.lane.b32.xlu0 %v1555, 32
  %v1565 = vpop.permute.xlu0 %1564
  %1566 = vrot.lane.b32.xlu0 %v1556, 32
  %v1567 = vpop.permute.xlu0 %1566
  %1568 = vrot.lane.b32.xlu0 %v1557, 32
  %v1569 = vpop.permute.xlu0 %1568
  %v1574 = vsel %vm30, %v1563, 0.0
  %1575 = vadd.xlane.f32.xlu0 %v1574
  %v1576 = vpop.xlane.xlu0 %1575
  %v1577 = vsel %vm30, %v1565, 0.0
  %1578 = vadd.xlane.f32.xlu0 %v1577
  %v1579 = vpop.xlane.xlu0 %1578
  %v1580 = vsel %vm30, %v1567, 0.0
  %1581 = vadd.xlane.f32.xlu0 %v1580
  %v1582 = vpop.xlane.xlu0 %1581
  %v1583 = vsel %vm30, %v1569, 0.0
  %1584 = vadd.xlane.f32.xlu0 %v1583
  %v1585 = vpop.xlane.xlu0 %1584
  %v1586 = vmul.f32 %v1576, %v43
  %v1587 = vmul.f32 %v1579, %v43
  %v1588 = vmul.f32 %v1582, %v43
  %v1589 = vmul.f32 %v1585, %v43
  %v1590 = vadd.f32 %v1586, 1e-05
  %v1591 = vadd.f32 %v1587, 1e-05
  %v1592 = vadd.f32 %v1588, 1e-05
  %v1593 = vadd.f32 %v1589, 1e-05
  %v1594 = vrsqrt.pop %v1590
  %v1595 = vrsqrt.pop %v1591
  %v1596 = vrsqrt.pop %v1592
  %v1597 = vrsqrt.pop %v1593
  %v1598 = vmul.f32 %v1550, %v1594
  %v1599 = vmul.f32 %v1551, %v1595
  %v1600 = vmul.f32 %v1552, %v1596
  %v1601 = vmul.f32 %v1553, %v1597
  %v1602 = vmul.f32 %v1598, %v613
  %v1603 = vmul.f32 %v1599, %v613
  %v1604 = vmul.f32 %v1600, %v613
  %v1605 = vmul.f32 %v1601, %v613
  %v1606 = vadd.f32 %v1602, %v620
  %v1607 = vadd.f32 %v1603, %v620
  %v1608 = vadd.f32 %v1604, %v620
  %v1609 = vadd.f32 %v1605, %v620
  %v1610 = vsel %vm30, %v336, %v434
  %v1611 = vsel %vm30, %v337, %v435
  %v1612 = vsel %vm30, %v338, %v436
  %v1613 = vsel %vm30, %v339, %v437
  %vm1614 = vcmask 523264
  %v1615 = vsel %vm1614, %v1610, %v528
  %v1616 = vsel %vm1614, %v1611, %v529
  %v1617 = vsel %vm1614, %v1612, %v530
  %v1618 = vsel %vm1614, %v1613, %v531
  %vm1619 = vcmask 785408
  %v1620 = vsel %vm1619, %v1615, %v622
  %v1621 = vsel %vm1619, %v1616, %v623
  %v1622 = vsel %vm1619, %v1617, %v624
  %v1623 = vsel %vm1619, %v1618, %v625
  %v1624 = vsel %vm30, %v682, %v774
  %v1625 = vsel %vm30, %v683, %v775
  %v1626 = vsel %vm30, %v684, %v776
  %v1627 = vsel %vm30, %v685, %v777
  %v1628 = vsel %vm1614, %v1624, %v862
  %v1629 = vsel %vm1614, %v1625, %v863
  %v1630 = vsel %vm1614, %v1626, %v864
  %v1631 = vsel %vm1614, %v1627, %v865
  %v1632 = vsel %vm1619, %v1628, %v950
  %v1633 = vsel %vm1619, %v1629, %v951
  %v1634 = vsel %vm1619, %v1630, %v952
  %v1635 = vsel %vm1619, %v1631, %v953
  %v1636 = vsel %vm30, %v1010, %v1102
  %v1637 = vsel %vm30, %v1011, %v1103
  %v1638 = vsel %vm30, %v1012, %v1104
  %v1639 = vsel %vm30, %v1013, %v1105
  %v1640 = vsel %vm1614, %v1636, %v1190
  %v1641 = vsel %vm1614, %v1637, %v1191
  %v1642 = vsel %vm1614, %v1638, %v1192
  %v1643 = vsel %vm1614, %v1639, %v1193
  %v1644 = vsel %vm1619, %v1640, %v1278
  %v1645 = vsel %vm1619, %v1641, %v1279
  %v1646 = vsel %vm1619, %v1642, %v1280
  %v1647 = vsel %vm1619, %v1643, %v1281
  %v1648 = vsel %vm30, %v1338, %v1430
  %v1649 = vsel %vm30, %v1339, %v1431
  %v1650 = vsel %vm30, %v1340, %v1432
  %v1651 = vsel %vm30, %v1341, %v1433
  %v1652 = vsel %vm1614, %v1648, %v1518
  %v1653 = vsel %vm1614, %v1649, %v1519
  %v1654 = vsel %vm1614, %v1650, %v1520
  %v1655 = vsel %vm1614, %v1651, %v1521
  %v1656 = vsel %vm1619, %v1652, %v1606
  %v1657 = vsel %vm1619, %v1653, %v1607
  %v1658 = vsel %vm1619, %v1654, %v1608
  %v1659 = vsel %vm1619, %v1655, %v1609
  %1660 = vst [vmem:[%s6] sm:$0xff] %v1620
  %1661 = vst [vmem:[%s6 + $0x8] sm:$0xff] %v1632
  %1662 = vst [vmem:[%s6 + $0x10] sm:$0xff] %v1644
  %1663 = vst [vmem:[%s6 + $0x18] sm:$0xff] %v1656
  %1664 = vst [vmem:[%s6 + $0x20] sm:$0xff] %v1621
  %1665 = vst [vmem:[%s6 + $0x28] sm:$0xff] %v1633
  %1666 = vst [vmem:[%s6 + $0x30] sm:$0xff] %v1645
  %1667 = vst [vmem:[%s6 + $0x38] sm:$0xff] %v1657
  %1668 = vst [vmem:[%s6 + $0x40] sm:$0xff] %v1622
  %1669 = vst [vmem:[%s6 + $0x48] sm:$0xff] %v1634
  %1670 = vst [vmem:[%s6 + $0x50] sm:$0xff] %v1646
  %1671 = vst [vmem:[%s6 + $0x58] sm:$0xff] %v1658
  %1672 = vst [vmem:[%s6 + $0x60] sm:$0xff] %v1623
  %1673 = vst [vmem:[%s6 + $0x68] sm:$0xff] %v1635
  %1674 = vst [vmem:[%s6 + $0x70] sm:$0xff] %v1647
  %1675 = vst [vmem:[%s6 + $0x78] sm:$0xff] %v1659
  // Predicated region
  $region26: #{swin_unet_forward.22} parent=0 // pred_check
    _
  $region27: #{swin_unet_forward.22} parent=0 // pred_check_branch
    %1677 = sbr.rel (0) target = $region29
  $region28: #{swin_unet_forward.22} parent=0 // pred_region
    _
  $region29: #{swin_unet_forward.22} parent=0 // pred_fallthru
    _
  // Predicated region
  $region30: #{swin_unet_forward.22} parent=0 // pred_check
    _
  $region31: #{swin_unet_forward.22} parent=0 // pred_check_branch
    %1679 = sbr.rel (0) target = $region33
  $region32: #{swin_unet_forward.22} parent=0 // pred_region
    _
  $region33: #{swin_unet_forward.22} parent=0 // pred_fallthru
    _

</llo_original>
